<compile_context>
chip_gen: v5e
topology: v5e:2x2
jax: 0.10.0
libtpu: 0.0.40
codegen_flags: <defaults>
</compile_context>

<pallas_src>
import functools

import jax
import jax.numpy as jnp
from jax.experimental import pallas as pl
from jax.experimental.pallas import tpu as pltpu


def _xunits_kernel(x_ref, w_ref, b_ref, o_ref, xp_ref, *, H, W, C, K, pad, HT, WL):
    # x_ref : (1, H, W, C)             input tile, channels-last (C on lanes)
    # w_ref : (K*K, 1, C) f32 VMEM     per-tap, per-channel weight vectors
    # b_ref : (1, C)      f32 VMEM     per-channel bias
    # o_ref : (1, H, W, C)             output tile
    # xp_ref: (H+2*pad, WL+W+pad, C)   f32 VMEM scratch: aligned left halo WL,
    #                                  zero halo strips + centred input
    WP = WL + W + pad

    # ---- build the SAME-padded slab: zero ONLY the halo strips, then write the
    #      centre (start column WL is a multiple of 8 -> unmasked stores).
    xf = x_ref[0].astype(jnp.float32)                            # single upfront cast
    if pad > 0:
        xp_ref[0:pad, :, :] = jnp.zeros((pad, WP, C), jnp.float32)          # top rows
        xp_ref[pad + H:pad + H + pad, :, :] = jnp.zeros((pad, WP, C), jnp.float32)
        xp_ref[pad:pad + H, 0:WL, :] = jnp.zeros((H, WL, C), jnp.float32)   # left cols
        xp_ref[pad:pad + H, WL + W:WP, :] = jnp.zeros((H, pad, C), jnp.float32)
    xp_ref[pad:pad + H, WL:WL + W, :] = xf                        # centre (aligned)

    # ---- hoist weight / bias loads and their broadcasts out of all loops.
    w_all = w_ref[...]                                            # (K*K, 1, C)
    w_taps = [w_all[t] for t in range(K * K)]                     # each (1, C)
    bias_tile = jnp.broadcast_to(b_ref[...], (HT, W, C)).astype(jnp.float32)

    # ---- depthwise KxK conv in HT-row chunks (accumulator stays in-register).
    for h0 in range(0, H, HT):
        acc = bias_tile
        for kh in range(K):
            rows = xp_ref[h0 + kh:h0 + kh + HT, :, :]             # one slab load / kh
            for kw in range(K):
                c0 = WL - pad + kw
                acc = acc + rows[:, c0:c0 + W, :] * w_taps[kh * K + kw]
        # sigmoid: exp -> EUP, approximate reciprocal -> EUP (frees the VALU slot)
        a = pl.reciprocal(1.0 + jnp.exp(-acc), approx=True)
        xc = xp_ref[pad + h0:pad + h0 + HT, WL:WL + W, :]         # aligned gate load
        o_ref[0, h0:h0 + HT, :, :] = (xc * a).astype(o_ref.dtype)


def xunits_forward(x, weight, bias, kernel_size=7):
    """x: (N, C, H, W); weight: (C, K, K) depthwise; bias: (C,). Returns NCHW."""
    N, C, H, W = x.shape
    K = int(kernel_size)
    assert K % 2 == 1, "xUnitS Pallas kernel implements SAME padding for odd K only"
    pad = K // 2
    # largest divisor of H that is <= 8: bounds accumulator live range, no spills
    HT = max(d for d in range(1, min(H, 8) + 1) if H % d == 0)
    # sublane-aligned left halo (multiple of 8) so the centre write is unmasked
    WL = ((pad + 7) // 8) * 8 if pad > 0 else 0

    # ---- layout plumbing (wrapper side): channels-last, C on the lane axis.
    x_nhwc = jnp.transpose(x, (0, 2, 3, 1))                               # (N, H, W, C)
    w_r = jnp.transpose(weight, (1, 2, 0)).reshape(K * K, 1, C).astype(jnp.float32)
    b_r = bias.reshape(1, C).astype(jnp.float32)

    # ---- lane packing: fold f batch images into channels so lanes are 128-dense.
    f = 1
    if C < 128 and 128 % C == 0:
        f = 128 // C
        while f > 1 and N % f != 0:
            f //= 2
    if f > 1:
        Np, Cp = N // f, f * C
        x_nhwc = jnp.transpose(x_nhwc.reshape(Np, f, H, W, C),
                               (0, 2, 3, 1, 4)).reshape(Np, H, W, Cp)
        w_r = jnp.tile(w_r, (1, 1, f))
        b_r = jnp.tile(b_r, (1, f))
    else:
        Np, Cp = N, C

    # ---- VMEM budget: double-buffered in/out blocks + scratch + params.
    itemsize = jnp.dtype(x.dtype).itemsize
    WP = WL + W + pad
    block_b = H * W * Cp * itemsize
    scratch_b = (H + 2 * pad) * WP * Cp * 4
    param_b = (K * K + 1) * Cp * 4
    needed = 2 * (2 * block_b + param_b) + scratch_b
    vmem_limit = int(min(max(2 * needed + (4 << 20), 32 << 20), 64 << 20))

    kernel = functools.partial(_xunits_kernel, H=H, W=W, C=Cp, K=K, pad=pad,
                               HT=HT, WL=WL)
    y_p = pl.pallas_call(
        kernel,
        out_shape=jax.ShapeDtypeStruct((Np, H, W, Cp), x.dtype),
        grid=(Np,),
        in_specs=[
            # one (packed) batch slab per grid step
            pl.BlockSpec((1, H, W, Cp), lambda n: (n, 0, 0, 0)),
            # depthwise weights / bias: whole arrays, constant block -> DMA'd once
            pl.BlockSpec((K * K, 1, Cp), lambda n: (0, 0, 0)),
            pl.BlockSpec((1, Cp), lambda n: (0, 0)),
        ],
        out_specs=pl.BlockSpec((1, H, W, Cp), lambda n: (n, 0, 0, 0)),
        scratch_shapes=[pltpu.VMEM((H + 2 * pad, WP, Cp), jnp.float32)],
        compiler_params=pltpu.CompilerParams(
            dimension_semantics=("parallel",),        # v7x: both TensorCores
            vmem_limit_bytes=vmem_limit),
    )(x_nhwc, w_r, b_r)

    # ---- un-pack lanes and go back to NCHW.
    if f > 1:
        y_nhwc = jnp.transpose(y_p.reshape(Np, H, W, f, C),
                               (0, 3, 1, 2, 4)).reshape(N, H, W, C)
    else:
        y_nhwc = y_p
    return jnp.transpose(y_nhwc, (0, 3, 1, 2))


def _reference(x, weight, bias):
    """Plain-JAX reference: depthwise conv (SAME) -> sigmoid -> gate."""
    C = x.shape[1]
    K = weight.shape[-1]
    w = weight.reshape(C, 1, K, K)            # (out=C, in/groups=1, K, K)
    a = jax.lax.conv_general_dilated(
        x, w, window_strides=(1, 1), padding="SAME",
        dimension_numbers=("NCHW", "OIHW", "NCHW"),
        feature_group_count=C)
    a = a + bias[None, :, None, None]
    return x * jax.nn.sigmoid(a)


if __name__ == "__main__":
    # num_features=64 (module default), K=7; N=4 so lane packing (f=2) still
    # leaves >= 2 grid steps for v7x's two TensorCores.
    N, C, H, W = 4, 64, 16, 16
    K = 7

    key = jax.random.PRNGKey(0)
    kx, kw, kb = jax.random.split(key, 3)
    x = jax.random.normal(kx, (N, C, H, W), dtype=jnp.float32)

    # Deterministic init mimicking nn.Conv2d defaults (fan_in = 1 * K * K).
    bound = 1.0 / jnp.sqrt(float(K * K))
    weight = jax.random.uniform(kw, (C, K, K), minval=-bound, maxval=bound,
                                dtype=jnp.float32)
    bias = jax.random.uniform(kb, (C,), minval=-bound, maxval=bound,
                              dtype=jnp.float32)

    y = xunits_forward(x, weight, bias, kernel_size=K)
    y = jax.block_until_ready(y)

    y_ref = _reference(x, weight, bias)
    assert y.shape == (N, C, H, W)
    # tolerance accounts for the approximate EUP reciprocal in the sigmoid
    assert jnp.allclose(y, y_ref, atol=5e-3, rtol=5e-3), "mismatch vs reference"

    print("KERNEL_OK")
</pallas_src>

<mosaic_0001>
module attributes {stable_mosaic.version = 11 : i64} {
  func.func @_xunits_kernel(%arg0: i32, %arg1: memref<1x16x16x128xf32, #tpu.memory_space<vmem>>, %arg2: memref<49x1x128xf32, #tpu.memory_space<vmem>>, %arg3: memref<1x128xf32, #tpu.memory_space<vmem>>, %arg4: memref<1x16x16x128xf32, #tpu.memory_space<vmem>>, %arg5: memref<22x27x128xf32, #tpu.memory_space<vmem>>) attributes {dimension_semantics = [#tpu.dimension_semantics<parallel>], iteration_bounds = array<i64: 2>, scalar_prefetch = 0 : i64, scratch_operands = 1 : i64, tpu.core_type = #tpu.core_type<tc>, window_params = [{transform_indices = @transform_0, window_bounds = array<i64: 1, 16, 16, 128>}, {pipeline_mode = #tpu.pipeline_mode<synchronous>, transform_indices = @transform_1, window_bounds = array<i64: 49, 1, 128>}, {pipeline_mode = #tpu.pipeline_mode<synchronous>, transform_indices = @transform_2, window_bounds = array<i64: 1, 128>}, {transform_indices = @transform_3, window_bounds = array<i64: 1, 16, 16, 128>}]} {
    %c0 = arith.constant 0 : index
    %c0_0 = arith.constant 0 : index
    %c0_1 = arith.constant 0 : index
    %c0_2 = arith.constant 0 : index
    %0 = vector.load %arg1[%c0, %c0_0, %c0_1, %c0_2] : memref<1x16x16x128xf32, #tpu.memory_space<vmem>>, vector<1x16x16x128xf32>
    %1 = vector.shape_cast %0 : vector<1x16x16x128xf32> to vector<16x16x128xf32>
    %cst = arith.constant 0.000000e+00 : f32
    %2 = vector.broadcast %cst : f32 to vector<3x27x128xf32>
    %c0_3 = arith.constant 0 : index
    %c0_4 = arith.constant 0 : index
    %c0_5 = arith.constant 0 : index
    %3 = vector.load %arg5[%c0_3, %c0_4, %c0_5] : memref<22x27x128xf32, #tpu.memory_space<vmem>>, vector<3x27x128xf32>
    tpu.vector_store %arg5[%c0_3, %c0_4, %c0_5], %2 {strides = array<i32>} : memref<22x27x128xf32, #tpu.memory_space<vmem>>, vector<3x27x128xf32>,
    %cst_6 = arith.constant 0.000000e+00 : f32
    %4 = vector.broadcast %cst_6 : f32 to vector<3x27x128xf32>
    %c19 = arith.constant 19 : index
    %c0_7 = arith.constant 0 : index
    %c0_8 = arith.constant 0 : index
    %5 = vector.load %arg5[%c19, %c0_7, %c0_8] : memref<22x27x128xf32, #tpu.memory_space<vmem>>, vector<3x27x128xf32>
    tpu.vector_store %arg5[%c19, %c0_7, %c0_8], %4 {strides = array<i32>} : memref<22x27x128xf32, #tpu.memory_space<vmem>>, vector<3x27x128xf32>,
    %cst_9 = arith.constant 0.000000e+00 : f32
    %6 = vector.broadcast %cst_9 : f32 to vector<16x8x128xf32>
    %c3 = arith.constant 3 : index
    %c0_10 = arith.constant 0 : index
    %c0_11 = arith.constant 0 : index
    %7 = vector.load %arg5[%c3, %c0_10, %c0_11] : memref<22x27x128xf32, #tpu.memory_space<vmem>>, vector<16x8x128xf32>
    tpu.vector_store %arg5[%c3, %c0_10, %c0_11], %6 {strides = array<i32>} : memref<22x27x128xf32, #tpu.memory_space<vmem>>, vector<16x8x128xf32>,
    %cst_12 = arith.constant 0.000000e+00 : f32
    %8 = vector.broadcast %cst_12 : f32 to vector<16x3x128xf32>
    %c3_13 = arith.constant 3 : index
    %c24 = arith.constant 24 : index
    %c0_14 = arith.constant 0 : index
    %9 = vector.load %arg5[%c3_13, %c24, %c0_14] : memref<22x27x128xf32, #tpu.memory_space<vmem>>, vector<16x3x128xf32>
    tpu.vector_store %arg5[%c3_13, %c24, %c0_14], %8 {strides = array<i32>} : memref<22x27x128xf32, #tpu.memory_space<vmem>>, vector<16x3x128xf32>,
    %c3_15 = arith.constant 3 : index
    %c8 = arith.constant 8 : index
    %c0_16 = arith.constant 0 : index
    %10 = vector.load %arg5[%c3_15, %c8, %c0_16] : memref<22x27x128xf32, #tpu.memory_space<vmem>>, vector<16x16x128xf32>
    tpu.vector_store %arg5[%c3_15, %c8, %c0_16], %1 {strides = array<i32>} : memref<22x27x128xf32, #tpu.memory_space<vmem>>, vector<16x16x128xf32>,
    %c0_17 = arith.constant 0 : index
    %c0_18 = arith.constant 0 : index
    %c0_19 = arith.constant 0 : index
    %11 = vector.load %arg2[%c0_17, %c0_18, %c0_19] : memref<49x1x128xf32, #tpu.memory_space<vmem>>, vector<49x1x128xf32>
    %12 = vector.extract_strided_slice %11 {offsets = [0, 0, 0], sizes = [1, 1, 128], strides = [1, 1, 1]} : vector<49x1x128xf32> to vector<1x1x128xf32>
    %13 = vector.shape_cast %12 : vector<1x1x128xf32> to vector<1x128xf32>
    %14 = vector.extract_strided_slice %11 {offsets = [1, 0, 0], sizes = [1, 1, 128], strides = [1, 1, 1]} : vector<49x1x128xf32> to vector<1x1x128xf32>
    %15 = vector.shape_cast %14 : vector<1x1x128xf32> to vector<1x128xf32>
    %16 = vector.extract_strided_slice %11 {offsets = [2, 0, 0], sizes = [1, 1, 128], strides = [1, 1, 1]} : vector<49x1x128xf32> to vector<1x1x128xf32>
    %17 = vector.shape_cast %16 : vector<1x1x128xf32> to vector<1x128xf32>
    %18 = vector.extract_strided_slice %11 {offsets = [3, 0, 0], sizes = [1, 1, 128], strides = [1, 1, 1]} : vector<49x1x128xf32> to vector<1x1x128xf32>
    %19 = vector.shape_cast %18 : vector<1x1x128xf32> to vector<1x128xf32>
    %20 = vector.extract_strided_slice %11 {offsets = [4, 0, 0], sizes = [1, 1, 128], strides = [1, 1, 1]} : vector<49x1x128xf32> to vector<1x1x128xf32>
    %21 = vector.shape_cast %20 : vector<1x1x128xf32> to vector<1x128xf32>
    %22 = vector.extract_strided_slice %11 {offsets = [5, 0, 0], sizes = [1, 1, 128], strides = [1, 1, 1]} : vector<49x1x128xf32> to vector<1x1x128xf32>
    %23 = vector.shape_cast %22 : vector<1x1x128xf32> to vector<1x128xf32>
    %24 = vector.extract_strided_slice %11 {offsets = [6, 0, 0], sizes = [1, 1, 128], strides = [1, 1, 1]} : vector<49x1x128xf32> to vector<1x1x128xf32>
    %25 = vector.shape_cast %24 : vector<1x1x128xf32> to vector<1x128xf32>
    %26 = vector.extract_strided_slice %11 {offsets = [7, 0, 0], sizes = [1, 1, 128], strides = [1, 1, 1]} : vector<49x1x128xf32> to vector<1x1x128xf32>
    %27 = vector.shape_cast %26 : vector<1x1x128xf32> to vector<1x128xf32>
    %28 = vector.extract_strided_slice %11 {offsets = [8, 0, 0], sizes = [1, 1, 128], strides = [1, 1, 1]} : vector<49x1x128xf32> to vector<1x1x128xf32>
    %29 = vector.shape_cast %28 : vector<1x1x128xf32> to vector<1x128xf32>
    %30 = vector.extract_strided_slice %11 {offsets = [9, 0, 0], sizes = [1, 1, 128], strides = [1, 1, 1]} : vector<49x1x128xf32> to vector<1x1x128xf32>
    %31 = vector.shape_cast %30 : vector<1x1x128xf32> to vector<1x128xf32>
    %32 = vector.extract_strided_slice %11 {offsets = [10, 0, 0], sizes = [1, 1, 128], strides = [1, 1, 1]} : vector<49x1x128xf32> to vector<1x1x128xf32>
    %33 = vector.shape_cast %32 : vector<1x1x128xf32> to vector<1x128xf32>
    %34 = vector.extract_strided_slice %11 {offsets = [11, 0, 0], sizes = [1, 1, 128], strides = [1, 1, 1]} : vector<49x1x128xf32> to vector<1x1x128xf32>
    %35 = vector.shape_cast %34 : vector<1x1x128xf32> to vector<1x128xf32>
    %36 = vector.extract_strided_slice %11 {offsets = [12, 0, 0], sizes = [1, 1, 128], strides = [1, 1, 1]} : vector<49x1x128xf32> to vector<1x1x128xf32>
    %37 = vector.shape_cast %36 : vector<1x1x128xf32> to vector<1x128xf32>
    %38 = vector.extract_strided_slice %11 {offsets = [13, 0, 0], sizes = [1, 1, 128], strides = [1, 1, 1]} : vector<49x1x128xf32> to vector<1x1x128xf32>
    %39 = vector.shape_cast %38 : vector<1x1x128xf32> to vector<1x128xf32>
    %40 = vector.extract_strided_slice %11 {offsets = [14, 0, 0], sizes = [1, 1, 128], strides = [1, 1, 1]} : vector<49x1x128xf32> to vector<1x1x128xf32>
    %41 = vector.shape_cast %40 : vector<1x1x128xf32> to vector<1x128xf32>
    %42 = vector.extract_strided_slice %11 {offsets = [15, 0, 0], sizes = [1, 1, 128], strides = [1, 1, 1]} : vector<49x1x128xf32> to vector<1x1x128xf32>
    %43 = vector.shape_cast %42 : vector<1x1x128xf32> to vector<1x128xf32>
    %44 = vector.extract_strided_slice %11 {offsets = [16, 0, 0], sizes = [1, 1, 128], strides = [1, 1, 1]} : vector<49x1x128xf32> to vector<1x1x128xf32>
    %45 = vector.shape_cast %44 : vector<1x1x128xf32> to vector<1x128xf32>
    %46 = vector.extract_strided_slice %11 {offsets = [17, 0, 0], sizes = [1, 1, 128], strides = [1, 1, 1]} : vector<49x1x128xf32> to vector<1x1x128xf32>
    %47 = vector.shape_cast %46 : vector<1x1x128xf32> to vector<1x128xf32>
    %48 = vector.extract_strided_slice %11 {offsets = [18, 0, 0], sizes = [1, 1, 128], strides = [1, 1, 1]} : vector<49x1x128xf32> to vector<1x1x128xf32>
    %49 = vector.shape_cast %48 : vector<1x1x128xf32> to vector<1x128xf32>
    %50 = vector.extract_strided_slice %11 {offsets = [19, 0, 0], sizes = [1, 1, 128], strides = [1, 1, 1]} : vector<49x1x128xf32> to vector<1x1x128xf32>
    %51 = vector.shape_cast %50 : vector<1x1x128xf32> to vector<1x128xf32>
    %52 = vector.extract_strided_slice %11 {offsets = [20, 0, 0], sizes = [1, 1, 128], strides = [1, 1, 1]} : vector<49x1x128xf32> to vector<1x1x128xf32>
    %53 = vector.shape_cast %52 : vector<1x1x128xf32> to vector<1x128xf32>
    %54 = vector.extract_strided_slice %11 {offsets = [21, 0, 0], sizes = [1, 1, 128], strides = [1, 1, 1]} : vector<49x1x128xf32> to vector<1x1x128xf32>
    %55 = vector.shape_cast %54 : vector<1x1x128xf32> to vector<1x128xf32>
    %56 = vector.extract_strided_slice %11 {offsets = [22, 0, 0], sizes = [1, 1, 128], strides = [1, 1, 1]} : vector<49x1x128xf32> to vector<1x1x128xf32>
    %57 = vector.shape_cast %56 : vector<1x1x128xf32> to vector<1x128xf32>
    %58 = vector.extract_strided_slice %11 {offsets = [23, 0, 0], sizes = [1, 1, 128], strides = [1, 1, 1]} : vector<49x1x128xf32> to vector<1x1x128xf32>
    %59 = vector.shape_cast %58 : vector<1x1x128xf32> to vector<1x128xf32>
    %60 = vector.extract_strided_slice %11 {offsets = [24, 0, 0], sizes = [1, 1, 128], strides = [1, 1, 1]} : vector<49x1x128xf32> to vector<1x1x128xf32>
    %61 = vector.shape_cast %60 : vector<1x1x128xf32> to vector<1x128xf32>
    %62 = vector.extract_strided_slice %11 {offsets = [25, 0, 0], sizes = [1, 1, 128], strides = [1, 1, 1]} : vector<49x1x128xf32> to vector<1x1x128xf32>
    %63 = vector.shape_cast %62 : vector<1x1x128xf32> to vector<1x128xf32>
    %64 = vector.extract_strided_slice %11 {offsets = [26, 0, 0], sizes = [1, 1, 128], strides = [1, 1, 1]} : vector<49x1x128xf32> to vector<1x1x128xf32>
    %65 = vector.shape_cast %64 : vector<1x1x128xf32> to vector<1x128xf32>
    %66 = vector.extract_strided_slice %11 {offsets = [27, 0, 0], sizes = [1, 1, 128], strides = [1, 1, 1]} : vector<49x1x128xf32> to vector<1x1x128xf32>
    %67 = vector.shape_cast %66 : vector<1x1x128xf32> to vector<1x128xf32>
    %68 = vector.extract_strided_slice %11 {offsets = [28, 0, 0], sizes = [1, 1, 128], strides = [1, 1, 1]} : vector<49x1x128xf32> to vector<1x1x128xf32>
    %69 = vector.shape_cast %68 : vector<1x1x128xf32> to vector<1x128xf32>
    %70 = vector.extract_strided_slice %11 {offsets = [29, 0, 0], sizes = [1, 1, 128], strides = [1, 1, 1]} : vector<49x1x128xf32> to vector<1x1x128xf32>
    %71 = vector.shape_cast %70 : vector<1x1x128xf32> to vector<1x128xf32>
    %72 = vector.extract_strided_slice %11 {offsets = [30, 0, 0], sizes = [1, 1, 128], strides = [1, 1, 1]} : vector<49x1x128xf32> to vector<1x1x128xf32>
    %73 = vector.shape_cast %72 : vector<1x1x128xf32> to vector<1x128xf32>
    %74 = vector.extract_strided_slice %11 {offsets = [31, 0, 0], sizes = [1, 1, 128], strides = [1, 1, 1]} : vector<49x1x128xf32> to vector<1x1x128xf32>
    %75 = vector.shape_cast %74 : vector<1x1x128xf32> to vector<1x128xf32>
    %76 = vector.extract_strided_slice %11 {offsets = [32, 0, 0], sizes = [1, 1, 128], strides = [1, 1, 1]} : vector<49x1x128xf32> to vector<1x1x128xf32>
    %77 = vector.shape_cast %76 : vector<1x1x128xf32> to vector<1x128xf32>
    %78 = vector.extract_strided_slice %11 {offsets = [33, 0, 0], sizes = [1, 1, 128], strides = [1, 1, 1]} : vector<49x1x128xf32> to vector<1x1x128xf32>
    %79 = vector.shape_cast %78 : vector<1x1x128xf32> to vector<1x128xf32>
    %80 = vector.extract_strided_slice %11 {offsets = [34, 0, 0], sizes = [1, 1, 128], strides = [1, 1, 1]} : vector<49x1x128xf32> to vector<1x1x128xf32>
    %81 = vector.shape_cast %80 : vector<1x1x128xf32> to vector<1x128xf32>
    %82 = vector.extract_strided_slice %11 {offsets = [35, 0, 0], sizes = [1, 1, 128], strides = [1, 1, 1]} : vector<49x1x128xf32> to vector<1x1x128xf32>
    %83 = vector.shape_cast %82 : vector<1x1x128xf32> to vector<1x128xf32>
    %84 = vector.extract_strided_slice %11 {offsets = [36, 0, 0], sizes = [1, 1, 128], strides = [1, 1, 1]} : vector<49x1x128xf32> to vector<1x1x128xf32>
    %85 = vector.shape_cast %84 : vector<1x1x128xf32> to vector<1x128xf32>
    %86 = vector.extract_strided_slice %11 {offsets = [37, 0, 0], sizes = [1, 1, 128], strides = [1, 1, 1]} : vector<49x1x128xf32> to vector<1x1x128xf32>
    %87 = vector.shape_cast %86 : vector<1x1x128xf32> to vector<1x128xf32>
    %88 = vector.extract_strided_slice %11 {offsets = [38, 0, 0], sizes = [1, 1, 128], strides = [1, 1, 1]} : vector<49x1x128xf32> to vector<1x1x128xf32>
    %89 = vector.shape_cast %88 : vector<1x1x128xf32> to vector<1x128xf32>
    %90 = vector.extract_strided_slice %11 {offsets = [39, 0, 0], sizes = [1, 1, 128], strides = [1, 1, 1]} : vector<49x1x128xf32> to vector<1x1x128xf32>
    %91 = vector.shape_cast %90 : vector<1x1x128xf32> to vector<1x128xf32>
    %92 = vector.extract_strided_slice %11 {offsets = [40, 0, 0], sizes = [1, 1, 128], strides = [1, 1, 1]} : vector<49x1x128xf32> to vector<1x1x128xf32>
    %93 = vector.shape_cast %92 : vector<1x1x128xf32> to vector<1x128xf32>
    %94 = vector.extract_strided_slice %11 {offsets = [41, 0, 0], sizes = [1, 1, 128], strides = [1, 1, 1]} : vector<49x1x128xf32> to vector<1x1x128xf32>
    %95 = vector.shape_cast %94 : vector<1x1x128xf32> to vector<1x128xf32>
    %96 = vector.extract_strided_slice %11 {offsets = [42, 0, 0], sizes = [1, 1, 128], strides = [1, 1, 1]} : vector<49x1x128xf32> to vector<1x1x128xf32>
    %97 = vector.shape_cast %96 : vector<1x1x128xf32> to vector<1x128xf32>
    %98 = vector.extract_strided_slice %11 {offsets = [43, 0, 0], sizes = [1, 1, 128], strides = [1, 1, 1]} : vector<49x1x128xf32> to vector<1x1x128xf32>
    %99 = vector.shape_cast %98 : vector<1x1x128xf32> to vector<1x128xf32>
    %100 = vector.extract_strided_slice %11 {offsets = [44, 0, 0], sizes = [1, 1, 128], strides = [1, 1, 1]} : vector<49x1x128xf32> to vector<1x1x128xf32>
    %101 = vector.shape_cast %100 : vector<1x1x128xf32> to vector<1x128xf32>
    %102 = vector.extract_strided_slice %11 {offsets = [45, 0, 0], sizes = [1, 1, 128], strides = [1, 1, 1]} : vector<49x1x128xf32> to vector<1x1x128xf32>
    %103 = vector.shape_cast %102 : vector<1x1x128xf32> to vector<1x128xf32>
    %104 = vector.extract_strided_slice %11 {offsets = [46, 0, 0], sizes = [1, 1, 128], strides = [1, 1, 1]} : vector<49x1x128xf32> to vector<1x1x128xf32>
    %105 = vector.shape_cast %104 : vector<1x1x128xf32> to vector<1x128xf32>
    %106 = vector.extract_strided_slice %11 {offsets = [47, 0, 0], sizes = [1, 1, 128], strides = [1, 1, 1]} : vector<49x1x128xf32> to vector<1x1x128xf32>
    %107 = vector.shape_cast %106 : vector<1x1x128xf32> to vector<1x128xf32>
    %108 = vector.extract_strided_slice %11 {offsets = [48, 0, 0], sizes = [1, 1, 128], strides = [1, 1, 1]} : vector<49x1x128xf32> to vector<1x1x128xf32>
    %109 = vector.shape_cast %108 : vector<1x1x128xf32> to vector<1x128xf32>
    %c0_20 = arith.constant 0 : index
    %c0_21 = arith.constant 0 : index
    %110 = vector.load %arg3[%c0_20, %c0_21] : memref<1x128xf32, #tpu.memory_space<vmem>>, vector<1x128xf32>
    %111 = vector.shape_cast %110 : vector<1x128xf32> to vector<1x1x128xf32>
    %112 = vector.broadcast %111 : vector<1x1x128xf32> to vector<8x16x128xf32>
    %c0_22 = arith.constant 0 : index
    %c0_23 = arith.constant 0 : index
    %c0_24 = arith.constant 0 : index
    %113 = vector.load %arg5[%c0_22, %c0_23, %c0_24] : memref<22x27x128xf32, #tpu.memory_space<vmem>>, vector<8x27x128xf32>
    %114 = vector.extract_strided_slice %113 {offsets = [0, 5, 0], sizes = [8, 16, 128], strides = [1, 1, 1]} : vector<8x27x128xf32> to vector<8x16x128xf32>
    %115 = vector.shape_cast %13 : vector<1x128xf32> to vector<1x1x128xf32>
    %116 = vector.broadcast %115 : vector<1x1x128xf32> to vector<8x16x128xf32>
    %117 = arith.mulf %114, %116 : vector<8x16x128xf32>
    %118 = arith.addf %112, %117 : vector<8x16x128xf32>
    %119 = vector.extract_strided_slice %113 {offsets = [0, 6, 0], sizes = [8, 16, 128], strides = [1, 1, 1]} : vector<8x27x128xf32> to vector<8x16x128xf32>
    %120 = vector.shape_cast %15 : vector<1x128xf32> to vector<1x1x128xf32>
    %121 = vector.broadcast %120 : vector<1x1x128xf32> to vector<8x16x128xf32>
    %122 = arith.mulf %119, %121 : vector<8x16x128xf32>
    %123 = arith.addf %118, %122 : vector<8x16x128xf32>
    %124 = vector.extract_strided_slice %113 {offsets = [0, 7, 0], sizes = [8, 16, 128], strides = [1, 1, 1]} : vector<8x27x128xf32> to vector<8x16x128xf32>
    %125 = vector.shape_cast %17 : vector<1x128xf32> to vector<1x1x128xf32>
    %126 = vector.broadcast %125 : vector<1x1x128xf32> to vector<8x16x128xf32>
    %127 = arith.mulf %124, %126 : vector<8x16x128xf32>
    %128 = arith.addf %123, %127 : vector<8x16x128xf32>
    %129 = vector.extract_strided_slice %113 {offsets = [0, 8, 0], sizes = [8, 16, 128], strides = [1, 1, 1]} : vector<8x27x128xf32> to vector<8x16x128xf32>
    %130 = vector.shape_cast %19 : vector<1x128xf32> to vector<1x1x128xf32>
    %131 = vector.broadcast %130 : vector<1x1x128xf32> to vector<8x16x128xf32>
    %132 = arith.mulf %129, %131 : vector<8x16x128xf32>
    %133 = arith.addf %128, %132 : vector<8x16x128xf32>
    %134 = vector.extract_strided_slice %113 {offsets = [0, 9, 0], sizes = [8, 16, 128], strides = [1, 1, 1]} : vector<8x27x128xf32> to vector<8x16x128xf32>
    %135 = vector.shape_cast %21 : vector<1x128xf32> to vector<1x1x128xf32>
    %136 = vector.broadcast %135 : vector<1x1x128xf32> to vector<8x16x128xf32>
    %137 = arith.mulf %134, %136 : vector<8x16x128xf32>
    %138 = arith.addf %133, %137 : vector<8x16x128xf32>
    %139 = vector.extract_strided_slice %113 {offsets = [0, 10, 0], sizes = [8, 16, 128], strides = [1, 1, 1]} : vector<8x27x128xf32> to vector<8x16x128xf32>
    %140 = vector.shape_cast %23 : vector<1x128xf32> to vector<1x1x128xf32>
    %141 = vector.broadcast %140 : vector<1x1x128xf32> to vector<8x16x128xf32>
    %142 = arith.mulf %139, %141 : vector<8x16x128xf32>
    %143 = arith.addf %138, %142 : vector<8x16x128xf32>
    %144 = vector.extract_strided_slice %113 {offsets = [0, 11, 0], sizes = [8, 16, 128], strides = [1, 1, 1]} : vector<8x27x128xf32> to vector<8x16x128xf32>
    %145 = vector.shape_cast %25 : vector<1x128xf32> to vector<1x1x128xf32>
    %146 = vector.broadcast %145 : vector<1x1x128xf32> to vector<8x16x128xf32>
    %147 = arith.mulf %144, %146 : vector<8x16x128xf32>
    %148 = arith.addf %143, %147 : vector<8x16x128xf32>
    %c1 = arith.constant 1 : index
    %c0_25 = arith.constant 0 : index
    %c0_26 = arith.constant 0 : index
    %149 = vector.load %arg5[%c1, %c0_25, %c0_26] : memref<22x27x128xf32, #tpu.memory_space<vmem>>, vector<8x27x128xf32>
    %150 = vector.extract_strided_slice %149 {offsets = [0, 5, 0], sizes = [8, 16, 128], strides = [1, 1, 1]} : vector<8x27x128xf32> to vector<8x16x128xf32>
    %151 = vector.shape_cast %27 : vector<1x128xf32> to vector<1x1x128xf32>
    %152 = vector.broadcast %151 : vector<1x1x128xf32> to vector<8x16x128xf32>
    %153 = arith.mulf %150, %152 : vector<8x16x128xf32>
    %154 = arith.addf %148, %153 : vector<8x16x128xf32>
    %155 = vector.extract_strided_slice %149 {offsets = [0, 6, 0], sizes = [8, 16, 128], strides = [1, 1, 1]} : vector<8x27x128xf32> to vector<8x16x128xf32>
    %156 = vector.shape_cast %29 : vector<1x128xf32> to vector<1x1x128xf32>
    %157 = vector.broadcast %156 : vector<1x1x128xf32> to vector<8x16x128xf32>
    %158 = arith.mulf %155, %157 : vector<8x16x128xf32>
    %159 = arith.addf %154, %158 : vector<8x16x128xf32>
    %160 = vector.extract_strided_slice %149 {offsets = [0, 7, 0], sizes = [8, 16, 128], strides = [1, 1, 1]} : vector<8x27x128xf32> to vector<8x16x128xf32>
    %161 = vector.shape_cast %31 : vector<1x128xf32> to vector<1x1x128xf32>
    %162 = vector.broadcast %161 : vector<1x1x128xf32> to vector<8x16x128xf32>
    %163 = arith.mulf %160, %162 : vector<8x16x128xf32>
    %164 = arith.addf %159, %163 : vector<8x16x128xf32>
    %165 = vector.extract_strided_slice %149 {offsets = [0, 8, 0], sizes = [8, 16, 128], strides = [1, 1, 1]} : vector<8x27x128xf32> to vector<8x16x128xf32>
    %166 = vector.shape_cast %33 : vector<1x128xf32> to vector<1x1x128xf32>
    %167 = vector.broadcast %166 : vector<1x1x128xf32> to vector<8x16x128xf32>
    %168 = arith.mulf %165, %167 : vector<8x16x128xf32>
    %169 = arith.addf %164, %168 : vector<8x16x128xf32>
    %170 = vector.extract_strided_slice %149 {offsets = [0, 9, 0], sizes = [8, 16, 128], strides = [1, 1, 1]} : vector<8x27x128xf32> to vector<8x16x128xf32>
    %171 = vector.shape_cast %35 : vector<1x128xf32> to vector<1x1x128xf32>
    %172 = vector.broadcast %171 : vector<1x1x128xf32> to vector<8x16x128xf32>
    %173 = arith.mulf %170, %172 : vector<8x16x128xf32>
    %174 = arith.addf %169, %173 : vector<8x16x128xf32>
    %175 = vector.extract_strided_slice %149 {offsets = [0, 10, 0], sizes = [8, 16, 128], strides = [1, 1, 1]} : vector<8x27x128xf32> to vector<8x16x128xf32>
    %176 = vector.shape_cast %37 : vector<1x128xf32> to vector<1x1x128xf32>
    %177 = vector.broadcast %176 : vector<1x1x128xf32> to vector<8x16x128xf32>
    %178 = arith.mulf %175, %177 : vector<8x16x128xf32>
    %179 = arith.addf %174, %178 : vector<8x16x128xf32>
    %180 = vector.extract_strided_slice %149 {offsets = [0, 11, 0], sizes = [8, 16, 128], strides = [1, 1, 1]} : vector<8x27x128xf32> to vector<8x16x128xf32>
    %181 = vector.shape_cast %39 : vector<1x128xf32> to vector<1x1x128xf32>
    %182 = vector.broadcast %181 : vector<1x1x128xf32> to vector<8x16x128xf32>
    %183 = arith.mulf %180, %182 : vector<8x16x128xf32>
    %184 = arith.addf %179, %183 : vector<8x16x128xf32>
    %c2 = arith.constant 2 : index
    %c0_27 = arith.constant 0 : index
    %c0_28 = arith.constant 0 : index
    %185 = vector.load %arg5[%c2, %c0_27, %c0_28] : memref<22x27x128xf32, #tpu.memory_space<vmem>>, vector<8x27x128xf32>
    %186 = vector.extract_strided_slice %185 {offsets = [0, 5, 0], sizes = [8, 16, 128], strides = [1, 1, 1]} : vector<8x27x128xf32> to vector<8x16x128xf32>
    %187 = vector.shape_cast %41 : vector<1x128xf32> to vector<1x1x128xf32>
    %188 = vector.broadcast %187 : vector<1x1x128xf32> to vector<8x16x128xf32>
    %189 = arith.mulf %186, %188 : vector<8x16x128xf32>
    %190 = arith.addf %184, %189 : vector<8x16x128xf32>
    %191 = vector.extract_strided_slice %185 {offsets = [0, 6, 0], sizes = [8, 16, 128], strides = [1, 1, 1]} : vector<8x27x128xf32> to vector<8x16x128xf32>
    %192 = vector.shape_cast %43 : vector<1x128xf32> to vector<1x1x128xf32>
    %193 = vector.broadcast %192 : vector<1x1x128xf32> to vector<8x16x128xf32>
    %194 = arith.mulf %191, %193 : vector<8x16x128xf32>
    %195 = arith.addf %190, %194 : vector<8x16x128xf32>
    %196 = vector.extract_strided_slice %185 {offsets = [0, 7, 0], sizes = [8, 16, 128], strides = [1, 1, 1]} : vector<8x27x128xf32> to vector<8x16x128xf32>
    %197 = vector.shape_cast %45 : vector<1x128xf32> to vector<1x1x128xf32>
    %198 = vector.broadcast %197 : vector<1x1x128xf32> to vector<8x16x128xf32>
    %199 = arith.mulf %196, %198 : vector<8x16x128xf32>
    %200 = arith.addf %195, %199 : vector<8x16x128xf32>
    %201 = vector.extract_strided_slice %185 {offsets = [0, 8, 0], sizes = [8, 16, 128], strides = [1, 1, 1]} : vector<8x27x128xf32> to vector<8x16x128xf32>
    %202 = vector.shape_cast %47 : vector<1x128xf32> to vector<1x1x128xf32>
    %203 = vector.broadcast %202 : vector<1x1x128xf32> to vector<8x16x128xf32>
    %204 = arith.mulf %201, %203 : vector<8x16x128xf32>
    %205 = arith.addf %200, %204 : vector<8x16x128xf32>
    %206 = vector.extract_strided_slice %185 {offsets = [0, 9, 0], sizes = [8, 16, 128], strides = [1, 1, 1]} : vector<8x27x128xf32> to vector<8x16x128xf32>
    %207 = vector.shape_cast %49 : vector<1x128xf32> to vector<1x1x128xf32>
    %208 = vector.broadcast %207 : vector<1x1x128xf32> to vector<8x16x128xf32>
    %209 = arith.mulf %206, %208 : vector<8x16x128xf32>
    %210 = arith.addf %205, %209 : vector<8x16x128xf32>
    %211 = vector.extract_strided_slice %185 {offsets = [0, 10, 0], sizes = [8, 16, 128], strides = [1, 1, 1]} : vector<8x27x128xf32> to vector<8x16x128xf32>
    %212 = vector.shape_cast %51 : vector<1x128xf32> to vector<1x1x128xf32>
    %213 = vector.broadcast %212 : vector<1x1x128xf32> to vector<8x16x128xf32>
    %214 = arith.mulf %211, %213 : vector<8x16x128xf32>
    %215 = arith.addf %210, %214 : vector<8x16x128xf32>
    %216 = vector.extract_strided_slice %185 {offsets = [0, 11, 0], sizes = [8, 16, 128], strides = [1, 1, 1]} : vector<8x27x128xf32> to vector<8x16x128xf32>
    %217 = vector.shape_cast %53 : vector<1x128xf32> to vector<1x1x128xf32>
    %218 = vector.broadcast %217 : vector<1x1x128xf32> to vector<8x16x128xf32>
    %219 = arith.mulf %216, %218 : vector<8x16x128xf32>
    %220 = arith.addf %215, %219 : vector<8x16x128xf32>
    %c3_29 = arith.constant 3 : index
    %c0_30 = arith.constant 0 : index
    %c0_31 = arith.constant 0 : index
    %221 = vector.load %arg5[%c3_29, %c0_30, %c0_31] : memref<22x27x128xf32, #tpu.memory_space<vmem>>, vector<8x27x128xf32>
    %222 = vector.extract_strided_slice %221 {offsets = [0, 5, 0], sizes = [8, 16, 128], strides = [1, 1, 1]} : vector<8x27x128xf32> to vector<8x16x128xf32>
    %223 = vector.shape_cast %55 : vector<1x128xf32> to vector<1x1x128xf32>
    %224 = vector.broadcast %223 : vector<1x1x128xf32> to vector<8x16x128xf32>
    %225 = arith.mulf %222, %224 : vector<8x16x128xf32>
    %226 = arith.addf %220, %225 : vector<8x16x128xf32>
    %227 = vector.extract_strided_slice %221 {offsets = [0, 6, 0], sizes = [8, 16, 128], strides = [1, 1, 1]} : vector<8x27x128xf32> to vector<8x16x128xf32>
    %228 = vector.shape_cast %57 : vector<1x128xf32> to vector<1x1x128xf32>
    %229 = vector.broadcast %228 : vector<1x1x128xf32> to vector<8x16x128xf32>
    %230 = arith.mulf %227, %229 : vector<8x16x128xf32>
    %231 = arith.addf %226, %230 : vector<8x16x128xf32>
    %232 = vector.extract_strided_slice %221 {offsets = [0, 7, 0], sizes = [8, 16, 128], strides = [1, 1, 1]} : vector<8x27x128xf32> to vector<8x16x128xf32>
    %233 = vector.shape_cast %59 : vector<1x128xf32> to vector<1x1x128xf32>
    %234 = vector.broadcast %233 : vector<1x1x128xf32> to vector<8x16x128xf32>
    %235 = arith.mulf %232, %234 : vector<8x16x128xf32>
    %236 = arith.addf %231, %235 : vector<8x16x128xf32>
    %237 = vector.extract_strided_slice %221 {offsets = [0, 8, 0], sizes = [8, 16, 128], strides = [1, 1, 1]} : vector<8x27x128xf32> to vector<8x16x128xf32>
    %238 = vector.shape_cast %61 : vector<1x128xf32> to vector<1x1x128xf32>
    %239 = vector.broadcast %238 : vector<1x1x128xf32> to vector<8x16x128xf32>
    %240 = arith.mulf %237, %239 : vector<8x16x128xf32>
    %241 = arith.addf %236, %240 : vector<8x16x128xf32>
    %242 = vector.extract_strided_slice %221 {offsets = [0, 9, 0], sizes = [8, 16, 128], strides = [1, 1, 1]} : vector<8x27x128xf32> to vector<8x16x128xf32>
    %243 = vector.shape_cast %63 : vector<1x128xf32> to vector<1x1x128xf32>
    %244 = vector.broadcast %243 : vector<1x1x128xf32> to vector<8x16x128xf32>
    %245 = arith.mulf %242, %244 : vector<8x16x128xf32>
    %246 = arith.addf %241, %245 : vector<8x16x128xf32>
    %247 = vector.extract_strided_slice %221 {offsets = [0, 10, 0], sizes = [8, 16, 128], strides = [1, 1, 1]} : vector<8x27x128xf32> to vector<8x16x128xf32>
    %248 = vector.shape_cast %65 : vector<1x128xf32> to vector<1x1x128xf32>
    %249 = vector.broadcast %248 : vector<1x1x128xf32> to vector<8x16x128xf32>
    %250 = arith.mulf %247, %249 : vector<8x16x128xf32>
    %251 = arith.addf %246, %250 : vector<8x16x128xf32>
    %252 = vector.extract_strided_slice %221 {offsets = [0, 11, 0], sizes = [8, 16, 128], strides = [1, 1, 1]} : vector<8x27x128xf32> to vector<8x16x128xf32>
    %253 = vector.shape_cast %67 : vector<1x128xf32> to vector<1x1x128xf32>
    %254 = vector.broadcast %253 : vector<1x1x128xf32> to vector<8x16x128xf32>
    %255 = arith.mulf %252, %254 : vector<8x16x128xf32>
    %256 = arith.addf %251, %255 : vector<8x16x128xf32>
    %c4 = arith.constant 4 : index
    %c0_32 = arith.constant 0 : index
    %c0_33 = arith.constant 0 : index
    %257 = vector.load %arg5[%c4, %c0_32, %c0_33] : memref<22x27x128xf32, #tpu.memory_space<vmem>>, vector<8x27x128xf32>
    %258 = vector.extract_strided_slice %257 {offsets = [0, 5, 0], sizes = [8, 16, 128], strides = [1, 1, 1]} : vector<8x27x128xf32> to vector<8x16x128xf32>
    %259 = vector.shape_cast %69 : vector<1x128xf32> to vector<1x1x128xf32>
    %260 = vector.broadcast %259 : vector<1x1x128xf32> to vector<8x16x128xf32>
    %261 = arith.mulf %258, %260 : vector<8x16x128xf32>
    %262 = arith.addf %256, %261 : vector<8x16x128xf32>
    %263 = vector.extract_strided_slice %257 {offsets = [0, 6, 0], sizes = [8, 16, 128], strides = [1, 1, 1]} : vector<8x27x128xf32> to vector<8x16x128xf32>
    %264 = vector.shape_cast %71 : vector<1x128xf32> to vector<1x1x128xf32>
    %265 = vector.broadcast %264 : vector<1x1x128xf32> to vector<8x16x128xf32>
    %266 = arith.mulf %263, %265 : vector<8x16x128xf32>
    %267 = arith.addf %262, %266 : vector<8x16x128xf32>
    %268 = vector.extract_strided_slice %257 {offsets = [0, 7, 0], sizes = [8, 16, 128], strides = [1, 1, 1]} : vector<8x27x128xf32> to vector<8x16x128xf32>
    %269 = vector.shape_cast %73 : vector<1x128xf32> to vector<1x1x128xf32>
    %270 = vector.broadcast %269 : vector<1x1x128xf32> to vector<8x16x128xf32>
    %271 = arith.mulf %268, %270 : vector<8x16x128xf32>
    %272 = arith.addf %267, %271 : vector<8x16x128xf32>
    %273 = vector.extract_strided_slice %257 {offsets = [0, 8, 0], sizes = [8, 16, 128], strides = [1, 1, 1]} : vector<8x27x128xf32> to vector<8x16x128xf32>
    %274 = vector.shape_cast %75 : vector<1x128xf32> to vector<1x1x128xf32>
    %275 = vector.broadcast %274 : vector<1x1x128xf32> to vector<8x16x128xf32>
    %276 = arith.mulf %273, %275 : vector<8x16x128xf32>
    %277 = arith.addf %272, %276 : vector<8x16x128xf32>
    %278 = vector.extract_strided_slice %257 {offsets = [0, 9, 0], sizes = [8, 16, 128], strides = [1, 1, 1]} : vector<8x27x128xf32> to vector<8x16x128xf32>
    %279 = vector.shape_cast %77 : vector<1x128xf32> to vector<1x1x128xf32>
    %280 = vector.broadcast %279 : vector<1x1x128xf32> to vector<8x16x128xf32>
    %281 = arith.mulf %278, %280 : vector<8x16x128xf32>
    %282 = arith.addf %277, %281 : vector<8x16x128xf32>
    %283 = vector.extract_strided_slice %257 {offsets = [0, 10, 0], sizes = [8, 16, 128], strides = [1, 1, 1]} : vector<8x27x128xf32> to vector<8x16x128xf32>
    %284 = vector.shape_cast %79 : vector<1x128xf32> to vector<1x1x128xf32>
    %285 = vector.broadcast %284 : vector<1x1x128xf32> to vector<8x16x128xf32>
    %286 = arith.mulf %283, %285 : vector<8x16x128xf32>
    %287 = arith.addf %282, %286 : vector<8x16x128xf32>
    %288 = vector.extract_strided_slice %257 {offsets = [0, 11, 0], sizes = [8, 16, 128], strides = [1, 1, 1]} : vector<8x27x128xf32> to vector<8x16x128xf32>
    %289 = vector.shape_cast %81 : vector<1x128xf32> to vector<1x1x128xf32>
    %290 = vector.broadcast %289 : vector<1x1x128xf32> to vector<8x16x128xf32>
    %291 = arith.mulf %288, %290 : vector<8x16x128xf32>
    %292 = arith.addf %287, %291 : vector<8x16x128xf32>
    %c5 = arith.constant 5 : index
    %c0_34 = arith.constant 0 : index
    %c0_35 = arith.constant 0 : index
    %293 = vector.load %arg5[%c5, %c0_34, %c0_35] : memref<22x27x128xf32, #tpu.memory_space<vmem>>, vector<8x27x128xf32>
    %294 = vector.extract_strided_slice %293 {offsets = [0, 5, 0], sizes = [8, 16, 128], strides = [1, 1, 1]} : vector<8x27x128xf32> to vector<8x16x128xf32>
    %295 = vector.shape_cast %83 : vector<1x128xf32> to vector<1x1x128xf32>
    %296 = vector.broadcast %295 : vector<1x1x128xf32> to vector<8x16x128xf32>
    %297 = arith.mulf %294, %296 : vector<8x16x128xf32>
    %298 = arith.addf %292, %297 : vector<8x16x128xf32>
    %299 = vector.extract_strided_slice %293 {offsets = [0, 6, 0], sizes = [8, 16, 128], strides = [1, 1, 1]} : vector<8x27x128xf32> to vector<8x16x128xf32>
    %300 = vector.shape_cast %85 : vector<1x128xf32> to vector<1x1x128xf32>
    %301 = vector.broadcast %300 : vector<1x1x128xf32> to vector<8x16x128xf32>
    %302 = arith.mulf %299, %301 : vector<8x16x128xf32>
    %303 = arith.addf %298, %302 : vector<8x16x128xf32>
    %304 = vector.extract_strided_slice %293 {offsets = [0, 7, 0], sizes = [8, 16, 128], strides = [1, 1, 1]} : vector<8x27x128xf32> to vector<8x16x128xf32>
    %305 = vector.shape_cast %87 : vector<1x128xf32> to vector<1x1x128xf32>
    %306 = vector.broadcast %305 : vector<1x1x128xf32> to vector<8x16x128xf32>
    %307 = arith.mulf %304, %306 : vector<8x16x128xf32>
    %308 = arith.addf %303, %307 : vector<8x16x128xf32>
    %309 = vector.extract_strided_slice %293 {offsets = [0, 8, 0], sizes = [8, 16, 128], strides = [1, 1, 1]} : vector<8x27x128xf32> to vector<8x16x128xf32>
    %310 = vector.shape_cast %89 : vector<1x128xf32> to vector<1x1x128xf32>
    %311 = vector.broadcast %310 : vector<1x1x128xf32> to vector<8x16x128xf32>
    %312 = arith.mulf %309, %311 : vector<8x16x128xf32>
    %313 = arith.addf %308, %312 : vector<8x16x128xf32>
    %314 = vector.extract_strided_slice %293 {offsets = [0, 9, 0], sizes = [8, 16, 128], strides = [1, 1, 1]} : vector<8x27x128xf32> to vector<8x16x128xf32>
    %315 = vector.shape_cast %91 : vector<1x128xf32> to vector<1x1x128xf32>
    %316 = vector.broadcast %315 : vector<1x1x128xf32> to vector<8x16x128xf32>
    %317 = arith.mulf %314, %316 : vector<8x16x128xf32>
    %318 = arith.addf %313, %317 : vector<8x16x128xf32>
    %319 = vector.extract_strided_slice %293 {offsets = [0, 10, 0], sizes = [8, 16, 128], strides = [1, 1, 1]} : vector<8x27x128xf32> to vector<8x16x128xf32>
    %320 = vector.shape_cast %93 : vector<1x128xf32> to vector<1x1x128xf32>
    %321 = vector.broadcast %320 : vector<1x1x128xf32> to vector<8x16x128xf32>
    %322 = arith.mulf %319, %321 : vector<8x16x128xf32>
    %323 = arith.addf %318, %322 : vector<8x16x128xf32>
    %324 = vector.extract_strided_slice %293 {offsets = [0, 11, 0], sizes = [8, 16, 128], strides = [1, 1, 1]} : vector<8x27x128xf32> to vector<8x16x128xf32>
    %325 = vector.shape_cast %95 : vector<1x128xf32> to vector<1x1x128xf32>
    %326 = vector.broadcast %325 : vector<1x1x128xf32> to vector<8x16x128xf32>
    %327 = arith.mulf %324, %326 : vector<8x16x128xf32>
    %328 = arith.addf %323, %327 : vector<8x16x128xf32>
    %c6 = arith.constant 6 : index
    %c0_36 = arith.constant 0 : index
    %c0_37 = arith.constant 0 : index
    %329 = vector.load %arg5[%c6, %c0_36, %c0_37] : memref<22x27x128xf32, #tpu.memory_space<vmem>>, vector<8x27x128xf32>
    %330 = vector.extract_strided_slice %329 {offsets = [0, 5, 0], sizes = [8, 16, 128], strides = [1, 1, 1]} : vector<8x27x128xf32> to vector<8x16x128xf32>
    %331 = vector.shape_cast %97 : vector<1x128xf32> to vector<1x1x128xf32>
    %332 = vector.broadcast %331 : vector<1x1x128xf32> to vector<8x16x128xf32>
    %333 = arith.mulf %330, %332 : vector<8x16x128xf32>
    %334 = arith.addf %328, %333 : vector<8x16x128xf32>
    %335 = vector.extract_strided_slice %329 {offsets = [0, 6, 0], sizes = [8, 16, 128], strides = [1, 1, 1]} : vector<8x27x128xf32> to vector<8x16x128xf32>
    %336 = vector.shape_cast %99 : vector<1x128xf32> to vector<1x1x128xf32>
    %337 = vector.broadcast %336 : vector<1x1x128xf32> to vector<8x16x128xf32>
    %338 = arith.mulf %335, %337 : vector<8x16x128xf32>
    %339 = arith.addf %334, %338 : vector<8x16x128xf32>
    %340 = vector.extract_strided_slice %329 {offsets = [0, 7, 0], sizes = [8, 16, 128], strides = [1, 1, 1]} : vector<8x27x128xf32> to vector<8x16x128xf32>
    %341 = vector.shape_cast %101 : vector<1x128xf32> to vector<1x1x128xf32>
    %342 = vector.broadcast %341 : vector<1x1x128xf32> to vector<8x16x128xf32>
    %343 = arith.mulf %340, %342 : vector<8x16x128xf32>
    %344 = arith.addf %339, %343 : vector<8x16x128xf32>
    %345 = vector.extract_strided_slice %329 {offsets = [0, 8, 0], sizes = [8, 16, 128], strides = [1, 1, 1]} : vector<8x27x128xf32> to vector<8x16x128xf32>
    %346 = vector.shape_cast %103 : vector<1x128xf32> to vector<1x1x128xf32>
    %347 = vector.broadcast %346 : vector<1x1x128xf32> to vector<8x16x128xf32>
    %348 = arith.mulf %345, %347 : vector<8x16x128xf32>
    %349 = arith.addf %344, %348 : vector<8x16x128xf32>
    %350 = vector.extract_strided_slice %329 {offsets = [0, 9, 0], sizes = [8, 16, 128], strides = [1, 1, 1]} : vector<8x27x128xf32> to vector<8x16x128xf32>
    %351 = vector.shape_cast %105 : vector<1x128xf32> to vector<1x1x128xf32>
    %352 = vector.broadcast %351 : vector<1x1x128xf32> to vector<8x16x128xf32>
    %353 = arith.mulf %350, %352 : vector<8x16x128xf32>
    %354 = arith.addf %349, %353 : vector<8x16x128xf32>
    %355 = vector.extract_strided_slice %329 {offsets = [0, 10, 0], sizes = [8, 16, 128], strides = [1, 1, 1]} : vector<8x27x128xf32> to vector<8x16x128xf32>
    %356 = vector.shape_cast %107 : vector<1x128xf32> to vector<1x1x128xf32>
    %357 = vector.broadcast %356 : vector<1x1x128xf32> to vector<8x16x128xf32>
    %358 = arith.mulf %355, %357 : vector<8x16x128xf32>
    %359 = arith.addf %354, %358 : vector<8x16x128xf32>
    %360 = vector.extract_strided_slice %329 {offsets = [0, 11, 0], sizes = [8, 16, 128], strides = [1, 1, 1]} : vector<8x27x128xf32> to vector<8x16x128xf32>
    %361 = vector.shape_cast %109 : vector<1x128xf32> to vector<1x1x128xf32>
    %362 = vector.broadcast %361 : vector<1x1x128xf32> to vector<8x16x128xf32>
    %363 = arith.mulf %360, %362 : vector<8x16x128xf32>
    %364 = arith.addf %359, %363 : vector<8x16x128xf32>
    %cst_38 = arith.constant 0.000000e+00 : f32
    %365 = vector.broadcast %cst_38 : f32 to vector<8x16x128xf32>
    %366 = arith.subf %365, %364 : vector<8x16x128xf32>
    %367 = math.exp %366 : vector<8x16x128xf32>
    %cst_39 = arith.constant 1.000000e+00 : f32
    %368 = vector.broadcast %cst_39 : f32 to vector<8x16x128xf32>
    %369 = arith.addf %368, %367 : vector<8x16x128xf32>
    %370 = tpu.reciprocal %369 {approx = true} : vector<8x16x128xf32> -> vector<8x16x128xf32>
    %c3_40 = arith.constant 3 : index
    %c8_41 = arith.constant 8 : index
    %c0_42 = arith.constant 0 : index
    %371 = vector.load %arg5[%c3_40, %c8_41, %c0_42] : memref<22x27x128xf32, #tpu.memory_space<vmem>>, vector<8x16x128xf32>
    %372 = arith.mulf %371, %370 : vector<8x16x128xf32>
    %c0_43 = arith.constant 0 : index
    %c0_44 = arith.constant 0 : index
    %c0_45 = arith.constant 0 : index
    %c0_46 = arith.constant 0 : index
    %373 = vector.load %arg4[%c0_43, %c0_44, %c0_45, %c0_46] : memref<1x16x16x128xf32, #tpu.memory_space<vmem>>, vector<1x8x16x128xf32>
    %374 = vector.shape_cast %373 : vector<1x8x16x128xf32> to vector<8x16x128xf32>
    %375 = vector.shape_cast %372 : vector<8x16x128xf32> to vector<1x8x16x128xf32>
    tpu.vector_store %arg4[%c0_43, %c0_44, %c0_45, %c0_46], %375 {strides = array<i32>} : memref<1x16x16x128xf32, #tpu.memory_space<vmem>>, vector<1x8x16x128xf32>,
    %c8_47 = arith.constant 8 : index
    %c0_48 = arith.constant 0 : index
    %c0_49 = arith.constant 0 : index
    %376 = vector.load %arg5[%c8_47, %c0_48, %c0_49] : memref<22x27x128xf32, #tpu.memory_space<vmem>>, vector<8x27x128xf32>
    %377 = vector.extract_strided_slice %376 {offsets = [0, 5, 0], sizes = [8, 16, 128], strides = [1, 1, 1]} : vector<8x27x128xf32> to vector<8x16x128xf32>
    %378 = vector.shape_cast %13 : vector<1x128xf32> to vector<1x1x128xf32>
    %379 = vector.broadcast %378 : vector<1x1x128xf32> to vector<8x16x128xf32>
    %380 = arith.mulf %377, %379 : vector<8x16x128xf32>
    %381 = arith.addf %112, %380 : vector<8x16x128xf32>
    %382 = vector.extract_strided_slice %376 {offsets = [0, 6, 0], sizes = [8, 16, 128], strides = [1, 1, 1]} : vector<8x27x128xf32> to vector<8x16x128xf32>
    %383 = vector.shape_cast %15 : vector<1x128xf32> to vector<1x1x128xf32>
    %384 = vector.broadcast %383 : vector<1x1x128xf32> to vector<8x16x128xf32>
    %385 = arith.mulf %382, %384 : vector<8x16x128xf32>
    %386 = arith.addf %381, %385 : vector<8x16x128xf32>
    %387 = vector.extract_strided_slice %376 {offsets = [0, 7, 0], sizes = [8, 16, 128], strides = [1, 1, 1]} : vector<8x27x128xf32> to vector<8x16x128xf32>
    %388 = vector.shape_cast %17 : vector<1x128xf32> to vector<1x1x128xf32>
    %389 = vector.broadcast %388 : vector<1x1x128xf32> to vector<8x16x128xf32>
    %390 = arith.mulf %387, %389 : vector<8x16x128xf32>
    %391 = arith.addf %386, %390 : vector<8x16x128xf32>
    %392 = vector.extract_strided_slice %376 {offsets = [0, 8, 0], sizes = [8, 16, 128], strides = [1, 1, 1]} : vector<8x27x128xf32> to vector<8x16x128xf32>
    %393 = vector.shape_cast %19 : vector<1x128xf32> to vector<1x1x128xf32>
    %394 = vector.broadcast %393 : vector<1x1x128xf32> to vector<8x16x128xf32>
    %395 = arith.mulf %392, %394 : vector<8x16x128xf32>
    %396 = arith.addf %391, %395 : vector<8x16x128xf32>
    %397 = vector.extract_strided_slice %376 {offsets = [0, 9, 0], sizes = [8, 16, 128], strides = [1, 1, 1]} : vector<8x27x128xf32> to vector<8x16x128xf32>
    %398 = vector.shape_cast %21 : vector<1x128xf32> to vector<1x1x128xf32>
    %399 = vector.broadcast %398 : vector<1x1x128xf32> to vector<8x16x128xf32>
    %400 = arith.mulf %397, %399 : vector<8x16x128xf32>
    %401 = arith.addf %396, %400 : vector<8x16x128xf32>
    %402 = vector.extract_strided_slice %376 {offsets = [0, 10, 0], sizes = [8, 16, 128], strides = [1, 1, 1]} : vector<8x27x128xf32> to vector<8x16x128xf32>
    %403 = vector.shape_cast %23 : vector<1x128xf32> to vector<1x1x128xf32>
    %404 = vector.broadcast %403 : vector<1x1x128xf32> to vector<8x16x128xf32>
    %405 = arith.mulf %402, %404 : vector<8x16x128xf32>
    %406 = arith.addf %401, %405 : vector<8x16x128xf32>
    %407 = vector.extract_strided_slice %376 {offsets = [0, 11, 0], sizes = [8, 16, 128], strides = [1, 1, 1]} : vector<8x27x128xf32> to vector<8x16x128xf32>
    %408 = vector.shape_cast %25 : vector<1x128xf32> to vector<1x1x128xf32>
    %409 = vector.broadcast %408 : vector<1x1x128xf32> to vector<8x16x128xf32>
    %410 = arith.mulf %407, %409 : vector<8x16x128xf32>
    %411 = arith.addf %406, %410 : vector<8x16x128xf32>
    %c9 = arith.constant 9 : index
    %c0_50 = arith.constant 0 : index
    %c0_51 = arith.constant 0 : index
    %412 = vector.load %arg5[%c9, %c0_50, %c0_51] : memref<22x27x128xf32, #tpu.memory_space<vmem>>, vector<8x27x128xf32>
    %413 = vector.extract_strided_slice %412 {offsets = [0, 5, 0], sizes = [8, 16, 128], strides = [1, 1, 1]} : vector<8x27x128xf32> to vector<8x16x128xf32>
    %414 = vector.shape_cast %27 : vector<1x128xf32> to vector<1x1x128xf32>
    %415 = vector.broadcast %414 : vector<1x1x128xf32> to vector<8x16x128xf32>
    %416 = arith.mulf %413, %415 : vector<8x16x128xf32>
    %417 = arith.addf %411, %416 : vector<8x16x128xf32>
    %418 = vector.extract_strided_slice %412 {offsets = [0, 6, 0], sizes = [8, 16, 128], strides = [1, 1, 1]} : vector<8x27x128xf32> to vector<8x16x128xf32>
    %419 = vector.shape_cast %29 : vector<1x128xf32> to vector<1x1x128xf32>
    %420 = vector.broadcast %419 : vector<1x1x128xf32> to vector<8x16x128xf32>
    %421 = arith.mulf %418, %420 : vector<8x16x128xf32>
    %422 = arith.addf %417, %421 : vector<8x16x128xf32>
    %423 = vector.extract_strided_slice %412 {offsets = [0, 7, 0], sizes = [8, 16, 128], strides = [1, 1, 1]} : vector<8x27x128xf32> to vector<8x16x128xf32>
    %424 = vector.shape_cast %31 : vector<1x128xf32> to vector<1x1x128xf32>
    %425 = vector.broadcast %424 : vector<1x1x128xf32> to vector<8x16x128xf32>
    %426 = arith.mulf %423, %425 : vector<8x16x128xf32>
    %427 = arith.addf %422, %426 : vector<8x16x128xf32>
    %428 = vector.extract_strided_slice %412 {offsets = [0, 8, 0], sizes = [8, 16, 128], strides = [1, 1, 1]} : vector<8x27x128xf32> to vector<8x16x128xf32>
    %429 = vector.shape_cast %33 : vector<1x128xf32> to vector<1x1x128xf32>
    %430 = vector.broadcast %429 : vector<1x1x128xf32> to vector<8x16x128xf32>
    %431 = arith.mulf %428, %430 : vector<8x16x128xf32>
    %432 = arith.addf %427, %431 : vector<8x16x128xf32>
    %433 = vector.extract_strided_slice %412 {offsets = [0, 9, 0], sizes = [8, 16, 128], strides = [1, 1, 1]} : vector<8x27x128xf32> to vector<8x16x128xf32>
    %434 = vector.shape_cast %35 : vector<1x128xf32> to vector<1x1x128xf32>
    %435 = vector.broadcast %434 : vector<1x1x128xf32> to vector<8x16x128xf32>
    %436 = arith.mulf %433, %435 : vector<8x16x128xf32>
    %437 = arith.addf %432, %436 : vector<8x16x128xf32>
    %438 = vector.extract_strided_slice %412 {offsets = [0, 10, 0], sizes = [8, 16, 128], strides = [1, 1, 1]} : vector<8x27x128xf32> to vector<8x16x128xf32>
    %439 = vector.shape_cast %37 : vector<1x128xf32> to vector<1x1x128xf32>
    %440 = vector.broadcast %439 : vector<1x1x128xf32> to vector<8x16x128xf32>
    %441 = arith.mulf %438, %440 : vector<8x16x128xf32>
    %442 = arith.addf %437, %441 : vector<8x16x128xf32>
    %443 = vector.extract_strided_slice %412 {offsets = [0, 11, 0], sizes = [8, 16, 128], strides = [1, 1, 1]} : vector<8x27x128xf32> to vector<8x16x128xf32>
    %444 = vector.shape_cast %39 : vector<1x128xf32> to vector<1x1x128xf32>
    %445 = vector.broadcast %444 : vector<1x1x128xf32> to vector<8x16x128xf32>
    %446 = arith.mulf %443, %445 : vector<8x16x128xf32>
    %447 = arith.addf %442, %446 : vector<8x16x128xf32>
    %c10 = arith.constant 10 : index
    %c0_52 = arith.constant 0 : index
    %c0_53 = arith.constant 0 : index
    %448 = vector.load %arg5[%c10, %c0_52, %c0_53] : memref<22x27x128xf32, #tpu.memory_space<vmem>>, vector<8x27x128xf32>
    %449 = vector.extract_strided_slice %448 {offsets = [0, 5, 0], sizes = [8, 16, 128], strides = [1, 1, 1]} : vector<8x27x128xf32> to vector<8x16x128xf32>
    %450 = vector.shape_cast %41 : vector<1x128xf32> to vector<1x1x128xf32>
    %451 = vector.broadcast %450 : vector<1x1x128xf32> to vector<8x16x128xf32>
    %452 = arith.mulf %449, %451 : vector<8x16x128xf32>
    %453 = arith.addf %447, %452 : vector<8x16x128xf32>
    %454 = vector.extract_strided_slice %448 {offsets = [0, 6, 0], sizes = [8, 16, 128], strides = [1, 1, 1]} : vector<8x27x128xf32> to vector<8x16x128xf32>
    %455 = vector.shape_cast %43 : vector<1x128xf32> to vector<1x1x128xf32>
    %456 = vector.broadcast %455 : vector<1x1x128xf32> to vector<8x16x128xf32>
    %457 = arith.mulf %454, %456 : vector<8x16x128xf32>
    %458 = arith.addf %453, %457 : vector<8x16x128xf32>
    %459 = vector.extract_strided_slice %448 {offsets = [0, 7, 0], sizes = [8, 16, 128], strides = [1, 1, 1]} : vector<8x27x128xf32> to vector<8x16x128xf32>
    %460 = vector.shape_cast %45 : vector<1x128xf32> to vector<1x1x128xf32>
    %461 = vector.broadcast %460 : vector<1x1x128xf32> to vector<8x16x128xf32>
    %462 = arith.mulf %459, %461 : vector<8x16x128xf32>
    %463 = arith.addf %458, %462 : vector<8x16x128xf32>
    %464 = vector.extract_strided_slice %448 {offsets = [0, 8, 0], sizes = [8, 16, 128], strides = [1, 1, 1]} : vector<8x27x128xf32> to vector<8x16x128xf32>
    %465 = vector.shape_cast %47 : vector<1x128xf32> to vector<1x1x128xf32>
    %466 = vector.broadcast %465 : vector<1x1x128xf32> to vector<8x16x128xf32>
    %467 = arith.mulf %464, %466 : vector<8x16x128xf32>
    %468 = arith.addf %463, %467 : vector<8x16x128xf32>
    %469 = vector.extract_strided_slice %448 {offsets = [0, 9, 0], sizes = [8, 16, 128], strides = [1, 1, 1]} : vector<8x27x128xf32> to vector<8x16x128xf32>
    %470 = vector.shape_cast %49 : vector<1x128xf32> to vector<1x1x128xf32>
    %471 = vector.broadcast %470 : vector<1x1x128xf32> to vector<8x16x128xf32>
    %472 = arith.mulf %469, %471 : vector<8x16x128xf32>
    %473 = arith.addf %468, %472 : vector<8x16x128xf32>
    %474 = vector.extract_strided_slice %448 {offsets = [0, 10, 0], sizes = [8, 16, 128], strides = [1, 1, 1]} : vector<8x27x128xf32> to vector<8x16x128xf32>
    %475 = vector.shape_cast %51 : vector<1x128xf32> to vector<1x1x128xf32>
    %476 = vector.broadcast %475 : vector<1x1x128xf32> to vector<8x16x128xf32>
    %477 = arith.mulf %474, %476 : vector<8x16x128xf32>
    %478 = arith.addf %473, %477 : vector<8x16x128xf32>
    %479 = vector.extract_strided_slice %448 {offsets = [0, 11, 0], sizes = [8, 16, 128], strides = [1, 1, 1]} : vector<8x27x128xf32> to vector<8x16x128xf32>
    %480 = vector.shape_cast %53 : vector<1x128xf32> to vector<1x1x128xf32>
    %481 = vector.broadcast %480 : vector<1x1x128xf32> to vector<8x16x128xf32>
    %482 = arith.mulf %479, %481 : vector<8x16x128xf32>
    %483 = arith.addf %478, %482 : vector<8x16x128xf32>
    %c11 = arith.constant 11 : index
    %c0_54 = arith.constant 0 : index
    %c0_55 = arith.constant 0 : index
    %484 = vector.load %arg5[%c11, %c0_54, %c0_55] : memref<22x27x128xf32, #tpu.memory_space<vmem>>, vector<8x27x128xf32>
    %485 = vector.extract_strided_slice %484 {offsets = [0, 5, 0], sizes = [8, 16, 128], strides = [1, 1, 1]} : vector<8x27x128xf32> to vector<8x16x128xf32>
    %486 = vector.shape_cast %55 : vector<1x128xf32> to vector<1x1x128xf32>
    %487 = vector.broadcast %486 : vector<1x1x128xf32> to vector<8x16x128xf32>
    %488 = arith.mulf %485, %487 : vector<8x16x128xf32>
    %489 = arith.addf %483, %488 : vector<8x16x128xf32>
    %490 = vector.extract_strided_slice %484 {offsets = [0, 6, 0], sizes = [8, 16, 128], strides = [1, 1, 1]} : vector<8x27x128xf32> to vector<8x16x128xf32>
    %491 = vector.shape_cast %57 : vector<1x128xf32> to vector<1x1x128xf32>
    %492 = vector.broadcast %491 : vector<1x1x128xf32> to vector<8x16x128xf32>
    %493 = arith.mulf %490, %492 : vector<8x16x128xf32>
    %494 = arith.addf %489, %493 : vector<8x16x128xf32>
    %495 = vector.extract_strided_slice %484 {offsets = [0, 7, 0], sizes = [8, 16, 128], strides = [1, 1, 1]} : vector<8x27x128xf32> to vector<8x16x128xf32>
    %496 = vector.shape_cast %59 : vector<1x128xf32> to vector<1x1x128xf32>
    %497 = vector.broadcast %496 : vector<1x1x128xf32> to vector<8x16x128xf32>
    %498 = arith.mulf %495, %497 : vector<8x16x128xf32>
    %499 = arith.addf %494, %498 : vector<8x16x128xf32>
    %500 = vector.extract_strided_slice %484 {offsets = [0, 8, 0], sizes = [8, 16, 128], strides = [1, 1, 1]} : vector<8x27x128xf32> to vector<8x16x128xf32>
    %501 = vector.shape_cast %61 : vector<1x128xf32> to vector<1x1x128xf32>
    %502 = vector.broadcast %501 : vector<1x1x128xf32> to vector<8x16x128xf32>
    %503 = arith.mulf %500, %502 : vector<8x16x128xf32>
    %504 = arith.addf %499, %503 : vector<8x16x128xf32>
    %505 = vector.extract_strided_slice %484 {offsets = [0, 9, 0], sizes = [8, 16, 128], strides = [1, 1, 1]} : vector<8x27x128xf32> to vector<8x16x128xf32>
    %506 = vector.shape_cast %63 : vector<1x128xf32> to vector<1x1x128xf32>
    %507 = vector.broadcast %506 : vector<1x1x128xf32> to vector<8x16x128xf32>
    %508 = arith.mulf %505, %507 : vector<8x16x128xf32>
    %509 = arith.addf %504, %508 : vector<8x16x128xf32>
    %510 = vector.extract_strided_slice %484 {offsets = [0, 10, 0], sizes = [8, 16, 128], strides = [1, 1, 1]} : vector<8x27x128xf32> to vector<8x16x128xf32>
    %511 = vector.shape_cast %65 : vector<1x128xf32> to vector<1x1x128xf32>
    %512 = vector.broadcast %511 : vector<1x1x128xf32> to vector<8x16x128xf32>
    %513 = arith.mulf %510, %512 : vector<8x16x128xf32>
    %514 = arith.addf %509, %513 : vector<8x16x128xf32>
    %515 = vector.extract_strided_slice %484 {offsets = [0, 11, 0], sizes = [8, 16, 128], strides = [1, 1, 1]} : vector<8x27x128xf32> to vector<8x16x128xf32>
    %516 = vector.shape_cast %67 : vector<1x128xf32> to vector<1x1x128xf32>
    %517 = vector.broadcast %516 : vector<1x1x128xf32> to vector<8x16x128xf32>
    %518 = arith.mulf %515, %517 : vector<8x16x128xf32>
    %519 = arith.addf %514, %518 : vector<8x16x128xf32>
    %c12 = arith.constant 12 : index
    %c0_56 = arith.constant 0 : index
    %c0_57 = arith.constant 0 : index
    %520 = vector.load %arg5[%c12, %c0_56, %c0_57] : memref<22x27x128xf32, #tpu.memory_space<vmem>>, vector<8x27x128xf32>
    %521 = vector.extract_strided_slice %520 {offsets = [0, 5, 0], sizes = [8, 16, 128], strides = [1, 1, 1]} : vector<8x27x128xf32> to vector<8x16x128xf32>
    %522 = vector.shape_cast %69 : vector<1x128xf32> to vector<1x1x128xf32>
    %523 = vector.broadcast %522 : vector<1x1x128xf32> to vector<8x16x128xf32>
    %524 = arith.mulf %521, %523 : vector<8x16x128xf32>
    %525 = arith.addf %519, %524 : vector<8x16x128xf32>
    %526 = vector.extract_strided_slice %520 {offsets = [0, 6, 0], sizes = [8, 16, 128], strides = [1, 1, 1]} : vector<8x27x128xf32> to vector<8x16x128xf32>
    %527 = vector.shape_cast %71 : vector<1x128xf32> to vector<1x1x128xf32>
    %528 = vector.broadcast %527 : vector<1x1x128xf32> to vector<8x16x128xf32>
    %529 = arith.mulf %526, %528 : vector<8x16x128xf32>
    %530 = arith.addf %525, %529 : vector<8x16x128xf32>
    %531 = vector.extract_strided_slice %520 {offsets = [0, 7, 0], sizes = [8, 16, 128], strides = [1, 1, 1]} : vector<8x27x128xf32> to vector<8x16x128xf32>
    %532 = vector.shape_cast %73 : vector<1x128xf32> to vector<1x1x128xf32>
    %533 = vector.broadcast %532 : vector<1x1x128xf32> to vector<8x16x128xf32>
    %534 = arith.mulf %531, %533 : vector<8x16x128xf32>
    %535 = arith.addf %530, %534 : vector<8x16x128xf32>
    %536 = vector.extract_strided_slice %520 {offsets = [0, 8, 0], sizes = [8, 16, 128], strides = [1, 1, 1]} : vector<8x27x128xf32> to vector<8x16x128xf32>
    %537 = vector.shape_cast %75 : vector<1x128xf32> to vector<1x1x128xf32>
    %538 = vector.broadcast %537 : vector<1x1x128xf32> to vector<8x16x128xf32>
    %539 = arith.mulf %536, %538 : vector<8x16x128xf32>
    %540 = arith.addf %535, %539 : vector<8x16x128xf32>
    %541 = vector.extract_strided_slice %520 {offsets = [0, 9, 0], sizes = [8, 16, 128], strides = [1, 1, 1]} : vector<8x27x128xf32> to vector<8x16x128xf32>
    %542 = vector.shape_cast %77 : vector<1x128xf32> to vector<1x1x128xf32>
    %543 = vector.broadcast %542 : vector<1x1x128xf32> to vector<8x16x128xf32>
    %544 = arith.mulf %541, %543 : vector<8x16x128xf32>
    %545 = arith.addf %540, %544 : vector<8x16x128xf32>
    %546 = vector.extract_strided_slice %520 {offsets = [0, 10, 0], sizes = [8, 16, 128], strides = [1, 1, 1]} : vector<8x27x128xf32> to vector<8x16x128xf32>
    %547 = vector.shape_cast %79 : vector<1x128xf32> to vector<1x1x128xf32>
    %548 = vector.broadcast %547 : vector<1x1x128xf32> to vector<8x16x128xf32>
    %549 = arith.mulf %546, %548 : vector<8x16x128xf32>
    %550 = arith.addf %545, %549 : vector<8x16x128xf32>
    %551 = vector.extract_strided_slice %520 {offsets = [0, 11, 0], sizes = [8, 16, 128], strides = [1, 1, 1]} : vector<8x27x128xf32> to vector<8x16x128xf32>
    %552 = vector.shape_cast %81 : vector<1x128xf32> to vector<1x1x128xf32>
    %553 = vector.broadcast %552 : vector<1x1x128xf32> to vector<8x16x128xf32>
    %554 = arith.mulf %551, %553 : vector<8x16x128xf32>
    %555 = arith.addf %550, %554 : vector<8x16x128xf32>
    %c13 = arith.constant 13 : index
    %c0_58 = arith.constant 0 : index
    %c0_59 = arith.constant 0 : index
    %556 = vector.load %arg5[%c13, %c0_58, %c0_59] : memref<22x27x128xf32, #tpu.memory_space<vmem>>, vector<8x27x128xf32>
    %557 = vector.extract_strided_slice %556 {offsets = [0, 5, 0], sizes = [8, 16, 128], strides = [1, 1, 1]} : vector<8x27x128xf32> to vector<8x16x128xf32>
    %558 = vector.shape_cast %83 : vector<1x128xf32> to vector<1x1x128xf32>
    %559 = vector.broadcast %558 : vector<1x1x128xf32> to vector<8x16x128xf32>
    %560 = arith.mulf %557, %559 : vector<8x16x128xf32>
    %561 = arith.addf %555, %560 : vector<8x16x128xf32>
    %562 = vector.extract_strided_slice %556 {offsets = [0, 6, 0], sizes = [8, 16, 128], strides = [1, 1, 1]} : vector<8x27x128xf32> to vector<8x16x128xf32>
    %563 = vector.shape_cast %85 : vector<1x128xf32> to vector<1x1x128xf32>
    %564 = vector.broadcast %563 : vector<1x1x128xf32> to vector<8x16x128xf32>
    %565 = arith.mulf %562, %564 : vector<8x16x128xf32>
    %566 = arith.addf %561, %565 : vector<8x16x128xf32>
    %567 = vector.extract_strided_slice %556 {offsets = [0, 7, 0], sizes = [8, 16, 128], strides = [1, 1, 1]} : vector<8x27x128xf32> to vector<8x16x128xf32>
    %568 = vector.shape_cast %87 : vector<1x128xf32> to vector<1x1x128xf32>
    %569 = vector.broadcast %568 : vector<1x1x128xf32> to vector<8x16x128xf32>
    %570 = arith.mulf %567, %569 : vector<8x16x128xf32>
    %571 = arith.addf %566, %570 : vector<8x16x128xf32>
    %572 = vector.extract_strided_slice %556 {offsets = [0, 8, 0], sizes = [8, 16, 128], strides = [1, 1, 1]} : vector<8x27x128xf32> to vector<8x16x128xf32>
    %573 = vector.shape_cast %89 : vector<1x128xf32> to vector<1x1x128xf32>
    %574 = vector.broadcast %573 : vector<1x1x128xf32> to vector<8x16x128xf32>
    %575 = arith.mulf %572, %574 : vector<8x16x128xf32>
    %576 = arith.addf %571, %575 : vector<8x16x128xf32>
    %577 = vector.extract_strided_slice %556 {offsets = [0, 9, 0], sizes = [8, 16, 128], strides = [1, 1, 1]} : vector<8x27x128xf32> to vector<8x16x128xf32>
    %578 = vector.shape_cast %91 : vector<1x128xf32> to vector<1x1x128xf32>
    %579 = vector.broadcast %578 : vector<1x1x128xf32> to vector<8x16x128xf32>
    %580 = arith.mulf %577, %579 : vector<8x16x128xf32>
    %581 = arith.addf %576, %580 : vector<8x16x128xf32>
    %582 = vector.extract_strided_slice %556 {offsets = [0, 10, 0], sizes = [8, 16, 128], strides = [1, 1, 1]} : vector<8x27x128xf32> to vector<8x16x128xf32>
    %583 = vector.shape_cast %93 : vector<1x128xf32> to vector<1x1x128xf32>
    %584 = vector.broadcast %583 : vector<1x1x128xf32> to vector<8x16x128xf32>
    %585 = arith.mulf %582, %584 : vector<8x16x128xf32>
    %586 = arith.addf %581, %585 : vector<8x16x128xf32>
    %587 = vector.extract_strided_slice %556 {offsets = [0, 11, 0], sizes = [8, 16, 128], strides = [1, 1, 1]} : vector<8x27x128xf32> to vector<8x16x128xf32>
    %588 = vector.shape_cast %95 : vector<1x128xf32> to vector<1x1x128xf32>
    %589 = vector.broadcast %588 : vector<1x1x128xf32> to vector<8x16x128xf32>
    %590 = arith.mulf %587, %589 : vector<8x16x128xf32>
    %591 = arith.addf %586, %590 : vector<8x16x128xf32>
    %c14 = arith.constant 14 : index
    %c0_60 = arith.constant 0 : index
    %c0_61 = arith.constant 0 : index
    %592 = vector.load %arg5[%c14, %c0_60, %c0_61] : memref<22x27x128xf32, #tpu.memory_space<vmem>>, vector<8x27x128xf32>
    %593 = vector.extract_strided_slice %592 {offsets = [0, 5, 0], sizes = [8, 16, 128], strides = [1, 1, 1]} : vector<8x27x128xf32> to vector<8x16x128xf32>
    %594 = vector.shape_cast %97 : vector<1x128xf32> to vector<1x1x128xf32>
    %595 = vector.broadcast %594 : vector<1x1x128xf32> to vector<8x16x128xf32>
    %596 = arith.mulf %593, %595 : vector<8x16x128xf32>
    %597 = arith.addf %591, %596 : vector<8x16x128xf32>
    %598 = vector.extract_strided_slice %592 {offsets = [0, 6, 0], sizes = [8, 16, 128], strides = [1, 1, 1]} : vector<8x27x128xf32> to vector<8x16x128xf32>
    %599 = vector.shape_cast %99 : vector<1x128xf32> to vector<1x1x128xf32>
    %600 = vector.broadcast %599 : vector<1x1x128xf32> to vector<8x16x128xf32>
    %601 = arith.mulf %598, %600 : vector<8x16x128xf32>
    %602 = arith.addf %597, %601 : vector<8x16x128xf32>
    %603 = vector.extract_strided_slice %592 {offsets = [0, 7, 0], sizes = [8, 16, 128], strides = [1, 1, 1]} : vector<8x27x128xf32> to vector<8x16x128xf32>
    %604 = vector.shape_cast %101 : vector<1x128xf32> to vector<1x1x128xf32>
    %605 = vector.broadcast %604 : vector<1x1x128xf32> to vector<8x16x128xf32>
    %606 = arith.mulf %603, %605 : vector<8x16x128xf32>
    %607 = arith.addf %602, %606 : vector<8x16x128xf32>
    %608 = vector.extract_strided_slice %592 {offsets = [0, 8, 0], sizes = [8, 16, 128], strides = [1, 1, 1]} : vector<8x27x128xf32> to vector<8x16x128xf32>
    %609 = vector.shape_cast %103 : vector<1x128xf32> to vector<1x1x128xf32>
    %610 = vector.broadcast %609 : vector<1x1x128xf32> to vector<8x16x128xf32>
    %611 = arith.mulf %608, %610 : vector<8x16x128xf32>
    %612 = arith.addf %607, %611 : vector<8x16x128xf32>
    %613 = vector.extract_strided_slice %592 {offsets = [0, 9, 0], sizes = [8, 16, 128], strides = [1, 1, 1]} : vector<8x27x128xf32> to vector<8x16x128xf32>
    %614 = vector.shape_cast %105 : vector<1x128xf32> to vector<1x1x128xf32>
    %615 = vector.broadcast %614 : vector<1x1x128xf32> to vector<8x16x128xf32>
    %616 = arith.mulf %613, %615 : vector<8x16x128xf32>
    %617 = arith.addf %612, %616 : vector<8x16x128xf32>
    %618 = vector.extract_strided_slice %592 {offsets = [0, 10, 0], sizes = [8, 16, 128], strides = [1, 1, 1]} : vector<8x27x128xf32> to vector<8x16x128xf32>
    %619 = vector.shape_cast %107 : vector<1x128xf32> to vector<1x1x128xf32>
    %620 = vector.broadcast %619 : vector<1x1x128xf32> to vector<8x16x128xf32>
    %621 = arith.mulf %618, %620 : vector<8x16x128xf32>
    %622 = arith.addf %617, %621 : vector<8x16x128xf32>
    %623 = vector.extract_strided_slice %592 {offsets = [0, 11, 0], sizes = [8, 16, 128], strides = [1, 1, 1]} : vector<8x27x128xf32> to vector<8x16x128xf32>
    %624 = vector.shape_cast %109 : vector<1x128xf32> to vector<1x1x128xf32>
    %625 = vector.broadcast %624 : vector<1x1x128xf32> to vector<8x16x128xf32>
    %626 = arith.mulf %623, %625 : vector<8x16x128xf32>
    %627 = arith.addf %622, %626 : vector<8x16x128xf32>
    %cst_62 = arith.constant 0.000000e+00 : f32
    %628 = vector.broadcast %cst_62 : f32 to vector<8x16x128xf32>
    %629 = arith.subf %628, %627 : vector<8x16x128xf32>
    %630 = math.exp %629 : vector<8x16x128xf32>
    %cst_63 = arith.constant 1.000000e+00 : f32
    %631 = vector.broadcast %cst_63 : f32 to vector<8x16x128xf32>
    %632 = arith.addf %631, %630 : vector<8x16x128xf32>
    %633 = tpu.reciprocal %632 {approx = true} : vector<8x16x128xf32> -> vector<8x16x128xf32>
    %c11_64 = arith.constant 11 : index
    %c8_65 = arith.constant 8 : index
    %c0_66 = arith.constant 0 : index
    %634 = vector.load %arg5[%c11_64, %c8_65, %c0_66] : memref<22x27x128xf32, #tpu.memory_space<vmem>>, vector<8x16x128xf32>
    %635 = arith.mulf %634, %633 : vector<8x16x128xf32>
    %c0_67 = arith.constant 0 : index
    %c8_68 = arith.constant 8 : index
    %c0_69 = arith.constant 0 : index
    %c0_70 = arith.constant 0 : index
    %636 = vector.load %arg4[%c0_67, %c8_68, %c0_69, %c0_70] : memref<1x16x16x128xf32, #tpu.memory_space<vmem>>, vector<1x8x16x128xf32>
    %637 = vector.shape_cast %636 : vector<1x8x16x128xf32> to vector<8x16x128xf32>
    %638 = vector.shape_cast %635 : vector<8x16x128xf32> to vector<1x8x16x128xf32>
    tpu.vector_store %arg4[%c0_67, %c8_68, %c0_69, %c0_70], %638 {strides = array<i32>} : memref<1x16x16x128xf32, #tpu.memory_space<vmem>>, vector<1x8x16x128xf32>,
    return
  }
  func.func @transform_0(%arg0: i32) -> (i32, i32, i32, i32) {
    %c0_i32 = arith.constant 0 : i32
    %c0_i32_0 = arith.constant 0 : i32
    %c0_i32_1 = arith.constant 0 : i32
    %c0_i32_2 = arith.constant 0 : i32
    return %arg0, %c0_i32, %c0_i32_0, %c0_i32_1 : i32, i32, i32, i32
  }
  func.func @transform_1(%arg0: i32) -> (i32, i32, i32) {
    %c0_i32 = arith.constant 0 : i32
    %c0_i32_0 = arith.constant 0 : i32
    %c0_i32_1 = arith.constant 0 : i32
    %c0_i32_2 = arith.constant 0 : i32
    return %c0_i32, %c0_i32_0, %c0_i32_1 : i32, i32, i32
  }
  func.func @transform_2(%arg0: i32) -> (i32, i32) {
    %c0_i32 = arith.constant 0 : i32
    %c0_i32_0 = arith.constant 0 : i32
    %c0_i32_1 = arith.constant 0 : i32
    return %c0_i32, %c0_i32_0 : i32, i32
  }
  func.func @transform_3(%arg0: i32) -> (i32, i32, i32, i32) {
    %c0_i32 = arith.constant 0 : i32
    %c0_i32_0 = arith.constant 0 : i32
    %c0_i32_1 = arith.constant 0 : i32
    %c0_i32_2 = arith.constant 0 : i32
    return %arg0, %c0_i32, %c0_i32_0, %c0_i32_1 : i32, i32, i32, i32
  }
}

</mosaic_0001>

<llo_original>
// kernel: tpu_custom_call.1
$region0: #{tpu_custom_call.1}
  #allocation0 [shape = 'u32[]', space=smem, size = 0x4, offset = 0x4, fixed_abs, tag = 'smem constant byte address 0x4 - core index']
  #allocation1 [shape = 'u32[72,128]{1,0:T(1,128)}', space=vmem, size = 0x9000, scoped, tag = 'internal scratch']
  #allocation2 [shape = 'f32[22,27,128]{2,1,0:T(8,128)}', space=vmem, size = 0x58000, scoped, tag = 'scratch operand']
  %s0 = inlined_call_operand.hbm [shape: f32[2,16,16,128], index: 0, kind: input, shape index: {}]
  %s1 = inlined_call_operand.hbm [shape: f32[49,1,128], index: 1, kind: input, shape index: {}]
  %s2 = inlined_call_operand.vmem [shape: f32[1,128], index: 2, kind: input, shape index: {}]
  %s3 = inlined_call_operand.hbm [shape: f32[2,16,16,128], index: 3, kind: output, shape index: {}]
  %s4 = sld [smem:[#allocation0]]
  $region53: #{tpu_custom_call.1} parent=0
    _
  %s6 = ssub.s32 1, %s4
  %s7 = scalar_select 0, %s6, %s4
  $region1: #{tpu_custom_call.1} parent=0
    #allocation3 [shape = 'u8[262144]{0}', space=vmem, size = 0x40000, scoped, tag = 'input window, operand 0']
    #allocation4 [shape = 's32[2]{0}', space=sflag, size = 0x8, scoped, tag = 'scoped memory for tpu_custom_call.1']
    #allocation5 [shape = 's32[2]{0}', space=sflag, size = 0x8, scoped, tag = 'scoped memory for tpu_custom_call.1']
    #allocation6 [shape = 'u8[25088]{0}', space=vmem, size = 0x6400, scoped, tag = 'input window, operand 1, single buffered']
    #allocation7 [shape = 's32[1]{0}', space=sflag, size = 0x4, scoped, tag = 'scoped memory for tpu_custom_call.1']
    #allocation8 [shape = 'u8[262144]{0}', space=vmem, size = 0x40000, scoped, tag = 'output window, operand 0']
    %8 = vsyncpa [#allocation4], 0
    %s9 = scalar_lea.sflag [#allocation4], 1
    %10 = vsyncpa %s9, 0
    %11 = vsyncpa [#allocation7], 0
    %12 = vsyncpa [#allocation5], 0
    %s13 = scalar_lea.sflag [#allocation5], 1
    %14 = vsyncpa %s13, 0
    loop: start=0, step=1, limit=4
    $region2: #{tpu_custom_call.1} parent=1 // loop_pre_header
      _
    $region3: #{tpu_custom_call.1} parent=1 // loop_header
      %s16 = sphi 0, %s20
      %p17 = scmp.ge.s32.totalorder %s16, 4
      %s26 = sphi 0, %s28
      %s29 = sphi 0, %s26
      %s30 = sphi 0, %s29
      %s46 = sphi 0, %s30
      %s50 = sphi 0, %s50
      %s52 = sphi 0, %s50
      %s53 = sphi 0, %s52
      %s67 = sphi 0, %s53
      %s71 = sphi 0, %s71
      %s73 = sphi 0, %s71
      %s74 = sphi 0, %s73
      %s88 = sphi 0, %s74
      %s94 = sphi 0, %s96
      %s97 = sphi 0, %s94
      %s98 = sphi 0, %s97
      %s114 = sphi 0, %s98
    $region4: #{tpu_custom_call.1} parent=1 // loop_header_branch
      %19 = sbr.rel (%p17) target = $region8
    $region5: #{tpu_custom_call.1} parent=1 // loop_body
      %s21 = ssub.s32 %s16, 1
      %s22 = ssub.s32 %s16, 2
      %s23 = sadd.s32 %s16, 1
      %s24 = ssub.s32 %s16, %s23
      %p25 = scmp.eq.s32.totalorder %s24, 0
      %s27 = sadd.s32 %s26, 1
      %s28 = scalar_select %p25, %s26, %s27
      %p31 = pneg %p25
      %p32 = scmp.eq.s32.totalorder %s16, 1
      %p33 = por %p31, %p32
      %p34 = scmp.ne.s32.totalorder %s26, %s29
      %p35 = scmp.eq.s32.totalorder %s16, 0
      %p36 = por %p34, %p35
      %p37 = scmp.ne.s32.totalorder %s26, %s29
      %p38 = scmp.eq.s32.totalorder %s21, 1
      %p39 = por %p37, %p38
      %p40 = scmp.ne.s32.totalorder %s29, %s30
      %p41 = scmp.eq.s32.totalorder %s21, 0
      %p42 = por %p40, %p41
      %p43 = scmp.ne.s32.totalorder %s29, %s30
      %p44 = scmp.eq.s32.totalorder %s22, 1
      %p45 = por %p43, %p44
      %p47 = scmp.ne.s32.totalorder %s30, %s46
      %p48 = scmp.eq.s32.totalorder %s22, 0
      %p49 = por %p47, %p48
      %s51 = sadd.s32 %s50, 1
      %p54 = scmp.eq.s32.totalorder %s16, 1
      %p55 = scmp.ne.s32.totalorder %s50, %s52
      %p56 = scmp.eq.s32.totalorder %s16, 0
      %p57 = por %p55, %p56
      %p58 = scmp.ne.s32.totalorder %s50, %s52
      %p59 = scmp.eq.s32.totalorder %s21, 1
      %p60 = por %p58, %p59
      %p61 = scmp.ne.s32.totalorder %s52, %s53
      %p62 = scmp.eq.s32.totalorder %s21, 0
      %p63 = por %p61, %p62
      %p64 = scmp.ne.s32.totalorder %s52, %s53
      %p65 = scmp.eq.s32.totalorder %s22, 1
      %p66 = por %p64, %p65
      %p68 = scmp.ne.s32.totalorder %s53, %s67
      %p69 = scmp.eq.s32.totalorder %s22, 0
      %p70 = por %p68, %p69
      %s72 = sadd.s32 %s71, 1
      %p75 = scmp.eq.s32.totalorder %s16, 1
      %p76 = scmp.ne.s32.totalorder %s71, %s73
      %p77 = scmp.eq.s32.totalorder %s16, 0
      %p78 = por %p76, %p77
      %p79 = scmp.ne.s32.totalorder %s71, %s73
      %p80 = scmp.eq.s32.totalorder %s21, 1
      %p81 = por %p79, %p80
      %p82 = scmp.ne.s32.totalorder %s73, %s74
      %p83 = scmp.eq.s32.totalorder %s21, 0
      %p84 = por %p82, %p83
      %p85 = scmp.ne.s32.totalorder %s73, %s74
      %p86 = scmp.eq.s32.totalorder %s22, 1
      %p87 = por %p85, %p86
      %p89 = scmp.ne.s32.totalorder %s74, %s88
      %p90 = scmp.eq.s32.totalorder %s22, 0
      %p91 = por %p89, %p90
      %s92 = ssub.s32 %s16, %s23
      %p93 = scmp.eq.s32.totalorder %s92, 0
      %s95 = sadd.s32 %s94, 1
      %s96 = scalar_select %p93, %s94, %s95
      %p99 = pneg %p93
      %p100 = scmp.eq.s32.totalorder %s16, 1
      %p101 = por %p99, %p100
      %p102 = scmp.ne.s32.totalorder %s94, %s97
      %p103 = scmp.eq.s32.totalorder %s16, 0
      %p104 = por %p102, %p103
      %p105 = scmp.ne.s32.totalorder %s94, %s97
      %p106 = scmp.eq.s32.totalorder %s21, 1
      %p107 = por %p105, %p106
      %p108 = scmp.ne.s32.totalorder %s97, %s98
      %p109 = scmp.eq.s32.totalorder %s21, 0
      %p110 = por %p108, %p109
      %p111 = scmp.ne.s32.totalorder %s97, %s98
      %p112 = scmp.eq.s32.totalorder %s22, 1
      %p113 = por %p111, %p112
      %p115 = scmp.ne.s32.totalorder %s98, %s114
      %p116 = scmp.eq.s32.totalorder %s22, 0
      %p117 = por %p115, %p116
      %p118 = scmp.le.s32.totalorder 1, %s16
      %p119 = scmp.lt.s32.totalorder %s16, 3
      %p120 = pnand %p118, %p119
      %p121 = pneg %p120
      // Predicated region
      $region9: #{tpu_custom_call.1} parent=5 // pred_check
        _
      $region10: #{tpu_custom_call.1} parent=5 // pred_check_branch
        %123 = sbr.rel (%p120) target = $region12
      $region11: #{tpu_custom_call.1} parent=5 // pred_region
        %s124 = ssub.s32 %s16, 1
        // Predicated region
        $region13: #{tpu_custom_call.1} parent=11 // pred_check
          %p125 = pneg %p63
        $region14: #{tpu_custom_call.1} parent=11 // pred_check_branch
          %127 = sbr.rel (%p125) target = $region16
        $region15: #{tpu_custom_call.1} parent=11 // pred_region
          %129 = vsyncadd [#allocation7], 0
          %s130 = sshll.u32 %s1, 4
          %s131 = int_to_ptr.hbm [resolvable:$true] %s130
          %s132 = sshll.u32 [#allocation6], 4
          %s133 = int_to_ptr.vmem [resolvable:$true] %s132
          %138 = dma.hbm_to_vmem [thread:$0]  %s131, 784, %s133, [#allocation7], 16, 16, 1
        $region16: #{tpu_custom_call.1} parent=11 // pred_fallthru
          _
        // Predicated region
        $region17: #{tpu_custom_call.1} parent=11 // pred_check
          %p139 = pneg %p84
        $region18: #{tpu_custom_call.1} parent=11 // pred_check_branch
          %141 = sbr.rel (%p139) target = $region20
        $region19: #{tpu_custom_call.1} parent=11 // pred_region
          _
        $region20: #{tpu_custom_call.1} parent=11 // pred_fallthru
          _
      $region12: #{tpu_custom_call.1} parent=5 // pred_fallthru
        _
      %p142 = scmp.lt.s32.totalorder %s16, 2
      // Predicated region
      $region21: #{tpu_custom_call.1} parent=5 // pred_check
        %p143 = pneg %p142
      $region22: #{tpu_custom_call.1} parent=5 // pred_check_branch
        %145 = sbr.rel (%p143) target = $region24
      $region23: #{tpu_custom_call.1} parent=5 // pred_region
        // Predicated region
        $region25: #{tpu_custom_call.1} parent=23 // pred_check
          %p146 = pneg %p36
        $region26: #{tpu_custom_call.1} parent=23 // pred_check_branch
          %148 = sbr.rel (%p146) target = $region28
        $region27: #{tpu_custom_call.1} parent=23 // pred_region
          %s149 = sand.u32 %s26, 1
          %s150 = scalar_lea.sflag [#allocation4], %s149
          %s151 = sand.u32 %s26, 1
          %s152 = smul.addr %s151, 256
          %s153 = scalar_lea.vmem [#allocation3], %s152
          %155 = vsyncadd %s150, 0
          %s156 = smul.addr %s16, 32
          %s157 = smul.addr %s156, 8
          %s158 = scalar_lea.hbm %s0, %s157
          %s159 = sshll.u32 %s158, 4
          %s160 = int_to_ptr.hbm [resolvable:$true] %s159
          %s161 = sshll.u32 %s153, 4
          %s162 = int_to_ptr.vmem [resolvable:$true] %s161
          %167 = dma.hbm_to_vmem [thread:$0]  %s160, 4096, %s162, %s150, 128, 128, 8
        $region28: #{tpu_custom_call.1} parent=23 // pred_fallthru
          _
      $region24: #{tpu_custom_call.1} parent=5 // pred_fallthru
        _
      %p168 = scmp.le.s32.totalorder 1, %s16
      %p169 = scmp.lt.s32.totalorder %s16, 3
      %p170 = pnand %p168, %p169
      %p171 = pneg %p170
      // Predicated region
      $region29: #{tpu_custom_call.1} parent=5 // pred_check
        _
      $region30: #{tpu_custom_call.1} parent=5 // pred_check_branch
        %173 = sbr.rel (%p170) target = $region32
      $region31: #{tpu_custom_call.1} parent=5 // pred_region
        %s174 = ssub.s32 %s16, 1
        %s175 = sand.u32 %s29, 1
        %s176 = scalar_lea.sflag [#allocation4], %s175
        %s177 = sand.u32 %s29, 1
        %s178 = smul.addr %s177, 256
        %s179 = scalar_lea.vmem [#allocation3], %s178
        // Predicated region
        $region33: #{tpu_custom_call.1} parent=31 // pred_check
          %p180 = pneg %p42
        $region34: #{tpu_custom_call.1} parent=31 // pred_check_branch
          %182 = sbr.rel (%p180) target = $region36
        $region35: #{tpu_custom_call.1} parent=31 // pred_region
          %184 = dma.done %s176, 4096
        $region36: #{tpu_custom_call.1} parent=31 // pred_fallthru
          _
        // Predicated region
        $region37: #{tpu_custom_call.1} parent=31 // pred_check
          %p185 = pneg %p63
        $region38: #{tpu_custom_call.1} parent=31 // pred_check_branch
          %187 = sbr.rel (%p185) target = $region40
        $region39: #{tpu_custom_call.1} parent=31 // pred_region
          %189 = dma.done [#allocation7], 784
        $region40: #{tpu_custom_call.1} parent=31 // pred_fallthru
          _
        %s190 = sand.u32 %s29, 1
        %s191 = scalar_lea.sflag [#allocation4], %s190
        %s192 = sand.u32 %s29, 1
        %s193 = smul.addr %s192, 256
        %s194 = scalar_lea.vmem [#allocation3], %s193
        %p195 = pneg %p42
        %p196 = pneg %p39
        %p197 = pneg %p63
        %p198 = pneg %p60
        %p199 = pneg %p84
        %p200 = pneg %p81
        %p201 = pneg %p110
        %p202 = pneg %p107
        %s203 = sand.u32 %s97, 1
        %s204 = scalar_lea.sflag [#allocation5], %s203
        %s205 = sand.u32 %s97, 1
        %s206 = smul.addr %s205, 256
        %s207 = scalar_lea.vmem [#allocation8], %s206
        %v208 = vld [vmem:[%s179] sm:$0xff]
        %v209 = vld [vmem:[%s179 + $0x8] sm:$0xff]
        %v210 = vld [vmem:[%s179 + $0x10] sm:$0xff]
        %v211 = vld [vmem:[%s179 + $0x18] sm:$0xff]
        %v212 = vld [vmem:[%s179 + $0x20] sm:$0xff]
        %v213 = vld [vmem:[%s179 + $0x28] sm:$0xff]
        %v214 = vld [vmem:[%s179 + $0x30] sm:$0xff]
        %v215 = vld [vmem:[%s179 + $0x38] sm:$0xff]
        %v216 = vld [vmem:[%s179 + $0x40] sm:$0xff]
        %v217 = vld [vmem:[%s179 + $0x48] sm:$0xff]
        %v218 = vld [vmem:[%s179 + $0x50] sm:$0xff]
        %v219 = vld [vmem:[%s179 + $0x58] sm:$0xff]
        %v220 = vld [vmem:[%s179 + $0x60] sm:$0xff]
        %v221 = vld [vmem:[%s179 + $0x68] sm:$0xff]
        %v222 = vld [vmem:[%s179 + $0x70] sm:$0xff]
        %v223 = vld [vmem:[%s179 + $0x78] sm:$0xff]
        %v224 = vld [vmem:[%s179 + $0x80] sm:$0xff]
        %v225 = vld [vmem:[%s179 + $0x88] sm:$0xff]
        %v226 = vld [vmem:[%s179 + $0x90] sm:$0xff]
        %v227 = vld [vmem:[%s179 + $0x98] sm:$0xff]
        %v228 = vld [vmem:[%s179 + $0xa0] sm:$0xff]
        %v229 = vld [vmem:[%s179 + $0xa8] sm:$0xff]
        %v230 = vld [vmem:[%s179 + $0xb0] sm:$0xff]
        %v231 = vld [vmem:[%s179 + $0xb8] sm:$0xff]
        %v232 = vld [vmem:[%s179 + $0xc0] sm:$0xff]
        %v233 = vld [vmem:[%s179 + $0xc8] sm:$0xff]
        %v234 = vld [vmem:[%s179 + $0xd0] sm:$0xff]
        %v235 = vld [vmem:[%s179 + $0xd8] sm:$0xff]
        %v236 = vld [vmem:[%s179 + $0xe0] sm:$0xff]
        %v237 = vld [vmem:[%s179 + $0xe8] sm:$0xff]
        %v238 = vld [vmem:[%s179 + $0xf0] sm:$0xff]
        %v239 = vld [vmem:[%s179 + $0xf8] sm:$0xff]
        %240 = vst [vmem:[#allocation2] sm:$0xff] 0.0
        %241 = vst [vmem:[#allocation2 + $0x8] sm:$0xff] 0.0
        %242 = vst [vmem:[#allocation2 + $0x10] sm:$0xff] 0.0
        %243 = vst [vmem:[#allocation2 + $0x18] sm:$0x7] 0.0
        %244 = vst [vmem:[#allocation2 + $0x20] sm:$0xff] 0.0
        %245 = vst [vmem:[#allocation2 + $0x28] sm:$0xff] 0.0
        %246 = vst [vmem:[#allocation2 + $0x30] sm:$0xff] 0.0
        %247 = vst [vmem:[#allocation2 + $0x38] sm:$0x7] 0.0
        %248 = vst [vmem:[#allocation2 + $0x40] sm:$0xff] 0.0
        %249 = vst [vmem:[#allocation2 + $0x48] sm:$0xff] 0.0
        %250 = vst [vmem:[#allocation2 + $0x50] sm:$0xff] 0.0
        %251 = vst [vmem:[#allocation2 + $0x58] sm:$0x7] 0.0
        %s252 = scalar_lea.vmem [#allocation2], 608
        %253 = vst [vmem:[%s252] sm:$0xff] 0.0
        %254 = vst [vmem:[%s252 + $0x8] sm:$0xff] 0.0
        %255 = vst [vmem:[%s252 + $0x10] sm:$0xff] 0.0
        %256 = vst [vmem:[%s252 + $0x18] sm:$0x7] 0.0
        %257 = vst [vmem:[%s252 + $0x20] sm:$0xff] 0.0
        %258 = vst [vmem:[%s252 + $0x28] sm:$0xff] 0.0
        %259 = vst [vmem:[%s252 + $0x30] sm:$0xff] 0.0
        %260 = vst [vmem:[%s252 + $0x38] sm:$0x7] 0.0
        %261 = vst [vmem:[%s252 + $0x40] sm:$0xff] 0.0
        %262 = vst [vmem:[%s252 + $0x48] sm:$0xff] 0.0
        %263 = vst [vmem:[%s252 + $0x50] sm:$0xff] 0.0
        %264 = vst [vmem:[%s252 + $0x58] sm:$0x7] 0.0
        %s265 = scalar_lea.vmem [#allocation2], 96
        %266 = vst [vmem:[%s265] sm:$0xff] 0.0
        %267 = vst [vmem:[%s265 + $0x20] sm:$0xff] 0.0
        %268 = vst [vmem:[%s265 + $0x40] sm:$0xff] 0.0
        %269 = vst [vmem:[%s265 + $0x60] sm:$0xff] 0.0
        %270 = vst [vmem:[%s265 + $0x80] sm:$0xff] 0.0
        %271 = vst [vmem:[%s265 + $0xa0] sm:$0xff] 0.0
        %272 = vst [vmem:[%s265 + $0xc0] sm:$0xff] 0.0
        %273 = vst [vmem:[%s265 + $0xe0] sm:$0xff] 0.0
        %274 = vst [vmem:[%s265 + $0x100] sm:$0xff] 0.0
        %275 = vst [vmem:[%s265 + $0x120] sm:$0xff] 0.0
        %276 = vst [vmem:[%s265 + $0x140] sm:$0xff] 0.0
        %277 = vst [vmem:[%s265 + $0x160] sm:$0xff] 0.0
        %278 = vst [vmem:[%s265 + $0x180] sm:$0xff] 0.0
        %279 = vst [vmem:[%s265 + $0x1a0] sm:$0xff] 0.0
        %280 = vst [vmem:[%s265 + $0x1c0] sm:$0xff] 0.0
        %281 = vst [vmem:[%s265 + $0x1e0] sm:$0xff] 0.0
        %282 = vst [vmem:[%s265 + $0x18] sm:$0x7] 0.0
        %283 = vst [vmem:[%s265 + $0x38] sm:$0x7] 0.0
        %284 = vst [vmem:[%s265 + $0x58] sm:$0x7] 0.0
        %285 = vst [vmem:[%s265 + $0x78] sm:$0x7] 0.0
        %286 = vst [vmem:[%s265 + $0x98] sm:$0x7] 0.0
        %287 = vst [vmem:[%s265 + $0xb8] sm:$0x7] 0.0
        %288 = vst [vmem:[%s265 + $0xd8] sm:$0x7] 0.0
        %289 = vst [vmem:[%s265 + $0xf8] sm:$0x7] 0.0
        %290 = vst [vmem:[%s265 + $0x118] sm:$0x7] 0.0
        %291 = vst [vmem:[%s265 + $0x138] sm:$0x7] 0.0
        %292 = vst [vmem:[%s265 + $0x158] sm:$0x7] 0.0
        %293 = vst [vmem:[%s265 + $0x178] sm:$0x7] 0.0
        %294 = vst [vmem:[%s265 + $0x198] sm:$0x7] 0.0
        %295 = vst [vmem:[%s265 + $0x1b8] sm:$0x7] 0.0
        %296 = vst [vmem:[%s265 + $0x1d8] sm:$0x7] 0.0
        %297 = vst [vmem:[%s265 + $0x1f8] sm:$0x7] 0.0
        %298 = vst [vmem:[%s265 + $0x8] sm:$0xff] %v208
        %299 = vst [vmem:[%s265 + $0x10] sm:$0xff] %v209
        %300 = vst [vmem:[%s265 + $0x28] sm:$0xff] %v210
        %301 = vst [vmem:[%s265 + $0x30] sm:$0xff] %v211
        %302 = vst [vmem:[%s265 + $0x48] sm:$0xff] %v212
        %303 = vst [vmem:[%s265 + $0x50] sm:$0xff] %v213
        %304 = vst [vmem:[%s265 + $0x68] sm:$0xff] %v214
        %305 = vst [vmem:[%s265 + $0x70] sm:$0xff] %v215
        %306 = vst [vmem:[%s265 + $0x88] sm:$0xff] %v216
        %307 = vst [vmem:[%s265 + $0x90] sm:$0xff] %v217
        %308 = vst [vmem:[%s265 + $0xa8] sm:$0xff] %v218
        %309 = vst [vmem:[%s265 + $0xb0] sm:$0xff] %v219
        %310 = vst [vmem:[%s265 + $0xc8] sm:$0xff] %v220
        %311 = vst [vmem:[%s265 + $0xd0] sm:$0xff] %v221
        %312 = vst [vmem:[%s265 + $0xe8] sm:$0xff] %v222
        %313 = vst [vmem:[%s265 + $0xf0] sm:$0xff] %v223
        %314 = vst [vmem:[%s265 + $0x108] sm:$0xff] %v224
        %315 = vst [vmem:[%s265 + $0x110] sm:$0xff] %v225
        %316 = vst [vmem:[%s265 + $0x128] sm:$0xff] %v226
        %317 = vst [vmem:[%s265 + $0x130] sm:$0xff] %v227
        %318 = vst [vmem:[%s265 + $0x148] sm:$0xff] %v228
        %319 = vst [vmem:[%s265 + $0x150] sm:$0xff] %v229
        %320 = vst [vmem:[%s265 + $0x168] sm:$0xff] %v230
        %321 = vst [vmem:[%s265 + $0x170] sm:$0xff] %v231
        %322 = vst [vmem:[%s265 + $0x188] sm:$0xff] %v232
        %323 = vst [vmem:[%s265 + $0x190] sm:$0xff] %v233
        %324 = vst [vmem:[%s265 + $0x1a8] sm:$0xff] %v234
        %325 = vst [vmem:[%s265 + $0x1b0] sm:$0xff] %v235
        %326 = vst [vmem:[%s265 + $0x1c8] sm:$0xff] %v236
        %327 = vst [vmem:[%s265 + $0x1d0] sm:$0xff] %v237
        %328 = vst [vmem:[%s265 + $0x1e8] sm:$0xff] %v238
        %329 = vst [vmem:[%s265 + $0x1f0] sm:$0xff] %v239
        %v330 = vld [vmem:[#allocation6] sm:$0x1]
        %v331 = vld [vmem:[#allocation6 + $0x1] sm:$0x1]
        %v332 = vld [vmem:[#allocation6 + $0x2] sm:$0x1]
        %v333 = vld [vmem:[#allocation6 + $0x3] sm:$0x1]
        %v334 = vld [vmem:[#allocation6 + $0x4] sm:$0x1]
        %v335 = vld [vmem:[#allocation6 + $0x5] sm:$0x1]
        %v336 = vld [vmem:[#allocation6 + $0x6] sm:$0x1]
        %v337 = vld [vmem:[#allocation6 + $0x7] sm:$0x1]
        %v338 = vld [vmem:[#allocation6 + $0x8] sm:$0x1]
        %v339 = vld [vmem:[#allocation6 + $0x9] sm:$0x1]
        %v340 = vld [vmem:[#allocation6 + $0xa] sm:$0x1]
        %v341 = vld [vmem:[#allocation6 + $0xb] sm:$0x1]
        %v342 = vld [vmem:[#allocation6 + $0xc] sm:$0x1]
        %v343 = vld [vmem:[#allocation6 + $0xd] sm:$0x1]
        %v344 = vld [vmem:[#allocation6 + $0xe] sm:$0x1]
        %v345 = vld [vmem:[#allocation6 + $0xf] sm:$0x1]
        %v346 = vld [vmem:[#allocation6 + $0x10] sm:$0x1]
        %v347 = vld [vmem:[#allocation6 + $0x11] sm:$0x1]
        %v348 = vld [vmem:[#allocation6 + $0x12] sm:$0x1]
        %v349 = vld [vmem:[#allocation6 + $0x13] sm:$0x1]
        %v350 = vld [vmem:[#allocation6 + $0x14] sm:$0x1]
        %v351 = vld [vmem:[#allocation6 + $0x15] sm:$0x1]
        %v352 = vld [vmem:[#allocation6 + $0x16] sm:$0x1]
        %v353 = vld [vmem:[#allocation6 + $0x17] sm:$0x1]
        %v354 = vld [vmem:[#allocation6 + $0x18] sm:$0x1]
        %v355 = vld [vmem:[#allocation6 + $0x19] sm:$0x1]
        %v356 = vld [vmem:[#allocation6 + $0x1a] sm:$0x1]
        %v357 = vld [vmem:[#allocation6 + $0x1b] sm:$0x1]
        %v358 = vld [vmem:[#allocation6 + $0x1c] sm:$0x1]
        %v359 = vld [vmem:[#allocation6 + $0x1d] sm:$0x1]
        %v360 = vld [vmem:[#allocation6 + $0x1e] sm:$0x1]
        %v361 = vld [vmem:[#allocation6 + $0x1f] sm:$0x1]
        %v362 = vld [vmem:[#allocation6 + $0x20] sm:$0x1]
        %v363 = vld [vmem:[#allocation6 + $0x21] sm:$0x1]
        %v364 = vld [vmem:[#allocation6 + $0x22] sm:$0x1]
        %v365 = vld [vmem:[#allocation6 + $0x23] sm:$0x1]
        %v366 = vld [vmem:[#allocation6 + $0x24] sm:$0x1]
        %v367 = vld [vmem:[#allocation6 + $0x25] sm:$0x1]
        %v368 = vld [vmem:[#allocation6 + $0x26] sm:$0x1]
        %v369 = vld [vmem:[#allocation6 + $0x27] sm:$0x1]
        %v370 = vld [vmem:[#allocation6 + $0x28] sm:$0x1]
        %v371 = vld [vmem:[#allocation6 + $0x29] sm:$0x1]
        %v372 = vld [vmem:[#allocation6 + $0x2a] sm:$0x1]
        %v373 = vld [vmem:[#allocation6 + $0x2b] sm:$0x1]
        %v374 = vld [vmem:[#allocation6 + $0x2c] sm:$0x1]
        %v375 = vld [vmem:[#allocation6 + $0x2d] sm:$0x1]
        %v376 = vld [vmem:[#allocation6 + $0x2e] sm:$0x1]
        %v377 = vld [vmem:[#allocation6 + $0x2f] sm:$0x1]
        %v378 = vld [vmem:[#allocation6 + $0x30] sm:$0x1]
        %v379 = vld [vmem:[%s2] sm:$0x1]
        %v381 = vperm.slane %v379, 0
        %v383 = vld [vmem:[#allocation2] sm:$0xff]
        %v384 = vld [vmem:[#allocation2 + $0x8] sm:$0xff]
        %v385 = vld [vmem:[#allocation2 + $0x10] sm:$0xff]
        %v386 = vld [vmem:[#allocation2 + $0x18] sm:$0x7]
        %v387 = vld [vmem:[#allocation2 + $0x20] sm:$0xff]
        %v388 = vld [vmem:[#allocation2 + $0x28] sm:$0xff]
        %v389 = vld [vmem:[#allocation2 + $0x30] sm:$0xff]
        %v390 = vld [vmem:[#allocation2 + $0x38] sm:$0x7]
        %v391 = vld [vmem:[#allocation2 + $0x40] sm:$0xff]
        %v392 = vld [vmem:[#allocation2 + $0x48] sm:$0xff]
        %v393 = vld [vmem:[#allocation2 + $0x50] sm:$0xff]
        %v394 = vld [vmem:[#allocation2 + $0x58] sm:$0x7]
        %v395 = vld [vmem:[#allocation2 + $0x60] sm:$0xff]
        %v396 = vld [vmem:[#allocation2 + $0x68] sm:$0xff]
        %v397 = vld [vmem:[#allocation2 + $0x70] sm:$0xff]
        %v398 = vld [vmem:[#allocation2 + $0x78] sm:$0x7]
        %v399 = vld [vmem:[#allocation2 + $0x80] sm:$0xff]
        %v400 = vld [vmem:[#allocation2 + $0x88] sm:$0xff]
        %v401 = vld [vmem:[#allocation2 + $0x90] sm:$0xff]
        %v402 = vld [vmem:[#allocation2 + $0x98] sm:$0x7]
        %v403 = vld [vmem:[#allocation2 + $0xa0] sm:$0xff]
        %v404 = vld [vmem:[#allocation2 + $0xa8] sm:$0xff]
        %v405 = vld [vmem:[#allocation2 + $0xb0] sm:$0xff]
        %v406 = vld [vmem:[#allocation2 + $0xb8] sm:$0x7]
        %v407 = vld [vmem:[#allocation2 + $0xc0] sm:$0xff]
        %v408 = vld [vmem:[#allocation2 + $0xc8] sm:$0xff]
        %v409 = vld [vmem:[#allocation2 + $0xd0] sm:$0xff]
        %v410 = vld [vmem:[#allocation2 + $0xd8] sm:$0x7]
        %v411 = vld [vmem:[#allocation2 + $0xe0] sm:$0xff]
        %v412 = vld [vmem:[#allocation2 + $0xe8] sm:$0xff]
        %v413 = vld [vmem:[#allocation2 + $0xf0] sm:$0xff]
        %v414 = vld [vmem:[#allocation2 + $0xf8] sm:$0x7]
        %v416 = vperm.slane %v330, 0
        %v418 = vmul.f32 %v383, %v416
        %v419 = vmul.f32 %v384, %v416
        %v420 = vmul.f32 %v385, %v416
        %v421 = vmul.f32 %v387, %v416
        %v422 = vmul.f32 %v388, %v416
        %v423 = vmul.f32 %v389, %v416
        %v424 = vmul.f32 %v391, %v416
        %v425 = vmul.f32 %v392, %v416
        %v426 = vmul.f32 %v393, %v416
        %v427 = vmul.f32 %v395, %v416
        %v428 = vmul.f32 %v396, %v416
        %v429 = vmul.f32 %v397, %v416
        %v430 = vmul.f32 %v399, %v416
        %v431 = vmul.f32 %v400, %v416
        %v432 = vmul.f32 %v401, %v416
        %v433 = vmul.f32 %v403, %v416
        %v434 = vmul.f32 %v404, %v416
        %v435 = vmul.f32 %v405, %v416
        %v436 = vmul.f32 %v407, %v416
        %v437 = vmul.f32 %v408, %v416
        %v438 = vmul.f32 %v409, %v416
        %v439 = vmul.f32 %v411, %v416
        %v440 = vmul.f32 %v412, %v416
        %v441 = vmul.f32 %v413, %v416
        %v442 = vadd.f32 %v381, %v418
        %v443 = vadd.f32 %v381, %v419
        %v444 = vadd.f32 %v381, %v420
        %v445 = vadd.f32 %v381, %v421
        %v446 = vadd.f32 %v381, %v422
        %v447 = vadd.f32 %v381, %v423
        %v448 = vadd.f32 %v381, %v424
        %v449 = vadd.f32 %v381, %v425
        %v450 = vadd.f32 %v381, %v426
        %v451 = vadd.f32 %v381, %v427
        %v452 = vadd.f32 %v381, %v428
        %v453 = vadd.f32 %v381, %v429
        %v454 = vadd.f32 %v381, %v430
        %v455 = vadd.f32 %v381, %v431
        %v456 = vadd.f32 %v381, %v432
        %v457 = vadd.f32 %v381, %v433
        %v458 = vadd.f32 %v381, %v434
        %v459 = vadd.f32 %v381, %v435
        %v460 = vadd.f32 %v381, %v436
        %v461 = vadd.f32 %v381, %v437
        %v462 = vadd.f32 %v381, %v438
        %v463 = vadd.f32 %v381, %v439
        %v464 = vadd.f32 %v381, %v440
        %v465 = vadd.f32 %v381, %v441
        %v467 = vperm.slane %v331, 0
        %v469 = vmul.f32 %v383, %v467
        %v470 = vmul.f32 %v384, %v467
        %v471 = vmul.f32 %v385, %v467
        %v472 = vmul.f32 %v387, %v467
        %v473 = vmul.f32 %v388, %v467
        %v474 = vmul.f32 %v389, %v467
        %v475 = vmul.f32 %v391, %v467
        %v476 = vmul.f32 %v392, %v467
        %v477 = vmul.f32 %v393, %v467
        %v478 = vmul.f32 %v395, %v467
        %v479 = vmul.f32 %v396, %v467
        %v480 = vmul.f32 %v397, %v467
        %v481 = vmul.f32 %v399, %v467
        %v482 = vmul.f32 %v400, %v467
        %v483 = vmul.f32 %v401, %v467
        %v484 = vmul.f32 %v403, %v467
        %v485 = vmul.f32 %v404, %v467
        %v486 = vmul.f32 %v405, %v467
        %v487 = vmul.f32 %v407, %v467
        %v488 = vmul.f32 %v408, %v467
        %v489 = vmul.f32 %v409, %v467
        %v490 = vmul.f32 %v411, %v467
        %v491 = vmul.f32 %v412, %v467
        %v492 = vmul.f32 %v413, %v467
        %vm517 = vcmask 1046528
        %v518 = vrot.slane %v469, 1
        %v519 = vrot.slane %v470, 1
        %v520 = vsel %vm517, %v518, %v519
        %v521 = vrot.slane %v471, 1
        %v522 = vsel %vm517, %v519, %v521
        %v523 = vrot.slane %v472, 1
        %v524 = vrot.slane %v473, 1
        %v525 = vsel %vm517, %v523, %v524
        %v526 = vrot.slane %v474, 1
        %v527 = vsel %vm517, %v524, %v526
        %v528 = vrot.slane %v475, 1
        %v529 = vrot.slane %v476, 1
        %v530 = vsel %vm517, %v528, %v529
        %v531 = vrot.slane %v477, 1
        %v532 = vsel %vm517, %v529, %v531
        %v533 = vrot.slane %v478, 1
        %v534 = vrot.slane %v479, 1
        %v535 = vsel %vm517, %v533, %v534
        %v536 = vrot.slane %v480, 1
        %v537 = vsel %vm517, %v534, %v536
        %v538 = vrot.slane %v481, 1
        %v539 = vrot.slane %v482, 1
        %v540 = vsel %vm517, %v538, %v539
        %v541 = vrot.slane %v483, 1
        %v542 = vsel %vm517, %v539, %v541
        %v543 = vrot.slane %v484, 1
        %v544 = vrot.slane %v485, 1
        %v545 = vsel %vm517, %v543, %v544
        %v546 = vrot.slane %v486, 1
        %v547 = vsel %vm517, %v544, %v546
        %v548 = vrot.slane %v487, 1
        %v549 = vrot.slane %v488, 1
        %v550 = vsel %vm517, %v548, %v549
        %v551 = vrot.slane %v489, 1
        %v552 = vsel %vm517, %v549, %v551
        %v553 = vrot.slane %v490, 1
        %v554 = vrot.slane %v491, 1
        %v555 = vsel %vm517, %v553, %v554
        %v556 = vrot.slane %v492, 1
        %v557 = vsel %vm517, %v554, %v556
        %v582 = vadd.f32 %v442, %v520
        %v583 = vadd.f32 %v443, %v522
        %v584 = vadd.f32 %v444, %v521
        %v585 = vadd.f32 %v445, %v525
        %v586 = vadd.f32 %v446, %v527
        %v587 = vadd.f32 %v447, %v526
        %v588 = vadd.f32 %v448, %v530
        %v589 = vadd.f32 %v449, %v532
        %v590 = vadd.f32 %v450, %v531
        %v591 = vadd.f32 %v451, %v535
        %v592 = vadd.f32 %v452, %v537
        %v593 = vadd.f32 %v453, %v536
        %v594 = vadd.f32 %v454, %v540
        %v595 = vadd.f32 %v455, %v542
        %v596 = vadd.f32 %v456, %v541
        %v597 = vadd.f32 %v457, %v545
        %v598 = vadd.f32 %v458, %v547
        %v599 = vadd.f32 %v459, %v546
        %v600 = vadd.f32 %v460, %v550
        %v601 = vadd.f32 %v461, %v552
        %v602 = vadd.f32 %v462, %v551
        %v603 = vadd.f32 %v463, %v555
        %v604 = vadd.f32 %v464, %v557
        %v605 = vadd.f32 %v465, %v556
        %v607 = vperm.slane %v332, 0
        %v609 = vmul.f32 %v383, %v607
        %v610 = vmul.f32 %v384, %v607
        %v611 = vmul.f32 %v385, %v607
        %v612 = vmul.f32 %v387, %v607
        %v613 = vmul.f32 %v388, %v607
        %v614 = vmul.f32 %v389, %v607
        %v615 = vmul.f32 %v391, %v607
        %v616 = vmul.f32 %v392, %v607
        %v617 = vmul.f32 %v393, %v607
        %v618 = vmul.f32 %v395, %v607
        %v619 = vmul.f32 %v396, %v607
        %v620 = vmul.f32 %v397, %v607
        %v621 = vmul.f32 %v399, %v607
        %v622 = vmul.f32 %v400, %v607
        %v623 = vmul.f32 %v401, %v607
        %v624 = vmul.f32 %v403, %v607
        %v625 = vmul.f32 %v404, %v607
        %v626 = vmul.f32 %v405, %v607
        %v627 = vmul.f32 %v407, %v607
        %v628 = vmul.f32 %v408, %v607
        %v629 = vmul.f32 %v409, %v607
        %v630 = vmul.f32 %v411, %v607
        %v631 = vmul.f32 %v412, %v607
        %v632 = vmul.f32 %v413, %v607
        %vm657 = vcmask 1045504
        %v658 = vrot.slane %v609, 2
        %v659 = vrot.slane %v610, 2
        %v660 = vsel %vm657, %v658, %v659
        %v661 = vrot.slane %v611, 2
        %v662 = vsel %vm657, %v659, %v661
        %v663 = vrot.slane %v612, 2
        %v664 = vrot.slane %v613, 2
        %v665 = vsel %vm657, %v663, %v664
        %v666 = vrot.slane %v614, 2
        %v667 = vsel %vm657, %v664, %v666
        %v668 = vrot.slane %v615, 2
        %v669 = vrot.slane %v616, 2
        %v670 = vsel %vm657, %v668, %v669
        %v671 = vrot.slane %v617, 2
        %v672 = vsel %vm657, %v669, %v671
        %v673 = vrot.slane %v618, 2
        %v674 = vrot.slane %v619, 2
        %v675 = vsel %vm657, %v673, %v674
        %v676 = vrot.slane %v620, 2
        %v677 = vsel %vm657, %v674, %v676
        %v678 = vrot.slane %v621, 2
        %v679 = vrot.slane %v622, 2
        %v680 = vsel %vm657, %v678, %v679
        %v681 = vrot.slane %v623, 2
        %v682 = vsel %vm657, %v679, %v681
        %v683 = vrot.slane %v624, 2
        %v684 = vrot.slane %v625, 2
        %v685 = vsel %vm657, %v683, %v684
        %v686 = vrot.slane %v626, 2
        %v687 = vsel %vm657, %v684, %v686
        %v688 = vrot.slane %v627, 2
        %v689 = vrot.slane %v628, 2
        %v690 = vsel %vm657, %v688, %v689
        %v691 = vrot.slane %v629, 2
        %v692 = vsel %vm657, %v689, %v691
        %v693 = vrot.slane %v630, 2
        %v694 = vrot.slane %v631, 2
        %v695 = vsel %vm657, %v693, %v694
        %v696 = vrot.slane %v632, 2
        %v697 = vsel %vm657, %v694, %v696
        %v722 = vadd.f32 %v582, %v660
        %v723 = vadd.f32 %v583, %v662
        %v724 = vadd.f32 %v584, %v661
        %v725 = vadd.f32 %v585, %v665
        %v726 = vadd.f32 %v586, %v667
        %v727 = vadd.f32 %v587, %v666
        %v728 = vadd.f32 %v588, %v670
        %v729 = vadd.f32 %v589, %v672
        %v730 = vadd.f32 %v590, %v671
        %v731 = vadd.f32 %v591, %v675
        %v732 = vadd.f32 %v592, %v677
        %v733 = vadd.f32 %v593, %v676
        %v734 = vadd.f32 %v594, %v680
        %v735 = vadd.f32 %v595, %v682
        %v736 = vadd.f32 %v596, %v681
        %v737 = vadd.f32 %v597, %v685
        %v738 = vadd.f32 %v598, %v687
        %v739 = vadd.f32 %v599, %v686
        %v740 = vadd.f32 %v600, %v690
        %v741 = vadd.f32 %v601, %v692
        %v742 = vadd.f32 %v602, %v691
        %v743 = vadd.f32 %v603, %v695
        %v744 = vadd.f32 %v604, %v697
        %v745 = vadd.f32 %v605, %v696
        %v747 = vperm.slane %v333, 0
        %v749 = vmul.f32 %v384, %v747
        %v750 = vmul.f32 %v385, %v747
        %v751 = vmul.f32 %v388, %v747
        %v752 = vmul.f32 %v389, %v747
        %v753 = vmul.f32 %v392, %v747
        %v754 = vmul.f32 %v393, %v747
        %v755 = vmul.f32 %v396, %v747
        %v756 = vmul.f32 %v397, %v747
        %v757 = vmul.f32 %v400, %v747
        %v758 = vmul.f32 %v401, %v747
        %v759 = vmul.f32 %v404, %v747
        %v760 = vmul.f32 %v405, %v747
        %v761 = vmul.f32 %v408, %v747
        %v762 = vmul.f32 %v409, %v747
        %v763 = vmul.f32 %v412, %v747
        %v764 = vmul.f32 %v413, %v747
        %vm781 = vcmask 1044480
        %v782 = vrot.slane %v749, 3
        %v783 = vrot.slane %v750, 3
        %v784 = vsel %vm781, %v782, %v783
        %v785 = vrot.slane %v751, 3
        %v786 = vrot.slane %v752, 3
        %v787 = vsel %vm781, %v785, %v786
        %v788 = vrot.slane %v753, 3
        %v789 = vrot.slane %v754, 3
        %v790 = vsel %vm781, %v788, %v789
        %v791 = vrot.slane %v755, 3
        %v792 = vrot.slane %v756, 3
        %v793 = vsel %vm781, %v791, %v792
        %v794 = vrot.slane %v757, 3
        %v795 = vrot.slane %v758, 3
        %v796 = vsel %vm781, %v794, %v795
        %v797 = vrot.slane %v759, 3
        %v798 = vrot.slane %v760, 3
        %v799 = vsel %vm781, %v797, %v798
        %v800 = vrot.slane %v761, 3
        %v801 = vrot.slane %v762, 3
        %v802 = vsel %vm781, %v800, %v801
        %v803 = vrot.slane %v763, 3
        %v804 = vrot.slane %v764, 3
        %v805 = vsel %vm781, %v803, %v804
        %v830 = vadd.f32 %v722, %v782
        %v831 = vadd.f32 %v723, %v784
        %v832 = vadd.f32 %v724, %v783
        %v833 = vadd.f32 %v725, %v785
        %v834 = vadd.f32 %v726, %v787
        %v835 = vadd.f32 %v727, %v786
        %v836 = vadd.f32 %v728, %v788
        %v837 = vadd.f32 %v729, %v790
        %v838 = vadd.f32 %v730, %v789
        %v839 = vadd.f32 %v731, %v791
        %v840 = vadd.f32 %v732, %v793
        %v841 = vadd.f32 %v733, %v792
        %v842 = vadd.f32 %v734, %v794
        %v843 = vadd.f32 %v735, %v796
        %v844 = vadd.f32 %v736, %v795
        %v845 = vadd.f32 %v737, %v797
        %v846 = vadd.f32 %v738, %v799
        %v847 = vadd.f32 %v739, %v798
        %v848 = vadd.f32 %v740, %v800
        %v849 = vadd.f32 %v741, %v802
        %v850 = vadd.f32 %v742, %v801
        %v851 = vadd.f32 %v743, %v803
        %v852 = vadd.f32 %v744, %v805
        %v853 = vadd.f32 %v745, %v804
        %v855 = vperm.slane %v334, 0
        %v857 = vmul.f32 %v384, %v855
        %v858 = vmul.f32 %v385, %v855
        %v859 = vmul.f32 %v386, %v855
        %v860 = vmul.f32 %v388, %v855
        %v861 = vmul.f32 %v389, %v855
        %v862 = vmul.f32 %v390, %v855
        %v863 = vmul.f32 %v392, %v855
        %v864 = vmul.f32 %v393, %v855
        %v865 = vmul.f32 %v394, %v855
        %v866 = vmul.f32 %v396, %v855
        %v867 = vmul.f32 %v397, %v855
        %v868 = vmul.f32 %v398, %v855
        %v869 = vmul.f32 %v400, %v855
        %v870 = vmul.f32 %v401, %v855
        %v871 = vmul.f32 %v402, %v855
        %v872 = vmul.f32 %v404, %v855
        %v873 = vmul.f32 %v405, %v855
        %v874 = vmul.f32 %v406, %v855
        %v875 = vmul.f32 %v408, %v855
        %v876 = vmul.f32 %v409, %v855
        %v877 = vmul.f32 %v410, %v855
        %v878 = vmul.f32 %v412, %v855
        %v879 = vmul.f32 %v413, %v855
        %v880 = vmul.f32 %v414, %v855
        %vm905 = vcmask 1043456
        %v906 = vrot.slane %v857, 4
        %v907 = vrot.slane %v858, 4
        %v908 = vsel %vm905, %v906, %v907
        %v909 = vrot.slane %v859, 4
        %v910 = vsel %vm905, %v907, %v909
        %v911 = vrot.slane %v860, 4
        %v912 = vrot.slane %v861, 4
        %v913 = vsel %vm905, %v911, %v912
        %v914 = vrot.slane %v862, 4
        %v915 = vsel %vm905, %v912, %v914
        %v916 = vrot.slane %v863, 4
        %v917 = vrot.slane %v864, 4
        %v918 = vsel %vm905, %v916, %v917
        %v919 = vrot.slane %v865, 4
        %v920 = vsel %vm905, %v917, %v919
        %v921 = vrot.slane %v866, 4
        %v922 = vrot.slane %v867, 4
        %v923 = vsel %vm905, %v921, %v922
        %v924 = vrot.slane %v868, 4
        %v925 = vsel %vm905, %v922, %v924
        %v926 = vrot.slane %v869, 4
        %v927 = vrot.slane %v870, 4
        %v928 = vsel %vm905, %v926, %v927
        %v929 = vrot.slane %v871, 4
        %v930 = vsel %vm905, %v927, %v929
        %v931 = vrot.slane %v872, 4
        %v932 = vrot.slane %v873, 4
        %v933 = vsel %vm905, %v931, %v932
        %v934 = vrot.slane %v874, 4
        %v935 = vsel %vm905, %v932, %v934
        %v936 = vrot.slane %v875, 4
        %v937 = vrot.slane %v876, 4
        %v938 = vsel %vm905, %v936, %v937
        %v939 = vrot.slane %v877, 4
        %v940 = vsel %vm905, %v937, %v939
        %v941 = vrot.slane %v878, 4
        %v942 = vrot.slane %v879, 4
        %v943 = vsel %vm905, %v941, %v942
        %v944 = vrot.slane %v880, 4
        %v945 = vsel %vm905, %v942, %v944
        %v970 = vadd.f32 %v830, %v906
        %v971 = vadd.f32 %v831, %v908
        %v972 = vadd.f32 %v832, %v910
        %v973 = vadd.f32 %v833, %v911
        %v974 = vadd.f32 %v834, %v913
        %v975 = vadd.f32 %v835, %v915
        %v976 = vadd.f32 %v836, %v916
        %v977 = vadd.f32 %v837, %v918
        %v978 = vadd.f32 %v838, %v920
        %v979 = vadd.f32 %v839, %v921
        %v980 = vadd.f32 %v840, %v923
        %v981 = vadd.f32 %v841, %v925
        %v982 = vadd.f32 %v842, %v926
        %v983 = vadd.f32 %v843, %v928
        %v984 = vadd.f32 %v844, %v930
        %v985 = vadd.f32 %v845, %v931
        %v986 = vadd.f32 %v846, %v933
        %v987 = vadd.f32 %v847, %v935
        %v988 = vadd.f32 %v848, %v936
        %v989 = vadd.f32 %v849, %v938
        %v990 = vadd.f32 %v850, %v940
        %v991 = vadd.f32 %v851, %v941
        %v992 = vadd.f32 %v852, %v943
        %v993 = vadd.f32 %v853, %v945
        %v995 = vperm.slane %v335, 0
        %v997 = vmul.f32 %v384, %v995
        %v998 = vmul.f32 %v385, %v995
        %v999 = vmul.f32 %v386, %v995
        %v1000 = vmul.f32 %v388, %v995
        %v1001 = vmul.f32 %v389, %v995
        %v1002 = vmul.f32 %v390, %v995
        %v1003 = vmul.f32 %v392, %v995
        %v1004 = vmul.f32 %v393, %v995
        %v1005 = vmul.f32 %v394, %v995
        %v1006 = vmul.f32 %v396, %v995
        %v1007 = vmul.f32 %v397, %v995
        %v1008 = vmul.f32 %v398, %v995
        %v1009 = vmul.f32 %v400, %v995
        %v1010 = vmul.f32 %v401, %v995
        %v1011 = vmul.f32 %v402, %v995
        %v1012 = vmul.f32 %v404, %v995
        %v1013 = vmul.f32 %v405, %v995
        %v1014 = vmul.f32 %v406, %v995
        %v1015 = vmul.f32 %v408, %v995
        %v1016 = vmul.f32 %v409, %v995
        %v1017 = vmul.f32 %v410, %v995
        %v1018 = vmul.f32 %v412, %v995
        %v1019 = vmul.f32 %v413, %v995
        %v1020 = vmul.f32 %v414, %v995
        %vm1045 = vcmask 1042432
        %v1046 = vrot.slane %v997, 5
        %v1047 = vrot.slane %v998, 5
        %v1048 = vsel %vm1045, %v1046, %v1047
        %v1049 = vrot.slane %v999, 5
        %v1050 = vsel %vm1045, %v1047, %v1049
        %v1051 = vrot.slane %v1000, 5
        %v1052 = vrot.slane %v1001, 5
        %v1053 = vsel %vm1045, %v1051, %v1052
        %v1054 = vrot.slane %v1002, 5
        %v1055 = vsel %vm1045, %v1052, %v1054
        %v1056 = vrot.slane %v1003, 5
        %v1057 = vrot.slane %v1004, 5
        %v1058 = vsel %vm1045, %v1056, %v1057
        %v1059 = vrot.slane %v1005, 5
        %v1060 = vsel %vm1045, %v1057, %v1059
        %v1061 = vrot.slane %v1006, 5
        %v1062 = vrot.slane %v1007, 5
        %v1063 = vsel %vm1045, %v1061, %v1062
        %v1064 = vrot.slane %v1008, 5
        %v1065 = vsel %vm1045, %v1062, %v1064
        %v1066 = vrot.slane %v1009, 5
        %v1067 = vrot.slane %v1010, 5
        %v1068 = vsel %vm1045, %v1066, %v1067
        %v1069 = vrot.slane %v1011, 5
        %v1070 = vsel %vm1045, %v1067, %v1069
        %v1071 = vrot.slane %v1012, 5
        %v1072 = vrot.slane %v1013, 5
        %v1073 = vsel %vm1045, %v1071, %v1072
        %v1074 = vrot.slane %v1014, 5
        %v1075 = vsel %vm1045, %v1072, %v1074
        %v1076 = vrot.slane %v1015, 5
        %v1077 = vrot.slane %v1016, 5
        %v1078 = vsel %vm1045, %v1076, %v1077
        %v1079 = vrot.slane %v1017, 5
        %v1080 = vsel %vm1045, %v1077, %v1079
        %v1081 = vrot.slane %v1018, 5
        %v1082 = vrot.slane %v1019, 5
        %v1083 = vsel %vm1045, %v1081, %v1082
        %v1084 = vrot.slane %v1020, 5
        %v1085 = vsel %vm1045, %v1082, %v1084
        %v1110 = vadd.f32 %v970, %v1046
        %v1111 = vadd.f32 %v971, %v1048
        %v1112 = vadd.f32 %v972, %v1050
        %v1113 = vadd.f32 %v973, %v1051
        %v1114 = vadd.f32 %v974, %v1053
        %v1115 = vadd.f32 %v975, %v1055
        %v1116 = vadd.f32 %v976, %v1056
        %v1117 = vadd.f32 %v977, %v1058
        %v1118 = vadd.f32 %v978, %v1060
        %v1119 = vadd.f32 %v979, %v1061
        %v1120 = vadd.f32 %v980, %v1063
        %v1121 = vadd.f32 %v981, %v1065
        %v1122 = vadd.f32 %v982, %v1066
        %v1123 = vadd.f32 %v983, %v1068
        %v1124 = vadd.f32 %v984, %v1070
        %v1125 = vadd.f32 %v985, %v1071
        %v1126 = vadd.f32 %v986, %v1073
        %v1127 = vadd.f32 %v987, %v1075
        %v1128 = vadd.f32 %v988, %v1076
        %v1129 = vadd.f32 %v989, %v1078
        %v1130 = vadd.f32 %v990, %v1080
        %v1131 = vadd.f32 %v991, %v1081
        %v1132 = vadd.f32 %v992, %v1083
        %v1133 = vadd.f32 %v993, %v1085
        %v1135 = vperm.slane %v336, 0
        %v1137 = vmul.f32 %v384, %v1135
        %v1138 = vmul.f32 %v385, %v1135
        %v1139 = vmul.f32 %v386, %v1135
        %v1140 = vmul.f32 %v388, %v1135
        %v1141 = vmul.f32 %v389, %v1135
        %v1142 = vmul.f32 %v390, %v1135
        %v1143 = vmul.f32 %v392, %v1135
        %v1144 = vmul.f32 %v393, %v1135
        %v1145 = vmul.f32 %v394, %v1135
        %v1146 = vmul.f32 %v396, %v1135
        %v1147 = vmul.f32 %v397, %v1135
        %v1148 = vmul.f32 %v398, %v1135
        %v1149 = vmul.f32 %v400, %v1135
        %v1150 = vmul.f32 %v401, %v1135
        %v1151 = vmul.f32 %v402, %v1135
        %v1152 = vmul.f32 %v404, %v1135
        %v1153 = vmul.f32 %v405, %v1135
        %v1154 = vmul.f32 %v406, %v1135
        %v1155 = vmul.f32 %v408, %v1135
        %v1156 = vmul.f32 %v409, %v1135
        %v1157 = vmul.f32 %v410, %v1135
        %v1158 = vmul.f32 %v412, %v1135
        %v1159 = vmul.f32 %v413, %v1135
        %v1160 = vmul.f32 %v414, %v1135
        %vm1185 = vcmask 1041408
        %v1186 = vrot.slane %v1137, 6
        %v1187 = vrot.slane %v1138, 6
        %v1188 = vsel %vm1185, %v1186, %v1187
        %v1189 = vrot.slane %v1139, 6
        %v1190 = vsel %vm1185, %v1187, %v1189
        %v1191 = vrot.slane %v1140, 6
        %v1192 = vrot.slane %v1141, 6
        %v1193 = vsel %vm1185, %v1191, %v1192
        %v1194 = vrot.slane %v1142, 6
        %v1195 = vsel %vm1185, %v1192, %v1194
        %v1196 = vrot.slane %v1143, 6
        %v1197 = vrot.slane %v1144, 6
        %v1198 = vsel %vm1185, %v1196, %v1197
        %v1199 = vrot.slane %v1145, 6
        %v1200 = vsel %vm1185, %v1197, %v1199
        %v1201 = vrot.slane %v1146, 6
        %v1202 = vrot.slane %v1147, 6
        %v1203 = vsel %vm1185, %v1201, %v1202
        %v1204 = vrot.slane %v1148, 6
        %v1205 = vsel %vm1185, %v1202, %v1204
        %v1206 = vrot.slane %v1149, 6
        %v1207 = vrot.slane %v1150, 6
        %v1208 = vsel %vm1185, %v1206, %v1207
        %v1209 = vrot.slane %v1151, 6
        %v1210 = vsel %vm1185, %v1207, %v1209
        %v1211 = vrot.slane %v1152, 6
        %v1212 = vrot.slane %v1153, 6
        %v1213 = vsel %vm1185, %v1211, %v1212
        %v1214 = vrot.slane %v1154, 6
        %v1215 = vsel %vm1185, %v1212, %v1214
        %v1216 = vrot.slane %v1155, 6
        %v1217 = vrot.slane %v1156, 6
        %v1218 = vsel %vm1185, %v1216, %v1217
        %v1219 = vrot.slane %v1157, 6
        %v1220 = vsel %vm1185, %v1217, %v1219
        %v1221 = vrot.slane %v1158, 6
        %v1222 = vrot.slane %v1159, 6
        %v1223 = vsel %vm1185, %v1221, %v1222
        %v1224 = vrot.slane %v1160, 6
        %v1225 = vsel %vm1185, %v1222, %v1224
        %v1250 = vadd.f32 %v1110, %v1186
        %v1251 = vadd.f32 %v1111, %v1188
        %v1252 = vadd.f32 %v1112, %v1190
        %v1253 = vadd.f32 %v1113, %v1191
        %v1254 = vadd.f32 %v1114, %v1193
        %v1255 = vadd.f32 %v1115, %v1195
        %v1256 = vadd.f32 %v1116, %v1196
        %v1257 = vadd.f32 %v1117, %v1198
        %v1258 = vadd.f32 %v1118, %v1200
        %v1259 = vadd.f32 %v1119, %v1201
        %v1260 = vadd.f32 %v1120, %v1203
        %v1261 = vadd.f32 %v1121, %v1205
        %v1262 = vadd.f32 %v1122, %v1206
        %v1263 = vadd.f32 %v1123, %v1208
        %v1264 = vadd.f32 %v1124, %v1210
        %v1265 = vadd.f32 %v1125, %v1211
        %v1266 = vadd.f32 %v1126, %v1213
        %v1267 = vadd.f32 %v1127, %v1215
        %v1268 = vadd.f32 %v1128, %v1216
        %v1269 = vadd.f32 %v1129, %v1218
        %v1270 = vadd.f32 %v1130, %v1220
        %v1271 = vadd.f32 %v1131, %v1221
        %v1272 = vadd.f32 %v1132, %v1223
        %v1273 = vadd.f32 %v1133, %v1225
        %s1274 = scalar_lea.vmem [#allocation2], 32
        %v1275 = vld [vmem:[%s1274] sm:$0xff]
        %v1276 = vld [vmem:[%s1274 + $0x8] sm:$0xff]
        %v1277 = vld [vmem:[%s1274 + $0x10] sm:$0xff]
        %v1278 = vld [vmem:[%s1274 + $0x18] sm:$0x7]
        %v1279 = vld [vmem:[%s1274 + $0x20] sm:$0xff]
        %v1280 = vld [vmem:[%s1274 + $0x28] sm:$0xff]
        %v1281 = vld [vmem:[%s1274 + $0x30] sm:$0xff]
        %v1282 = vld [vmem:[%s1274 + $0x38] sm:$0x7]
        %v1283 = vld [vmem:[%s1274 + $0x40] sm:$0xff]
        %v1284 = vld [vmem:[%s1274 + $0x48] sm:$0xff]
        %v1285 = vld [vmem:[%s1274 + $0x50] sm:$0xff]
        %v1286 = vld [vmem:[%s1274 + $0x58] sm:$0x7]
        %v1287 = vld [vmem:[%s1274 + $0x60] sm:$0xff]
        %v1288 = vld [vmem:[%s1274 + $0x68] sm:$0xff]
        %v1289 = vld [vmem:[%s1274 + $0x70] sm:$0xff]
        %v1290 = vld [vmem:[%s1274 + $0x78] sm:$0x7]
        %v1291 = vld [vmem:[%s1274 + $0x80] sm:$0xff]
        %v1292 = vld [vmem:[%s1274 + $0x88] sm:$0xff]
        %v1293 = vld [vmem:[%s1274 + $0x90] sm:$0xff]
        %v1294 = vld [vmem:[%s1274 + $0x98] sm:$0x7]
        %v1295 = vld [vmem:[%s1274 + $0xa0] sm:$0xff]
        %v1296 = vld [vmem:[%s1274 + $0xa8] sm:$0xff]
        %v1297 = vld [vmem:[%s1274 + $0xb0] sm:$0xff]
        %v1298 = vld [vmem:[%s1274 + $0xb8] sm:$0x7]
        %v1299 = vld [vmem:[%s1274 + $0xc0] sm:$0xff]
        %v1300 = vld [vmem:[%s1274 + $0xc8] sm:$0xff]
        %v1301 = vld [vmem:[%s1274 + $0xd0] sm:$0xff]
        %v1302 = vld [vmem:[%s1274 + $0xd8] sm:$0x7]
        %v1303 = vld [vmem:[%s1274 + $0xe0] sm:$0xff]
        %v1304 = vld [vmem:[%s1274 + $0xe8] sm:$0xff]
        %v1305 = vld [vmem:[%s1274 + $0xf0] sm:$0xff]
        %v1306 = vld [vmem:[%s1274 + $0xf8] sm:$0x7]
        %v1308 = vperm.slane %v337, 0
        %v1310 = vmul.f32 %v1275, %v1308
        %v1311 = vmul.f32 %v1276, %v1308
        %v1312 = vmul.f32 %v1277, %v1308
        %v1313 = vmul.f32 %v1279, %v1308
        %v1314 = vmul.f32 %v1280, %v1308
        %v1315 = vmul.f32 %v1281, %v1308
        %v1316 = vmul.f32 %v1283, %v1308
        %v1317 = vmul.f32 %v1284, %v1308
        %v1318 = vmul.f32 %v1285, %v1308
        %v1319 = vmul.f32 %v1287, %v1308
        %v1320 = vmul.f32 %v1288, %v1308
        %v1321 = vmul.f32 %v1289, %v1308
        %v1322 = vmul.f32 %v1291, %v1308
        %v1323 = vmul.f32 %v1292, %v1308
        %v1324 = vmul.f32 %v1293, %v1308
        %v1325 = vmul.f32 %v1295, %v1308
        %v1326 = vmul.f32 %v1296, %v1308
        %v1327 = vmul.f32 %v1297, %v1308
        %v1328 = vmul.f32 %v1299, %v1308
        %v1329 = vmul.f32 %v1300, %v1308
        %v1330 = vmul.f32 %v1301, %v1308
        %v1331 = vmul.f32 %v1303, %v1308
        %v1332 = vmul.f32 %v1304, %v1308
        %v1333 = vmul.f32 %v1305, %v1308
        %v1334 = vadd.f32 %v1250, %v1310
        %v1335 = vadd.f32 %v1251, %v1311
        %v1336 = vadd.f32 %v1252, %v1312
        %v1337 = vadd.f32 %v1253, %v1313
        %v1338 = vadd.f32 %v1254, %v1314
        %v1339 = vadd.f32 %v1255, %v1315
        %v1340 = vadd.f32 %v1256, %v1316
        %v1341 = vadd.f32 %v1257, %v1317
        %v1342 = vadd.f32 %v1258, %v1318
        %v1343 = vadd.f32 %v1259, %v1319
        %v1344 = vadd.f32 %v1260, %v1320
        %v1345 = vadd.f32 %v1261, %v1321
        %v1346 = vadd.f32 %v1262, %v1322
        %v1347 = vadd.f32 %v1263, %v1323
        %v1348 = vadd.f32 %v1264, %v1324
        %v1349 = vadd.f32 %v1265, %v1325
        %v1350 = vadd.f32 %v1266, %v1326
        %v1351 = vadd.f32 %v1267, %v1327
        %v1352 = vadd.f32 %v1268, %v1328
        %v1353 = vadd.f32 %v1269, %v1329
        %v1354 = vadd.f32 %v1270, %v1330
        %v1355 = vadd.f32 %v1271, %v1331
        %v1356 = vadd.f32 %v1272, %v1332
        %v1357 = vadd.f32 %v1273, %v1333
        %v1359 = vperm.slane %v338, 0
        %v1361 = vmul.f32 %v1275, %v1359
        %v1362 = vmul.f32 %v1276, %v1359
        %v1363 = vmul.f32 %v1277, %v1359
        %v1364 = vmul.f32 %v1279, %v1359
        %v1365 = vmul.f32 %v1280, %v1359
        %v1366 = vmul.f32 %v1281, %v1359
        %v1367 = vmul.f32 %v1283, %v1359
        %v1368 = vmul.f32 %v1284, %v1359
        %v1369 = vmul.f32 %v1285, %v1359
        %v1370 = vmul.f32 %v1287, %v1359
        %v1371 = vmul.f32 %v1288, %v1359
        %v1372 = vmul.f32 %v1289, %v1359
        %v1373 = vmul.f32 %v1291, %v1359
        %v1374 = vmul.f32 %v1292, %v1359
        %v1375 = vmul.f32 %v1293, %v1359
        %v1376 = vmul.f32 %v1295, %v1359
        %v1377 = vmul.f32 %v1296, %v1359
        %v1378 = vmul.f32 %v1297, %v1359
        %v1379 = vmul.f32 %v1299, %v1359
        %v1380 = vmul.f32 %v1300, %v1359
        %v1381 = vmul.f32 %v1301, %v1359
        %v1382 = vmul.f32 %v1303, %v1359
        %v1383 = vmul.f32 %v1304, %v1359
        %v1384 = vmul.f32 %v1305, %v1359
        %v1409 = vrot.slane %v1361, 1
        %v1410 = vrot.slane %v1362, 1
        %v1411 = vsel %vm517, %v1409, %v1410
        %v1412 = vrot.slane %v1363, 1
        %v1413 = vsel %vm517, %v1410, %v1412
        %v1414 = vrot.slane %v1364, 1
        %v1415 = vrot.slane %v1365, 1
        %v1416 = vsel %vm517, %v1414, %v1415
        %v1417 = vrot.slane %v1366, 1
        %v1418 = vsel %vm517, %v1415, %v1417
        %v1419 = vrot.slane %v1367, 1
        %v1420 = vrot.slane %v1368, 1
        %v1421 = vsel %vm517, %v1419, %v1420
        %v1422 = vrot.slane %v1369, 1
        %v1423 = vsel %vm517, %v1420, %v1422
        %v1424 = vrot.slane %v1370, 1
        %v1425 = vrot.slane %v1371, 1
        %v1426 = vsel %vm517, %v1424, %v1425
        %v1427 = vrot.slane %v1372, 1
        %v1428 = vsel %vm517, %v1425, %v1427
        %v1429 = vrot.slane %v1373, 1
        %v1430 = vrot.slane %v1374, 1
        %v1431 = vsel %vm517, %v1429, %v1430
        %v1432 = vrot.slane %v1375, 1
        %v1433 = vsel %vm517, %v1430, %v1432
        %v1434 = vrot.slane %v1376, 1
        %v1435 = vrot.slane %v1377, 1
        %v1436 = vsel %vm517, %v1434, %v1435
        %v1437 = vrot.slane %v1378, 1
        %v1438 = vsel %vm517, %v1435, %v1437
        %v1439 = vrot.slane %v1379, 1
        %v1440 = vrot.slane %v1380, 1
        %v1441 = vsel %vm517, %v1439, %v1440
        %v1442 = vrot.slane %v1381, 1
        %v1443 = vsel %vm517, %v1440, %v1442
        %v1444 = vrot.slane %v1382, 1
        %v1445 = vrot.slane %v1383, 1
        %v1446 = vsel %vm517, %v1444, %v1445
        %v1447 = vrot.slane %v1384, 1
        %v1448 = vsel %vm517, %v1445, %v1447
        %v1473 = vadd.f32 %v1334, %v1411
        %v1474 = vadd.f32 %v1335, %v1413
        %v1475 = vadd.f32 %v1336, %v1412
        %v1476 = vadd.f32 %v1337, %v1416
        %v1477 = vadd.f32 %v1338, %v1418
        %v1478 = vadd.f32 %v1339, %v1417
        %v1479 = vadd.f32 %v1340, %v1421
        %v1480 = vadd.f32 %v1341, %v1423
        %v1481 = vadd.f32 %v1342, %v1422
        %v1482 = vadd.f32 %v1343, %v1426
        %v1483 = vadd.f32 %v1344, %v1428
        %v1484 = vadd.f32 %v1345, %v1427
        %v1485 = vadd.f32 %v1346, %v1431
        %v1486 = vadd.f32 %v1347, %v1433
        %v1487 = vadd.f32 %v1348, %v1432
        %v1488 = vadd.f32 %v1349, %v1436
        %v1489 = vadd.f32 %v1350, %v1438
        %v1490 = vadd.f32 %v1351, %v1437
        %v1491 = vadd.f32 %v1352, %v1441
        %v1492 = vadd.f32 %v1353, %v1443
        %v1493 = vadd.f32 %v1354, %v1442
        %v1494 = vadd.f32 %v1355, %v1446
        %v1495 = vadd.f32 %v1356, %v1448
        %v1496 = vadd.f32 %v1357, %v1447
        %v1498 = vperm.slane %v339, 0
        %v1500 = vmul.f32 %v1275, %v1498
        %v1501 = vmul.f32 %v1276, %v1498
        %v1502 = vmul.f32 %v1277, %v1498
        %v1503 = vmul.f32 %v1279, %v1498
        %v1504 = vmul.f32 %v1280, %v1498
        %v1505 = vmul.f32 %v1281, %v1498
        %v1506 = vmul.f32 %v1283, %v1498
        %v1507 = vmul.f32 %v1284, %v1498
        %v1508 = vmul.f32 %v1285, %v1498
        %v1509 = vmul.f32 %v1287, %v1498
        %v1510 = vmul.f32 %v1288, %v1498
        %v1511 = vmul.f32 %v1289, %v1498
        %v1512 = vmul.f32 %v1291, %v1498
        %v1513 = vmul.f32 %v1292, %v1498
        %v1514 = vmul.f32 %v1293, %v1498
        %v1515 = vmul.f32 %v1295, %v1498
        %v1516 = vmul.f32 %v1296, %v1498
        %v1517 = vmul.f32 %v1297, %v1498
        %v1518 = vmul.f32 %v1299, %v1498
        %v1519 = vmul.f32 %v1300, %v1498
        %v1520 = vmul.f32 %v1301, %v1498
        %v1521 = vmul.f32 %v1303, %v1498
        %v1522 = vmul.f32 %v1304, %v1498
        %v1523 = vmul.f32 %v1305, %v1498
        %v1548 = vrot.slane %v1500, 2
        %v1549 = vrot.slane %v1501, 2
        %v1550 = vsel %vm657, %v1548, %v1549
        %v1551 = vrot.slane %v1502, 2
        %v1552 = vsel %vm657, %v1549, %v1551
        %v1553 = vrot.slane %v1503, 2
        %v1554 = vrot.slane %v1504, 2
        %v1555 = vsel %vm657, %v1553, %v1554
        %v1556 = vrot.slane %v1505, 2
        %v1557 = vsel %vm657, %v1554, %v1556
        %v1558 = vrot.slane %v1506, 2
        %v1559 = vrot.slane %v1507, 2
        %v1560 = vsel %vm657, %v1558, %v1559
        %v1561 = vrot.slane %v1508, 2
        %v1562 = vsel %vm657, %v1559, %v1561
        %v1563 = vrot.slane %v1509, 2
        %v1564 = vrot.slane %v1510, 2
        %v1565 = vsel %vm657, %v1563, %v1564
        %v1566 = vrot.slane %v1511, 2
        %v1567 = vsel %vm657, %v1564, %v1566
        %v1568 = vrot.slane %v1512, 2
        %v1569 = vrot.slane %v1513, 2
        %v1570 = vsel %vm657, %v1568, %v1569
        %v1571 = vrot.slane %v1514, 2
        %v1572 = vsel %vm657, %v1569, %v1571
        %v1573 = vrot.slane %v1515, 2
        %v1574 = vrot.slane %v1516, 2
        %v1575 = vsel %vm657, %v1573, %v1574
        %v1576 = vrot.slane %v1517, 2
        %v1577 = vsel %vm657, %v1574, %v1576
        %v1578 = vrot.slane %v1518, 2
        %v1579 = vrot.slane %v1519, 2
        %v1580 = vsel %vm657, %v1578, %v1579
        %v1581 = vrot.slane %v1520, 2
        %v1582 = vsel %vm657, %v1579, %v1581
        %v1583 = vrot.slane %v1521, 2
        %v1584 = vrot.slane %v1522, 2
        %v1585 = vsel %vm657, %v1583, %v1584
        %v1586 = vrot.slane %v1523, 2
        %v1587 = vsel %vm657, %v1584, %v1586
        %v1612 = vadd.f32 %v1473, %v1550
        %v1613 = vadd.f32 %v1474, %v1552
        %v1614 = vadd.f32 %v1475, %v1551
        %v1615 = vadd.f32 %v1476, %v1555
        %v1616 = vadd.f32 %v1477, %v1557
        %v1617 = vadd.f32 %v1478, %v1556
        %v1618 = vadd.f32 %v1479, %v1560
        %v1619 = vadd.f32 %v1480, %v1562
        %v1620 = vadd.f32 %v1481, %v1561
        %v1621 = vadd.f32 %v1482, %v1565
        %v1622 = vadd.f32 %v1483, %v1567
        %v1623 = vadd.f32 %v1484, %v1566
        %v1624 = vadd.f32 %v1485, %v1570
        %v1625 = vadd.f32 %v1486, %v1572
        %v1626 = vadd.f32 %v1487, %v1571
        %v1627 = vadd.f32 %v1488, %v1575
        %v1628 = vadd.f32 %v1489, %v1577
        %v1629 = vadd.f32 %v1490, %v1576
        %v1630 = vadd.f32 %v1491, %v1580
        %v1631 = vadd.f32 %v1492, %v1582
        %v1632 = vadd.f32 %v1493, %v1581
        %v1633 = vadd.f32 %v1494, %v1585
        %v1634 = vadd.f32 %v1495, %v1587
        %v1635 = vadd.f32 %v1496, %v1586
        %v1637 = vperm.slane %v340, 0
        %v1639 = vmul.f32 %v1276, %v1637
        %v1640 = vmul.f32 %v1277, %v1637
        %v1641 = vmul.f32 %v1280, %v1637
        %v1642 = vmul.f32 %v1281, %v1637
        %v1643 = vmul.f32 %v1284, %v1637
        %v1644 = vmul.f32 %v1285, %v1637
        %v1645 = vmul.f32 %v1288, %v1637
        %v1646 = vmul.f32 %v1289, %v1637
        %v1647 = vmul.f32 %v1292, %v1637
        %v1648 = vmul.f32 %v1293, %v1637
        %v1649 = vmul.f32 %v1296, %v1637
        %v1650 = vmul.f32 %v1297, %v1637
        %v1651 = vmul.f32 %v1300, %v1637
        %v1652 = vmul.f32 %v1301, %v1637
        %v1653 = vmul.f32 %v1304, %v1637
        %v1654 = vmul.f32 %v1305, %v1637
        %v1671 = vrot.slane %v1639, 3
        %v1672 = vrot.slane %v1640, 3
        %v1673 = vsel %vm781, %v1671, %v1672
        %v1674 = vrot.slane %v1641, 3
        %v1675 = vrot.slane %v1642, 3
        %v1676 = vsel %vm781, %v1674, %v1675
        %v1677 = vrot.slane %v1643, 3
        %v1678 = vrot.slane %v1644, 3
        %v1679 = vsel %vm781, %v1677, %v1678
        %v1680 = vrot.slane %v1645, 3
        %v1681 = vrot.slane %v1646, 3
        %v1682 = vsel %vm781, %v1680, %v1681
        %v1683 = vrot.slane %v1647, 3
        %v1684 = vrot.slane %v1648, 3
        %v1685 = vsel %vm781, %v1683, %v1684
        %v1686 = vrot.slane %v1649, 3
        %v1687 = vrot.slane %v1650, 3
        %v1688 = vsel %vm781, %v1686, %v1687
        %v1689 = vrot.slane %v1651, 3
        %v1690 = vrot.slane %v1652, 3
        %v1691 = vsel %vm781, %v1689, %v1690
        %v1692 = vrot.slane %v1653, 3
        %v1693 = vrot.slane %v1654, 3
        %v1694 = vsel %vm781, %v1692, %v1693
        %v1719 = vadd.f32 %v1612, %v1671
        %v1720 = vadd.f32 %v1613, %v1673
        %v1721 = vadd.f32 %v1614, %v1672
        %v1722 = vadd.f32 %v1615, %v1674
        %v1723 = vadd.f32 %v1616, %v1676
        %v1724 = vadd.f32 %v1617, %v1675
        %v1725 = vadd.f32 %v1618, %v1677
        %v1726 = vadd.f32 %v1619, %v1679
        %v1727 = vadd.f32 %v1620, %v1678
        %v1728 = vadd.f32 %v1621, %v1680
        %v1729 = vadd.f32 %v1622, %v1682
        %v1730 = vadd.f32 %v1623, %v1681
        %v1731 = vadd.f32 %v1624, %v1683
        %v1732 = vadd.f32 %v1625, %v1685
        %v1733 = vadd.f32 %v1626, %v1684
        %v1734 = vadd.f32 %v1627, %v1686
        %v1735 = vadd.f32 %v1628, %v1688
        %v1736 = vadd.f32 %v1629, %v1687
        %v1737 = vadd.f32 %v1630, %v1689
        %v1738 = vadd.f32 %v1631, %v1691
        %v1739 = vadd.f32 %v1632, %v1690
        %v1740 = vadd.f32 %v1633, %v1692
        %v1741 = vadd.f32 %v1634, %v1694
        %v1742 = vadd.f32 %v1635, %v1693
        %v1744 = vperm.slane %v341, 0
        %v1746 = vmul.f32 %v1276, %v1744
        %v1747 = vmul.f32 %v1277, %v1744
        %v1748 = vmul.f32 %v1278, %v1744
        %v1749 = vmul.f32 %v1280, %v1744
        %v1750 = vmul.f32 %v1281, %v1744
        %v1751 = vmul.f32 %v1282, %v1744
        %v1752 = vmul.f32 %v1284, %v1744
        %v1753 = vmul.f32 %v1285, %v1744
        %v1754 = vmul.f32 %v1286, %v1744
        %v1755 = vmul.f32 %v1288, %v1744
        %v1756 = vmul.f32 %v1289, %v1744
        %v1757 = vmul.f32 %v1290, %v1744
        %v1758 = vmul.f32 %v1292, %v1744
        %v1759 = vmul.f32 %v1293, %v1744
        %v1760 = vmul.f32 %v1294, %v1744
        %v1761 = vmul.f32 %v1296, %v1744
        %v1762 = vmul.f32 %v1297, %v1744
        %v1763 = vmul.f32 %v1298, %v1744
        %v1764 = vmul.f32 %v1300, %v1744
        %v1765 = vmul.f32 %v1301, %v1744
        %v1766 = vmul.f32 %v1302, %v1744
        %v1767 = vmul.f32 %v1304, %v1744
        %v1768 = vmul.f32 %v1305, %v1744
        %v1769 = vmul.f32 %v1306, %v1744
        %v1794 = vrot.slane %v1746, 4
        %v1795 = vrot.slane %v1747, 4
        %v1796 = vsel %vm905, %v1794, %v1795
        %v1797 = vrot.slane %v1748, 4
        %v1798 = vsel %vm905, %v1795, %v1797
        %v1799 = vrot.slane %v1749, 4
        %v1800 = vrot.slane %v1750, 4
        %v1801 = vsel %vm905, %v1799, %v1800
        %v1802 = vrot.slane %v1751, 4
        %v1803 = vsel %vm905, %v1800, %v1802
        %v1804 = vrot.slane %v1752, 4
        %v1805 = vrot.slane %v1753, 4
        %v1806 = vsel %vm905, %v1804, %v1805
        %v1807 = vrot.slane %v1754, 4
        %v1808 = vsel %vm905, %v1805, %v1807
        %v1809 = vrot.slane %v1755, 4
        %v1810 = vrot.slane %v1756, 4
        %v1811 = vsel %vm905, %v1809, %v1810
        %v1812 = vrot.slane %v1757, 4
        %v1813 = vsel %vm905, %v1810, %v1812
        %v1814 = vrot.slane %v1758, 4
        %v1815 = vrot.slane %v1759, 4
        %v1816 = vsel %vm905, %v1814, %v1815
        %v1817 = vrot.slane %v1760, 4
        %v1818 = vsel %vm905, %v1815, %v1817
        %v1819 = vrot.slane %v1761, 4
        %v1820 = vrot.slane %v1762, 4
        %v1821 = vsel %vm905, %v1819, %v1820
        %v1822 = vrot.slane %v1763, 4
        %v1823 = vsel %vm905, %v1820, %v1822
        %v1824 = vrot.slane %v1764, 4
        %v1825 = vrot.slane %v1765, 4
        %v1826 = vsel %vm905, %v1824, %v1825
        %v1827 = vrot.slane %v1766, 4
        %v1828 = vsel %vm905, %v1825, %v1827
        %v1829 = vrot.slane %v1767, 4
        %v1830 = vrot.slane %v1768, 4
        %v1831 = vsel %vm905, %v1829, %v1830
        %v1832 = vrot.slane %v1769, 4
        %v1833 = vsel %vm905, %v1830, %v1832
        %v1858 = vadd.f32 %v1719, %v1794
        %v1859 = vadd.f32 %v1720, %v1796
        %v1860 = vadd.f32 %v1721, %v1798
        %v1861 = vadd.f32 %v1722, %v1799
        %v1862 = vadd.f32 %v1723, %v1801
        %v1863 = vadd.f32 %v1724, %v1803
        %v1864 = vadd.f32 %v1725, %v1804
        %v1865 = vadd.f32 %v1726, %v1806
        %v1866 = vadd.f32 %v1727, %v1808
        %v1867 = vadd.f32 %v1728, %v1809
        %v1868 = vadd.f32 %v1729, %v1811
        %v1869 = vadd.f32 %v1730, %v1813
        %v1870 = vadd.f32 %v1731, %v1814
        %v1871 = vadd.f32 %v1732, %v1816
        %v1872 = vadd.f32 %v1733, %v1818
        %v1873 = vadd.f32 %v1734, %v1819
        %v1874 = vadd.f32 %v1735, %v1821
        %v1875 = vadd.f32 %v1736, %v1823
        %v1876 = vadd.f32 %v1737, %v1824
        %v1877 = vadd.f32 %v1738, %v1826
        %v1878 = vadd.f32 %v1739, %v1828
        %v1879 = vadd.f32 %v1740, %v1829
        %v1880 = vadd.f32 %v1741, %v1831
        %v1881 = vadd.f32 %v1742, %v1833
        %v1883 = vperm.slane %v342, 0
        %v1885 = vmul.f32 %v1276, %v1883
        %v1886 = vmul.f32 %v1277, %v1883
        %v1887 = vmul.f32 %v1278, %v1883
        %v1888 = vmul.f32 %v1280, %v1883
        %v1889 = vmul.f32 %v1281, %v1883
        %v1890 = vmul.f32 %v1282, %v1883
        %v1891 = vmul.f32 %v1284, %v1883
        %v1892 = vmul.f32 %v1285, %v1883
        %v1893 = vmul.f32 %v1286, %v1883
        %v1894 = vmul.f32 %v1288, %v1883
        %v1895 = vmul.f32 %v1289, %v1883
        %v1896 = vmul.f32 %v1290, %v1883
        %v1897 = vmul.f32 %v1292, %v1883
        %v1898 = vmul.f32 %v1293, %v1883
        %v1899 = vmul.f32 %v1294, %v1883
        %v1900 = vmul.f32 %v1296, %v1883
        %v1901 = vmul.f32 %v1297, %v1883
        %v1902 = vmul.f32 %v1298, %v1883
        %v1903 = vmul.f32 %v1300, %v1883
        %v1904 = vmul.f32 %v1301, %v1883
        %v1905 = vmul.f32 %v1302, %v1883
        %v1906 = vmul.f32 %v1304, %v1883
        %v1907 = vmul.f32 %v1305, %v1883
        %v1908 = vmul.f32 %v1306, %v1883
        %v1933 = vrot.slane %v1885, 5
        %v1934 = vrot.slane %v1886, 5
        %v1935 = vsel %vm1045, %v1933, %v1934
        %v1936 = vrot.slane %v1887, 5
        %v1937 = vsel %vm1045, %v1934, %v1936
        %v1938 = vrot.slane %v1888, 5
        %v1939 = vrot.slane %v1889, 5
        %v1940 = vsel %vm1045, %v1938, %v1939
        %v1941 = vrot.slane %v1890, 5
        %v1942 = vsel %vm1045, %v1939, %v1941
        %v1943 = vrot.slane %v1891, 5
        %v1944 = vrot.slane %v1892, 5
        %v1945 = vsel %vm1045, %v1943, %v1944
        %v1946 = vrot.slane %v1893, 5
        %v1947 = vsel %vm1045, %v1944, %v1946
        %v1948 = vrot.slane %v1894, 5
        %v1949 = vrot.slane %v1895, 5
        %v1950 = vsel %vm1045, %v1948, %v1949
        %v1951 = vrot.slane %v1896, 5
        %v1952 = vsel %vm1045, %v1949, %v1951
        %v1953 = vrot.slane %v1897, 5
        %v1954 = vrot.slane %v1898, 5
        %v1955 = vsel %vm1045, %v1953, %v1954
        %v1956 = vrot.slane %v1899, 5
        %v1957 = vsel %vm1045, %v1954, %v1956
        %v1958 = vrot.slane %v1900, 5
        %v1959 = vrot.slane %v1901, 5
        %v1960 = vsel %vm1045, %v1958, %v1959
        %v1961 = vrot.slane %v1902, 5
        %v1962 = vsel %vm1045, %v1959, %v1961
        %v1963 = vrot.slane %v1903, 5
        %v1964 = vrot.slane %v1904, 5
        %v1965 = vsel %vm1045, %v1963, %v1964
        %v1966 = vrot.slane %v1905, 5
        %v1967 = vsel %vm1045, %v1964, %v1966
        %v1968 = vrot.slane %v1906, 5
        %v1969 = vrot.slane %v1907, 5
        %v1970 = vsel %vm1045, %v1968, %v1969
        %v1971 = vrot.slane %v1908, 5
        %v1972 = vsel %vm1045, %v1969, %v1971
        %v1997 = vadd.f32 %v1858, %v1933
        %v1998 = vadd.f32 %v1859, %v1935
        %v1999 = vadd.f32 %v1860, %v1937
        %v2000 = vadd.f32 %v1861, %v1938
        %v2001 = vadd.f32 %v1862, %v1940
        %v2002 = vadd.f32 %v1863, %v1942
        %v2003 = vadd.f32 %v1864, %v1943
        %v2004 = vadd.f32 %v1865, %v1945
        %v2005 = vadd.f32 %v1866, %v1947
        %v2006 = vadd.f32 %v1867, %v1948
        %v2007 = vadd.f32 %v1868, %v1950
        %v2008 = vadd.f32 %v1869, %v1952
        %v2009 = vadd.f32 %v1870, %v1953
        %v2010 = vadd.f32 %v1871, %v1955
        %v2011 = vadd.f32 %v1872, %v1957
        %v2012 = vadd.f32 %v1873, %v1958
        %v2013 = vadd.f32 %v1874, %v1960
        %v2014 = vadd.f32 %v1875, %v1962
        %v2015 = vadd.f32 %v1876, %v1963
        %v2016 = vadd.f32 %v1877, %v1965
        %v2017 = vadd.f32 %v1878, %v1967
        %v2018 = vadd.f32 %v1879, %v1968
        %v2019 = vadd.f32 %v1880, %v1970
        %v2020 = vadd.f32 %v1881, %v1972
        %v2022 = vperm.slane %v343, 0
        %v2024 = vmul.f32 %v1276, %v2022
        %v2025 = vmul.f32 %v1277, %v2022
        %v2026 = vmul.f32 %v1278, %v2022
        %v2027 = vmul.f32 %v1280, %v2022
        %v2028 = vmul.f32 %v1281, %v2022
        %v2029 = vmul.f32 %v1282, %v2022
        %v2030 = vmul.f32 %v1284, %v2022
        %v2031 = vmul.f32 %v1285, %v2022
        %v2032 = vmul.f32 %v1286, %v2022
        %v2033 = vmul.f32 %v1288, %v2022
        %v2034 = vmul.f32 %v1289, %v2022
        %v2035 = vmul.f32 %v1290, %v2022
        %v2036 = vmul.f32 %v1292, %v2022
        %v2037 = vmul.f32 %v1293, %v2022
        %v2038 = vmul.f32 %v1294, %v2022
        %v2039 = vmul.f32 %v1296, %v2022
        %v2040 = vmul.f32 %v1297, %v2022
        %v2041 = vmul.f32 %v1298, %v2022
        %v2042 = vmul.f32 %v1300, %v2022
        %v2043 = vmul.f32 %v1301, %v2022
        %v2044 = vmul.f32 %v1302, %v2022
        %v2045 = vmul.f32 %v1304, %v2022
        %v2046 = vmul.f32 %v1305, %v2022
        %v2047 = vmul.f32 %v1306, %v2022
        %v2072 = vrot.slane %v2024, 6
        %v2073 = vrot.slane %v2025, 6
        %v2074 = vsel %vm1185, %v2072, %v2073
        %v2075 = vrot.slane %v2026, 6
        %v2076 = vsel %vm1185, %v2073, %v2075
        %v2077 = vrot.slane %v2027, 6
        %v2078 = vrot.slane %v2028, 6
        %v2079 = vsel %vm1185, %v2077, %v2078
        %v2080 = vrot.slane %v2029, 6
        %v2081 = vsel %vm1185, %v2078, %v2080
        %v2082 = vrot.slane %v2030, 6
        %v2083 = vrot.slane %v2031, 6
        %v2084 = vsel %vm1185, %v2082, %v2083
        %v2085 = vrot.slane %v2032, 6
        %v2086 = vsel %vm1185, %v2083, %v2085
        %v2087 = vrot.slane %v2033, 6
        %v2088 = vrot.slane %v2034, 6
        %v2089 = vsel %vm1185, %v2087, %v2088
        %v2090 = vrot.slane %v2035, 6
        %v2091 = vsel %vm1185, %v2088, %v2090
        %v2092 = vrot.slane %v2036, 6
        %v2093 = vrot.slane %v2037, 6
        %v2094 = vsel %vm1185, %v2092, %v2093
        %v2095 = vrot.slane %v2038, 6
        %v2096 = vsel %vm1185, %v2093, %v2095
        %v2097 = vrot.slane %v2039, 6
        %v2098 = vrot.slane %v2040, 6
        %v2099 = vsel %vm1185, %v2097, %v2098
        %v2100 = vrot.slane %v2041, 6
        %v2101 = vsel %vm1185, %v2098, %v2100
        %v2102 = vrot.slane %v2042, 6
        %v2103 = vrot.slane %v2043, 6
        %v2104 = vsel %vm1185, %v2102, %v2103
        %v2105 = vrot.slane %v2044, 6
        %v2106 = vsel %vm1185, %v2103, %v2105
        %v2107 = vrot.slane %v2045, 6
        %v2108 = vrot.slane %v2046, 6
        %v2109 = vsel %vm1185, %v2107, %v2108
        %v2110 = vrot.slane %v2047, 6
        %v2111 = vsel %vm1185, %v2108, %v2110
        %v2136 = vadd.f32 %v1997, %v2072
        %v2137 = vadd.f32 %v1998, %v2074
        %v2138 = vadd.f32 %v1999, %v2076
        %v2139 = vadd.f32 %v2000, %v2077
        %v2140 = vadd.f32 %v2001, %v2079
        %v2141 = vadd.f32 %v2002, %v2081
        %v2142 = vadd.f32 %v2003, %v2082
        %v2143 = vadd.f32 %v2004, %v2084
        %v2144 = vadd.f32 %v2005, %v2086
        %v2145 = vadd.f32 %v2006, %v2087
        %v2146 = vadd.f32 %v2007, %v2089
        %v2147 = vadd.f32 %v2008, %v2091
        %v2148 = vadd.f32 %v2009, %v2092
        %v2149 = vadd.f32 %v2010, %v2094
        %v2150 = vadd.f32 %v2011, %v2096
        %v2151 = vadd.f32 %v2012, %v2097
        %v2152 = vadd.f32 %v2013, %v2099
        %v2153 = vadd.f32 %v2014, %v2101
        %v2154 = vadd.f32 %v2015, %v2102
        %v2155 = vadd.f32 %v2016, %v2104
        %v2156 = vadd.f32 %v2017, %v2106
        %v2157 = vadd.f32 %v2018, %v2107
        %v2158 = vadd.f32 %v2019, %v2109
        %v2159 = vadd.f32 %v2020, %v2111
        %s2160 = scalar_lea.vmem [#allocation2], 64
        %v2161 = vld [vmem:[%s2160] sm:$0xff]
        %v2162 = vld [vmem:[%s2160 + $0x8] sm:$0xff]
        %v2163 = vld [vmem:[%s2160 + $0x10] sm:$0xff]
        %v2164 = vld [vmem:[%s2160 + $0x18] sm:$0x7]
        %v2165 = vld [vmem:[%s2160 + $0x20] sm:$0xff]
        %v2166 = vld [vmem:[%s2160 + $0x28] sm:$0xff]
        %v2167 = vld [vmem:[%s2160 + $0x30] sm:$0xff]
        %v2168 = vld [vmem:[%s2160 + $0x38] sm:$0x7]
        %v2169 = vld [vmem:[%s2160 + $0x40] sm:$0xff]
        %v2170 = vld [vmem:[%s2160 + $0x48] sm:$0xff]
        %v2171 = vld [vmem:[%s2160 + $0x50] sm:$0xff]
        %v2172 = vld [vmem:[%s2160 + $0x58] sm:$0x7]
        %v2173 = vld [vmem:[%s2160 + $0x60] sm:$0xff]
        %v2174 = vld [vmem:[%s2160 + $0x68] sm:$0xff]
        %v2175 = vld [vmem:[%s2160 + $0x70] sm:$0xff]
        %v2176 = vld [vmem:[%s2160 + $0x78] sm:$0x7]
        %v2177 = vld [vmem:[%s2160 + $0x80] sm:$0xff]
        %v2178 = vld [vmem:[%s2160 + $0x88] sm:$0xff]
        %v2179 = vld [vmem:[%s2160 + $0x90] sm:$0xff]
        %v2180 = vld [vmem:[%s2160 + $0x98] sm:$0x7]
        %v2181 = vld [vmem:[%s2160 + $0xa0] sm:$0xff]
        %v2182 = vld [vmem:[%s2160 + $0xa8] sm:$0xff]
        %v2183 = vld [vmem:[%s2160 + $0xb0] sm:$0xff]
        %v2184 = vld [vmem:[%s2160 + $0xb8] sm:$0x7]
        %v2185 = vld [vmem:[%s2160 + $0xc0] sm:$0xff]
        %v2186 = vld [vmem:[%s2160 + $0xc8] sm:$0xff]
        %v2187 = vld [vmem:[%s2160 + $0xd0] sm:$0xff]
        %v2188 = vld [vmem:[%s2160 + $0xd8] sm:$0x7]
        %v2189 = vld [vmem:[%s2160 + $0xe0] sm:$0xff]
        %v2190 = vld [vmem:[%s2160 + $0xe8] sm:$0xff]
        %v2191 = vld [vmem:[%s2160 + $0xf0] sm:$0xff]
        %v2192 = vld [vmem:[%s2160 + $0xf8] sm:$0x7]
        %v2194 = vperm.slane %v344, 0
        %v2196 = vmul.f32 %v2161, %v2194
        %v2197 = vmul.f32 %v2162, %v2194
        %v2198 = vmul.f32 %v2163, %v2194
        %v2199 = vmul.f32 %v2165, %v2194
        %v2200 = vmul.f32 %v2166, %v2194
        %v2201 = vmul.f32 %v2167, %v2194
        %v2202 = vmul.f32 %v2169, %v2194
        %v2203 = vmul.f32 %v2170, %v2194
        %v2204 = vmul.f32 %v2171, %v2194
        %v2205 = vmul.f32 %v2173, %v2194
        %v2206 = vmul.f32 %v2174, %v2194
        %v2207 = vmul.f32 %v2175, %v2194
        %v2208 = vmul.f32 %v2177, %v2194
        %v2209 = vmul.f32 %v2178, %v2194
        %v2210 = vmul.f32 %v2179, %v2194
        %v2211 = vmul.f32 %v2181, %v2194
        %v2212 = vmul.f32 %v2182, %v2194
        %v2213 = vmul.f32 %v2183, %v2194
        %v2214 = vmul.f32 %v2185, %v2194
        %v2215 = vmul.f32 %v2186, %v2194
        %v2216 = vmul.f32 %v2187, %v2194
        %v2217 = vmul.f32 %v2189, %v2194
        %v2218 = vmul.f32 %v2190, %v2194
        %v2219 = vmul.f32 %v2191, %v2194
        %v2220 = vadd.f32 %v2136, %v2196
        %v2221 = vadd.f32 %v2137, %v2197
        %v2222 = vadd.f32 %v2138, %v2198
        %v2223 = vadd.f32 %v2139, %v2199
        %v2224 = vadd.f32 %v2140, %v2200
        %v2225 = vadd.f32 %v2141, %v2201
        %v2226 = vadd.f32 %v2142, %v2202
        %v2227 = vadd.f32 %v2143, %v2203
        %v2228 = vadd.f32 %v2144, %v2204
        %v2229 = vadd.f32 %v2145, %v2205
        %v2230 = vadd.f32 %v2146, %v2206
        %v2231 = vadd.f32 %v2147, %v2207
        %v2232 = vadd.f32 %v2148, %v2208
        %v2233 = vadd.f32 %v2149, %v2209
        %v2234 = vadd.f32 %v2150, %v2210
        %v2235 = vadd.f32 %v2151, %v2211
        %v2236 = vadd.f32 %v2152, %v2212
        %v2237 = vadd.f32 %v2153, %v2213
        %v2238 = vadd.f32 %v2154, %v2214
        %v2239 = vadd.f32 %v2155, %v2215
        %v2240 = vadd.f32 %v2156, %v2216
        %v2241 = vadd.f32 %v2157, %v2217
        %v2242 = vadd.f32 %v2158, %v2218
        %v2243 = vadd.f32 %v2159, %v2219
        %v2245 = vperm.slane %v345, 0
        %v2247 = vmul.f32 %v2161, %v2245
        %v2248 = vmul.f32 %v2162, %v2245
        %v2249 = vmul.f32 %v2163, %v2245
        %v2250 = vmul.f32 %v2165, %v2245
        %v2251 = vmul.f32 %v2166, %v2245
        %v2252 = vmul.f32 %v2167, %v2245
        %v2253 = vmul.f32 %v2169, %v2245
        %v2254 = vmul.f32 %v2170, %v2245
        %v2255 = vmul.f32 %v2171, %v2245
        %v2256 = vmul.f32 %v2173, %v2245
        %v2257 = vmul.f32 %v2174, %v2245
        %v2258 = vmul.f32 %v2175, %v2245
        %v2259 = vmul.f32 %v2177, %v2245
        %v2260 = vmul.f32 %v2178, %v2245
        %v2261 = vmul.f32 %v2179, %v2245
        %v2262 = vmul.f32 %v2181, %v2245
        %v2263 = vmul.f32 %v2182, %v2245
        %v2264 = vmul.f32 %v2183, %v2245
        %v2265 = vmul.f32 %v2185, %v2245
        %v2266 = vmul.f32 %v2186, %v2245
        %v2267 = vmul.f32 %v2187, %v2245
        %v2268 = vmul.f32 %v2189, %v2245
        %v2269 = vmul.f32 %v2190, %v2245
        %v2270 = vmul.f32 %v2191, %v2245
        %v2295 = vrot.slane %v2247, 1
        %v2296 = vrot.slane %v2248, 1
        %v2297 = vsel %vm517, %v2295, %v2296
        %v2298 = vrot.slane %v2249, 1
        %v2299 = vsel %vm517, %v2296, %v2298
        %v2300 = vrot.slane %v2250, 1
        %v2301 = vrot.slane %v2251, 1
        %v2302 = vsel %vm517, %v2300, %v2301
        %v2303 = vrot.slane %v2252, 1
        %v2304 = vsel %vm517, %v2301, %v2303
        %v2305 = vrot.slane %v2253, 1
        %v2306 = vrot.slane %v2254, 1
        %v2307 = vsel %vm517, %v2305, %v2306
        %v2308 = vrot.slane %v2255, 1
        %v2309 = vsel %vm517, %v2306, %v2308
        %v2310 = vrot.slane %v2256, 1
        %v2311 = vrot.slane %v2257, 1
        %v2312 = vsel %vm517, %v2310, %v2311
        %v2313 = vrot.slane %v2258, 1
        %v2314 = vsel %vm517, %v2311, %v2313
        %v2315 = vrot.slane %v2259, 1
        %v2316 = vrot.slane %v2260, 1
        %v2317 = vsel %vm517, %v2315, %v2316
        %v2318 = vrot.slane %v2261, 1
        %v2319 = vsel %vm517, %v2316, %v2318
        %v2320 = vrot.slane %v2262, 1
        %v2321 = vrot.slane %v2263, 1
        %v2322 = vsel %vm517, %v2320, %v2321
        %v2323 = vrot.slane %v2264, 1
        %v2324 = vsel %vm517, %v2321, %v2323
        %v2325 = vrot.slane %v2265, 1
        %v2326 = vrot.slane %v2266, 1
        %v2327 = vsel %vm517, %v2325, %v2326
        %v2328 = vrot.slane %v2267, 1
        %v2329 = vsel %vm517, %v2326, %v2328
        %v2330 = vrot.slane %v2268, 1
        %v2331 = vrot.slane %v2269, 1
        %v2332 = vsel %vm517, %v2330, %v2331
        %v2333 = vrot.slane %v2270, 1
        %v2334 = vsel %vm517, %v2331, %v2333
        %v2359 = vadd.f32 %v2220, %v2297
        %v2360 = vadd.f32 %v2221, %v2299
        %v2361 = vadd.f32 %v2222, %v2298
        %v2362 = vadd.f32 %v2223, %v2302
        %v2363 = vadd.f32 %v2224, %v2304
        %v2364 = vadd.f32 %v2225, %v2303
        %v2365 = vadd.f32 %v2226, %v2307
        %v2366 = vadd.f32 %v2227, %v2309
        %v2367 = vadd.f32 %v2228, %v2308
        %v2368 = vadd.f32 %v2229, %v2312
        %v2369 = vadd.f32 %v2230, %v2314
        %v2370 = vadd.f32 %v2231, %v2313
        %v2371 = vadd.f32 %v2232, %v2317
        %v2372 = vadd.f32 %v2233, %v2319
        %v2373 = vadd.f32 %v2234, %v2318
        %v2374 = vadd.f32 %v2235, %v2322
        %v2375 = vadd.f32 %v2236, %v2324
        %v2376 = vadd.f32 %v2237, %v2323
        %v2377 = vadd.f32 %v2238, %v2327
        %v2378 = vadd.f32 %v2239, %v2329
        %v2379 = vadd.f32 %v2240, %v2328
        %v2380 = vadd.f32 %v2241, %v2332
        %v2381 = vadd.f32 %v2242, %v2334
        %v2382 = vadd.f32 %v2243, %v2333
        %v2384 = vperm.slane %v346, 0
        %v2386 = vmul.f32 %v2161, %v2384
        %v2387 = vmul.f32 %v2162, %v2384
        %v2388 = vmul.f32 %v2163, %v2384
        %v2389 = vmul.f32 %v2165, %v2384
        %v2390 = vmul.f32 %v2166, %v2384
        %v2391 = vmul.f32 %v2167, %v2384
        %v2392 = vmul.f32 %v2169, %v2384
        %v2393 = vmul.f32 %v2170, %v2384
        %v2394 = vmul.f32 %v2171, %v2384
        %v2395 = vmul.f32 %v2173, %v2384
        %v2396 = vmul.f32 %v2174, %v2384
        %v2397 = vmul.f32 %v2175, %v2384
        %v2398 = vmul.f32 %v2177, %v2384
        %v2399 = vmul.f32 %v2178, %v2384
        %v2400 = vmul.f32 %v2179, %v2384
        %v2401 = vmul.f32 %v2181, %v2384
        %v2402 = vmul.f32 %v2182, %v2384
        %v2403 = vmul.f32 %v2183, %v2384
        %v2404 = vmul.f32 %v2185, %v2384
        %v2405 = vmul.f32 %v2186, %v2384
        %v2406 = vmul.f32 %v2187, %v2384
        %v2407 = vmul.f32 %v2189, %v2384
        %v2408 = vmul.f32 %v2190, %v2384
        %v2409 = vmul.f32 %v2191, %v2384
        %v2434 = vrot.slane %v2386, 2
        %v2435 = vrot.slane %v2387, 2
        %v2436 = vsel %vm657, %v2434, %v2435
        %v2437 = vrot.slane %v2388, 2
        %v2438 = vsel %vm657, %v2435, %v2437
        %v2439 = vrot.slane %v2389, 2
        %v2440 = vrot.slane %v2390, 2
        %v2441 = vsel %vm657, %v2439, %v2440
        %v2442 = vrot.slane %v2391, 2
        %v2443 = vsel %vm657, %v2440, %v2442
        %v2444 = vrot.slane %v2392, 2
        %v2445 = vrot.slane %v2393, 2
        %v2446 = vsel %vm657, %v2444, %v2445
        %v2447 = vrot.slane %v2394, 2
        %v2448 = vsel %vm657, %v2445, %v2447
        %v2449 = vrot.slane %v2395, 2
        %v2450 = vrot.slane %v2396, 2
        %v2451 = vsel %vm657, %v2449, %v2450
        %v2452 = vrot.slane %v2397, 2
        %v2453 = vsel %vm657, %v2450, %v2452
        %v2454 = vrot.slane %v2398, 2
        %v2455 = vrot.slane %v2399, 2
        %v2456 = vsel %vm657, %v2454, %v2455
        %v2457 = vrot.slane %v2400, 2
        %v2458 = vsel %vm657, %v2455, %v2457
        %v2459 = vrot.slane %v2401, 2
        %v2460 = vrot.slane %v2402, 2
        %v2461 = vsel %vm657, %v2459, %v2460
        %v2462 = vrot.slane %v2403, 2
        %v2463 = vsel %vm657, %v2460, %v2462
        %v2464 = vrot.slane %v2404, 2
        %v2465 = vrot.slane %v2405, 2
        %v2466 = vsel %vm657, %v2464, %v2465
        %v2467 = vrot.slane %v2406, 2
        %v2468 = vsel %vm657, %v2465, %v2467
        %v2469 = vrot.slane %v2407, 2
        %v2470 = vrot.slane %v2408, 2
        %v2471 = vsel %vm657, %v2469, %v2470
        %v2472 = vrot.slane %v2409, 2
        %v2473 = vsel %vm657, %v2470, %v2472
        %v2498 = vadd.f32 %v2359, %v2436
        %v2499 = vadd.f32 %v2360, %v2438
        %v2500 = vadd.f32 %v2361, %v2437
        %v2501 = vadd.f32 %v2362, %v2441
        %v2502 = vadd.f32 %v2363, %v2443
        %v2503 = vadd.f32 %v2364, %v2442
        %v2504 = vadd.f32 %v2365, %v2446
        %v2505 = vadd.f32 %v2366, %v2448
        %v2506 = vadd.f32 %v2367, %v2447
        %v2507 = vadd.f32 %v2368, %v2451
        %v2508 = vadd.f32 %v2369, %v2453
        %v2509 = vadd.f32 %v2370, %v2452
        %v2510 = vadd.f32 %v2371, %v2456
        %v2511 = vadd.f32 %v2372, %v2458
        %v2512 = vadd.f32 %v2373, %v2457
        %v2513 = vadd.f32 %v2374, %v2461
        %v2514 = vadd.f32 %v2375, %v2463
        %v2515 = vadd.f32 %v2376, %v2462
        %v2516 = vadd.f32 %v2377, %v2466
        %v2517 = vadd.f32 %v2378, %v2468
        %v2518 = vadd.f32 %v2379, %v2467
        %v2519 = vadd.f32 %v2380, %v2471
        %v2520 = vadd.f32 %v2381, %v2473
        %v2521 = vadd.f32 %v2382, %v2472
        %v2523 = vperm.slane %v347, 0
        %v2525 = vmul.f32 %v2162, %v2523
        %v2526 = vmul.f32 %v2163, %v2523
        %v2527 = vmul.f32 %v2166, %v2523
        %v2528 = vmul.f32 %v2167, %v2523
        %v2529 = vmul.f32 %v2170, %v2523
        %v2530 = vmul.f32 %v2171, %v2523
        %v2531 = vmul.f32 %v2174, %v2523
        %v2532 = vmul.f32 %v2175, %v2523
        %v2533 = vmul.f32 %v2178, %v2523
        %v2534 = vmul.f32 %v2179, %v2523
        %v2535 = vmul.f32 %v2182, %v2523
        %v2536 = vmul.f32 %v2183, %v2523
        %v2537 = vmul.f32 %v2186, %v2523
        %v2538 = vmul.f32 %v2187, %v2523
        %v2539 = vmul.f32 %v2190, %v2523
        %v2540 = vmul.f32 %v2191, %v2523
        %v2557 = vrot.slane %v2525, 3
        %v2558 = vrot.slane %v2526, 3
        %v2559 = vsel %vm781, %v2557, %v2558
        %v2560 = vrot.slane %v2527, 3
        %v2561 = vrot.slane %v2528, 3
        %v2562 = vsel %vm781, %v2560, %v2561
        %v2563 = vrot.slane %v2529, 3
        %v2564 = vrot.slane %v2530, 3
        %v2565 = vsel %vm781, %v2563, %v2564
        %v2566 = vrot.slane %v2531, 3
        %v2567 = vrot.slane %v2532, 3
        %v2568 = vsel %vm781, %v2566, %v2567
        %v2569 = vrot.slane %v2533, 3
        %v2570 = vrot.slane %v2534, 3
        %v2571 = vsel %vm781, %v2569, %v2570
        %v2572 = vrot.slane %v2535, 3
        %v2573 = vrot.slane %v2536, 3
        %v2574 = vsel %vm781, %v2572, %v2573
        %v2575 = vrot.slane %v2537, 3
        %v2576 = vrot.slane %v2538, 3
        %v2577 = vsel %vm781, %v2575, %v2576
        %v2578 = vrot.slane %v2539, 3
        %v2579 = vrot.slane %v2540, 3
        %v2580 = vsel %vm781, %v2578, %v2579
        %v2605 = vadd.f32 %v2498, %v2557
        %v2606 = vadd.f32 %v2499, %v2559
        %v2607 = vadd.f32 %v2500, %v2558
        %v2608 = vadd.f32 %v2501, %v2560
        %v2609 = vadd.f32 %v2502, %v2562
        %v2610 = vadd.f32 %v2503, %v2561
        %v2611 = vadd.f32 %v2504, %v2563
        %v2612 = vadd.f32 %v2505, %v2565
        %v2613 = vadd.f32 %v2506, %v2564
        %v2614 = vadd.f32 %v2507, %v2566
        %v2615 = vadd.f32 %v2508, %v2568
        %v2616 = vadd.f32 %v2509, %v2567
        %v2617 = vadd.f32 %v2510, %v2569
        %v2618 = vadd.f32 %v2511, %v2571
        %v2619 = vadd.f32 %v2512, %v2570
        %v2620 = vadd.f32 %v2513, %v2572
        %v2621 = vadd.f32 %v2514, %v2574
        %v2622 = vadd.f32 %v2515, %v2573
        %v2623 = vadd.f32 %v2516, %v2575
        %v2624 = vadd.f32 %v2517, %v2577
        %v2625 = vadd.f32 %v2518, %v2576
        %v2626 = vadd.f32 %v2519, %v2578
        %v2627 = vadd.f32 %v2520, %v2580
        %v2628 = vadd.f32 %v2521, %v2579
        %v2630 = vperm.slane %v348, 0
        %v2632 = vmul.f32 %v2162, %v2630
        %v2633 = vmul.f32 %v2163, %v2630
        %v2634 = vmul.f32 %v2164, %v2630
        %v2635 = vmul.f32 %v2166, %v2630
        %v2636 = vmul.f32 %v2167, %v2630
        %v2637 = vmul.f32 %v2168, %v2630
        %v2638 = vmul.f32 %v2170, %v2630
        %v2639 = vmul.f32 %v2171, %v2630
        %v2640 = vmul.f32 %v2172, %v2630
        %v2641 = vmul.f32 %v2174, %v2630
        %v2642 = vmul.f32 %v2175, %v2630
        %v2643 = vmul.f32 %v2176, %v2630
        %v2644 = vmul.f32 %v2178, %v2630
        %v2645 = vmul.f32 %v2179, %v2630
        %v2646 = vmul.f32 %v2180, %v2630
        %v2647 = vmul.f32 %v2182, %v2630
        %v2648 = vmul.f32 %v2183, %v2630
        %v2649 = vmul.f32 %v2184, %v2630
        %v2650 = vmul.f32 %v2186, %v2630
        %v2651 = vmul.f32 %v2187, %v2630
        %v2652 = vmul.f32 %v2188, %v2630
        %v2653 = vmul.f32 %v2190, %v2630
        %v2654 = vmul.f32 %v2191, %v2630
        %v2655 = vmul.f32 %v2192, %v2630
        %v2680 = vrot.slane %v2632, 4
        %v2681 = vrot.slane %v2633, 4
        %v2682 = vsel %vm905, %v2680, %v2681
        %v2683 = vrot.slane %v2634, 4
        %v2684 = vsel %vm905, %v2681, %v2683
        %v2685 = vrot.slane %v2635, 4
        %v2686 = vrot.slane %v2636, 4
        %v2687 = vsel %vm905, %v2685, %v2686
        %v2688 = vrot.slane %v2637, 4
        %v2689 = vsel %vm905, %v2686, %v2688
        %v2690 = vrot.slane %v2638, 4
        %v2691 = vrot.slane %v2639, 4
        %v2692 = vsel %vm905, %v2690, %v2691
        %v2693 = vrot.slane %v2640, 4
        %v2694 = vsel %vm905, %v2691, %v2693
        %v2695 = vrot.slane %v2641, 4
        %v2696 = vrot.slane %v2642, 4
        %v2697 = vsel %vm905, %v2695, %v2696
        %v2698 = vrot.slane %v2643, 4
        %v2699 = vsel %vm905, %v2696, %v2698
        %v2700 = vrot.slane %v2644, 4
        %v2701 = vrot.slane %v2645, 4
        %v2702 = vsel %vm905, %v2700, %v2701
        %v2703 = vrot.slane %v2646, 4
        %v2704 = vsel %vm905, %v2701, %v2703
        %v2705 = vrot.slane %v2647, 4
        %v2706 = vrot.slane %v2648, 4
        %v2707 = vsel %vm905, %v2705, %v2706
        %v2708 = vrot.slane %v2649, 4
        %v2709 = vsel %vm905, %v2706, %v2708
        %v2710 = vrot.slane %v2650, 4
        %v2711 = vrot.slane %v2651, 4
        %v2712 = vsel %vm905, %v2710, %v2711
        %v2713 = vrot.slane %v2652, 4
        %v2714 = vsel %vm905, %v2711, %v2713
        %v2715 = vrot.slane %v2653, 4
        %v2716 = vrot.slane %v2654, 4
        %v2717 = vsel %vm905, %v2715, %v2716
        %v2718 = vrot.slane %v2655, 4
        %v2719 = vsel %vm905, %v2716, %v2718
        %v2744 = vadd.f32 %v2605, %v2680
        %v2745 = vadd.f32 %v2606, %v2682
        %v2746 = vadd.f32 %v2607, %v2684
        %v2747 = vadd.f32 %v2608, %v2685
        %v2748 = vadd.f32 %v2609, %v2687
        %v2749 = vadd.f32 %v2610, %v2689
        %v2750 = vadd.f32 %v2611, %v2690
        %v2751 = vadd.f32 %v2612, %v2692
        %v2752 = vadd.f32 %v2613, %v2694
        %v2753 = vadd.f32 %v2614, %v2695
        %v2754 = vadd.f32 %v2615, %v2697
        %v2755 = vadd.f32 %v2616, %v2699
        %v2756 = vadd.f32 %v2617, %v2700
        %v2757 = vadd.f32 %v2618, %v2702
        %v2758 = vadd.f32 %v2619, %v2704
        %v2759 = vadd.f32 %v2620, %v2705
        %v2760 = vadd.f32 %v2621, %v2707
        %v2761 = vadd.f32 %v2622, %v2709
        %v2762 = vadd.f32 %v2623, %v2710
        %v2763 = vadd.f32 %v2624, %v2712
        %v2764 = vadd.f32 %v2625, %v2714
        %v2765 = vadd.f32 %v2626, %v2715
        %v2766 = vadd.f32 %v2627, %v2717
        %v2767 = vadd.f32 %v2628, %v2719
        %v2769 = vperm.slane %v349, 0
        %v2771 = vmul.f32 %v2162, %v2769
        %v2772 = vmul.f32 %v2163, %v2769
        %v2773 = vmul.f32 %v2164, %v2769
        %v2774 = vmul.f32 %v2166, %v2769
        %v2775 = vmul.f32 %v2167, %v2769
        %v2776 = vmul.f32 %v2168, %v2769
        %v2777 = vmul.f32 %v2170, %v2769
        %v2778 = vmul.f32 %v2171, %v2769
        %v2779 = vmul.f32 %v2172, %v2769
        %v2780 = vmul.f32 %v2174, %v2769
        %v2781 = vmul.f32 %v2175, %v2769
        %v2782 = vmul.f32 %v2176, %v2769
        %v2783 = vmul.f32 %v2178, %v2769
        %v2784 = vmul.f32 %v2179, %v2769
        %v2785 = vmul.f32 %v2180, %v2769
        %v2786 = vmul.f32 %v2182, %v2769
        %v2787 = vmul.f32 %v2183, %v2769
        %v2788 = vmul.f32 %v2184, %v2769
        %v2789 = vmul.f32 %v2186, %v2769
        %v2790 = vmul.f32 %v2187, %v2769
        %v2791 = vmul.f32 %v2188, %v2769
        %v2792 = vmul.f32 %v2190, %v2769
        %v2793 = vmul.f32 %v2191, %v2769
        %v2794 = vmul.f32 %v2192, %v2769
        %v2819 = vrot.slane %v2771, 5
        %v2820 = vrot.slane %v2772, 5
        %v2821 = vsel %vm1045, %v2819, %v2820
        %v2822 = vrot.slane %v2773, 5
        %v2823 = vsel %vm1045, %v2820, %v2822
        %v2824 = vrot.slane %v2774, 5
        %v2825 = vrot.slane %v2775, 5
        %v2826 = vsel %vm1045, %v2824, %v2825
        %v2827 = vrot.slane %v2776, 5
        %v2828 = vsel %vm1045, %v2825, %v2827
        %v2829 = vrot.slane %v2777, 5
        %v2830 = vrot.slane %v2778, 5
        %v2831 = vsel %vm1045, %v2829, %v2830
        %v2832 = vrot.slane %v2779, 5
        %v2833 = vsel %vm1045, %v2830, %v2832
        %v2834 = vrot.slane %v2780, 5
        %v2835 = vrot.slane %v2781, 5
        %v2836 = vsel %vm1045, %v2834, %v2835
        %v2837 = vrot.slane %v2782, 5
        %v2838 = vsel %vm1045, %v2835, %v2837
        %v2839 = vrot.slane %v2783, 5
        %v2840 = vrot.slane %v2784, 5
        %v2841 = vsel %vm1045, %v2839, %v2840
        %v2842 = vrot.slane %v2785, 5
        %v2843 = vsel %vm1045, %v2840, %v2842
        %v2844 = vrot.slane %v2786, 5
        %v2845 = vrot.slane %v2787, 5
        %v2846 = vsel %vm1045, %v2844, %v2845
        %v2847 = vrot.slane %v2788, 5
        %v2848 = vsel %vm1045, %v2845, %v2847
        %v2849 = vrot.slane %v2789, 5
        %v2850 = vrot.slane %v2790, 5
        %v2851 = vsel %vm1045, %v2849, %v2850
        %v2852 = vrot.slane %v2791, 5
        %v2853 = vsel %vm1045, %v2850, %v2852
        %v2854 = vrot.slane %v2792, 5
        %v2855 = vrot.slane %v2793, 5
        %v2856 = vsel %vm1045, %v2854, %v2855
        %v2857 = vrot.slane %v2794, 5
        %v2858 = vsel %vm1045, %v2855, %v2857
        %v2883 = vadd.f32 %v2744, %v2819
        %v2884 = vadd.f32 %v2745, %v2821
        %v2885 = vadd.f32 %v2746, %v2823
        %v2886 = vadd.f32 %v2747, %v2824
        %v2887 = vadd.f32 %v2748, %v2826
        %v2888 = vadd.f32 %v2749, %v2828
        %v2889 = vadd.f32 %v2750, %v2829
        %v2890 = vadd.f32 %v2751, %v2831
        %v2891 = vadd.f32 %v2752, %v2833
        %v2892 = vadd.f32 %v2753, %v2834
        %v2893 = vadd.f32 %v2754, %v2836
        %v2894 = vadd.f32 %v2755, %v2838
        %v2895 = vadd.f32 %v2756, %v2839
        %v2896 = vadd.f32 %v2757, %v2841
        %v2897 = vadd.f32 %v2758, %v2843
        %v2898 = vadd.f32 %v2759, %v2844
        %v2899 = vadd.f32 %v2760, %v2846
        %v2900 = vadd.f32 %v2761, %v2848
        %v2901 = vadd.f32 %v2762, %v2849
        %v2902 = vadd.f32 %v2763, %v2851
        %v2903 = vadd.f32 %v2764, %v2853
        %v2904 = vadd.f32 %v2765, %v2854
        %v2905 = vadd.f32 %v2766, %v2856
        %v2906 = vadd.f32 %v2767, %v2858
        %v2908 = vperm.slane %v350, 0
        %v2910 = vmul.f32 %v2162, %v2908
        %v2911 = vmul.f32 %v2163, %v2908
        %v2912 = vmul.f32 %v2164, %v2908
        %v2913 = vmul.f32 %v2166, %v2908
        %v2914 = vmul.f32 %v2167, %v2908
        %v2915 = vmul.f32 %v2168, %v2908
        %v2916 = vmul.f32 %v2170, %v2908
        %v2917 = vmul.f32 %v2171, %v2908
        %v2918 = vmul.f32 %v2172, %v2908
        %v2919 = vmul.f32 %v2174, %v2908
        %v2920 = vmul.f32 %v2175, %v2908
        %v2921 = vmul.f32 %v2176, %v2908
        %v2922 = vmul.f32 %v2178, %v2908
        %v2923 = vmul.f32 %v2179, %v2908
        %v2924 = vmul.f32 %v2180, %v2908
        %v2925 = vmul.f32 %v2182, %v2908
        %v2926 = vmul.f32 %v2183, %v2908
        %v2927 = vmul.f32 %v2184, %v2908
        %v2928 = vmul.f32 %v2186, %v2908
        %v2929 = vmul.f32 %v2187, %v2908
        %v2930 = vmul.f32 %v2188, %v2908
        %v2931 = vmul.f32 %v2190, %v2908
        %v2932 = vmul.f32 %v2191, %v2908
        %v2933 = vmul.f32 %v2192, %v2908
        %v2958 = vrot.slane %v2910, 6
        %v2959 = vrot.slane %v2911, 6
        %v2960 = vsel %vm1185, %v2958, %v2959
        %v2961 = vrot.slane %v2912, 6
        %v2962 = vsel %vm1185, %v2959, %v2961
        %v2963 = vrot.slane %v2913, 6
        %v2964 = vrot.slane %v2914, 6
        %v2965 = vsel %vm1185, %v2963, %v2964
        %v2966 = vrot.slane %v2915, 6
        %v2967 = vsel %vm1185, %v2964, %v2966
        %v2968 = vrot.slane %v2916, 6
        %v2969 = vrot.slane %v2917, 6
        %v2970 = vsel %vm1185, %v2968, %v2969
        %v2971 = vrot.slane %v2918, 6
        %v2972 = vsel %vm1185, %v2969, %v2971
        %v2973 = vrot.slane %v2919, 6
        %v2974 = vrot.slane %v2920, 6
        %v2975 = vsel %vm1185, %v2973, %v2974
        %v2976 = vrot.slane %v2921, 6
        %v2977 = vsel %vm1185, %v2974, %v2976
        %v2978 = vrot.slane %v2922, 6
        %v2979 = vrot.slane %v2923, 6
        %v2980 = vsel %vm1185, %v2978, %v2979
        %v2981 = vrot.slane %v2924, 6
        %v2982 = vsel %vm1185, %v2979, %v2981
        %v2983 = vrot.slane %v2925, 6
        %v2984 = vrot.slane %v2926, 6
        %v2985 = vsel %vm1185, %v2983, %v2984
        %v2986 = vrot.slane %v2927, 6
        %v2987 = vsel %vm1185, %v2984, %v2986
        %v2988 = vrot.slane %v2928, 6
        %v2989 = vrot.slane %v2929, 6
        %v2990 = vsel %vm1185, %v2988, %v2989
        %v2991 = vrot.slane %v2930, 6
        %v2992 = vsel %vm1185, %v2989, %v2991
        %v2993 = vrot.slane %v2931, 6
        %v2994 = vrot.slane %v2932, 6
        %v2995 = vsel %vm1185, %v2993, %v2994
        %v2996 = vrot.slane %v2933, 6
        %v2997 = vsel %vm1185, %v2994, %v2996
        %v3022 = vadd.f32 %v2883, %v2958
        %v3023 = vadd.f32 %v2884, %v2960
        %v3024 = vadd.f32 %v2885, %v2962
        %v3025 = vadd.f32 %v2886, %v2963
        %v3026 = vadd.f32 %v2887, %v2965
        %v3027 = vadd.f32 %v2888, %v2967
        %v3028 = vadd.f32 %v2889, %v2968
        %v3029 = vadd.f32 %v2890, %v2970
        %v3030 = vadd.f32 %v2891, %v2972
        %v3031 = vadd.f32 %v2892, %v2973
        %v3032 = vadd.f32 %v2893, %v2975
        %v3033 = vadd.f32 %v2894, %v2977
        %v3034 = vadd.f32 %v2895, %v2978
        %v3035 = vadd.f32 %v2896, %v2980
        %v3036 = vadd.f32 %v2897, %v2982
        %v3037 = vadd.f32 %v2898, %v2983
        %v3038 = vadd.f32 %v2899, %v2985
        %v3039 = vadd.f32 %v2900, %v2987
        %v3040 = vadd.f32 %v2901, %v2988
        %v3041 = vadd.f32 %v2902, %v2990
        %v3042 = vadd.f32 %v2903, %v2992
        %v3043 = vadd.f32 %v2904, %v2993
        %v3044 = vadd.f32 %v2905, %v2995
        %v3045 = vadd.f32 %v2906, %v2997
        %v3046 = vld [vmem:[%s265] sm:$0xff]
        %v3047 = vld [vmem:[%s265 + $0x8] sm:$0xff]
        %v3048 = vld [vmem:[%s265 + $0x10] sm:$0xff]
        %v3049 = vld [vmem:[%s265 + $0x18] sm:$0x7]
        %v3050 = vld [vmem:[%s265 + $0x20] sm:$0xff]
        %v3051 = vld [vmem:[%s265 + $0x28] sm:$0xff]
        %v3052 = vld [vmem:[%s265 + $0x30] sm:$0xff]
        %v3053 = vld [vmem:[%s265 + $0x38] sm:$0x7]
        %v3054 = vld [vmem:[%s265 + $0x40] sm:$0xff]
        %v3055 = vld [vmem:[%s265 + $0x48] sm:$0xff]
        %v3056 = vld [vmem:[%s265 + $0x50] sm:$0xff]
        %v3057 = vld [vmem:[%s265 + $0x58] sm:$0x7]
        %v3058 = vld [vmem:[%s265 + $0x60] sm:$0xff]
        %v3059 = vld [vmem:[%s265 + $0x68] sm:$0xff]
        %v3060 = vld [vmem:[%s265 + $0x70] sm:$0xff]
        %v3061 = vld [vmem:[%s265 + $0x78] sm:$0x7]
        %v3062 = vld [vmem:[%s265 + $0x80] sm:$0xff]
        %v3063 = vld [vmem:[%s265 + $0x88] sm:$0xff]
        %v3064 = vld [vmem:[%s265 + $0x90] sm:$0xff]
        %v3065 = vld [vmem:[%s265 + $0x98] sm:$0x7]
        %v3066 = vld [vmem:[%s265 + $0xa0] sm:$0xff]
        %v3067 = vld [vmem:[%s265 + $0xa8] sm:$0xff]
        %v3068 = vld [vmem:[%s265 + $0xb0] sm:$0xff]
        %v3069 = vld [vmem:[%s265 + $0xb8] sm:$0x7]
        %v3070 = vld [vmem:[%s265 + $0xc0] sm:$0xff]
        %v3071 = vld [vmem:[%s265 + $0xc8] sm:$0xff]
        %v3072 = vld [vmem:[%s265 + $0xd0] sm:$0xff]
        %v3073 = vld [vmem:[%s265 + $0xd8] sm:$0x7]
        %v3074 = vld [vmem:[%s265 + $0xe0] sm:$0xff]
        %v3075 = vld [vmem:[%s265 + $0xe8] sm:$0xff]
        %v3076 = vld [vmem:[%s265 + $0xf0] sm:$0xff]
        %v3077 = vld [vmem:[%s265 + $0xf8] sm:$0x7]
        %v3079 = vperm.slane %v351, 0
        %v3081 = vmul.f32 %v3046, %v3079
        %v3082 = vmul.f32 %v3047, %v3079
        %v3083 = vmul.f32 %v3048, %v3079
        %v3084 = vmul.f32 %v3050, %v3079
        %v3085 = vmul.f32 %v3051, %v3079
        %v3086 = vmul.f32 %v3052, %v3079
        %v3087 = vmul.f32 %v3054, %v3079
        %v3088 = vmul.f32 %v3055, %v3079
        %v3089 = vmul.f32 %v3056, %v3079
        %v3090 = vmul.f32 %v3058, %v3079
        %v3091 = vmul.f32 %v3059, %v3079
        %v3092 = vmul.f32 %v3060, %v3079
        %v3093 = vmul.f32 %v3062, %v3079
        %v3094 = vmul.f32 %v3063, %v3079
        %v3095 = vmul.f32 %v3064, %v3079
        %v3096 = vmul.f32 %v3066, %v3079
        %v3097 = vmul.f32 %v3067, %v3079
        %v3098 = vmul.f32 %v3068, %v3079
        %v3099 = vmul.f32 %v3070, %v3079
        %v3100 = vmul.f32 %v3071, %v3079
        %v3101 = vmul.f32 %v3072, %v3079
        %v3102 = vmul.f32 %v3074, %v3079
        %v3103 = vmul.f32 %v3075, %v3079
        %v3104 = vmul.f32 %v3076, %v3079
        %v3105 = vadd.f32 %v3022, %v3081
        %v3106 = vadd.f32 %v3023, %v3082
        %v3107 = vadd.f32 %v3024, %v3083
        %v3108 = vadd.f32 %v3025, %v3084
        %v3109 = vadd.f32 %v3026, %v3085
        %v3110 = vadd.f32 %v3027, %v3086
        %v3111 = vadd.f32 %v3028, %v3087
        %v3112 = vadd.f32 %v3029, %v3088
        %v3113 = vadd.f32 %v3030, %v3089
        %v3114 = vadd.f32 %v3031, %v3090
        %v3115 = vadd.f32 %v3032, %v3091
        %v3116 = vadd.f32 %v3033, %v3092
        %v3117 = vadd.f32 %v3034, %v3093
        %v3118 = vadd.f32 %v3035, %v3094
        %v3119 = vadd.f32 %v3036, %v3095
        %v3120 = vadd.f32 %v3037, %v3096
        %v3121 = vadd.f32 %v3038, %v3097
        %v3122 = vadd.f32 %v3039, %v3098
        %v3123 = vadd.f32 %v3040, %v3099
        %v3124 = vadd.f32 %v3041, %v3100
        %v3125 = vadd.f32 %v3042, %v3101
        %v3126 = vadd.f32 %v3043, %v3102
        %v3127 = vadd.f32 %v3044, %v3103
        %v3128 = vadd.f32 %v3045, %v3104
        %v3130 = vperm.slane %v352, 0
        %v3132 = vmul.f32 %v3046, %v3130
        %v3133 = vmul.f32 %v3047, %v3130
        %v3134 = vmul.f32 %v3048, %v3130
        %v3135 = vmul.f32 %v3050, %v3130
        %v3136 = vmul.f32 %v3051, %v3130
        %v3137 = vmul.f32 %v3052, %v3130
        %v3138 = vmul.f32 %v3054, %v3130
        %v3139 = vmul.f32 %v3055, %v3130
        %v3140 = vmul.f32 %v3056, %v3130
        %v3141 = vmul.f32 %v3058, %v3130
        %v3142 = vmul.f32 %v3059, %v3130
        %v3143 = vmul.f32 %v3060, %v3130
        %v3144 = vmul.f32 %v3062, %v3130
        %v3145 = vmul.f32 %v3063, %v3130
        %v3146 = vmul.f32 %v3064, %v3130
        %v3147 = vmul.f32 %v3066, %v3130
        %v3148 = vmul.f32 %v3067, %v3130
        %v3149 = vmul.f32 %v3068, %v3130
        %v3150 = vmul.f32 %v3070, %v3130
        %v3151 = vmul.f32 %v3071, %v3130
        %v3152 = vmul.f32 %v3072, %v3130
        %v3153 = vmul.f32 %v3074, %v3130
        %v3154 = vmul.f32 %v3075, %v3130
        %v3155 = vmul.f32 %v3076, %v3130
        %v3180 = vrot.slane %v3132, 1
        %v3181 = vrot.slane %v3133, 1
        %v3182 = vsel %vm517, %v3180, %v3181
        %v3183 = vrot.slane %v3134, 1
        %v3184 = vsel %vm517, %v3181, %v3183
        %v3185 = vrot.slane %v3135, 1
        %v3186 = vrot.slane %v3136, 1
        %v3187 = vsel %vm517, %v3185, %v3186
        %v3188 = vrot.slane %v3137, 1
        %v3189 = vsel %vm517, %v3186, %v3188
        %v3190 = vrot.slane %v3138, 1
        %v3191 = vrot.slane %v3139, 1
        %v3192 = vsel %vm517, %v3190, %v3191
        %v3193 = vrot.slane %v3140, 1
        %v3194 = vsel %vm517, %v3191, %v3193
        %v3195 = vrot.slane %v3141, 1
        %v3196 = vrot.slane %v3142, 1
        %v3197 = vsel %vm517, %v3195, %v3196
        %v3198 = vrot.slane %v3143, 1
        %v3199 = vsel %vm517, %v3196, %v3198
        %v3200 = vrot.slane %v3144, 1
        %v3201 = vrot.slane %v3145, 1
        %v3202 = vsel %vm517, %v3200, %v3201
        %v3203 = vrot.slane %v3146, 1
        %v3204 = vsel %vm517, %v3201, %v3203
        %v3205 = vrot.slane %v3147, 1
        %v3206 = vrot.slane %v3148, 1
        %v3207 = vsel %vm517, %v3205, %v3206
        %v3208 = vrot.slane %v3149, 1
        %v3209 = vsel %vm517, %v3206, %v3208
        %v3210 = vrot.slane %v3150, 1
        %v3211 = vrot.slane %v3151, 1
        %v3212 = vsel %vm517, %v3210, %v3211
        %v3213 = vrot.slane %v3152, 1
        %v3214 = vsel %vm517, %v3211, %v3213
        %v3215 = vrot.slane %v3153, 1
        %v3216 = vrot.slane %v3154, 1
        %v3217 = vsel %vm517, %v3215, %v3216
        %v3218 = vrot.slane %v3155, 1
        %v3219 = vsel %vm517, %v3216, %v3218
        %v3244 = vadd.f32 %v3105, %v3182
        %v3245 = vadd.f32 %v3106, %v3184
        %v3246 = vadd.f32 %v3107, %v3183
        %v3247 = vadd.f32 %v3108, %v3187
        %v3248 = vadd.f32 %v3109, %v3189
        %v3249 = vadd.f32 %v3110, %v3188
        %v3250 = vadd.f32 %v3111, %v3192
        %v3251 = vadd.f32 %v3112, %v3194
        %v3252 = vadd.f32 %v3113, %v3193
        %v3253 = vadd.f32 %v3114, %v3197
        %v3254 = vadd.f32 %v3115, %v3199
        %v3255 = vadd.f32 %v3116, %v3198
        %v3256 = vadd.f32 %v3117, %v3202
        %v3257 = vadd.f32 %v3118, %v3204
        %v3258 = vadd.f32 %v3119, %v3203
        %v3259 = vadd.f32 %v3120, %v3207
        %v3260 = vadd.f32 %v3121, %v3209
        %v3261 = vadd.f32 %v3122, %v3208
        %v3262 = vadd.f32 %v3123, %v3212
        %v3263 = vadd.f32 %v3124, %v3214
        %v3264 = vadd.f32 %v3125, %v3213
        %v3265 = vadd.f32 %v3126, %v3217
        %v3266 = vadd.f32 %v3127, %v3219
        %v3267 = vadd.f32 %v3128, %v3218
        %v3269 = vperm.slane %v353, 0
        %v3271 = vmul.f32 %v3046, %v3269
        %v3272 = vmul.f32 %v3047, %v3269
        %v3273 = vmul.f32 %v3048, %v3269
        %v3274 = vmul.f32 %v3050, %v3269
        %v3275 = vmul.f32 %v3051, %v3269
        %v3276 = vmul.f32 %v3052, %v3269
        %v3277 = vmul.f32 %v3054, %v3269
        %v3278 = vmul.f32 %v3055, %v3269
        %v3279 = vmul.f32 %v3056, %v3269
        %v3280 = vmul.f32 %v3058, %v3269
        %v3281 = vmul.f32 %v3059, %v3269
        %v3282 = vmul.f32 %v3060, %v3269
        %v3283 = vmul.f32 %v3062, %v3269
        %v3284 = vmul.f32 %v3063, %v3269
        %v3285 = vmul.f32 %v3064, %v3269
        %v3286 = vmul.f32 %v3066, %v3269
        %v3287 = vmul.f32 %v3067, %v3269
        %v3288 = vmul.f32 %v3068, %v3269
        %v3289 = vmul.f32 %v3070, %v3269
        %v3290 = vmul.f32 %v3071, %v3269
        %v3291 = vmul.f32 %v3072, %v3269
        %v3292 = vmul.f32 %v3074, %v3269
        %v3293 = vmul.f32 %v3075, %v3269
        %v3294 = vmul.f32 %v3076, %v3269
        %v3319 = vrot.slane %v3271, 2
        %v3320 = vrot.slane %v3272, 2
        %v3321 = vsel %vm657, %v3319, %v3320
        %v3322 = vrot.slane %v3273, 2
        %v3323 = vsel %vm657, %v3320, %v3322
        %v3324 = vrot.slane %v3274, 2
        %v3325 = vrot.slane %v3275, 2
        %v3326 = vsel %vm657, %v3324, %v3325
        %v3327 = vrot.slane %v3276, 2
        %v3328 = vsel %vm657, %v3325, %v3327
        %v3329 = vrot.slane %v3277, 2
        %v3330 = vrot.slane %v3278, 2
        %v3331 = vsel %vm657, %v3329, %v3330
        %v3332 = vrot.slane %v3279, 2
        %v3333 = vsel %vm657, %v3330, %v3332
        %v3334 = vrot.slane %v3280, 2
        %v3335 = vrot.slane %v3281, 2
        %v3336 = vsel %vm657, %v3334, %v3335
        %v3337 = vrot.slane %v3282, 2
        %v3338 = vsel %vm657, %v3335, %v3337
        %v3339 = vrot.slane %v3283, 2
        %v3340 = vrot.slane %v3284, 2
        %v3341 = vsel %vm657, %v3339, %v3340
        %v3342 = vrot.slane %v3285, 2
        %v3343 = vsel %vm657, %v3340, %v3342
        %v3344 = vrot.slane %v3286, 2
        %v3345 = vrot.slane %v3287, 2
        %v3346 = vsel %vm657, %v3344, %v3345
        %v3347 = vrot.slane %v3288, 2
        %v3348 = vsel %vm657, %v3345, %v3347
        %v3349 = vrot.slane %v3289, 2
        %v3350 = vrot.slane %v3290, 2
        %v3351 = vsel %vm657, %v3349, %v3350
        %v3352 = vrot.slane %v3291, 2
        %v3353 = vsel %vm657, %v3350, %v3352
        %v3354 = vrot.slane %v3292, 2
        %v3355 = vrot.slane %v3293, 2
        %v3356 = vsel %vm657, %v3354, %v3355
        %v3357 = vrot.slane %v3294, 2
        %v3358 = vsel %vm657, %v3355, %v3357
        %v3383 = vadd.f32 %v3244, %v3321
        %v3384 = vadd.f32 %v3245, %v3323
        %v3385 = vadd.f32 %v3246, %v3322
        %v3386 = vadd.f32 %v3247, %v3326
        %v3387 = vadd.f32 %v3248, %v3328
        %v3388 = vadd.f32 %v3249, %v3327
        %v3389 = vadd.f32 %v3250, %v3331
        %v3390 = vadd.f32 %v3251, %v3333
        %v3391 = vadd.f32 %v3252, %v3332
        %v3392 = vadd.f32 %v3253, %v3336
        %v3393 = vadd.f32 %v3254, %v3338
        %v3394 = vadd.f32 %v3255, %v3337
        %v3395 = vadd.f32 %v3256, %v3341
        %v3396 = vadd.f32 %v3257, %v3343
        %v3397 = vadd.f32 %v3258, %v3342
        %v3398 = vadd.f32 %v3259, %v3346
        %v3399 = vadd.f32 %v3260, %v3348
        %v3400 = vadd.f32 %v3261, %v3347
        %v3401 = vadd.f32 %v3262, %v3351
        %v3402 = vadd.f32 %v3263, %v3353
        %v3403 = vadd.f32 %v3264, %v3352
        %v3404 = vadd.f32 %v3265, %v3356
        %v3405 = vadd.f32 %v3266, %v3358
        %v3406 = vadd.f32 %v3267, %v3357
        %v3408 = vperm.slane %v354, 0
        %v3410 = vmul.f32 %v3047, %v3408
        %v3411 = vmul.f32 %v3048, %v3408
        %v3412 = vmul.f32 %v3051, %v3408
        %v3413 = vmul.f32 %v3052, %v3408
        %v3414 = vmul.f32 %v3055, %v3408
        %v3415 = vmul.f32 %v3056, %v3408
        %v3416 = vmul.f32 %v3059, %v3408
        %v3417 = vmul.f32 %v3060, %v3408
        %v3418 = vmul.f32 %v3063, %v3408
        %v3419 = vmul.f32 %v3064, %v3408
        %v3420 = vmul.f32 %v3067, %v3408
        %v3421 = vmul.f32 %v3068, %v3408
        %v3422 = vmul.f32 %v3071, %v3408
        %v3423 = vmul.f32 %v3072, %v3408
        %v3424 = vmul.f32 %v3075, %v3408
        %v3425 = vmul.f32 %v3076, %v3408
        %v3442 = vrot.slane %v3410, 3
        %v3443 = vrot.slane %v3411, 3
        %v3444 = vsel %vm781, %v3442, %v3443
        %v3445 = vrot.slane %v3412, 3
        %v3446 = vrot.slane %v3413, 3
        %v3447 = vsel %vm781, %v3445, %v3446
        %v3448 = vrot.slane %v3414, 3
        %v3449 = vrot.slane %v3415, 3
        %v3450 = vsel %vm781, %v3448, %v3449
        %v3451 = vrot.slane %v3416, 3
        %v3452 = vrot.slane %v3417, 3
        %v3453 = vsel %vm781, %v3451, %v3452
        %v3454 = vrot.slane %v3418, 3
        %v3455 = vrot.slane %v3419, 3
        %v3456 = vsel %vm781, %v3454, %v3455
        %v3457 = vrot.slane %v3420, 3
        %v3458 = vrot.slane %v3421, 3
        %v3459 = vsel %vm781, %v3457, %v3458
        %v3460 = vrot.slane %v3422, 3
        %v3461 = vrot.slane %v3423, 3
        %v3462 = vsel %vm781, %v3460, %v3461
        %v3463 = vrot.slane %v3424, 3
        %v3464 = vrot.slane %v3425, 3
        %v3465 = vsel %vm781, %v3463, %v3464
        %v3490 = vadd.f32 %v3383, %v3442
        %v3491 = vadd.f32 %v3384, %v3444
        %v3492 = vadd.f32 %v3385, %v3443
        %v3493 = vadd.f32 %v3386, %v3445
        %v3494 = vadd.f32 %v3387, %v3447
        %v3495 = vadd.f32 %v3388, %v3446
        %v3496 = vadd.f32 %v3389, %v3448
        %v3497 = vadd.f32 %v3390, %v3450
        %v3498 = vadd.f32 %v3391, %v3449
        %v3499 = vadd.f32 %v3392, %v3451
        %v3500 = vadd.f32 %v3393, %v3453
        %v3501 = vadd.f32 %v3394, %v3452
        %v3502 = vadd.f32 %v3395, %v3454
        %v3503 = vadd.f32 %v3396, %v3456
        %v3504 = vadd.f32 %v3397, %v3455
        %v3505 = vadd.f32 %v3398, %v3457
        %v3506 = vadd.f32 %v3399, %v3459
        %v3507 = vadd.f32 %v3400, %v3458
        %v3508 = vadd.f32 %v3401, %v3460
        %v3509 = vadd.f32 %v3402, %v3462
        %v3510 = vadd.f32 %v3403, %v3461
        %v3511 = vadd.f32 %v3404, %v3463
        %v3512 = vadd.f32 %v3405, %v3465
        %v3513 = vadd.f32 %v3406, %v3464
        %v3515 = vperm.slane %v355, 0
        %v3517 = vmul.f32 %v3047, %v3515
        %v3518 = vmul.f32 %v3048, %v3515
        %v3519 = vmul.f32 %v3049, %v3515
        %v3520 = vmul.f32 %v3051, %v3515
        %v3521 = vmul.f32 %v3052, %v3515
        %v3522 = vmul.f32 %v3053, %v3515
        %v3523 = vmul.f32 %v3055, %v3515
        %v3524 = vmul.f32 %v3056, %v3515
        %v3525 = vmul.f32 %v3057, %v3515
        %v3526 = vmul.f32 %v3059, %v3515
        %v3527 = vmul.f32 %v3060, %v3515
        %v3528 = vmul.f32 %v3061, %v3515
        %v3529 = vmul.f32 %v3063, %v3515
        %v3530 = vmul.f32 %v3064, %v3515
        %v3531 = vmul.f32 %v3065, %v3515
        %v3532 = vmul.f32 %v3067, %v3515
        %v3533 = vmul.f32 %v3068, %v3515
        %v3534 = vmul.f32 %v3069, %v3515
        %v3535 = vmul.f32 %v3071, %v3515
        %v3536 = vmul.f32 %v3072, %v3515
        %v3537 = vmul.f32 %v3073, %v3515
        %v3538 = vmul.f32 %v3075, %v3515
        %v3539 = vmul.f32 %v3076, %v3515
        %v3540 = vmul.f32 %v3077, %v3515
        %v3565 = vrot.slane %v3517, 4
        %v3566 = vrot.slane %v3518, 4
        %v3567 = vsel %vm905, %v3565, %v3566
        %v3568 = vrot.slane %v3519, 4
        %v3569 = vsel %vm905, %v3566, %v3568
        %v3570 = vrot.slane %v3520, 4
        %v3571 = vrot.slane %v3521, 4
        %v3572 = vsel %vm905, %v3570, %v3571
        %v3573 = vrot.slane %v3522, 4
        %v3574 = vsel %vm905, %v3571, %v3573
        %v3575 = vrot.slane %v3523, 4
        %v3576 = vrot.slane %v3524, 4
        %v3577 = vsel %vm905, %v3575, %v3576
        %v3578 = vrot.slane %v3525, 4
        %v3579 = vsel %vm905, %v3576, %v3578
        %v3580 = vrot.slane %v3526, 4
        %v3581 = vrot.slane %v3527, 4
        %v3582 = vsel %vm905, %v3580, %v3581
        %v3583 = vrot.slane %v3528, 4
        %v3584 = vsel %vm905, %v3581, %v3583
        %v3585 = vrot.slane %v3529, 4
        %v3586 = vrot.slane %v3530, 4
        %v3587 = vsel %vm905, %v3585, %v3586
        %v3588 = vrot.slane %v3531, 4
        %v3589 = vsel %vm905, %v3586, %v3588
        %v3590 = vrot.slane %v3532, 4
        %v3591 = vrot.slane %v3533, 4
        %v3592 = vsel %vm905, %v3590, %v3591
        %v3593 = vrot.slane %v3534, 4
        %v3594 = vsel %vm905, %v3591, %v3593
        %v3595 = vrot.slane %v3535, 4
        %v3596 = vrot.slane %v3536, 4
        %v3597 = vsel %vm905, %v3595, %v3596
        %v3598 = vrot.slane %v3537, 4
        %v3599 = vsel %vm905, %v3596, %v3598
        %v3600 = vrot.slane %v3538, 4
        %v3601 = vrot.slane %v3539, 4
        %v3602 = vsel %vm905, %v3600, %v3601
        %v3603 = vrot.slane %v3540, 4
        %v3604 = vsel %vm905, %v3601, %v3603
        %v3629 = vadd.f32 %v3490, %v3565
        %v3630 = vadd.f32 %v3491, %v3567
        %v3631 = vadd.f32 %v3492, %v3569
        %v3632 = vadd.f32 %v3493, %v3570
        %v3633 = vadd.f32 %v3494, %v3572
        %v3634 = vadd.f32 %v3495, %v3574
        %v3635 = vadd.f32 %v3496, %v3575
        %v3636 = vadd.f32 %v3497, %v3577
        %v3637 = vadd.f32 %v3498, %v3579
        %v3638 = vadd.f32 %v3499, %v3580
        %v3639 = vadd.f32 %v3500, %v3582
        %v3640 = vadd.f32 %v3501, %v3584
        %v3641 = vadd.f32 %v3502, %v3585
        %v3642 = vadd.f32 %v3503, %v3587
        %v3643 = vadd.f32 %v3504, %v3589
        %v3644 = vadd.f32 %v3505, %v3590
        %v3645 = vadd.f32 %v3506, %v3592
        %v3646 = vadd.f32 %v3507, %v3594
        %v3647 = vadd.f32 %v3508, %v3595
        %v3648 = vadd.f32 %v3509, %v3597
        %v3649 = vadd.f32 %v3510, %v3599
        %v3650 = vadd.f32 %v3511, %v3600
        %v3651 = vadd.f32 %v3512, %v3602
        %v3652 = vadd.f32 %v3513, %v3604
        %v3654 = vperm.slane %v356, 0
        %v3656 = vmul.f32 %v3047, %v3654
        %v3657 = vmul.f32 %v3048, %v3654
        %v3658 = vmul.f32 %v3049, %v3654
        %v3659 = vmul.f32 %v3051, %v3654
        %v3660 = vmul.f32 %v3052, %v3654
        %v3661 = vmul.f32 %v3053, %v3654
        %v3662 = vmul.f32 %v3055, %v3654
        %v3663 = vmul.f32 %v3056, %v3654
        %v3664 = vmul.f32 %v3057, %v3654
        %v3665 = vmul.f32 %v3059, %v3654
        %v3666 = vmul.f32 %v3060, %v3654
        %v3667 = vmul.f32 %v3061, %v3654
        %v3668 = vmul.f32 %v3063, %v3654
        %v3669 = vmul.f32 %v3064, %v3654
        %v3670 = vmul.f32 %v3065, %v3654
        %v3671 = vmul.f32 %v3067, %v3654
        %v3672 = vmul.f32 %v3068, %v3654
        %v3673 = vmul.f32 %v3069, %v3654
        %v3674 = vmul.f32 %v3071, %v3654
        %v3675 = vmul.f32 %v3072, %v3654
        %v3676 = vmul.f32 %v3073, %v3654
        %v3677 = vmul.f32 %v3075, %v3654
        %v3678 = vmul.f32 %v3076, %v3654
        %v3679 = vmul.f32 %v3077, %v3654
        %v3704 = vrot.slane %v3656, 5
        %v3705 = vrot.slane %v3657, 5
        %v3706 = vsel %vm1045, %v3704, %v3705
        %v3707 = vrot.slane %v3658, 5
        %v3708 = vsel %vm1045, %v3705, %v3707
        %v3709 = vrot.slane %v3659, 5
        %v3710 = vrot.slane %v3660, 5
        %v3711 = vsel %vm1045, %v3709, %v3710
        %v3712 = vrot.slane %v3661, 5
        %v3713 = vsel %vm1045, %v3710, %v3712
        %v3714 = vrot.slane %v3662, 5
        %v3715 = vrot.slane %v3663, 5
        %v3716 = vsel %vm1045, %v3714, %v3715
        %v3717 = vrot.slane %v3664, 5
        %v3718 = vsel %vm1045, %v3715, %v3717
        %v3719 = vrot.slane %v3665, 5
        %v3720 = vrot.slane %v3666, 5
        %v3721 = vsel %vm1045, %v3719, %v3720
        %v3722 = vrot.slane %v3667, 5
        %v3723 = vsel %vm1045, %v3720, %v3722
        %v3724 = vrot.slane %v3668, 5
        %v3725 = vrot.slane %v3669, 5
        %v3726 = vsel %vm1045, %v3724, %v3725
        %v3727 = vrot.slane %v3670, 5
        %v3728 = vsel %vm1045, %v3725, %v3727
        %v3729 = vrot.slane %v3671, 5
        %v3730 = vrot.slane %v3672, 5
        %v3731 = vsel %vm1045, %v3729, %v3730
        %v3732 = vrot.slane %v3673, 5
        %v3733 = vsel %vm1045, %v3730, %v3732
        %v3734 = vrot.slane %v3674, 5
        %v3735 = vrot.slane %v3675, 5
        %v3736 = vsel %vm1045, %v3734, %v3735
        %v3737 = vrot.slane %v3676, 5
        %v3738 = vsel %vm1045, %v3735, %v3737
        %v3739 = vrot.slane %v3677, 5
        %v3740 = vrot.slane %v3678, 5
        %v3741 = vsel %vm1045, %v3739, %v3740
        %v3742 = vrot.slane %v3679, 5
        %v3743 = vsel %vm1045, %v3740, %v3742
        %v3768 = vadd.f32 %v3629, %v3704
        %v3769 = vadd.f32 %v3630, %v3706
        %v3770 = vadd.f32 %v3631, %v3708
        %v3771 = vadd.f32 %v3632, %v3709
        %v3772 = vadd.f32 %v3633, %v3711
        %v3773 = vadd.f32 %v3634, %v3713
        %v3774 = vadd.f32 %v3635, %v3714
        %v3775 = vadd.f32 %v3636, %v3716
        %v3776 = vadd.f32 %v3637, %v3718
        %v3777 = vadd.f32 %v3638, %v3719
        %v3778 = vadd.f32 %v3639, %v3721
        %v3779 = vadd.f32 %v3640, %v3723
        %v3780 = vadd.f32 %v3641, %v3724
        %v3781 = vadd.f32 %v3642, %v3726
        %v3782 = vadd.f32 %v3643, %v3728
        %v3783 = vadd.f32 %v3644, %v3729
        %v3784 = vadd.f32 %v3645, %v3731
        %v3785 = vadd.f32 %v3646, %v3733
        %v3786 = vadd.f32 %v3647, %v3734
        %v3787 = vadd.f32 %v3648, %v3736
        %v3788 = vadd.f32 %v3649, %v3738
        %v3789 = vadd.f32 %v3650, %v3739
        %v3790 = vadd.f32 %v3651, %v3741
        %v3791 = vadd.f32 %v3652, %v3743
        %v3793 = vperm.slane %v357, 0
        %v3795 = vmul.f32 %v3047, %v3793
        %v3796 = vmul.f32 %v3048, %v3793
        %v3797 = vmul.f32 %v3049, %v3793
        %v3798 = vmul.f32 %v3051, %v3793
        %v3799 = vmul.f32 %v3052, %v3793
        %v3800 = vmul.f32 %v3053, %v3793
        %v3801 = vmul.f32 %v3055, %v3793
        %v3802 = vmul.f32 %v3056, %v3793
        %v3803 = vmul.f32 %v3057, %v3793
        %v3804 = vmul.f32 %v3059, %v3793
        %v3805 = vmul.f32 %v3060, %v3793
        %v3806 = vmul.f32 %v3061, %v3793
        %v3807 = vmul.f32 %v3063, %v3793
        %v3808 = vmul.f32 %v3064, %v3793
        %v3809 = vmul.f32 %v3065, %v3793
        %v3810 = vmul.f32 %v3067, %v3793
        %v3811 = vmul.f32 %v3068, %v3793
        %v3812 = vmul.f32 %v3069, %v3793
        %v3813 = vmul.f32 %v3071, %v3793
        %v3814 = vmul.f32 %v3072, %v3793
        %v3815 = vmul.f32 %v3073, %v3793
        %v3816 = vmul.f32 %v3075, %v3793
        %v3817 = vmul.f32 %v3076, %v3793
        %v3818 = vmul.f32 %v3077, %v3793
        %v3843 = vrot.slane %v3795, 6
        %v3844 = vrot.slane %v3796, 6
        %v3845 = vsel %vm1185, %v3843, %v3844
        %v3846 = vrot.slane %v3797, 6
        %v3847 = vsel %vm1185, %v3844, %v3846
        %v3848 = vrot.slane %v3798, 6
        %v3849 = vrot.slane %v3799, 6
        %v3850 = vsel %vm1185, %v3848, %v3849
        %v3851 = vrot.slane %v3800, 6
        %v3852 = vsel %vm1185, %v3849, %v3851
        %v3853 = vrot.slane %v3801, 6
        %v3854 = vrot.slane %v3802, 6
        %v3855 = vsel %vm1185, %v3853, %v3854
        %v3856 = vrot.slane %v3803, 6
        %v3857 = vsel %vm1185, %v3854, %v3856
        %v3858 = vrot.slane %v3804, 6
        %v3859 = vrot.slane %v3805, 6
        %v3860 = vsel %vm1185, %v3858, %v3859
        %v3861 = vrot.slane %v3806, 6
        %v3862 = vsel %vm1185, %v3859, %v3861
        %v3863 = vrot.slane %v3807, 6
        %v3864 = vrot.slane %v3808, 6
        %v3865 = vsel %vm1185, %v3863, %v3864
        %v3866 = vrot.slane %v3809, 6
        %v3867 = vsel %vm1185, %v3864, %v3866
        %v3868 = vrot.slane %v3810, 6
        %v3869 = vrot.slane %v3811, 6
        %v3870 = vsel %vm1185, %v3868, %v3869
        %v3871 = vrot.slane %v3812, 6
        %v3872 = vsel %vm1185, %v3869, %v3871
        %v3873 = vrot.slane %v3813, 6
        %v3874 = vrot.slane %v3814, 6
        %v3875 = vsel %vm1185, %v3873, %v3874
        %v3876 = vrot.slane %v3815, 6
        %v3877 = vsel %vm1185, %v3874, %v3876
        %v3878 = vrot.slane %v3816, 6
        %v3879 = vrot.slane %v3817, 6
        %v3880 = vsel %vm1185, %v3878, %v3879
        %v3881 = vrot.slane %v3818, 6
        %v3882 = vsel %vm1185, %v3879, %v3881
        %v3907 = vadd.f32 %v3768, %v3843
        %v3908 = vadd.f32 %v3769, %v3845
        %v3909 = vadd.f32 %v3770, %v3847
        %v3910 = vadd.f32 %v3771, %v3848
        %v3911 = vadd.f32 %v3772, %v3850
        %v3912 = vadd.f32 %v3773, %v3852
        %v3913 = vadd.f32 %v3774, %v3853
        %v3914 = vadd.f32 %v3775, %v3855
        %v3915 = vadd.f32 %v3776, %v3857
        %v3916 = vadd.f32 %v3777, %v3858
        %v3917 = vadd.f32 %v3778, %v3860
        %v3918 = vadd.f32 %v3779, %v3862
        %v3919 = vadd.f32 %v3780, %v3863
        %v3920 = vadd.f32 %v3781, %v3865
        %v3921 = vadd.f32 %v3782, %v3867
        %v3922 = vadd.f32 %v3783, %v3868
        %v3923 = vadd.f32 %v3784, %v3870
        %v3924 = vadd.f32 %v3785, %v3872
        %v3925 = vadd.f32 %v3786, %v3873
        %v3926 = vadd.f32 %v3787, %v3875
        %v3927 = vadd.f32 %v3788, %v3877
        %v3928 = vadd.f32 %v3789, %v3878
        %v3929 = vadd.f32 %v3790, %v3880
        %v3930 = vadd.f32 %v3791, %v3882
        %s3931 = scalar_lea.vmem [#allocation2], 128
        %v3932 = vld [vmem:[%s3931] sm:$0xff]
        %v3933 = vld [vmem:[%s3931 + $0x8] sm:$0xff]
        %v3934 = vld [vmem:[%s3931 + $0x10] sm:$0xff]
        %v3935 = vld [vmem:[%s3931 + $0x18] sm:$0x7]
        %v3936 = vld [vmem:[%s3931 + $0x20] sm:$0xff]
        %v3937 = vld [vmem:[%s3931 + $0x28] sm:$0xff]
        %v3938 = vld [vmem:[%s3931 + $0x30] sm:$0xff]
        %v3939 = vld [vmem:[%s3931 + $0x38] sm:$0x7]
        %v3940 = vld [vmem:[%s3931 + $0x40] sm:$0xff]
        %v3941 = vld [vmem:[%s3931 + $0x48] sm:$0xff]
        %v3942 = vld [vmem:[%s3931 + $0x50] sm:$0xff]
        %v3943 = vld [vmem:[%s3931 + $0x58] sm:$0x7]
        %v3944 = vld [vmem:[%s3931 + $0x60] sm:$0xff]
        %v3945 = vld [vmem:[%s3931 + $0x68] sm:$0xff]
        %v3946 = vld [vmem:[%s3931 + $0x70] sm:$0xff]
        %v3947 = vld [vmem:[%s3931 + $0x78] sm:$0x7]
        %v3948 = vld [vmem:[%s3931 + $0x80] sm:$0xff]
        %v3949 = vld [vmem:[%s3931 + $0x88] sm:$0xff]
        %v3950 = vld [vmem:[%s3931 + $0x90] sm:$0xff]
        %v3951 = vld [vmem:[%s3931 + $0x98] sm:$0x7]
        %v3952 = vld [vmem:[%s3931 + $0xa0] sm:$0xff]
        %v3953 = vld [vmem:[%s3931 + $0xa8] sm:$0xff]
        %v3954 = vld [vmem:[%s3931 + $0xb0] sm:$0xff]
        %v3955 = vld [vmem:[%s3931 + $0xb8] sm:$0x7]
        %v3956 = vld [vmem:[%s3931 + $0xc0] sm:$0xff]
        %v3957 = vld [vmem:[%s3931 + $0xc8] sm:$0xff]
        %v3958 = vld [vmem:[%s3931 + $0xd0] sm:$0xff]
        %v3959 = vld [vmem:[%s3931 + $0xd8] sm:$0x7]
        %v3960 = vld [vmem:[%s3931 + $0xe0] sm:$0xff]
        %v3961 = vld [vmem:[%s3931 + $0xe8] sm:$0xff]
        %v3962 = vld [vmem:[%s3931 + $0xf0] sm:$0xff]
        %v3963 = vld [vmem:[%s3931 + $0xf8] sm:$0x7]
        %v3965 = vperm.slane %v358, 0
        %v3967 = vmul.f32 %v3932, %v3965
        %v3968 = vmul.f32 %v3933, %v3965
        %v3969 = vmul.f32 %v3934, %v3965
        %v3970 = vmul.f32 %v3936, %v3965
        %v3971 = vmul.f32 %v3937, %v3965
        %v3972 = vmul.f32 %v3938, %v3965
        %v3973 = vmul.f32 %v3940, %v3965
        %v3974 = vmul.f32 %v3941, %v3965
        %v3975 = vmul.f32 %v3942, %v3965
        %v3976 = vmul.f32 %v3944, %v3965
        %v3977 = vmul.f32 %v3945, %v3965
        %v3978 = vmul.f32 %v3946, %v3965
        %v3979 = vmul.f32 %v3948, %v3965
        %v3980 = vmul.f32 %v3949, %v3965
        %v3981 = vmul.f32 %v3950, %v3965
        %v3982 = vmul.f32 %v3952, %v3965
        %v3983 = vmul.f32 %v3953, %v3965
        %v3984 = vmul.f32 %v3954, %v3965
        %v3985 = vmul.f32 %v3956, %v3965
        %v3986 = vmul.f32 %v3957, %v3965
        %v3987 = vmul.f32 %v3958, %v3965
        %v3988 = vmul.f32 %v3960, %v3965
        %v3989 = vmul.f32 %v3961, %v3965
        %v3990 = vmul.f32 %v3962, %v3965
        %v3991 = vadd.f32 %v3907, %v3967
        %v3992 = vadd.f32 %v3908, %v3968
        %v3993 = vadd.f32 %v3909, %v3969
        %v3994 = vadd.f32 %v3910, %v3970
        %v3995 = vadd.f32 %v3911, %v3971
        %v3996 = vadd.f32 %v3912, %v3972
        %v3997 = vadd.f32 %v3913, %v3973
        %v3998 = vadd.f32 %v3914, %v3974
        %v3999 = vadd.f32 %v3915, %v3975
        %v4000 = vadd.f32 %v3916, %v3976
        %v4001 = vadd.f32 %v3917, %v3977
        %v4002 = vadd.f32 %v3918, %v3978
        %v4003 = vadd.f32 %v3919, %v3979
        %v4004 = vadd.f32 %v3920, %v3980
        %v4005 = vadd.f32 %v3921, %v3981
        %v4006 = vadd.f32 %v3922, %v3982
        %v4007 = vadd.f32 %v3923, %v3983
        %v4008 = vadd.f32 %v3924, %v3984
        %v4009 = vadd.f32 %v3925, %v3985
        %v4010 = vadd.f32 %v3926, %v3986
        %v4011 = vadd.f32 %v3927, %v3987
        %v4012 = vadd.f32 %v3928, %v3988
        %v4013 = vadd.f32 %v3929, %v3989
        %v4014 = vadd.f32 %v3930, %v3990
        %v4016 = vperm.slane %v359, 0
        %v4018 = vmul.f32 %v3932, %v4016
        %v4019 = vmul.f32 %v3933, %v4016
        %v4020 = vmul.f32 %v3934, %v4016
        %v4021 = vmul.f32 %v3936, %v4016
        %v4022 = vmul.f32 %v3937, %v4016
        %v4023 = vmul.f32 %v3938, %v4016
        %v4024 = vmul.f32 %v3940, %v4016
        %v4025 = vmul.f32 %v3941, %v4016
        %v4026 = vmul.f32 %v3942, %v4016
        %v4027 = vmul.f32 %v3944, %v4016
        %v4028 = vmul.f32 %v3945, %v4016
        %v4029 = vmul.f32 %v3946, %v4016
        %v4030 = vmul.f32 %v3948, %v4016
        %v4031 = vmul.f32 %v3949, %v4016
        %v4032 = vmul.f32 %v3950, %v4016
        %v4033 = vmul.f32 %v3952, %v4016
        %v4034 = vmul.f32 %v3953, %v4016
        %v4035 = vmul.f32 %v3954, %v4016
        %v4036 = vmul.f32 %v3956, %v4016
        %v4037 = vmul.f32 %v3957, %v4016
        %v4038 = vmul.f32 %v3958, %v4016
        %v4039 = vmul.f32 %v3960, %v4016
        %v4040 = vmul.f32 %v3961, %v4016
        %v4041 = vmul.f32 %v3962, %v4016
        %v4066 = vrot.slane %v4018, 1
        %v4067 = vrot.slane %v4019, 1
        %v4068 = vsel %vm517, %v4066, %v4067
        %v4069 = vrot.slane %v4020, 1
        %v4070 = vsel %vm517, %v4067, %v4069
        %v4071 = vrot.slane %v4021, 1
        %v4072 = vrot.slane %v4022, 1
        %v4073 = vsel %vm517, %v4071, %v4072
        %v4074 = vrot.slane %v4023, 1
        %v4075 = vsel %vm517, %v4072, %v4074
        %v4076 = vrot.slane %v4024, 1
        %v4077 = vrot.slane %v4025, 1
        %v4078 = vsel %vm517, %v4076, %v4077
        %v4079 = vrot.slane %v4026, 1
        %v4080 = vsel %vm517, %v4077, %v4079
        %v4081 = vrot.slane %v4027, 1
        %v4082 = vrot.slane %v4028, 1
        %v4083 = vsel %vm517, %v4081, %v4082
        %v4084 = vrot.slane %v4029, 1
        %v4085 = vsel %vm517, %v4082, %v4084
        %v4086 = vrot.slane %v4030, 1
        %v4087 = vrot.slane %v4031, 1
        %v4088 = vsel %vm517, %v4086, %v4087
        %v4089 = vrot.slane %v4032, 1
        %v4090 = vsel %vm517, %v4087, %v4089
        %v4091 = vrot.slane %v4033, 1
        %v4092 = vrot.slane %v4034, 1
        %v4093 = vsel %vm517, %v4091, %v4092
        %v4094 = vrot.slane %v4035, 1
        %v4095 = vsel %vm517, %v4092, %v4094
        %v4096 = vrot.slane %v4036, 1
        %v4097 = vrot.slane %v4037, 1
        %v4098 = vsel %vm517, %v4096, %v4097
        %v4099 = vrot.slane %v4038, 1
        %v4100 = vsel %vm517, %v4097, %v4099
        %v4101 = vrot.slane %v4039, 1
        %v4102 = vrot.slane %v4040, 1
        %v4103 = vsel %vm517, %v4101, %v4102
        %v4104 = vrot.slane %v4041, 1
        %v4105 = vsel %vm517, %v4102, %v4104
        %v4130 = vadd.f32 %v3991, %v4068
        %v4131 = vadd.f32 %v3992, %v4070
        %v4132 = vadd.f32 %v3993, %v4069
        %v4133 = vadd.f32 %v3994, %v4073
        %v4134 = vadd.f32 %v3995, %v4075
        %v4135 = vadd.f32 %v3996, %v4074
        %v4136 = vadd.f32 %v3997, %v4078
        %v4137 = vadd.f32 %v3998, %v4080
        %v4138 = vadd.f32 %v3999, %v4079
        %v4139 = vadd.f32 %v4000, %v4083
        %v4140 = vadd.f32 %v4001, %v4085
        %v4141 = vadd.f32 %v4002, %v4084
        %v4142 = vadd.f32 %v4003, %v4088
        %v4143 = vadd.f32 %v4004, %v4090
        %v4144 = vadd.f32 %v4005, %v4089
        %v4145 = vadd.f32 %v4006, %v4093
        %v4146 = vadd.f32 %v4007, %v4095
        %v4147 = vadd.f32 %v4008, %v4094
        %v4148 = vadd.f32 %v4009, %v4098
        %v4149 = vadd.f32 %v4010, %v4100
        %v4150 = vadd.f32 %v4011, %v4099
        %v4151 = vadd.f32 %v4012, %v4103
        %v4152 = vadd.f32 %v4013, %v4105
        %v4153 = vadd.f32 %v4014, %v4104
        %v4155 = vperm.slane %v360, 0
        %v4157 = vmul.f32 %v3932, %v4155
        %v4158 = vmul.f32 %v3933, %v4155
        %v4159 = vmul.f32 %v3934, %v4155
        %v4160 = vmul.f32 %v3936, %v4155
        %v4161 = vmul.f32 %v3937, %v4155
        %v4162 = vmul.f32 %v3938, %v4155
        %v4163 = vmul.f32 %v3940, %v4155
        %v4164 = vmul.f32 %v3941, %v4155
        %v4165 = vmul.f32 %v3942, %v4155
        %v4166 = vmul.f32 %v3944, %v4155
        %v4167 = vmul.f32 %v3945, %v4155
        %v4168 = vmul.f32 %v3946, %v4155
        %v4169 = vmul.f32 %v3948, %v4155
        %v4170 = vmul.f32 %v3949, %v4155
        %v4171 = vmul.f32 %v3950, %v4155
        %v4172 = vmul.f32 %v3952, %v4155
        %v4173 = vmul.f32 %v3953, %v4155
        %v4174 = vmul.f32 %v3954, %v4155
        %v4175 = vmul.f32 %v3956, %v4155
        %v4176 = vmul.f32 %v3957, %v4155
        %v4177 = vmul.f32 %v3958, %v4155
        %v4178 = vmul.f32 %v3960, %v4155
        %v4179 = vmul.f32 %v3961, %v4155
        %v4180 = vmul.f32 %v3962, %v4155
        %v4205 = vrot.slane %v4157, 2
        %v4206 = vrot.slane %v4158, 2
        %v4207 = vsel %vm657, %v4205, %v4206
        %v4208 = vrot.slane %v4159, 2
        %v4209 = vsel %vm657, %v4206, %v4208
        %v4210 = vrot.slane %v4160, 2
        %v4211 = vrot.slane %v4161, 2
        %v4212 = vsel %vm657, %v4210, %v4211
        %v4213 = vrot.slane %v4162, 2
        %v4214 = vsel %vm657, %v4211, %v4213
        %v4215 = vrot.slane %v4163, 2
        %v4216 = vrot.slane %v4164, 2
        %v4217 = vsel %vm657, %v4215, %v4216
        %v4218 = vrot.slane %v4165, 2
        %v4219 = vsel %vm657, %v4216, %v4218
        %v4220 = vrot.slane %v4166, 2
        %v4221 = vrot.slane %v4167, 2
        %v4222 = vsel %vm657, %v4220, %v4221
        %v4223 = vrot.slane %v4168, 2
        %v4224 = vsel %vm657, %v4221, %v4223
        %v4225 = vrot.slane %v4169, 2
        %v4226 = vrot.slane %v4170, 2
        %v4227 = vsel %vm657, %v4225, %v4226
        %v4228 = vrot.slane %v4171, 2
        %v4229 = vsel %vm657, %v4226, %v4228
        %v4230 = vrot.slane %v4172, 2
        %v4231 = vrot.slane %v4173, 2
        %v4232 = vsel %vm657, %v4230, %v4231
        %v4233 = vrot.slane %v4174, 2
        %v4234 = vsel %vm657, %v4231, %v4233
        %v4235 = vrot.slane %v4175, 2
        %v4236 = vrot.slane %v4176, 2
        %v4237 = vsel %vm657, %v4235, %v4236
        %v4238 = vrot.slane %v4177, 2
        %v4239 = vsel %vm657, %v4236, %v4238
        %v4240 = vrot.slane %v4178, 2
        %v4241 = vrot.slane %v4179, 2
        %v4242 = vsel %vm657, %v4240, %v4241
        %v4243 = vrot.slane %v4180, 2
        %v4244 = vsel %vm657, %v4241, %v4243
        %v4269 = vadd.f32 %v4130, %v4207
        %v4270 = vadd.f32 %v4131, %v4209
        %v4271 = vadd.f32 %v4132, %v4208
        %v4272 = vadd.f32 %v4133, %v4212
        %v4273 = vadd.f32 %v4134, %v4214
        %v4274 = vadd.f32 %v4135, %v4213
        %v4275 = vadd.f32 %v4136, %v4217
        %v4276 = vadd.f32 %v4137, %v4219
        %v4277 = vadd.f32 %v4138, %v4218
        %v4278 = vadd.f32 %v4139, %v4222
        %v4279 = vadd.f32 %v4140, %v4224
        %v4280 = vadd.f32 %v4141, %v4223
        %v4281 = vadd.f32 %v4142, %v4227
        %v4282 = vadd.f32 %v4143, %v4229
        %v4283 = vadd.f32 %v4144, %v4228
        %v4284 = vadd.f32 %v4145, %v4232
        %v4285 = vadd.f32 %v4146, %v4234
        %v4286 = vadd.f32 %v4147, %v4233
        %v4287 = vadd.f32 %v4148, %v4237
        %v4288 = vadd.f32 %v4149, %v4239
        %v4289 = vadd.f32 %v4150, %v4238
        %v4290 = vadd.f32 %v4151, %v4242
        %v4291 = vadd.f32 %v4152, %v4244
        %v4292 = vadd.f32 %v4153, %v4243
        %v4294 = vperm.slane %v361, 0
        %v4296 = vmul.f32 %v3933, %v4294
        %v4297 = vmul.f32 %v3934, %v4294
        %v4298 = vmul.f32 %v3937, %v4294
        %v4299 = vmul.f32 %v3938, %v4294
        %v4300 = vmul.f32 %v3941, %v4294
        %v4301 = vmul.f32 %v3942, %v4294
        %v4302 = vmul.f32 %v3945, %v4294
        %v4303 = vmul.f32 %v3946, %v4294
        %v4304 = vmul.f32 %v3949, %v4294
        %v4305 = vmul.f32 %v3950, %v4294
        %v4306 = vmul.f32 %v3953, %v4294
        %v4307 = vmul.f32 %v3954, %v4294
        %v4308 = vmul.f32 %v3957, %v4294
        %v4309 = vmul.f32 %v3958, %v4294
        %v4310 = vmul.f32 %v3961, %v4294
        %v4311 = vmul.f32 %v3962, %v4294
        %v4328 = vrot.slane %v4296, 3
        %v4329 = vrot.slane %v4297, 3
        %v4330 = vsel %vm781, %v4328, %v4329
        %v4331 = vrot.slane %v4298, 3
        %v4332 = vrot.slane %v4299, 3
        %v4333 = vsel %vm781, %v4331, %v4332
        %v4334 = vrot.slane %v4300, 3
        %v4335 = vrot.slane %v4301, 3
        %v4336 = vsel %vm781, %v4334, %v4335
        %v4337 = vrot.slane %v4302, 3
        %v4338 = vrot.slane %v4303, 3
        %v4339 = vsel %vm781, %v4337, %v4338
        %v4340 = vrot.slane %v4304, 3
        %v4341 = vrot.slane %v4305, 3
        %v4342 = vsel %vm781, %v4340, %v4341
        %v4343 = vrot.slane %v4306, 3
        %v4344 = vrot.slane %v4307, 3
        %v4345 = vsel %vm781, %v4343, %v4344
        %v4346 = vrot.slane %v4308, 3
        %v4347 = vrot.slane %v4309, 3
        %v4348 = vsel %vm781, %v4346, %v4347
        %v4349 = vrot.slane %v4310, 3
        %v4350 = vrot.slane %v4311, 3
        %v4351 = vsel %vm781, %v4349, %v4350
        %v4376 = vadd.f32 %v4269, %v4328
        %v4377 = vadd.f32 %v4270, %v4330
        %v4378 = vadd.f32 %v4271, %v4329
        %v4379 = vadd.f32 %v4272, %v4331
        %v4380 = vadd.f32 %v4273, %v4333
        %v4381 = vadd.f32 %v4274, %v4332
        %v4382 = vadd.f32 %v4275, %v4334
        %v4383 = vadd.f32 %v4276, %v4336
        %v4384 = vadd.f32 %v4277, %v4335
        %v4385 = vadd.f32 %v4278, %v4337
        %v4386 = vadd.f32 %v4279, %v4339
        %v4387 = vadd.f32 %v4280, %v4338
        %v4388 = vadd.f32 %v4281, %v4340
        %v4389 = vadd.f32 %v4282, %v4342
        %v4390 = vadd.f32 %v4283, %v4341
        %v4391 = vadd.f32 %v4284, %v4343
        %v4392 = vadd.f32 %v4285, %v4345
        %v4393 = vadd.f32 %v4286, %v4344
        %v4394 = vadd.f32 %v4287, %v4346
        %v4395 = vadd.f32 %v4288, %v4348
        %v4396 = vadd.f32 %v4289, %v4347
        %v4397 = vadd.f32 %v4290, %v4349
        %v4398 = vadd.f32 %v4291, %v4351
        %v4399 = vadd.f32 %v4292, %v4350
        %v4401 = vperm.slane %v362, 0
        %v4403 = vmul.f32 %v3933, %v4401
        %v4404 = vmul.f32 %v3934, %v4401
        %v4405 = vmul.f32 %v3935, %v4401
        %v4406 = vmul.f32 %v3937, %v4401
        %v4407 = vmul.f32 %v3938, %v4401
        %v4408 = vmul.f32 %v3939, %v4401
        %v4409 = vmul.f32 %v3941, %v4401
        %v4410 = vmul.f32 %v3942, %v4401
        %v4411 = vmul.f32 %v3943, %v4401
        %v4412 = vmul.f32 %v3945, %v4401
        %v4413 = vmul.f32 %v3946, %v4401
        %v4414 = vmul.f32 %v3947, %v4401
        %v4415 = vmul.f32 %v3949, %v4401
        %v4416 = vmul.f32 %v3950, %v4401
        %v4417 = vmul.f32 %v3951, %v4401
        %v4418 = vmul.f32 %v3953, %v4401
        %v4419 = vmul.f32 %v3954, %v4401
        %v4420 = vmul.f32 %v3955, %v4401
        %v4421 = vmul.f32 %v3957, %v4401
        %v4422 = vmul.f32 %v3958, %v4401
        %v4423 = vmul.f32 %v3959, %v4401
        %v4424 = vmul.f32 %v3961, %v4401
        %v4425 = vmul.f32 %v3962, %v4401
        %v4426 = vmul.f32 %v3963, %v4401
        %v4451 = vrot.slane %v4403, 4
        %v4452 = vrot.slane %v4404, 4
        %v4453 = vsel %vm905, %v4451, %v4452
        %v4454 = vrot.slane %v4405, 4
        %v4455 = vsel %vm905, %v4452, %v4454
        %v4456 = vrot.slane %v4406, 4
        %v4457 = vrot.slane %v4407, 4
        %v4458 = vsel %vm905, %v4456, %v4457
        %v4459 = vrot.slane %v4408, 4
        %v4460 = vsel %vm905, %v4457, %v4459
        %v4461 = vrot.slane %v4409, 4
        %v4462 = vrot.slane %v4410, 4
        %v4463 = vsel %vm905, %v4461, %v4462
        %v4464 = vrot.slane %v4411, 4
        %v4465 = vsel %vm905, %v4462, %v4464
        %v4466 = vrot.slane %v4412, 4
        %v4467 = vrot.slane %v4413, 4
        %v4468 = vsel %vm905, %v4466, %v4467
        %v4469 = vrot.slane %v4414, 4
        %v4470 = vsel %vm905, %v4467, %v4469
        %v4471 = vrot.slane %v4415, 4
        %v4472 = vrot.slane %v4416, 4
        %v4473 = vsel %vm905, %v4471, %v4472
        %v4474 = vrot.slane %v4417, 4
        %v4475 = vsel %vm905, %v4472, %v4474
        %v4476 = vrot.slane %v4418, 4
        %v4477 = vrot.slane %v4419, 4
        %v4478 = vsel %vm905, %v4476, %v4477
        %v4479 = vrot.slane %v4420, 4
        %v4480 = vsel %vm905, %v4477, %v4479
        %v4481 = vrot.slane %v4421, 4
        %v4482 = vrot.slane %v4422, 4
        %v4483 = vsel %vm905, %v4481, %v4482
        %v4484 = vrot.slane %v4423, 4
        %v4485 = vsel %vm905, %v4482, %v4484
        %v4486 = vrot.slane %v4424, 4
        %v4487 = vrot.slane %v4425, 4
        %v4488 = vsel %vm905, %v4486, %v4487
        %v4489 = vrot.slane %v4426, 4
        %v4490 = vsel %vm905, %v4487, %v4489
        %v4515 = vadd.f32 %v4376, %v4451
        %v4516 = vadd.f32 %v4377, %v4453
        %v4517 = vadd.f32 %v4378, %v4455
        %v4518 = vadd.f32 %v4379, %v4456
        %v4519 = vadd.f32 %v4380, %v4458
        %v4520 = vadd.f32 %v4381, %v4460
        %v4521 = vadd.f32 %v4382, %v4461
        %v4522 = vadd.f32 %v4383, %v4463
        %v4523 = vadd.f32 %v4384, %v4465
        %v4524 = vadd.f32 %v4385, %v4466
        %v4525 = vadd.f32 %v4386, %v4468
        %v4526 = vadd.f32 %v4387, %v4470
        %v4527 = vadd.f32 %v4388, %v4471
        %v4528 = vadd.f32 %v4389, %v4473
        %v4529 = vadd.f32 %v4390, %v4475
        %v4530 = vadd.f32 %v4391, %v4476
        %v4531 = vadd.f32 %v4392, %v4478
        %v4532 = vadd.f32 %v4393, %v4480
        %v4533 = vadd.f32 %v4394, %v4481
        %v4534 = vadd.f32 %v4395, %v4483
        %v4535 = vadd.f32 %v4396, %v4485
        %v4536 = vadd.f32 %v4397, %v4486
        %v4537 = vadd.f32 %v4398, %v4488
        %v4538 = vadd.f32 %v4399, %v4490
        %v4540 = vperm.slane %v363, 0
        %v4542 = vmul.f32 %v3933, %v4540
        %v4543 = vmul.f32 %v3934, %v4540
        %v4544 = vmul.f32 %v3935, %v4540
        %v4545 = vmul.f32 %v3937, %v4540
        %v4546 = vmul.f32 %v3938, %v4540
        %v4547 = vmul.f32 %v3939, %v4540
        %v4548 = vmul.f32 %v3941, %v4540
        %v4549 = vmul.f32 %v3942, %v4540
        %v4550 = vmul.f32 %v3943, %v4540
        %v4551 = vmul.f32 %v3945, %v4540
        %v4552 = vmul.f32 %v3946, %v4540
        %v4553 = vmul.f32 %v3947, %v4540
        %v4554 = vmul.f32 %v3949, %v4540
        %v4555 = vmul.f32 %v3950, %v4540
        %v4556 = vmul.f32 %v3951, %v4540
        %v4557 = vmul.f32 %v3953, %v4540
        %v4558 = vmul.f32 %v3954, %v4540
        %v4559 = vmul.f32 %v3955, %v4540
        %v4560 = vmul.f32 %v3957, %v4540
        %v4561 = vmul.f32 %v3958, %v4540
        %v4562 = vmul.f32 %v3959, %v4540
        %v4563 = vmul.f32 %v3961, %v4540
        %v4564 = vmul.f32 %v3962, %v4540
        %v4565 = vmul.f32 %v3963, %v4540
        %v4590 = vrot.slane %v4542, 5
        %v4591 = vrot.slane %v4543, 5
        %v4592 = vsel %vm1045, %v4590, %v4591
        %v4593 = vrot.slane %v4544, 5
        %v4594 = vsel %vm1045, %v4591, %v4593
        %v4595 = vrot.slane %v4545, 5
        %v4596 = vrot.slane %v4546, 5
        %v4597 = vsel %vm1045, %v4595, %v4596
        %v4598 = vrot.slane %v4547, 5
        %v4599 = vsel %vm1045, %v4596, %v4598
        %v4600 = vrot.slane %v4548, 5
        %v4601 = vrot.slane %v4549, 5
        %v4602 = vsel %vm1045, %v4600, %v4601
        %v4603 = vrot.slane %v4550, 5
        %v4604 = vsel %vm1045, %v4601, %v4603
        %v4605 = vrot.slane %v4551, 5
        %v4606 = vrot.slane %v4552, 5
        %v4607 = vsel %vm1045, %v4605, %v4606
        %v4608 = vrot.slane %v4553, 5
        %v4609 = vsel %vm1045, %v4606, %v4608
        %v4610 = vrot.slane %v4554, 5
        %v4611 = vrot.slane %v4555, 5
        %v4612 = vsel %vm1045, %v4610, %v4611
        %v4613 = vrot.slane %v4556, 5
        %v4614 = vsel %vm1045, %v4611, %v4613
        %v4615 = vrot.slane %v4557, 5
        %v4616 = vrot.slane %v4558, 5
        %v4617 = vsel %vm1045, %v4615, %v4616
        %v4618 = vrot.slane %v4559, 5
        %v4619 = vsel %vm1045, %v4616, %v4618
        %v4620 = vrot.slane %v4560, 5
        %v4621 = vrot.slane %v4561, 5
        %v4622 = vsel %vm1045, %v4620, %v4621
        %v4623 = vrot.slane %v4562, 5
        %v4624 = vsel %vm1045, %v4621, %v4623
        %v4625 = vrot.slane %v4563, 5
        %v4626 = vrot.slane %v4564, 5
        %v4627 = vsel %vm1045, %v4625, %v4626
        %v4628 = vrot.slane %v4565, 5
        %v4629 = vsel %vm1045, %v4626, %v4628
        %v4654 = vadd.f32 %v4515, %v4590
        %v4655 = vadd.f32 %v4516, %v4592
        %v4656 = vadd.f32 %v4517, %v4594
        %v4657 = vadd.f32 %v4518, %v4595
        %v4658 = vadd.f32 %v4519, %v4597
        %v4659 = vadd.f32 %v4520, %v4599
        %v4660 = vadd.f32 %v4521, %v4600
        %v4661 = vadd.f32 %v4522, %v4602
        %v4662 = vadd.f32 %v4523, %v4604
        %v4663 = vadd.f32 %v4524, %v4605
        %v4664 = vadd.f32 %v4525, %v4607
        %v4665 = vadd.f32 %v4526, %v4609
        %v4666 = vadd.f32 %v4527, %v4610
        %v4667 = vadd.f32 %v4528, %v4612
        %v4668 = vadd.f32 %v4529, %v4614
        %v4669 = vadd.f32 %v4530, %v4615
        %v4670 = vadd.f32 %v4531, %v4617
        %v4671 = vadd.f32 %v4532, %v4619
        %v4672 = vadd.f32 %v4533, %v4620
        %v4673 = vadd.f32 %v4534, %v4622
        %v4674 = vadd.f32 %v4535, %v4624
        %v4675 = vadd.f32 %v4536, %v4625
        %v4676 = vadd.f32 %v4537, %v4627
        %v4677 = vadd.f32 %v4538, %v4629
        %v4679 = vperm.slane %v364, 0
        %v4681 = vmul.f32 %v3933, %v4679
        %v4682 = vmul.f32 %v3934, %v4679
        %v4683 = vmul.f32 %v3935, %v4679
        %v4684 = vmul.f32 %v3937, %v4679
        %v4685 = vmul.f32 %v3938, %v4679
        %v4686 = vmul.f32 %v3939, %v4679
        %v4687 = vmul.f32 %v3941, %v4679
        %v4688 = vmul.f32 %v3942, %v4679
        %v4689 = vmul.f32 %v3943, %v4679
        %v4690 = vmul.f32 %v3945, %v4679
        %v4691 = vmul.f32 %v3946, %v4679
        %v4692 = vmul.f32 %v3947, %v4679
        %v4693 = vmul.f32 %v3949, %v4679
        %v4694 = vmul.f32 %v3950, %v4679
        %v4695 = vmul.f32 %v3951, %v4679
        %v4696 = vmul.f32 %v3953, %v4679
        %v4697 = vmul.f32 %v3954, %v4679
        %v4698 = vmul.f32 %v3955, %v4679
        %v4699 = vmul.f32 %v3957, %v4679
        %v4700 = vmul.f32 %v3958, %v4679
        %v4701 = vmul.f32 %v3959, %v4679
        %v4702 = vmul.f32 %v3961, %v4679
        %v4703 = vmul.f32 %v3962, %v4679
        %v4704 = vmul.f32 %v3963, %v4679
        %v4729 = vrot.slane %v4681, 6
        %v4730 = vrot.slane %v4682, 6
        %v4731 = vsel %vm1185, %v4729, %v4730
        %v4732 = vrot.slane %v4683, 6
        %v4733 = vsel %vm1185, %v4730, %v4732
        %v4734 = vrot.slane %v4684, 6
        %v4735 = vrot.slane %v4685, 6
        %v4736 = vsel %vm1185, %v4734, %v4735
        %v4737 = vrot.slane %v4686, 6
        %v4738 = vsel %vm1185, %v4735, %v4737
        %v4739 = vrot.slane %v4687, 6
        %v4740 = vrot.slane %v4688, 6
        %v4741 = vsel %vm1185, %v4739, %v4740
        %v4742 = vrot.slane %v4689, 6
        %v4743 = vsel %vm1185, %v4740, %v4742
        %v4744 = vrot.slane %v4690, 6
        %v4745 = vrot.slane %v4691, 6
        %v4746 = vsel %vm1185, %v4744, %v4745
        %v4747 = vrot.slane %v4692, 6
        %v4748 = vsel %vm1185, %v4745, %v4747
        %v4749 = vrot.slane %v4693, 6
        %v4750 = vrot.slane %v4694, 6
        %v4751 = vsel %vm1185, %v4749, %v4750
        %v4752 = vrot.slane %v4695, 6
        %v4753 = vsel %vm1185, %v4750, %v4752
        %v4754 = vrot.slane %v4696, 6
        %v4755 = vrot.slane %v4697, 6
        %v4756 = vsel %vm1185, %v4754, %v4755
        %v4757 = vrot.slane %v4698, 6
        %v4758 = vsel %vm1185, %v4755, %v4757
        %v4759 = vrot.slane %v4699, 6
        %v4760 = vrot.slane %v4700, 6
        %v4761 = vsel %vm1185, %v4759, %v4760
        %v4762 = vrot.slane %v4701, 6
        %v4763 = vsel %vm1185, %v4760, %v4762
        %v4764 = vrot.slane %v4702, 6
        %v4765 = vrot.slane %v4703, 6
        %v4766 = vsel %vm1185, %v4764, %v4765
        %v4767 = vrot.slane %v4704, 6
        %v4768 = vsel %vm1185, %v4765, %v4767
        %v4793 = vadd.f32 %v4654, %v4729
        %v4794 = vadd.f32 %v4655, %v4731
        %v4795 = vadd.f32 %v4656, %v4733
        %v4796 = vadd.f32 %v4657, %v4734
        %v4797 = vadd.f32 %v4658, %v4736
        %v4798 = vadd.f32 %v4659, %v4738
        %v4799 = vadd.f32 %v4660, %v4739
        %v4800 = vadd.f32 %v4661, %v4741
        %v4801 = vadd.f32 %v4662, %v4743
        %v4802 = vadd.f32 %v4663, %v4744
        %v4803 = vadd.f32 %v4664, %v4746
        %v4804 = vadd.f32 %v4665, %v4748
        %v4805 = vadd.f32 %v4666, %v4749
        %v4806 = vadd.f32 %v4667, %v4751
        %v4807 = vadd.f32 %v4668, %v4753
        %v4808 = vadd.f32 %v4669, %v4754
        %v4809 = vadd.f32 %v4670, %v4756
        %v4810 = vadd.f32 %v4671, %v4758
        %v4811 = vadd.f32 %v4672, %v4759
        %v4812 = vadd.f32 %v4673, %v4761
        %v4813 = vadd.f32 %v4674, %v4763
        %v4814 = vadd.f32 %v4675, %v4764
        %v4815 = vadd.f32 %v4676, %v4766
        %v4816 = vadd.f32 %v4677, %v4768
        %s4817 = scalar_lea.vmem [#allocation2], 160
        %v4818 = vld [vmem:[%s4817] sm:$0xff]
        %v4819 = vld [vmem:[%s4817 + $0x8] sm:$0xff]
        %v4820 = vld [vmem:[%s4817 + $0x10] sm:$0xff]
        %v4821 = vld [vmem:[%s4817 + $0x18] sm:$0x7]
        %v4822 = vld [vmem:[%s4817 + $0x20] sm:$0xff]
        %v4823 = vld [vmem:[%s4817 + $0x28] sm:$0xff]
        %v4824 = vld [vmem:[%s4817 + $0x30] sm:$0xff]
        %v4825 = vld [vmem:[%s4817 + $0x38] sm:$0x7]
        %v4826 = vld [vmem:[%s4817 + $0x40] sm:$0xff]
        %v4827 = vld [vmem:[%s4817 + $0x48] sm:$0xff]
        %v4828 = vld [vmem:[%s4817 + $0x50] sm:$0xff]
        %v4829 = vld [vmem:[%s4817 + $0x58] sm:$0x7]
        %v4830 = vld [vmem:[%s4817 + $0x60] sm:$0xff]
        %v4831 = vld [vmem:[%s4817 + $0x68] sm:$0xff]
        %v4832 = vld [vmem:[%s4817 + $0x70] sm:$0xff]
        %v4833 = vld [vmem:[%s4817 + $0x78] sm:$0x7]
        %v4834 = vld [vmem:[%s4817 + $0x80] sm:$0xff]
        %v4835 = vld [vmem:[%s4817 + $0x88] sm:$0xff]
        %v4836 = vld [vmem:[%s4817 + $0x90] sm:$0xff]
        %v4837 = vld [vmem:[%s4817 + $0x98] sm:$0x7]
        %v4838 = vld [vmem:[%s4817 + $0xa0] sm:$0xff]
        %v4839 = vld [vmem:[%s4817 + $0xa8] sm:$0xff]
        %v4840 = vld [vmem:[%s4817 + $0xb0] sm:$0xff]
        %v4841 = vld [vmem:[%s4817 + $0xb8] sm:$0x7]
        %v4842 = vld [vmem:[%s4817 + $0xc0] sm:$0xff]
        %v4843 = vld [vmem:[%s4817 + $0xc8] sm:$0xff]
        %v4844 = vld [vmem:[%s4817 + $0xd0] sm:$0xff]
        %v4845 = vld [vmem:[%s4817 + $0xd8] sm:$0x7]
        %v4846 = vld [vmem:[%s4817 + $0xe0] sm:$0xff]
        %v4847 = vld [vmem:[%s4817 + $0xe8] sm:$0xff]
        %v4848 = vld [vmem:[%s4817 + $0xf0] sm:$0xff]
        %v4849 = vld [vmem:[%s4817 + $0xf8] sm:$0x7]
        %v4851 = vperm.slane %v365, 0
        %v4853 = vmul.f32 %v4818, %v4851
        %v4854 = vmul.f32 %v4819, %v4851
        %v4855 = vmul.f32 %v4820, %v4851
        %v4856 = vmul.f32 %v4822, %v4851
        %v4857 = vmul.f32 %v4823, %v4851
        %v4858 = vmul.f32 %v4824, %v4851
        %v4859 = vmul.f32 %v4826, %v4851
        %v4860 = vmul.f32 %v4827, %v4851
        %v4861 = vmul.f32 %v4828, %v4851
        %v4862 = vmul.f32 %v4830, %v4851
        %v4863 = vmul.f32 %v4831, %v4851
        %v4864 = vmul.f32 %v4832, %v4851
        %v4865 = vmul.f32 %v4834, %v4851
        %v4866 = vmul.f32 %v4835, %v4851
        %v4867 = vmul.f32 %v4836, %v4851
        %v4868 = vmul.f32 %v4838, %v4851
        %v4869 = vmul.f32 %v4839, %v4851
        %v4870 = vmul.f32 %v4840, %v4851
        %v4871 = vmul.f32 %v4842, %v4851
        %v4872 = vmul.f32 %v4843, %v4851
        %v4873 = vmul.f32 %v4844, %v4851
        %v4874 = vmul.f32 %v4846, %v4851
        %v4875 = vmul.f32 %v4847, %v4851
        %v4876 = vmul.f32 %v4848, %v4851
        %v4877 = vadd.f32 %v4793, %v4853
        %v4878 = vadd.f32 %v4794, %v4854
        %v4879 = vadd.f32 %v4795, %v4855
        %v4880 = vadd.f32 %v4796, %v4856
        %v4881 = vadd.f32 %v4797, %v4857
        %v4882 = vadd.f32 %v4798, %v4858
        %v4883 = vadd.f32 %v4799, %v4859
        %v4884 = vadd.f32 %v4800, %v4860
        %v4885 = vadd.f32 %v4801, %v4861
        %v4886 = vadd.f32 %v4802, %v4862
        %v4887 = vadd.f32 %v4803, %v4863
        %v4888 = vadd.f32 %v4804, %v4864
        %v4889 = vadd.f32 %v4805, %v4865
        %v4890 = vadd.f32 %v4806, %v4866
        %v4891 = vadd.f32 %v4807, %v4867
        %v4892 = vadd.f32 %v4808, %v4868
        %v4893 = vadd.f32 %v4809, %v4869
        %v4894 = vadd.f32 %v4810, %v4870
        %v4895 = vadd.f32 %v4811, %v4871
        %v4896 = vadd.f32 %v4812, %v4872
        %v4897 = vadd.f32 %v4813, %v4873
        %v4898 = vadd.f32 %v4814, %v4874
        %v4899 = vadd.f32 %v4815, %v4875
        %v4900 = vadd.f32 %v4816, %v4876
        %v4902 = vperm.slane %v366, 0
        %v4904 = vmul.f32 %v4818, %v4902
        %v4905 = vmul.f32 %v4819, %v4902
        %v4906 = vmul.f32 %v4820, %v4902
        %v4907 = vmul.f32 %v4822, %v4902
        %v4908 = vmul.f32 %v4823, %v4902
        %v4909 = vmul.f32 %v4824, %v4902
        %v4910 = vmul.f32 %v4826, %v4902
        %v4911 = vmul.f32 %v4827, %v4902
        %v4912 = vmul.f32 %v4828, %v4902
        %v4913 = vmul.f32 %v4830, %v4902
        %v4914 = vmul.f32 %v4831, %v4902
        %v4915 = vmul.f32 %v4832, %v4902
        %v4916 = vmul.f32 %v4834, %v4902
        %v4917 = vmul.f32 %v4835, %v4902
        %v4918 = vmul.f32 %v4836, %v4902
        %v4919 = vmul.f32 %v4838, %v4902
        %v4920 = vmul.f32 %v4839, %v4902
        %v4921 = vmul.f32 %v4840, %v4902
        %v4922 = vmul.f32 %v4842, %v4902
        %v4923 = vmul.f32 %v4843, %v4902
        %v4924 = vmul.f32 %v4844, %v4902
        %v4925 = vmul.f32 %v4846, %v4902
        %v4926 = vmul.f32 %v4847, %v4902
        %v4927 = vmul.f32 %v4848, %v4902
        %v4952 = vrot.slane %v4904, 1
        %v4953 = vrot.slane %v4905, 1
        %v4954 = vsel %vm517, %v4952, %v4953
        %v4955 = vrot.slane %v4906, 1
        %v4956 = vsel %vm517, %v4953, %v4955
        %v4957 = vrot.slane %v4907, 1
        %v4958 = vrot.slane %v4908, 1
        %v4959 = vsel %vm517, %v4957, %v4958
        %v4960 = vrot.slane %v4909, 1
        %v4961 = vsel %vm517, %v4958, %v4960
        %v4962 = vrot.slane %v4910, 1
        %v4963 = vrot.slane %v4911, 1
        %v4964 = vsel %vm517, %v4962, %v4963
        %v4965 = vrot.slane %v4912, 1
        %v4966 = vsel %vm517, %v4963, %v4965
        %v4967 = vrot.slane %v4913, 1
        %v4968 = vrot.slane %v4914, 1
        %v4969 = vsel %vm517, %v4967, %v4968
        %v4970 = vrot.slane %v4915, 1
        %v4971 = vsel %vm517, %v4968, %v4970
        %v4972 = vrot.slane %v4916, 1
        %v4973 = vrot.slane %v4917, 1
        %v4974 = vsel %vm517, %v4972, %v4973
        %v4975 = vrot.slane %v4918, 1
        %v4976 = vsel %vm517, %v4973, %v4975
        %v4977 = vrot.slane %v4919, 1
        %v4978 = vrot.slane %v4920, 1
        %v4979 = vsel %vm517, %v4977, %v4978
        %v4980 = vrot.slane %v4921, 1
        %v4981 = vsel %vm517, %v4978, %v4980
        %v4982 = vrot.slane %v4922, 1
        %v4983 = vrot.slane %v4923, 1
        %v4984 = vsel %vm517, %v4982, %v4983
        %v4985 = vrot.slane %v4924, 1
        %v4986 = vsel %vm517, %v4983, %v4985
        %v4987 = vrot.slane %v4925, 1
        %v4988 = vrot.slane %v4926, 1
        %v4989 = vsel %vm517, %v4987, %v4988
        %v4990 = vrot.slane %v4927, 1
        %v4991 = vsel %vm517, %v4988, %v4990
        %v5016 = vadd.f32 %v4877, %v4954
        %v5017 = vadd.f32 %v4878, %v4956
        %v5018 = vadd.f32 %v4879, %v4955
        %v5019 = vadd.f32 %v4880, %v4959
        %v5020 = vadd.f32 %v4881, %v4961
        %v5021 = vadd.f32 %v4882, %v4960
        %v5022 = vadd.f32 %v4883, %v4964
        %v5023 = vadd.f32 %v4884, %v4966
        %v5024 = vadd.f32 %v4885, %v4965
        %v5025 = vadd.f32 %v4886, %v4969
        %v5026 = vadd.f32 %v4887, %v4971
        %v5027 = vadd.f32 %v4888, %v4970
        %v5028 = vadd.f32 %v4889, %v4974
        %v5029 = vadd.f32 %v4890, %v4976
        %v5030 = vadd.f32 %v4891, %v4975
        %v5031 = vadd.f32 %v4892, %v4979
        %v5032 = vadd.f32 %v4893, %v4981
        %v5033 = vadd.f32 %v4894, %v4980
        %v5034 = vadd.f32 %v4895, %v4984
        %v5035 = vadd.f32 %v4896, %v4986
        %v5036 = vadd.f32 %v4897, %v4985
        %v5037 = vadd.f32 %v4898, %v4989
        %v5038 = vadd.f32 %v4899, %v4991
        %v5039 = vadd.f32 %v4900, %v4990
        %v5041 = vperm.slane %v367, 0
        %v5043 = vmul.f32 %v4818, %v5041
        %v5044 = vmul.f32 %v4819, %v5041
        %v5045 = vmul.f32 %v4820, %v5041
        %v5046 = vmul.f32 %v4822, %v5041
        %v5047 = vmul.f32 %v4823, %v5041
        %v5048 = vmul.f32 %v4824, %v5041
        %v5049 = vmul.f32 %v4826, %v5041
        %v5050 = vmul.f32 %v4827, %v5041
        %v5051 = vmul.f32 %v4828, %v5041
        %v5052 = vmul.f32 %v4830, %v5041
        %v5053 = vmul.f32 %v4831, %v5041
        %v5054 = vmul.f32 %v4832, %v5041
        %v5055 = vmul.f32 %v4834, %v5041
        %v5056 = vmul.f32 %v4835, %v5041
        %v5057 = vmul.f32 %v4836, %v5041
        %v5058 = vmul.f32 %v4838, %v5041
        %v5059 = vmul.f32 %v4839, %v5041
        %v5060 = vmul.f32 %v4840, %v5041
        %v5061 = vmul.f32 %v4842, %v5041
        %v5062 = vmul.f32 %v4843, %v5041
        %v5063 = vmul.f32 %v4844, %v5041
        %v5064 = vmul.f32 %v4846, %v5041
        %v5065 = vmul.f32 %v4847, %v5041
        %v5066 = vmul.f32 %v4848, %v5041
        %v5091 = vrot.slane %v5043, 2
        %v5092 = vrot.slane %v5044, 2
        %v5093 = vsel %vm657, %v5091, %v5092
        %v5094 = vrot.slane %v5045, 2
        %v5095 = vsel %vm657, %v5092, %v5094
        %v5096 = vrot.slane %v5046, 2
        %v5097 = vrot.slane %v5047, 2
        %v5098 = vsel %vm657, %v5096, %v5097
        %v5099 = vrot.slane %v5048, 2
        %v5100 = vsel %vm657, %v5097, %v5099
        %v5101 = vrot.slane %v5049, 2
        %v5102 = vrot.slane %v5050, 2
        %v5103 = vsel %vm657, %v5101, %v5102
        %v5104 = vrot.slane %v5051, 2
        %v5105 = vsel %vm657, %v5102, %v5104
        %v5106 = vrot.slane %v5052, 2
        %v5107 = vrot.slane %v5053, 2
        %v5108 = vsel %vm657, %v5106, %v5107
        %v5109 = vrot.slane %v5054, 2
        %v5110 = vsel %vm657, %v5107, %v5109
        %v5111 = vrot.slane %v5055, 2
        %v5112 = vrot.slane %v5056, 2
        %v5113 = vsel %vm657, %v5111, %v5112
        %v5114 = vrot.slane %v5057, 2
        %v5115 = vsel %vm657, %v5112, %v5114
        %v5116 = vrot.slane %v5058, 2
        %v5117 = vrot.slane %v5059, 2
        %v5118 = vsel %vm657, %v5116, %v5117
        %v5119 = vrot.slane %v5060, 2
        %v5120 = vsel %vm657, %v5117, %v5119
        %v5121 = vrot.slane %v5061, 2
        %v5122 = vrot.slane %v5062, 2
        %v5123 = vsel %vm657, %v5121, %v5122
        %v5124 = vrot.slane %v5063, 2
        %v5125 = vsel %vm657, %v5122, %v5124
        %v5126 = vrot.slane %v5064, 2
        %v5127 = vrot.slane %v5065, 2
        %v5128 = vsel %vm657, %v5126, %v5127
        %v5129 = vrot.slane %v5066, 2
        %v5130 = vsel %vm657, %v5127, %v5129
        %v5155 = vadd.f32 %v5016, %v5093
        %v5156 = vadd.f32 %v5017, %v5095
        %v5157 = vadd.f32 %v5018, %v5094
        %v5158 = vadd.f32 %v5019, %v5098
        %v5159 = vadd.f32 %v5020, %v5100
        %v5160 = vadd.f32 %v5021, %v5099
        %v5161 = vadd.f32 %v5022, %v5103
        %v5162 = vadd.f32 %v5023, %v5105
        %v5163 = vadd.f32 %v5024, %v5104
        %v5164 = vadd.f32 %v5025, %v5108
        %v5165 = vadd.f32 %v5026, %v5110
        %v5166 = vadd.f32 %v5027, %v5109
        %v5167 = vadd.f32 %v5028, %v5113
        %v5168 = vadd.f32 %v5029, %v5115
        %v5169 = vadd.f32 %v5030, %v5114
        %v5170 = vadd.f32 %v5031, %v5118
        %v5171 = vadd.f32 %v5032, %v5120
        %v5172 = vadd.f32 %v5033, %v5119
        %v5173 = vadd.f32 %v5034, %v5123
        %v5174 = vadd.f32 %v5035, %v5125
        %v5175 = vadd.f32 %v5036, %v5124
        %v5176 = vadd.f32 %v5037, %v5128
        %v5177 = vadd.f32 %v5038, %v5130
        %v5178 = vadd.f32 %v5039, %v5129
        %v5180 = vperm.slane %v368, 0
        %v5182 = vmul.f32 %v4819, %v5180
        %v5183 = vmul.f32 %v4820, %v5180
        %v5184 = vmul.f32 %v4823, %v5180
        %v5185 = vmul.f32 %v4824, %v5180
        %v5186 = vmul.f32 %v4827, %v5180
        %v5187 = vmul.f32 %v4828, %v5180
        %v5188 = vmul.f32 %v4831, %v5180
        %v5189 = vmul.f32 %v4832, %v5180
        %v5190 = vmul.f32 %v4835, %v5180
        %v5191 = vmul.f32 %v4836, %v5180
        %v5192 = vmul.f32 %v4839, %v5180
        %v5193 = vmul.f32 %v4840, %v5180
        %v5194 = vmul.f32 %v4843, %v5180
        %v5195 = vmul.f32 %v4844, %v5180
        %v5196 = vmul.f32 %v4847, %v5180
        %v5197 = vmul.f32 %v4848, %v5180
        %v5214 = vrot.slane %v5182, 3
        %v5215 = vrot.slane %v5183, 3
        %v5216 = vsel %vm781, %v5214, %v5215
        %v5217 = vrot.slane %v5184, 3
        %v5218 = vrot.slane %v5185, 3
        %v5219 = vsel %vm781, %v5217, %v5218
        %v5220 = vrot.slane %v5186, 3
        %v5221 = vrot.slane %v5187, 3
        %v5222 = vsel %vm781, %v5220, %v5221
        %v5223 = vrot.slane %v5188, 3
        %v5224 = vrot.slane %v5189, 3
        %v5225 = vsel %vm781, %v5223, %v5224
        %v5226 = vrot.slane %v5190, 3
        %v5227 = vrot.slane %v5191, 3
        %v5228 = vsel %vm781, %v5226, %v5227
        %v5229 = vrot.slane %v5192, 3
        %v5230 = vrot.slane %v5193, 3
        %v5231 = vsel %vm781, %v5229, %v5230
        %v5232 = vrot.slane %v5194, 3
        %v5233 = vrot.slane %v5195, 3
        %v5234 = vsel %vm781, %v5232, %v5233
        %v5235 = vrot.slane %v5196, 3
        %v5236 = vrot.slane %v5197, 3
        %v5237 = vsel %vm781, %v5235, %v5236
        %v5262 = vadd.f32 %v5155, %v5214
        %v5263 = vadd.f32 %v5156, %v5216
        %v5264 = vadd.f32 %v5157, %v5215
        %v5265 = vadd.f32 %v5158, %v5217
        %v5266 = vadd.f32 %v5159, %v5219
        %v5267 = vadd.f32 %v5160, %v5218
        %v5268 = vadd.f32 %v5161, %v5220
        %v5269 = vadd.f32 %v5162, %v5222
        %v5270 = vadd.f32 %v5163, %v5221
        %v5271 = vadd.f32 %v5164, %v5223
        %v5272 = vadd.f32 %v5165, %v5225
        %v5273 = vadd.f32 %v5166, %v5224
        %v5274 = vadd.f32 %v5167, %v5226
        %v5275 = vadd.f32 %v5168, %v5228
        %v5276 = vadd.f32 %v5169, %v5227
        %v5277 = vadd.f32 %v5170, %v5229
        %v5278 = vadd.f32 %v5171, %v5231
        %v5279 = vadd.f32 %v5172, %v5230
        %v5280 = vadd.f32 %v5173, %v5232
        %v5281 = vadd.f32 %v5174, %v5234
        %v5282 = vadd.f32 %v5175, %v5233
        %v5283 = vadd.f32 %v5176, %v5235
        %v5284 = vadd.f32 %v5177, %v5237
        %v5285 = vadd.f32 %v5178, %v5236
        %v5287 = vperm.slane %v369, 0
        %v5289 = vmul.f32 %v4819, %v5287
        %v5290 = vmul.f32 %v4820, %v5287
        %v5291 = vmul.f32 %v4821, %v5287
        %v5292 = vmul.f32 %v4823, %v5287
        %v5293 = vmul.f32 %v4824, %v5287
        %v5294 = vmul.f32 %v4825, %v5287
        %v5295 = vmul.f32 %v4827, %v5287
        %v5296 = vmul.f32 %v4828, %v5287
        %v5297 = vmul.f32 %v4829, %v5287
        %v5298 = vmul.f32 %v4831, %v5287
        %v5299 = vmul.f32 %v4832, %v5287
        %v5300 = vmul.f32 %v4833, %v5287
        %v5301 = vmul.f32 %v4835, %v5287
        %v5302 = vmul.f32 %v4836, %v5287
        %v5303 = vmul.f32 %v4837, %v5287
        %v5304 = vmul.f32 %v4839, %v5287
        %v5305 = vmul.f32 %v4840, %v5287
        %v5306 = vmul.f32 %v4841, %v5287
        %v5307 = vmul.f32 %v4843, %v5287
        %v5308 = vmul.f32 %v4844, %v5287
        %v5309 = vmul.f32 %v4845, %v5287
        %v5310 = vmul.f32 %v4847, %v5287
        %v5311 = vmul.f32 %v4848, %v5287
        %v5312 = vmul.f32 %v4849, %v5287
        %v5337 = vrot.slane %v5289, 4
        %v5338 = vrot.slane %v5290, 4
        %v5339 = vsel %vm905, %v5337, %v5338
        %v5340 = vrot.slane %v5291, 4
        %v5341 = vsel %vm905, %v5338, %v5340
        %v5342 = vrot.slane %v5292, 4
        %v5343 = vrot.slane %v5293, 4
        %v5344 = vsel %vm905, %v5342, %v5343
        %v5345 = vrot.slane %v5294, 4
        %v5346 = vsel %vm905, %v5343, %v5345
        %v5347 = vrot.slane %v5295, 4
        %v5348 = vrot.slane %v5296, 4
        %v5349 = vsel %vm905, %v5347, %v5348
        %v5350 = vrot.slane %v5297, 4
        %v5351 = vsel %vm905, %v5348, %v5350
        %v5352 = vrot.slane %v5298, 4
        %v5353 = vrot.slane %v5299, 4
        %v5354 = vsel %vm905, %v5352, %v5353
        %v5355 = vrot.slane %v5300, 4
        %v5356 = vsel %vm905, %v5353, %v5355
        %v5357 = vrot.slane %v5301, 4
        %v5358 = vrot.slane %v5302, 4
        %v5359 = vsel %vm905, %v5357, %v5358
        %v5360 = vrot.slane %v5303, 4
        %v5361 = vsel %vm905, %v5358, %v5360
        %v5362 = vrot.slane %v5304, 4
        %v5363 = vrot.slane %v5305, 4
        %v5364 = vsel %vm905, %v5362, %v5363
        %v5365 = vrot.slane %v5306, 4
        %v5366 = vsel %vm905, %v5363, %v5365
        %v5367 = vrot.slane %v5307, 4
        %v5368 = vrot.slane %v5308, 4
        %v5369 = vsel %vm905, %v5367, %v5368
        %v5370 = vrot.slane %v5309, 4
        %v5371 = vsel %vm905, %v5368, %v5370
        %v5372 = vrot.slane %v5310, 4
        %v5373 = vrot.slane %v5311, 4
        %v5374 = vsel %vm905, %v5372, %v5373
        %v5375 = vrot.slane %v5312, 4
        %v5376 = vsel %vm905, %v5373, %v5375
        %v5401 = vadd.f32 %v5262, %v5337
        %v5402 = vadd.f32 %v5263, %v5339
        %v5403 = vadd.f32 %v5264, %v5341
        %v5404 = vadd.f32 %v5265, %v5342
        %v5405 = vadd.f32 %v5266, %v5344
        %v5406 = vadd.f32 %v5267, %v5346
        %v5407 = vadd.f32 %v5268, %v5347
        %v5408 = vadd.f32 %v5269, %v5349
        %v5409 = vadd.f32 %v5270, %v5351
        %v5410 = vadd.f32 %v5271, %v5352
        %v5411 = vadd.f32 %v5272, %v5354
        %v5412 = vadd.f32 %v5273, %v5356
        %v5413 = vadd.f32 %v5274, %v5357
        %v5414 = vadd.f32 %v5275, %v5359
        %v5415 = vadd.f32 %v5276, %v5361
        %v5416 = vadd.f32 %v5277, %v5362
        %v5417 = vadd.f32 %v5278, %v5364
        %v5418 = vadd.f32 %v5279, %v5366
        %v5419 = vadd.f32 %v5280, %v5367
        %v5420 = vadd.f32 %v5281, %v5369
        %v5421 = vadd.f32 %v5282, %v5371
        %v5422 = vadd.f32 %v5283, %v5372
        %v5423 = vadd.f32 %v5284, %v5374
        %v5424 = vadd.f32 %v5285, %v5376
        %v5426 = vperm.slane %v370, 0
        %v5428 = vmul.f32 %v4819, %v5426
        %v5429 = vmul.f32 %v4820, %v5426
        %v5430 = vmul.f32 %v4821, %v5426
        %v5431 = vmul.f32 %v4823, %v5426
        %v5432 = vmul.f32 %v4824, %v5426
        %v5433 = vmul.f32 %v4825, %v5426
        %v5434 = vmul.f32 %v4827, %v5426
        %v5435 = vmul.f32 %v4828, %v5426
        %v5436 = vmul.f32 %v4829, %v5426
        %v5437 = vmul.f32 %v4831, %v5426
        %v5438 = vmul.f32 %v4832, %v5426
        %v5439 = vmul.f32 %v4833, %v5426
        %v5440 = vmul.f32 %v4835, %v5426
        %v5441 = vmul.f32 %v4836, %v5426
        %v5442 = vmul.f32 %v4837, %v5426
        %v5443 = vmul.f32 %v4839, %v5426
        %v5444 = vmul.f32 %v4840, %v5426
        %v5445 = vmul.f32 %v4841, %v5426
        %v5446 = vmul.f32 %v4843, %v5426
        %v5447 = vmul.f32 %v4844, %v5426
        %v5448 = vmul.f32 %v4845, %v5426
        %v5449 = vmul.f32 %v4847, %v5426
        %v5450 = vmul.f32 %v4848, %v5426
        %v5451 = vmul.f32 %v4849, %v5426
        %v5476 = vrot.slane %v5428, 5
        %v5477 = vrot.slane %v5429, 5
        %v5478 = vsel %vm1045, %v5476, %v5477
        %v5479 = vrot.slane %v5430, 5
        %v5480 = vsel %vm1045, %v5477, %v5479
        %v5481 = vrot.slane %v5431, 5
        %v5482 = vrot.slane %v5432, 5
        %v5483 = vsel %vm1045, %v5481, %v5482
        %v5484 = vrot.slane %v5433, 5
        %v5485 = vsel %vm1045, %v5482, %v5484
        %v5486 = vrot.slane %v5434, 5
        %v5487 = vrot.slane %v5435, 5
        %v5488 = vsel %vm1045, %v5486, %v5487
        %v5489 = vrot.slane %v5436, 5
        %v5490 = vsel %vm1045, %v5487, %v5489
        %v5491 = vrot.slane %v5437, 5
        %v5492 = vrot.slane %v5438, 5
        %v5493 = vsel %vm1045, %v5491, %v5492
        %v5494 = vrot.slane %v5439, 5
        %v5495 = vsel %vm1045, %v5492, %v5494
        %v5496 = vrot.slane %v5440, 5
        %v5497 = vrot.slane %v5441, 5
        %v5498 = vsel %vm1045, %v5496, %v5497
        %v5499 = vrot.slane %v5442, 5
        %v5500 = vsel %vm1045, %v5497, %v5499
        %v5501 = vrot.slane %v5443, 5
        %v5502 = vrot.slane %v5444, 5
        %v5503 = vsel %vm1045, %v5501, %v5502
        %v5504 = vrot.slane %v5445, 5
        %v5505 = vsel %vm1045, %v5502, %v5504
        %v5506 = vrot.slane %v5446, 5
        %v5507 = vrot.slane %v5447, 5
        %v5508 = vsel %vm1045, %v5506, %v5507
        %v5509 = vrot.slane %v5448, 5
        %v5510 = vsel %vm1045, %v5507, %v5509
        %v5511 = vrot.slane %v5449, 5
        %v5512 = vrot.slane %v5450, 5
        %v5513 = vsel %vm1045, %v5511, %v5512
        %v5514 = vrot.slane %v5451, 5
        %v5515 = vsel %vm1045, %v5512, %v5514
        %v5540 = vadd.f32 %v5401, %v5476
        %v5541 = vadd.f32 %v5402, %v5478
        %v5542 = vadd.f32 %v5403, %v5480
        %v5543 = vadd.f32 %v5404, %v5481
        %v5544 = vadd.f32 %v5405, %v5483
        %v5545 = vadd.f32 %v5406, %v5485
        %v5546 = vadd.f32 %v5407, %v5486
        %v5547 = vadd.f32 %v5408, %v5488
        %v5548 = vadd.f32 %v5409, %v5490
        %v5549 = vadd.f32 %v5410, %v5491
        %v5550 = vadd.f32 %v5411, %v5493
        %v5551 = vadd.f32 %v5412, %v5495
        %v5552 = vadd.f32 %v5413, %v5496
        %v5553 = vadd.f32 %v5414, %v5498
        %v5554 = vadd.f32 %v5415, %v5500
        %v5555 = vadd.f32 %v5416, %v5501
        %v5556 = vadd.f32 %v5417, %v5503
        %v5557 = vadd.f32 %v5418, %v5505
        %v5558 = vadd.f32 %v5419, %v5506
        %v5559 = vadd.f32 %v5420, %v5508
        %v5560 = vadd.f32 %v5421, %v5510
        %v5561 = vadd.f32 %v5422, %v5511
        %v5562 = vadd.f32 %v5423, %v5513
        %v5563 = vadd.f32 %v5424, %v5515
        %v5565 = vperm.slane %v371, 0
        %v5567 = vmul.f32 %v4819, %v5565
        %v5568 = vmul.f32 %v4820, %v5565
        %v5569 = vmul.f32 %v4821, %v5565
        %v5570 = vmul.f32 %v4823, %v5565
        %v5571 = vmul.f32 %v4824, %v5565
        %v5572 = vmul.f32 %v4825, %v5565
        %v5573 = vmul.f32 %v4827, %v5565
        %v5574 = vmul.f32 %v4828, %v5565
        %v5575 = vmul.f32 %v4829, %v5565
        %v5576 = vmul.f32 %v4831, %v5565
        %v5577 = vmul.f32 %v4832, %v5565
        %v5578 = vmul.f32 %v4833, %v5565
        %v5579 = vmul.f32 %v4835, %v5565
        %v5580 = vmul.f32 %v4836, %v5565
        %v5581 = vmul.f32 %v4837, %v5565
        %v5582 = vmul.f32 %v4839, %v5565
        %v5583 = vmul.f32 %v4840, %v5565
        %v5584 = vmul.f32 %v4841, %v5565
        %v5585 = vmul.f32 %v4843, %v5565
        %v5586 = vmul.f32 %v4844, %v5565
        %v5587 = vmul.f32 %v4845, %v5565
        %v5588 = vmul.f32 %v4847, %v5565
        %v5589 = vmul.f32 %v4848, %v5565
        %v5590 = vmul.f32 %v4849, %v5565
        %v5615 = vrot.slane %v5567, 6
        %v5616 = vrot.slane %v5568, 6
        %v5617 = vsel %vm1185, %v5615, %v5616
        %v5618 = vrot.slane %v5569, 6
        %v5619 = vsel %vm1185, %v5616, %v5618
        %v5620 = vrot.slane %v5570, 6
        %v5621 = vrot.slane %v5571, 6
        %v5622 = vsel %vm1185, %v5620, %v5621
        %v5623 = vrot.slane %v5572, 6
        %v5624 = vsel %vm1185, %v5621, %v5623
        %v5625 = vrot.slane %v5573, 6
        %v5626 = vrot.slane %v5574, 6
        %v5627 = vsel %vm1185, %v5625, %v5626
        %v5628 = vrot.slane %v5575, 6
        %v5629 = vsel %vm1185, %v5626, %v5628
        %v5630 = vrot.slane %v5576, 6
        %v5631 = vrot.slane %v5577, 6
        %v5632 = vsel %vm1185, %v5630, %v5631
        %v5633 = vrot.slane %v5578, 6
        %v5634 = vsel %vm1185, %v5631, %v5633
        %v5635 = vrot.slane %v5579, 6
        %v5636 = vrot.slane %v5580, 6
        %v5637 = vsel %vm1185, %v5635, %v5636
        %v5638 = vrot.slane %v5581, 6
        %v5639 = vsel %vm1185, %v5636, %v5638
        %v5640 = vrot.slane %v5582, 6
        %v5641 = vrot.slane %v5583, 6
        %v5642 = vsel %vm1185, %v5640, %v5641
        %v5643 = vrot.slane %v5584, 6
        %v5644 = vsel %vm1185, %v5641, %v5643
        %v5645 = vrot.slane %v5585, 6
        %v5646 = vrot.slane %v5586, 6
        %v5647 = vsel %vm1185, %v5645, %v5646
        %v5648 = vrot.slane %v5587, 6
        %v5649 = vsel %vm1185, %v5646, %v5648
        %v5650 = vrot.slane %v5588, 6
        %v5651 = vrot.slane %v5589, 6
        %v5652 = vsel %vm1185, %v5650, %v5651
        %v5653 = vrot.slane %v5590, 6
        %v5654 = vsel %vm1185, %v5651, %v5653
        %v5679 = vadd.f32 %v5540, %v5615
        %v5680 = vadd.f32 %v5541, %v5617
        %v5681 = vadd.f32 %v5542, %v5619
        %v5682 = vadd.f32 %v5543, %v5620
        %v5683 = vadd.f32 %v5544, %v5622
        %v5684 = vadd.f32 %v5545, %v5624
        %v5685 = vadd.f32 %v5546, %v5625
        %v5686 = vadd.f32 %v5547, %v5627
        %v5687 = vadd.f32 %v5548, %v5629
        %v5688 = vadd.f32 %v5549, %v5630
        %v5689 = vadd.f32 %v5550, %v5632
        %v5690 = vadd.f32 %v5551, %v5634
        %v5691 = vadd.f32 %v5552, %v5635
        %v5692 = vadd.f32 %v5553, %v5637
        %v5693 = vadd.f32 %v5554, %v5639
        %v5694 = vadd.f32 %v5555, %v5640
        %v5695 = vadd.f32 %v5556, %v5642
        %v5696 = vadd.f32 %v5557, %v5644
        %v5697 = vadd.f32 %v5558, %v5645
        %v5698 = vadd.f32 %v5559, %v5647
        %v5699 = vadd.f32 %v5560, %v5649
        %v5700 = vadd.f32 %v5561, %v5650
        %v5701 = vadd.f32 %v5562, %v5652
        %v5702 = vadd.f32 %v5563, %v5654
        %s5703 = scalar_lea.vmem [#allocation2], 192
        %v5704 = vld [vmem:[%s5703] sm:$0xff]
        %v5705 = vld [vmem:[%s5703 + $0x8] sm:$0xff]
        %v5706 = vld [vmem:[%s5703 + $0x10] sm:$0xff]
        %v5707 = vld [vmem:[%s5703 + $0x18] sm:$0x7]
        %v5708 = vld [vmem:[%s5703 + $0x20] sm:$0xff]
        %v5709 = vld [vmem:[%s5703 + $0x28] sm:$0xff]
        %v5710 = vld [vmem:[%s5703 + $0x30] sm:$0xff]
        %v5711 = vld [vmem:[%s5703 + $0x38] sm:$0x7]
        %v5712 = vld [vmem:[%s5703 + $0x40] sm:$0xff]
        %v5713 = vld [vmem:[%s5703 + $0x48] sm:$0xff]
        %v5714 = vld [vmem:[%s5703 + $0x50] sm:$0xff]
        %v5715 = vld [vmem:[%s5703 + $0x58] sm:$0x7]
        %v5716 = vld [vmem:[%s5703 + $0x60] sm:$0xff]
        %v5717 = vld [vmem:[%s5703 + $0x68] sm:$0xff]
        %v5718 = vld [vmem:[%s5703 + $0x70] sm:$0xff]
        %v5719 = vld [vmem:[%s5703 + $0x78] sm:$0x7]
        %v5720 = vld [vmem:[%s5703 + $0x80] sm:$0xff]
        %v5721 = vld [vmem:[%s5703 + $0x88] sm:$0xff]
        %v5722 = vld [vmem:[%s5703 + $0x90] sm:$0xff]
        %v5723 = vld [vmem:[%s5703 + $0x98] sm:$0x7]
        %v5724 = vld [vmem:[%s5703 + $0xa0] sm:$0xff]
        %v5725 = vld [vmem:[%s5703 + $0xa8] sm:$0xff]
        %v5726 = vld [vmem:[%s5703 + $0xb0] sm:$0xff]
        %v5727 = vld [vmem:[%s5703 + $0xb8] sm:$0x7]
        %v5728 = vld [vmem:[%s5703 + $0xc0] sm:$0xff]
        %v5729 = vld [vmem:[%s5703 + $0xc8] sm:$0xff]
        %v5730 = vld [vmem:[%s5703 + $0xd0] sm:$0xff]
        %v5731 = vld [vmem:[%s5703 + $0xd8] sm:$0x7]
        %v5732 = vld [vmem:[%s5703 + $0xe0] sm:$0xff]
        %v5733 = vld [vmem:[%s5703 + $0xe8] sm:$0xff]
        %v5734 = vld [vmem:[%s5703 + $0xf0] sm:$0xff]
        %v5735 = vld [vmem:[%s5703 + $0xf8] sm:$0x7]
        %v5737 = vperm.slane %v372, 0
        %v5739 = vmul.f32 %v5704, %v5737
        %v5740 = vmul.f32 %v5705, %v5737
        %v5741 = vmul.f32 %v5706, %v5737
        %v5742 = vmul.f32 %v5708, %v5737
        %v5743 = vmul.f32 %v5709, %v5737
        %v5744 = vmul.f32 %v5710, %v5737
        %v5745 = vmul.f32 %v5712, %v5737
        %v5746 = vmul.f32 %v5713, %v5737
        %v5747 = vmul.f32 %v5714, %v5737
        %v5748 = vmul.f32 %v5716, %v5737
        %v5749 = vmul.f32 %v5717, %v5737
        %v5750 = vmul.f32 %v5718, %v5737
        %v5751 = vmul.f32 %v5720, %v5737
        %v5752 = vmul.f32 %v5721, %v5737
        %v5753 = vmul.f32 %v5722, %v5737
        %v5754 = vmul.f32 %v5724, %v5737
        %v5755 = vmul.f32 %v5725, %v5737
        %v5756 = vmul.f32 %v5726, %v5737
        %v5757 = vmul.f32 %v5728, %v5737
        %v5758 = vmul.f32 %v5729, %v5737
        %v5759 = vmul.f32 %v5730, %v5737
        %v5760 = vmul.f32 %v5732, %v5737
        %v5761 = vmul.f32 %v5733, %v5737
        %v5762 = vmul.f32 %v5734, %v5737
        %v5763 = vadd.f32 %v5679, %v5739
        %v5764 = vadd.f32 %v5680, %v5740
        %v5765 = vadd.f32 %v5681, %v5741
        %v5766 = vadd.f32 %v5682, %v5742
        %v5767 = vadd.f32 %v5683, %v5743
        %v5768 = vadd.f32 %v5684, %v5744
        %v5769 = vadd.f32 %v5685, %v5745
        %v5770 = vadd.f32 %v5686, %v5746
        %v5771 = vadd.f32 %v5687, %v5747
        %v5772 = vadd.f32 %v5688, %v5748
        %v5773 = vadd.f32 %v5689, %v5749
        %v5774 = vadd.f32 %v5690, %v5750
        %v5775 = vadd.f32 %v5691, %v5751
        %v5776 = vadd.f32 %v5692, %v5752
        %v5777 = vadd.f32 %v5693, %v5753
        %v5778 = vadd.f32 %v5694, %v5754
        %v5779 = vadd.f32 %v5695, %v5755
        %v5780 = vadd.f32 %v5696, %v5756
        %v5781 = vadd.f32 %v5697, %v5757
        %v5782 = vadd.f32 %v5698, %v5758
        %v5783 = vadd.f32 %v5699, %v5759
        %v5784 = vadd.f32 %v5700, %v5760
        %v5785 = vadd.f32 %v5701, %v5761
        %v5786 = vadd.f32 %v5702, %v5762
        %v5788 = vperm.slane %v373, 0
        %v5790 = vmul.f32 %v5704, %v5788
        %v5791 = vmul.f32 %v5705, %v5788
        %v5792 = vmul.f32 %v5706, %v5788
        %v5793 = vmul.f32 %v5708, %v5788
        %v5794 = vmul.f32 %v5709, %v5788
        %v5795 = vmul.f32 %v5710, %v5788
        %v5796 = vmul.f32 %v5712, %v5788
        %v5797 = vmul.f32 %v5713, %v5788
        %v5798 = vmul.f32 %v5714, %v5788
        %v5799 = vmul.f32 %v5716, %v5788
        %v5800 = vmul.f32 %v5717, %v5788
        %v5801 = vmul.f32 %v5718, %v5788
        %v5802 = vmul.f32 %v5720, %v5788
        %v5803 = vmul.f32 %v5721, %v5788
        %v5804 = vmul.f32 %v5722, %v5788
        %v5805 = vmul.f32 %v5724, %v5788
        %v5806 = vmul.f32 %v5725, %v5788
        %v5807 = vmul.f32 %v5726, %v5788
        %v5808 = vmul.f32 %v5728, %v5788
        %v5809 = vmul.f32 %v5729, %v5788
        %v5810 = vmul.f32 %v5730, %v5788
        %v5811 = vmul.f32 %v5732, %v5788
        %v5812 = vmul.f32 %v5733, %v5788
        %v5813 = vmul.f32 %v5734, %v5788
        %v5838 = vrot.slane %v5790, 1
        %v5839 = vrot.slane %v5791, 1
        %v5840 = vsel %vm517, %v5838, %v5839
        %v5841 = vrot.slane %v5792, 1
        %v5842 = vsel %vm517, %v5839, %v5841
        %v5843 = vrot.slane %v5793, 1
        %v5844 = vrot.slane %v5794, 1
        %v5845 = vsel %vm517, %v5843, %v5844
        %v5846 = vrot.slane %v5795, 1
        %v5847 = vsel %vm517, %v5844, %v5846
        %v5848 = vrot.slane %v5796, 1
        %v5849 = vrot.slane %v5797, 1
        %v5850 = vsel %vm517, %v5848, %v5849
        %v5851 = vrot.slane %v5798, 1
        %v5852 = vsel %vm517, %v5849, %v5851
        %v5853 = vrot.slane %v5799, 1
        %v5854 = vrot.slane %v5800, 1
        %v5855 = vsel %vm517, %v5853, %v5854
        %v5856 = vrot.slane %v5801, 1
        %v5857 = vsel %vm517, %v5854, %v5856
        %v5858 = vrot.slane %v5802, 1
        %v5859 = vrot.slane %v5803, 1
        %v5860 = vsel %vm517, %v5858, %v5859
        %v5861 = vrot.slane %v5804, 1
        %v5862 = vsel %vm517, %v5859, %v5861
        %v5863 = vrot.slane %v5805, 1
        %v5864 = vrot.slane %v5806, 1
        %v5865 = vsel %vm517, %v5863, %v5864
        %v5866 = vrot.slane %v5807, 1
        %v5867 = vsel %vm517, %v5864, %v5866
        %v5868 = vrot.slane %v5808, 1
        %v5869 = vrot.slane %v5809, 1
        %v5870 = vsel %vm517, %v5868, %v5869
        %v5871 = vrot.slane %v5810, 1
        %v5872 = vsel %vm517, %v5869, %v5871
        %v5873 = vrot.slane %v5811, 1
        %v5874 = vrot.slane %v5812, 1
        %v5875 = vsel %vm517, %v5873, %v5874
        %v5876 = vrot.slane %v5813, 1
        %v5877 = vsel %vm517, %v5874, %v5876
        %v5902 = vadd.f32 %v5763, %v5840
        %v5903 = vadd.f32 %v5764, %v5842
        %v5904 = vadd.f32 %v5765, %v5841
        %v5905 = vadd.f32 %v5766, %v5845
        %v5906 = vadd.f32 %v5767, %v5847
        %v5907 = vadd.f32 %v5768, %v5846
        %v5908 = vadd.f32 %v5769, %v5850
        %v5909 = vadd.f32 %v5770, %v5852
        %v5910 = vadd.f32 %v5771, %v5851
        %v5911 = vadd.f32 %v5772, %v5855
        %v5912 = vadd.f32 %v5773, %v5857
        %v5913 = vadd.f32 %v5774, %v5856
        %v5914 = vadd.f32 %v5775, %v5860
        %v5915 = vadd.f32 %v5776, %v5862
        %v5916 = vadd.f32 %v5777, %v5861
        %v5917 = vadd.f32 %v5778, %v5865
        %v5918 = vadd.f32 %v5779, %v5867
        %v5919 = vadd.f32 %v5780, %v5866
        %v5920 = vadd.f32 %v5781, %v5870
        %v5921 = vadd.f32 %v5782, %v5872
        %v5922 = vadd.f32 %v5783, %v5871
        %v5923 = vadd.f32 %v5784, %v5875
        %v5924 = vadd.f32 %v5785, %v5877
        %v5925 = vadd.f32 %v5786, %v5876
        %v5927 = vperm.slane %v374, 0
        %v5929 = vmul.f32 %v5704, %v5927
        %v5930 = vmul.f32 %v5705, %v5927
        %v5931 = vmul.f32 %v5706, %v5927
        %v5932 = vmul.f32 %v5708, %v5927
        %v5933 = vmul.f32 %v5709, %v5927
        %v5934 = vmul.f32 %v5710, %v5927
        %v5935 = vmul.f32 %v5712, %v5927
        %v5936 = vmul.f32 %v5713, %v5927
        %v5937 = vmul.f32 %v5714, %v5927
        %v5938 = vmul.f32 %v5716, %v5927
        %v5939 = vmul.f32 %v5717, %v5927
        %v5940 = vmul.f32 %v5718, %v5927
        %v5941 = vmul.f32 %v5720, %v5927
        %v5942 = vmul.f32 %v5721, %v5927
        %v5943 = vmul.f32 %v5722, %v5927
        %v5944 = vmul.f32 %v5724, %v5927
        %v5945 = vmul.f32 %v5725, %v5927
        %v5946 = vmul.f32 %v5726, %v5927
        %v5947 = vmul.f32 %v5728, %v5927
        %v5948 = vmul.f32 %v5729, %v5927
        %v5949 = vmul.f32 %v5730, %v5927
        %v5950 = vmul.f32 %v5732, %v5927
        %v5951 = vmul.f32 %v5733, %v5927
        %v5952 = vmul.f32 %v5734, %v5927
        %v5977 = vrot.slane %v5929, 2
        %v5978 = vrot.slane %v5930, 2
        %v5979 = vsel %vm657, %v5977, %v5978
        %v5980 = vrot.slane %v5931, 2
        %v5981 = vsel %vm657, %v5978, %v5980
        %v5982 = vrot.slane %v5932, 2
        %v5983 = vrot.slane %v5933, 2
        %v5984 = vsel %vm657, %v5982, %v5983
        %v5985 = vrot.slane %v5934, 2
        %v5986 = vsel %vm657, %v5983, %v5985
        %v5987 = vrot.slane %v5935, 2
        %v5988 = vrot.slane %v5936, 2
        %v5989 = vsel %vm657, %v5987, %v5988
        %v5990 = vrot.slane %v5937, 2
        %v5991 = vsel %vm657, %v5988, %v5990
        %v5992 = vrot.slane %v5938, 2
        %v5993 = vrot.slane %v5939, 2
        %v5994 = vsel %vm657, %v5992, %v5993
        %v5995 = vrot.slane %v5940, 2
        %v5996 = vsel %vm657, %v5993, %v5995
        %v5997 = vrot.slane %v5941, 2
        %v5998 = vrot.slane %v5942, 2
        %v5999 = vsel %vm657, %v5997, %v5998
        %v6000 = vrot.slane %v5943, 2
        %v6001 = vsel %vm657, %v5998, %v6000
        %v6002 = vrot.slane %v5944, 2
        %v6003 = vrot.slane %v5945, 2
        %v6004 = vsel %vm657, %v6002, %v6003
        %v6005 = vrot.slane %v5946, 2
        %v6006 = vsel %vm657, %v6003, %v6005
        %v6007 = vrot.slane %v5947, 2
        %v6008 = vrot.slane %v5948, 2
        %v6009 = vsel %vm657, %v6007, %v6008
        %v6010 = vrot.slane %v5949, 2
        %v6011 = vsel %vm657, %v6008, %v6010
        %v6012 = vrot.slane %v5950, 2
        %v6013 = vrot.slane %v5951, 2
        %v6014 = vsel %vm657, %v6012, %v6013
        %v6015 = vrot.slane %v5952, 2
        %v6016 = vsel %vm657, %v6013, %v6015
        %v6041 = vadd.f32 %v5902, %v5979
        %v6042 = vadd.f32 %v5903, %v5981
        %v6043 = vadd.f32 %v5904, %v5980
        %v6044 = vadd.f32 %v5905, %v5984
        %v6045 = vadd.f32 %v5906, %v5986
        %v6046 = vadd.f32 %v5907, %v5985
        %v6047 = vadd.f32 %v5908, %v5989
        %v6048 = vadd.f32 %v5909, %v5991
        %v6049 = vadd.f32 %v5910, %v5990
        %v6050 = vadd.f32 %v5911, %v5994
        %v6051 = vadd.f32 %v5912, %v5996
        %v6052 = vadd.f32 %v5913, %v5995
        %v6053 = vadd.f32 %v5914, %v5999
        %v6054 = vadd.f32 %v5915, %v6001
        %v6055 = vadd.f32 %v5916, %v6000
        %v6056 = vadd.f32 %v5917, %v6004
        %v6057 = vadd.f32 %v5918, %v6006
        %v6058 = vadd.f32 %v5919, %v6005
        %v6059 = vadd.f32 %v5920, %v6009
        %v6060 = vadd.f32 %v5921, %v6011
        %v6061 = vadd.f32 %v5922, %v6010
        %v6062 = vadd.f32 %v5923, %v6014
        %v6063 = vadd.f32 %v5924, %v6016
        %v6064 = vadd.f32 %v5925, %v6015
        %v6066 = vperm.slane %v375, 0
        %v6068 = vmul.f32 %v5705, %v6066
        %v6069 = vmul.f32 %v5706, %v6066
        %v6070 = vmul.f32 %v5709, %v6066
        %v6071 = vmul.f32 %v5710, %v6066
        %v6072 = vmul.f32 %v5713, %v6066
        %v6073 = vmul.f32 %v5714, %v6066
        %v6074 = vmul.f32 %v5717, %v6066
        %v6075 = vmul.f32 %v5718, %v6066
        %v6076 = vmul.f32 %v5721, %v6066
        %v6077 = vmul.f32 %v5722, %v6066
        %v6078 = vmul.f32 %v5725, %v6066
        %v6079 = vmul.f32 %v5726, %v6066
        %v6080 = vmul.f32 %v5729, %v6066
        %v6081 = vmul.f32 %v5730, %v6066
        %v6082 = vmul.f32 %v5733, %v6066
        %v6083 = vmul.f32 %v5734, %v6066
        %v6100 = vrot.slane %v6068, 3
        %v6101 = vrot.slane %v6069, 3
        %v6102 = vsel %vm781, %v6100, %v6101
        %v6103 = vrot.slane %v6070, 3
        %v6104 = vrot.slane %v6071, 3
        %v6105 = vsel %vm781, %v6103, %v6104
        %v6106 = vrot.slane %v6072, 3
        %v6107 = vrot.slane %v6073, 3
        %v6108 = vsel %vm781, %v6106, %v6107
        %v6109 = vrot.slane %v6074, 3
        %v6110 = vrot.slane %v6075, 3
        %v6111 = vsel %vm781, %v6109, %v6110
        %v6112 = vrot.slane %v6076, 3
        %v6113 = vrot.slane %v6077, 3
        %v6114 = vsel %vm781, %v6112, %v6113
        %v6115 = vrot.slane %v6078, 3
        %v6116 = vrot.slane %v6079, 3
        %v6117 = vsel %vm781, %v6115, %v6116
        %v6118 = vrot.slane %v6080, 3
        %v6119 = vrot.slane %v6081, 3
        %v6120 = vsel %vm781, %v6118, %v6119
        %v6121 = vrot.slane %v6082, 3
        %v6122 = vrot.slane %v6083, 3
        %v6123 = vsel %vm781, %v6121, %v6122
        %v6148 = vadd.f32 %v6041, %v6100
        %v6149 = vadd.f32 %v6042, %v6102
        %v6150 = vadd.f32 %v6043, %v6101
        %v6151 = vadd.f32 %v6044, %v6103
        %v6152 = vadd.f32 %v6045, %v6105
        %v6153 = vadd.f32 %v6046, %v6104
        %v6154 = vadd.f32 %v6047, %v6106
        %v6155 = vadd.f32 %v6048, %v6108
        %v6156 = vadd.f32 %v6049, %v6107
        %v6157 = vadd.f32 %v6050, %v6109
        %v6158 = vadd.f32 %v6051, %v6111
        %v6159 = vadd.f32 %v6052, %v6110
        %v6160 = vadd.f32 %v6053, %v6112
        %v6161 = vadd.f32 %v6054, %v6114
        %v6162 = vadd.f32 %v6055, %v6113
        %v6163 = vadd.f32 %v6056, %v6115
        %v6164 = vadd.f32 %v6057, %v6117
        %v6165 = vadd.f32 %v6058, %v6116
        %v6166 = vadd.f32 %v6059, %v6118
        %v6167 = vadd.f32 %v6060, %v6120
        %v6168 = vadd.f32 %v6061, %v6119
        %v6169 = vadd.f32 %v6062, %v6121
        %v6170 = vadd.f32 %v6063, %v6123
        %v6171 = vadd.f32 %v6064, %v6122
        %v6173 = vperm.slane %v376, 0
        %v6175 = vmul.f32 %v5705, %v6173
        %v6176 = vmul.f32 %v5706, %v6173
        %v6177 = vmul.f32 %v5707, %v6173
        %v6178 = vmul.f32 %v5709, %v6173
        %v6179 = vmul.f32 %v5710, %v6173
        %v6180 = vmul.f32 %v5711, %v6173
        %v6181 = vmul.f32 %v5713, %v6173
        %v6182 = vmul.f32 %v5714, %v6173
        %v6183 = vmul.f32 %v5715, %v6173
        %v6184 = vmul.f32 %v5717, %v6173
        %v6185 = vmul.f32 %v5718, %v6173
        %v6186 = vmul.f32 %v5719, %v6173
        %v6187 = vmul.f32 %v5721, %v6173
        %v6188 = vmul.f32 %v5722, %v6173
        %v6189 = vmul.f32 %v5723, %v6173
        %v6190 = vmul.f32 %v5725, %v6173
        %v6191 = vmul.f32 %v5726, %v6173
        %v6192 = vmul.f32 %v5727, %v6173
        %v6193 = vmul.f32 %v5729, %v6173
        %v6194 = vmul.f32 %v5730, %v6173
        %v6195 = vmul.f32 %v5731, %v6173
        %v6196 = vmul.f32 %v5733, %v6173
        %v6197 = vmul.f32 %v5734, %v6173
        %v6198 = vmul.f32 %v5735, %v6173
        %v6223 = vrot.slane %v6175, 4
        %v6224 = vrot.slane %v6176, 4
        %v6225 = vsel %vm905, %v6223, %v6224
        %v6226 = vrot.slane %v6177, 4
        %v6227 = vsel %vm905, %v6224, %v6226
        %v6228 = vrot.slane %v6178, 4
        %v6229 = vrot.slane %v6179, 4
        %v6230 = vsel %vm905, %v6228, %v6229
        %v6231 = vrot.slane %v6180, 4
        %v6232 = vsel %vm905, %v6229, %v6231
        %v6233 = vrot.slane %v6181, 4
        %v6234 = vrot.slane %v6182, 4
        %v6235 = vsel %vm905, %v6233, %v6234
        %v6236 = vrot.slane %v6183, 4
        %v6237 = vsel %vm905, %v6234, %v6236
        %v6238 = vrot.slane %v6184, 4
        %v6239 = vrot.slane %v6185, 4
        %v6240 = vsel %vm905, %v6238, %v6239
        %v6241 = vrot.slane %v6186, 4
        %v6242 = vsel %vm905, %v6239, %v6241
        %v6243 = vrot.slane %v6187, 4
        %v6244 = vrot.slane %v6188, 4
        %v6245 = vsel %vm905, %v6243, %v6244
        %v6246 = vrot.slane %v6189, 4
        %v6247 = vsel %vm905, %v6244, %v6246
        %v6248 = vrot.slane %v6190, 4
        %v6249 = vrot.slane %v6191, 4
        %v6250 = vsel %vm905, %v6248, %v6249
        %v6251 = vrot.slane %v6192, 4
        %v6252 = vsel %vm905, %v6249, %v6251
        %v6253 = vrot.slane %v6193, 4
        %v6254 = vrot.slane %v6194, 4
        %v6255 = vsel %vm905, %v6253, %v6254
        %v6256 = vrot.slane %v6195, 4
        %v6257 = vsel %vm905, %v6254, %v6256
        %v6258 = vrot.slane %v6196, 4
        %v6259 = vrot.slane %v6197, 4
        %v6260 = vsel %vm905, %v6258, %v6259
        %v6261 = vrot.slane %v6198, 4
        %v6262 = vsel %vm905, %v6259, %v6261
        %v6287 = vadd.f32 %v6148, %v6223
        %v6288 = vadd.f32 %v6149, %v6225
        %v6289 = vadd.f32 %v6150, %v6227
        %v6290 = vadd.f32 %v6151, %v6228
        %v6291 = vadd.f32 %v6152, %v6230
        %v6292 = vadd.f32 %v6153, %v6232
        %v6293 = vadd.f32 %v6154, %v6233
        %v6294 = vadd.f32 %v6155, %v6235
        %v6295 = vadd.f32 %v6156, %v6237
        %v6296 = vadd.f32 %v6157, %v6238
        %v6297 = vadd.f32 %v6158, %v6240
        %v6298 = vadd.f32 %v6159, %v6242
        %v6299 = vadd.f32 %v6160, %v6243
        %v6300 = vadd.f32 %v6161, %v6245
        %v6301 = vadd.f32 %v6162, %v6247
        %v6302 = vadd.f32 %v6163, %v6248
        %v6303 = vadd.f32 %v6164, %v6250
        %v6304 = vadd.f32 %v6165, %v6252
        %v6305 = vadd.f32 %v6166, %v6253
        %v6306 = vadd.f32 %v6167, %v6255
        %v6307 = vadd.f32 %v6168, %v6257
        %v6308 = vadd.f32 %v6169, %v6258
        %v6309 = vadd.f32 %v6170, %v6260
        %v6310 = vadd.f32 %v6171, %v6262
        %v6312 = vperm.slane %v377, 0
        %v6314 = vmul.f32 %v5705, %v6312
        %v6315 = vmul.f32 %v5706, %v6312
        %v6316 = vmul.f32 %v5707, %v6312
        %v6317 = vmul.f32 %v5709, %v6312
        %v6318 = vmul.f32 %v5710, %v6312
        %v6319 = vmul.f32 %v5711, %v6312
        %v6320 = vmul.f32 %v5713, %v6312
        %v6321 = vmul.f32 %v5714, %v6312
        %v6322 = vmul.f32 %v5715, %v6312
        %v6323 = vmul.f32 %v5717, %v6312
        %v6324 = vmul.f32 %v5718, %v6312
        %v6325 = vmul.f32 %v5719, %v6312
        %v6326 = vmul.f32 %v5721, %v6312
        %v6327 = vmul.f32 %v5722, %v6312
        %v6328 = vmul.f32 %v5723, %v6312
        %v6329 = vmul.f32 %v5725, %v6312
        %v6330 = vmul.f32 %v5726, %v6312
        %v6331 = vmul.f32 %v5727, %v6312
        %v6332 = vmul.f32 %v5729, %v6312
        %v6333 = vmul.f32 %v5730, %v6312
        %v6334 = vmul.f32 %v5731, %v6312
        %v6335 = vmul.f32 %v5733, %v6312
        %v6336 = vmul.f32 %v5734, %v6312
        %v6337 = vmul.f32 %v5735, %v6312
        %v6362 = vrot.slane %v6314, 5
        %v6363 = vrot.slane %v6315, 5
        %v6364 = vsel %vm1045, %v6362, %v6363
        %v6365 = vrot.slane %v6316, 5
        %v6366 = vsel %vm1045, %v6363, %v6365
        %v6367 = vrot.slane %v6317, 5
        %v6368 = vrot.slane %v6318, 5
        %v6369 = vsel %vm1045, %v6367, %v6368
        %v6370 = vrot.slane %v6319, 5
        %v6371 = vsel %vm1045, %v6368, %v6370
        %v6372 = vrot.slane %v6320, 5
        %v6373 = vrot.slane %v6321, 5
        %v6374 = vsel %vm1045, %v6372, %v6373
        %v6375 = vrot.slane %v6322, 5
        %v6376 = vsel %vm1045, %v6373, %v6375
        %v6377 = vrot.slane %v6323, 5
        %v6378 = vrot.slane %v6324, 5
        %v6379 = vsel %vm1045, %v6377, %v6378
        %v6380 = vrot.slane %v6325, 5
        %v6381 = vsel %vm1045, %v6378, %v6380
        %v6382 = vrot.slane %v6326, 5
        %v6383 = vrot.slane %v6327, 5
        %v6384 = vsel %vm1045, %v6382, %v6383
        %v6385 = vrot.slane %v6328, 5
        %v6386 = vsel %vm1045, %v6383, %v6385
        %v6387 = vrot.slane %v6329, 5
        %v6388 = vrot.slane %v6330, 5
        %v6389 = vsel %vm1045, %v6387, %v6388
        %v6390 = vrot.slane %v6331, 5
        %v6391 = vsel %vm1045, %v6388, %v6390
        %v6392 = vrot.slane %v6332, 5
        %v6393 = vrot.slane %v6333, 5
        %v6394 = vsel %vm1045, %v6392, %v6393
        %v6395 = vrot.slane %v6334, 5
        %v6396 = vsel %vm1045, %v6393, %v6395
        %v6397 = vrot.slane %v6335, 5
        %v6398 = vrot.slane %v6336, 5
        %v6399 = vsel %vm1045, %v6397, %v6398
        %v6400 = vrot.slane %v6337, 5
        %v6401 = vsel %vm1045, %v6398, %v6400
        %v6426 = vadd.f32 %v6287, %v6362
        %v6427 = vadd.f32 %v6288, %v6364
        %v6428 = vadd.f32 %v6289, %v6366
        %v6429 = vadd.f32 %v6290, %v6367
        %v6430 = vadd.f32 %v6291, %v6369
        %v6431 = vadd.f32 %v6292, %v6371
        %v6432 = vadd.f32 %v6293, %v6372
        %v6433 = vadd.f32 %v6294, %v6374
        %v6434 = vadd.f32 %v6295, %v6376
        %v6435 = vadd.f32 %v6296, %v6377
        %v6436 = vadd.f32 %v6297, %v6379
        %v6437 = vadd.f32 %v6298, %v6381
        %v6438 = vadd.f32 %v6299, %v6382
        %v6439 = vadd.f32 %v6300, %v6384
        %v6440 = vadd.f32 %v6301, %v6386
        %v6441 = vadd.f32 %v6302, %v6387
        %v6442 = vadd.f32 %v6303, %v6389
        %v6443 = vadd.f32 %v6304, %v6391
        %v6444 = vadd.f32 %v6305, %v6392
        %v6445 = vadd.f32 %v6306, %v6394
        %v6446 = vadd.f32 %v6307, %v6396
        %v6447 = vadd.f32 %v6308, %v6397
        %v6448 = vadd.f32 %v6309, %v6399
        %v6449 = vadd.f32 %v6310, %v6401
        %v6451 = vperm.slane %v378, 0
        %v6453 = vmul.f32 %v5705, %v6451
        %v6454 = vmul.f32 %v5706, %v6451
        %v6455 = vmul.f32 %v5707, %v6451
        %v6456 = vmul.f32 %v5709, %v6451
        %v6457 = vmul.f32 %v5710, %v6451
        %v6458 = vmul.f32 %v5711, %v6451
        %v6459 = vmul.f32 %v5713, %v6451
        %v6460 = vmul.f32 %v5714, %v6451
        %v6461 = vmul.f32 %v5715, %v6451
        %v6462 = vmul.f32 %v5717, %v6451
        %v6463 = vmul.f32 %v5718, %v6451
        %v6464 = vmul.f32 %v5719, %v6451
        %v6465 = vmul.f32 %v5721, %v6451
        %v6466 = vmul.f32 %v5722, %v6451
        %v6467 = vmul.f32 %v5723, %v6451
        %v6468 = vmul.f32 %v5725, %v6451
        %v6469 = vmul.f32 %v5726, %v6451
        %v6470 = vmul.f32 %v5727, %v6451
        %v6471 = vmul.f32 %v5729, %v6451
        %v6472 = vmul.f32 %v5730, %v6451
        %v6473 = vmul.f32 %v5731, %v6451
        %v6474 = vmul.f32 %v5733, %v6451
        %v6475 = vmul.f32 %v5734, %v6451
        %v6476 = vmul.f32 %v5735, %v6451
        %v6501 = vrot.slane %v6453, 6
        %v6502 = vrot.slane %v6454, 6
        %v6503 = vsel %vm1185, %v6501, %v6502
        %v6504 = vrot.slane %v6455, 6
        %v6505 = vsel %vm1185, %v6502, %v6504
        %v6506 = vrot.slane %v6456, 6
        %v6507 = vrot.slane %v6457, 6
        %v6508 = vsel %vm1185, %v6506, %v6507
        %v6509 = vrot.slane %v6458, 6
        %v6510 = vsel %vm1185, %v6507, %v6509
        %v6511 = vrot.slane %v6459, 6
        %v6512 = vrot.slane %v6460, 6
        %v6513 = vsel %vm1185, %v6511, %v6512
        %v6514 = vrot.slane %v6461, 6
        %v6515 = vsel %vm1185, %v6512, %v6514
        %v6516 = vrot.slane %v6462, 6
        %v6517 = vrot.slane %v6463, 6
        %v6518 = vsel %vm1185, %v6516, %v6517
        %v6519 = vrot.slane %v6464, 6
        %v6520 = vsel %vm1185, %v6517, %v6519
        %v6521 = vrot.slane %v6465, 6
        %v6522 = vrot.slane %v6466, 6
        %v6523 = vsel %vm1185, %v6521, %v6522
        %v6524 = vrot.slane %v6467, 6
        %v6525 = vsel %vm1185, %v6522, %v6524
        %v6526 = vrot.slane %v6468, 6
        %v6527 = vrot.slane %v6469, 6
        %v6528 = vsel %vm1185, %v6526, %v6527
        %v6529 = vrot.slane %v6470, 6
        %v6530 = vsel %vm1185, %v6527, %v6529
        %v6531 = vrot.slane %v6471, 6
        %v6532 = vrot.slane %v6472, 6
        %v6533 = vsel %vm1185, %v6531, %v6532
        %v6534 = vrot.slane %v6473, 6
        %v6535 = vsel %vm1185, %v6532, %v6534
        %v6536 = vrot.slane %v6474, 6
        %v6537 = vrot.slane %v6475, 6
        %v6538 = vsel %vm1185, %v6536, %v6537
        %v6539 = vrot.slane %v6476, 6
        %v6540 = vsel %vm1185, %v6537, %v6539
        %v6565 = vadd.f32 %v6426, %v6501
        %v6566 = vadd.f32 %v6427, %v6503
        %v6567 = vadd.f32 %v6428, %v6505
        %v6568 = vadd.f32 %v6429, %v6506
        %v6569 = vadd.f32 %v6430, %v6508
        %v6570 = vadd.f32 %v6431, %v6510
        %v6571 = vadd.f32 %v6432, %v6511
        %v6572 = vadd.f32 %v6433, %v6513
        %v6573 = vadd.f32 %v6434, %v6515
        %v6574 = vadd.f32 %v6435, %v6516
        %v6575 = vadd.f32 %v6436, %v6518
        %v6576 = vadd.f32 %v6437, %v6520
        %v6577 = vadd.f32 %v6438, %v6521
        %v6578 = vadd.f32 %v6439, %v6523
        %v6579 = vadd.f32 %v6440, %v6525
        %v6580 = vadd.f32 %v6441, %v6526
        %v6581 = vadd.f32 %v6442, %v6528
        %v6582 = vadd.f32 %v6443, %v6530
        %v6583 = vadd.f32 %v6444, %v6531
        %v6584 = vadd.f32 %v6445, %v6533
        %v6585 = vadd.f32 %v6446, %v6535
        %v6586 = vadd.f32 %v6447, %v6536
        %v6587 = vadd.f32 %v6448, %v6538
        %v6588 = vadd.f32 %v6449, %v6540
        %v6589 = vsub.f32 0.0, %v6565
        %v6590 = vsub.f32 0.0, %v6566
        %v6591 = vsub.f32 0.0, %v6567
        %v6592 = vsub.f32 0.0, %v6568
        %v6593 = vsub.f32 0.0, %v6569
        %v6594 = vsub.f32 0.0, %v6570
        %v6595 = vsub.f32 0.0, %v6571
        %v6596 = vsub.f32 0.0, %v6572
        %v6597 = vsub.f32 0.0, %v6573
        %v6598 = vsub.f32 0.0, %v6574
        %v6599 = vsub.f32 0.0, %v6575
        %v6600 = vsub.f32 0.0, %v6576
        %v6601 = vsub.f32 0.0, %v6577
        %v6602 = vsub.f32 0.0, %v6578
        %v6603 = vsub.f32 0.0, %v6579
        %v6604 = vsub.f32 0.0, %v6580
        %v6605 = vsub.f32 0.0, %v6581
        %v6606 = vsub.f32 0.0, %v6582
        %v6607 = vsub.f32 0.0, %v6583
        %v6608 = vsub.f32 0.0, %v6584
        %v6609 = vsub.f32 0.0, %v6585
        %v6610 = vsub.f32 0.0, %v6586
        %v6611 = vsub.f32 0.0, %v6587
        %v6612 = vsub.f32 0.0, %v6588
        %v6613 = vmul.f32 %v6589, 1.442695
        %v6614 = vpow.pop %v6613
        %v6615 = vmul.f32 %v6590, 1.442695
        %v6616 = vpow.pop %v6615
        %v6617 = vmul.f32 %v6591, 1.442695
        %v6618 = vpow.pop %v6617
        %v6619 = vmul.f32 %v6592, 1.442695
        %v6620 = vpow.pop %v6619
        %v6621 = vmul.f32 %v6593, 1.442695
        %v6622 = vpow.pop %v6621
        %v6623 = vmul.f32 %v6594, 1.442695
        %v6624 = vpow.pop %v6623
        %v6625 = vmul.f32 %v6595, 1.442695
        %v6626 = vpow.pop %v6625
        %v6627 = vmul.f32 %v6596, 1.442695
        %v6628 = vpow.pop %v6627
        %v6629 = vmul.f32 %v6597, 1.442695
        %v6630 = vpow.pop %v6629
        %v6631 = vmul.f32 %v6598, 1.442695
        %v6632 = vpow.pop %v6631
        %v6633 = vmul.f32 %v6599, 1.442695
        %v6634 = vpow.pop %v6633
        %v6635 = vmul.f32 %v6600, 1.442695
        %v6636 = vpow.pop %v6635
        %v6637 = vmul.f32 %v6601, 1.442695
        %v6638 = vpow.pop %v6637
        %v6639 = vmul.f32 %v6602, 1.442695
        %v6640 = vpow.pop %v6639
        %v6641 = vmul.f32 %v6603, 1.442695
        %v6642 = vpow.pop %v6641
        %v6643 = vmul.f32 %v6604, 1.442695
        %v6644 = vpow.pop %v6643
        %v6645 = vmul.f32 %v6605, 1.442695
        %v6646 = vpow.pop %v6645
        %v6647 = vmul.f32 %v6606, 1.442695
        %v6648 = vpow.pop %v6647
        %v6649 = vmul.f32 %v6607, 1.442695
        %v6650 = vpow.pop %v6649
        %v6651 = vmul.f32 %v6608, 1.442695
        %v6652 = vpow.pop %v6651
        %v6653 = vmul.f32 %v6609, 1.442695
        %v6654 = vpow.pop %v6653
        %v6655 = vmul.f32 %v6610, 1.442695
        %v6656 = vpow.pop %v6655
        %v6657 = vmul.f32 %v6611, 1.442695
        %v6658 = vpow.pop %v6657
        %v6659 = vmul.f32 %v6612, 1.442695
        %v6660 = vpow.pop %v6659
        %v6661 = vadd.f32 %v6614, 1.0
        %v6662 = vadd.f32 %v6616, 1.0
        %v6663 = vadd.f32 %v6618, 1.0
        %v6664 = vadd.f32 %v6620, 1.0
        %v6665 = vadd.f32 %v6622, 1.0
        %v6666 = vadd.f32 %v6624, 1.0
        %v6667 = vadd.f32 %v6626, 1.0
        %v6668 = vadd.f32 %v6628, 1.0
        %v6669 = vadd.f32 %v6630, 1.0
        %v6670 = vadd.f32 %v6632, 1.0
        %v6671 = vadd.f32 %v6634, 1.0
        %v6672 = vadd.f32 %v6636, 1.0
        %v6673 = vadd.f32 %v6638, 1.0
        %v6674 = vadd.f32 %v6640, 1.0
        %v6675 = vadd.f32 %v6642, 1.0
        %v6676 = vadd.f32 %v6644, 1.0
        %v6677 = vadd.f32 %v6646, 1.0
        %v6678 = vadd.f32 %v6648, 1.0
        %v6679 = vadd.f32 %v6650, 1.0
        %v6680 = vadd.f32 %v6652, 1.0
        %v6681 = vadd.f32 %v6654, 1.0
        %v6682 = vadd.f32 %v6656, 1.0
        %v6683 = vadd.f32 %v6658, 1.0
        %v6684 = vadd.f32 %v6660, 1.0
        %v6685 = vrcp.pop %v6661
        %v6686 = vrcp.pop %v6662
        %v6687 = vrcp.pop %v6663
        %v6688 = vrcp.pop %v6664
        %v6689 = vrcp.pop %v6665
        %v6690 = vrcp.pop %v6666
        %v6691 = vrcp.pop %v6667
        %v6692 = vrcp.pop %v6668
        %v6693 = vrcp.pop %v6669
        %v6694 = vrcp.pop %v6670
        %v6695 = vrcp.pop %v6671
        %v6696 = vrcp.pop %v6672
        %v6697 = vrcp.pop %v6673
        %v6698 = vrcp.pop %v6674
        %v6699 = vrcp.pop %v6675
        %v6700 = vrcp.pop %v6676
        %v6701 = vrcp.pop %v6677
        %v6702 = vrcp.pop %v6678
        %v6703 = vrcp.pop %v6679
        %v6704 = vrcp.pop %v6680
        %v6705 = vrcp.pop %v6681
        %v6706 = vrcp.pop %v6682
        %v6707 = vrcp.pop %v6683
        %v6708 = vrcp.pop %v6684
        %v6733 = vrot.slane %v6685, 5
        %v6734 = vrot.slane %v6686, 5
        %v6735 = vsel %vm1045, %v6733, %v6734
        %v6736 = vrot.slane %v6687, 5
        %v6737 = vsel %vm1045, %v6734, %v6736
        %v6738 = vrot.slane %v6688, 5
        %v6739 = vrot.slane %v6689, 5
        %v6740 = vsel %vm1045, %v6738, %v6739
        %v6741 = vrot.slane %v6690, 5
        %v6742 = vsel %vm1045, %v6739, %v6741
        %v6743 = vrot.slane %v6691, 5
        %v6744 = vrot.slane %v6692, 5
        %v6745 = vsel %vm1045, %v6743, %v6744
        %v6746 = vrot.slane %v6693, 5
        %v6747 = vsel %vm1045, %v6744, %v6746
        %v6748 = vrot.slane %v6694, 5
        %v6749 = vrot.slane %v6695, 5
        %v6750 = vsel %vm1045, %v6748, %v6749
        %v6751 = vrot.slane %v6696, 5
        %v6752 = vsel %vm1045, %v6749, %v6751
        %v6753 = vrot.slane %v6697, 5
        %v6754 = vrot.slane %v6698, 5
        %v6755 = vsel %vm1045, %v6753, %v6754
        %v6756 = vrot.slane %v6699, 5
        %v6757 = vsel %vm1045, %v6754, %v6756
        %v6758 = vrot.slane %v6700, 5
        %v6759 = vrot.slane %v6701, 5
        %v6760 = vsel %vm1045, %v6758, %v6759
        %v6761 = vrot.slane %v6702, 5
        %v6762 = vsel %vm1045, %v6759, %v6761
        %v6763 = vrot.slane %v6703, 5
        %v6764 = vrot.slane %v6704, 5
        %v6765 = vsel %vm1045, %v6763, %v6764
        %v6766 = vrot.slane %v6705, 5
        %v6767 = vsel %vm1045, %v6764, %v6766
        %v6768 = vrot.slane %v6706, 5
        %v6769 = vrot.slane %v6707, 5
        %v6770 = vsel %vm1045, %v6768, %v6769
        %v6771 = vrot.slane %v6708, 5
        %v6772 = vsel %vm1045, %v6769, %v6771
        %v6789 = vmul.f32 %v3047, %v6735
        %v6790 = vmul.f32 %v3048, %v6737
        %v6791 = vmul.f32 %v3051, %v6740
        %v6792 = vmul.f32 %v3052, %v6742
        %v6793 = vmul.f32 %v3055, %v6745
        %v6794 = vmul.f32 %v3056, %v6747
        %v6795 = vmul.f32 %v3059, %v6750
        %v6796 = vmul.f32 %v3060, %v6752
        %v6797 = vmul.f32 %v3063, %v6755
        %v6798 = vmul.f32 %v3064, %v6757
        %v6799 = vmul.f32 %v3067, %v6760
        %v6800 = vmul.f32 %v3068, %v6762
        %v6801 = vmul.f32 %v3071, %v6765
        %v6802 = vmul.f32 %v3072, %v6767
        %v6803 = vmul.f32 %v3075, %v6770
        %v6804 = vmul.f32 %v3076, %v6772
        %6805 = vst [vmem:[%s207] sm:$0xff] %v6789
        %6806 = vst [vmem:[%s207 + $0x8] sm:$0xff] %v6790
        %6807 = vst [vmem:[%s207 + $0x10] sm:$0xff] %v6791
        %6808 = vst [vmem:[%s207 + $0x18] sm:$0xff] %v6792
        %6809 = vst [vmem:[%s207 + $0x20] sm:$0xff] %v6793
        %6810 = vst [vmem:[%s207 + $0x28] sm:$0xff] %v6794
        %6811 = vst [vmem:[%s207 + $0x30] sm:$0xff] %v6795
        %6812 = vst [vmem:[%s207 + $0x38] sm:$0xff] %v6796
        %6813 = vst [vmem:[%s207 + $0x40] sm:$0xff] %v6797
        %6814 = vst [vmem:[%s207 + $0x48] sm:$0xff] %v6798
        %6815 = vst [vmem:[%s207 + $0x50] sm:$0xff] %v6799
        %6816 = vst [vmem:[%s207 + $0x58] sm:$0xff] %v6800
        %6817 = vst [vmem:[%s207 + $0x60] sm:$0xff] %v6801
        %6818 = vst [vmem:[%s207 + $0x68] sm:$0xff] %v6802
        %6819 = vst [vmem:[%s207 + $0x70] sm:$0xff] %v6803
        %6820 = vst [vmem:[%s207 + $0x78] sm:$0xff] %v6804
        %s6821 = scalar_lea.vmem [#allocation2], 256
        %v6822 = vld [vmem:[%s6821] sm:$0xff]
        %v6823 = vld [vmem:[%s6821 + $0x8] sm:$0xff]
        %v6824 = vld [vmem:[%s6821 + $0x10] sm:$0xff]
        %v6825 = vld [vmem:[%s6821 + $0x18] sm:$0x7]
        %v6826 = vld [vmem:[%s6821 + $0x20] sm:$0xff]
        %v6827 = vld [vmem:[%s6821 + $0x28] sm:$0xff]
        %v6828 = vld [vmem:[%s6821 + $0x30] sm:$0xff]
        %v6829 = vld [vmem:[%s6821 + $0x38] sm:$0x7]
        %v6830 = vld [vmem:[%s6821 + $0x40] sm:$0xff]
        %v6831 = vld [vmem:[%s6821 + $0x48] sm:$0xff]
        %v6832 = vld [vmem:[%s6821 + $0x50] sm:$0xff]
        %v6833 = vld [vmem:[%s6821 + $0x58] sm:$0x7]
        %v6834 = vld [vmem:[%s6821 + $0x60] sm:$0xff]
        %v6835 = vld [vmem:[%s6821 + $0x68] sm:$0xff]
        %v6836 = vld [vmem:[%s6821 + $0x70] sm:$0xff]
        %v6837 = vld [vmem:[%s6821 + $0x78] sm:$0x7]
        %v6838 = vld [vmem:[%s6821 + $0x80] sm:$0xff]
        %v6839 = vld [vmem:[%s6821 + $0x88] sm:$0xff]
        %v6840 = vld [vmem:[%s6821 + $0x90] sm:$0xff]
        %v6841 = vld [vmem:[%s6821 + $0x98] sm:$0x7]
        %v6842 = vld [vmem:[%s6821 + $0xa0] sm:$0xff]
        %v6843 = vld [vmem:[%s6821 + $0xa8] sm:$0xff]
        %v6844 = vld [vmem:[%s6821 + $0xb0] sm:$0xff]
        %v6845 = vld [vmem:[%s6821 + $0xb8] sm:$0x7]
        %v6846 = vld [vmem:[%s6821 + $0xc0] sm:$0xff]
        %v6847 = vld [vmem:[%s6821 + $0xc8] sm:$0xff]
        %v6848 = vld [vmem:[%s6821 + $0xd0] sm:$0xff]
        %v6849 = vld [vmem:[%s6821 + $0xd8] sm:$0x7]
        %v6850 = vld [vmem:[%s6821 + $0xe0] sm:$0xff]
        %v6851 = vld [vmem:[%s6821 + $0xe8] sm:$0xff]
        %v6852 = vld [vmem:[%s6821 + $0xf0] sm:$0xff]
        %v6853 = vld [vmem:[%s6821 + $0xf8] sm:$0x7]
        %v6854 = vmul.f32 %v6822, %v416
        %v6855 = vmul.f32 %v6823, %v416
        %v6856 = vmul.f32 %v6824, %v416
        %v6857 = vmul.f32 %v6826, %v416
        %v6858 = vmul.f32 %v6827, %v416
        %v6859 = vmul.f32 %v6828, %v416
        %v6860 = vmul.f32 %v6830, %v416
        %v6861 = vmul.f32 %v6831, %v416
        %v6862 = vmul.f32 %v6832, %v416
        %v6863 = vmul.f32 %v6834, %v416
        %v6864 = vmul.f32 %v6835, %v416
        %v6865 = vmul.f32 %v6836, %v416
        %v6866 = vmul.f32 %v6838, %v416
        %v6867 = vmul.f32 %v6839, %v416
        %v6868 = vmul.f32 %v6840, %v416
        %v6869 = vmul.f32 %v6842, %v416
        %v6870 = vmul.f32 %v6843, %v416
        %v6871 = vmul.f32 %v6844, %v416
        %v6872 = vmul.f32 %v6846, %v416
        %v6873 = vmul.f32 %v6847, %v416
        %v6874 = vmul.f32 %v6848, %v416
        %v6875 = vmul.f32 %v6850, %v416
        %v6876 = vmul.f32 %v6851, %v416
        %v6877 = vmul.f32 %v6852, %v416
        %v6878 = vadd.f32 %v381, %v6854
        %v6879 = vadd.f32 %v381, %v6855
        %v6880 = vadd.f32 %v381, %v6856
        %v6881 = vadd.f32 %v381, %v6857
        %v6882 = vadd.f32 %v381, %v6858
        %v6883 = vadd.f32 %v381, %v6859
        %v6884 = vadd.f32 %v381, %v6860
        %v6885 = vadd.f32 %v381, %v6861
        %v6886 = vadd.f32 %v381, %v6862
        %v6887 = vadd.f32 %v381, %v6863
        %v6888 = vadd.f32 %v381, %v6864
        %v6889 = vadd.f32 %v381, %v6865
        %v6890 = vadd.f32 %v381, %v6866
        %v6891 = vadd.f32 %v381, %v6867
        %v6892 = vadd.f32 %v381, %v6868
        %v6893 = vadd.f32 %v381, %v6869
        %v6894 = vadd.f32 %v381, %v6870
        %v6895 = vadd.f32 %v381, %v6871
        %v6896 = vadd.f32 %v381, %v6872
        %v6897 = vadd.f32 %v381, %v6873
        %v6898 = vadd.f32 %v381, %v6874
        %v6899 = vadd.f32 %v381, %v6875
        %v6900 = vadd.f32 %v381, %v6876
        %v6901 = vadd.f32 %v381, %v6877
        %v6902 = vmul.f32 %v6822, %v467
        %v6903 = vmul.f32 %v6823, %v467
        %v6904 = vmul.f32 %v6824, %v467
        %v6905 = vmul.f32 %v6826, %v467
        %v6906 = vmul.f32 %v6827, %v467
        %v6907 = vmul.f32 %v6828, %v467
        %v6908 = vmul.f32 %v6830, %v467
        %v6909 = vmul.f32 %v6831, %v467
        %v6910 = vmul.f32 %v6832, %v467
        %v6911 = vmul.f32 %v6834, %v467
        %v6912 = vmul.f32 %v6835, %v467
        %v6913 = vmul.f32 %v6836, %v467
        %v6914 = vmul.f32 %v6838, %v467
        %v6915 = vmul.f32 %v6839, %v467
        %v6916 = vmul.f32 %v6840, %v467
        %v6917 = vmul.f32 %v6842, %v467
        %v6918 = vmul.f32 %v6843, %v467
        %v6919 = vmul.f32 %v6844, %v467
        %v6920 = vmul.f32 %v6846, %v467
        %v6921 = vmul.f32 %v6847, %v467
        %v6922 = vmul.f32 %v6848, %v467
        %v6923 = vmul.f32 %v6850, %v467
        %v6924 = vmul.f32 %v6851, %v467
        %v6925 = vmul.f32 %v6852, %v467
        %v6950 = vrot.slane %v6902, 1
        %v6951 = vrot.slane %v6903, 1
        %v6952 = vsel %vm517, %v6950, %v6951
        %v6953 = vrot.slane %v6904, 1
        %v6954 = vsel %vm517, %v6951, %v6953
        %v6955 = vrot.slane %v6905, 1
        %v6956 = vrot.slane %v6906, 1
        %v6957 = vsel %vm517, %v6955, %v6956
        %v6958 = vrot.slane %v6907, 1
        %v6959 = vsel %vm517, %v6956, %v6958
        %v6960 = vrot.slane %v6908, 1
        %v6961 = vrot.slane %v6909, 1
        %v6962 = vsel %vm517, %v6960, %v6961
        %v6963 = vrot.slane %v6910, 1
        %v6964 = vsel %vm517, %v6961, %v6963
        %v6965 = vrot.slane %v6911, 1
        %v6966 = vrot.slane %v6912, 1
        %v6967 = vsel %vm517, %v6965, %v6966
        %v6968 = vrot.slane %v6913, 1
        %v6969 = vsel %vm517, %v6966, %v6968
        %v6970 = vrot.slane %v6914, 1
        %v6971 = vrot.slane %v6915, 1
        %v6972 = vsel %vm517, %v6970, %v6971
        %v6973 = vrot.slane %v6916, 1
        %v6974 = vsel %vm517, %v6971, %v6973
        %v6975 = vrot.slane %v6917, 1
        %v6976 = vrot.slane %v6918, 1
        %v6977 = vsel %vm517, %v6975, %v6976
        %v6978 = vrot.slane %v6919, 1
        %v6979 = vsel %vm517, %v6976, %v6978
        %v6980 = vrot.slane %v6920, 1
        %v6981 = vrot.slane %v6921, 1
        %v6982 = vsel %vm517, %v6980, %v6981
        %v6983 = vrot.slane %v6922, 1
        %v6984 = vsel %vm517, %v6981, %v6983
        %v6985 = vrot.slane %v6923, 1
        %v6986 = vrot.slane %v6924, 1
        %v6987 = vsel %vm517, %v6985, %v6986
        %v6988 = vrot.slane %v6925, 1
        %v6989 = vsel %vm517, %v6986, %v6988
        %v7014 = vadd.f32 %v6878, %v6952
        %v7015 = vadd.f32 %v6879, %v6954
        %v7016 = vadd.f32 %v6880, %v6953
        %v7017 = vadd.f32 %v6881, %v6957
        %v7018 = vadd.f32 %v6882, %v6959
        %v7019 = vadd.f32 %v6883, %v6958
        %v7020 = vadd.f32 %v6884, %v6962
        %v7021 = vadd.f32 %v6885, %v6964
        %v7022 = vadd.f32 %v6886, %v6963
        %v7023 = vadd.f32 %v6887, %v6967
        %v7024 = vadd.f32 %v6888, %v6969
        %v7025 = vadd.f32 %v6889, %v6968
        %v7026 = vadd.f32 %v6890, %v6972
        %v7027 = vadd.f32 %v6891, %v6974
        %v7028 = vadd.f32 %v6892, %v6973
        %v7029 = vadd.f32 %v6893, %v6977
        %v7030 = vadd.f32 %v6894, %v6979
        %v7031 = vadd.f32 %v6895, %v6978
        %v7032 = vadd.f32 %v6896, %v6982
        %v7033 = vadd.f32 %v6897, %v6984
        %v7034 = vadd.f32 %v6898, %v6983
        %v7035 = vadd.f32 %v6899, %v6987
        %v7036 = vadd.f32 %v6900, %v6989
        %v7037 = vadd.f32 %v6901, %v6988
        %v7038 = vmul.f32 %v6822, %v607
        %v7039 = vmul.f32 %v6823, %v607
        %v7040 = vmul.f32 %v6824, %v607
        %v7041 = vmul.f32 %v6826, %v607
        %v7042 = vmul.f32 %v6827, %v607
        %v7043 = vmul.f32 %v6828, %v607
        %v7044 = vmul.f32 %v6830, %v607
        %v7045 = vmul.f32 %v6831, %v607
        %v7046 = vmul.f32 %v6832, %v607
        %v7047 = vmul.f32 %v6834, %v607
        %v7048 = vmul.f32 %v6835, %v607
        %v7049 = vmul.f32 %v6836, %v607
        %v7050 = vmul.f32 %v6838, %v607
        %v7051 = vmul.f32 %v6839, %v607
        %v7052 = vmul.f32 %v6840, %v607
        %v7053 = vmul.f32 %v6842, %v607
        %v7054 = vmul.f32 %v6843, %v607
        %v7055 = vmul.f32 %v6844, %v607
        %v7056 = vmul.f32 %v6846, %v607
        %v7057 = vmul.f32 %v6847, %v607
        %v7058 = vmul.f32 %v6848, %v607
        %v7059 = vmul.f32 %v6850, %v607
        %v7060 = vmul.f32 %v6851, %v607
        %v7061 = vmul.f32 %v6852, %v607
        %v7086 = vrot.slane %v7038, 2
        %v7087 = vrot.slane %v7039, 2
        %v7088 = vsel %vm657, %v7086, %v7087
        %v7089 = vrot.slane %v7040, 2
        %v7090 = vsel %vm657, %v7087, %v7089
        %v7091 = vrot.slane %v7041, 2
        %v7092 = vrot.slane %v7042, 2
        %v7093 = vsel %vm657, %v7091, %v7092
        %v7094 = vrot.slane %v7043, 2
        %v7095 = vsel %vm657, %v7092, %v7094
        %v7096 = vrot.slane %v7044, 2
        %v7097 = vrot.slane %v7045, 2
        %v7098 = vsel %vm657, %v7096, %v7097
        %v7099 = vrot.slane %v7046, 2
        %v7100 = vsel %vm657, %v7097, %v7099
        %v7101 = vrot.slane %v7047, 2
        %v7102 = vrot.slane %v7048, 2
        %v7103 = vsel %vm657, %v7101, %v7102
        %v7104 = vrot.slane %v7049, 2
        %v7105 = vsel %vm657, %v7102, %v7104
        %v7106 = vrot.slane %v7050, 2
        %v7107 = vrot.slane %v7051, 2
        %v7108 = vsel %vm657, %v7106, %v7107
        %v7109 = vrot.slane %v7052, 2
        %v7110 = vsel %vm657, %v7107, %v7109
        %v7111 = vrot.slane %v7053, 2
        %v7112 = vrot.slane %v7054, 2
        %v7113 = vsel %vm657, %v7111, %v7112
        %v7114 = vrot.slane %v7055, 2
        %v7115 = vsel %vm657, %v7112, %v7114
        %v7116 = vrot.slane %v7056, 2
        %v7117 = vrot.slane %v7057, 2
        %v7118 = vsel %vm657, %v7116, %v7117
        %v7119 = vrot.slane %v7058, 2
        %v7120 = vsel %vm657, %v7117, %v7119
        %v7121 = vrot.slane %v7059, 2
        %v7122 = vrot.slane %v7060, 2
        %v7123 = vsel %vm657, %v7121, %v7122
        %v7124 = vrot.slane %v7061, 2
        %v7125 = vsel %vm657, %v7122, %v7124
        %v7150 = vadd.f32 %v7014, %v7088
        %v7151 = vadd.f32 %v7015, %v7090
        %v7152 = vadd.f32 %v7016, %v7089
        %v7153 = vadd.f32 %v7017, %v7093
        %v7154 = vadd.f32 %v7018, %v7095
        %v7155 = vadd.f32 %v7019, %v7094
        %v7156 = vadd.f32 %v7020, %v7098
        %v7157 = vadd.f32 %v7021, %v7100
        %v7158 = vadd.f32 %v7022, %v7099
        %v7159 = vadd.f32 %v7023, %v7103
        %v7160 = vadd.f32 %v7024, %v7105
        %v7161 = vadd.f32 %v7025, %v7104
        %v7162 = vadd.f32 %v7026, %v7108
        %v7163 = vadd.f32 %v7027, %v7110
        %v7164 = vadd.f32 %v7028, %v7109
        %v7165 = vadd.f32 %v7029, %v7113
        %v7166 = vadd.f32 %v7030, %v7115
        %v7167 = vadd.f32 %v7031, %v7114
        %v7168 = vadd.f32 %v7032, %v7118
        %v7169 = vadd.f32 %v7033, %v7120
        %v7170 = vadd.f32 %v7034, %v7119
        %v7171 = vadd.f32 %v7035, %v7123
        %v7172 = vadd.f32 %v7036, %v7125
        %v7173 = vadd.f32 %v7037, %v7124
        %v7174 = vmul.f32 %v6823, %v747
        %v7175 = vmul.f32 %v6824, %v747
        %v7176 = vmul.f32 %v6827, %v747
        %v7177 = vmul.f32 %v6828, %v747
        %v7178 = vmul.f32 %v6831, %v747
        %v7179 = vmul.f32 %v6832, %v747
        %v7180 = vmul.f32 %v6835, %v747
        %v7181 = vmul.f32 %v6836, %v747
        %v7182 = vmul.f32 %v6839, %v747
        %v7183 = vmul.f32 %v6840, %v747
        %v7184 = vmul.f32 %v6843, %v747
        %v7185 = vmul.f32 %v6844, %v747
        %v7186 = vmul.f32 %v6847, %v747
        %v7187 = vmul.f32 %v6848, %v747
        %v7188 = vmul.f32 %v6851, %v747
        %v7189 = vmul.f32 %v6852, %v747
        %v7206 = vrot.slane %v7174, 3
        %v7207 = vrot.slane %v7175, 3
        %v7208 = vsel %vm781, %v7206, %v7207
        %v7209 = vrot.slane %v7176, 3
        %v7210 = vrot.slane %v7177, 3
        %v7211 = vsel %vm781, %v7209, %v7210
        %v7212 = vrot.slane %v7178, 3
        %v7213 = vrot.slane %v7179, 3
        %v7214 = vsel %vm781, %v7212, %v7213
        %v7215 = vrot.slane %v7180, 3
        %v7216 = vrot.slane %v7181, 3
        %v7217 = vsel %vm781, %v7215, %v7216
        %v7218 = vrot.slane %v7182, 3
        %v7219 = vrot.slane %v7183, 3
        %v7220 = vsel %vm781, %v7218, %v7219
        %v7221 = vrot.slane %v7184, 3
        %v7222 = vrot.slane %v7185, 3
        %v7223 = vsel %vm781, %v7221, %v7222
        %v7224 = vrot.slane %v7186, 3
        %v7225 = vrot.slane %v7187, 3
        %v7226 = vsel %vm781, %v7224, %v7225
        %v7227 = vrot.slane %v7188, 3
        %v7228 = vrot.slane %v7189, 3
        %v7229 = vsel %vm781, %v7227, %v7228
        %v7254 = vadd.f32 %v7150, %v7206
        %v7255 = vadd.f32 %v7151, %v7208
        %v7256 = vadd.f32 %v7152, %v7207
        %v7257 = vadd.f32 %v7153, %v7209
        %v7258 = vadd.f32 %v7154, %v7211
        %v7259 = vadd.f32 %v7155, %v7210
        %v7260 = vadd.f32 %v7156, %v7212
        %v7261 = vadd.f32 %v7157, %v7214
        %v7262 = vadd.f32 %v7158, %v7213
        %v7263 = vadd.f32 %v7159, %v7215
        %v7264 = vadd.f32 %v7160, %v7217
        %v7265 = vadd.f32 %v7161, %v7216
        %v7266 = vadd.f32 %v7162, %v7218
        %v7267 = vadd.f32 %v7163, %v7220
        %v7268 = vadd.f32 %v7164, %v7219
        %v7269 = vadd.f32 %v7165, %v7221
        %v7270 = vadd.f32 %v7166, %v7223
        %v7271 = vadd.f32 %v7167, %v7222
        %v7272 = vadd.f32 %v7168, %v7224
        %v7273 = vadd.f32 %v7169, %v7226
        %v7274 = vadd.f32 %v7170, %v7225
        %v7275 = vadd.f32 %v7171, %v7227
        %v7276 = vadd.f32 %v7172, %v7229
        %v7277 = vadd.f32 %v7173, %v7228
        %v7278 = vmul.f32 %v6823, %v855
        %v7279 = vmul.f32 %v6824, %v855
        %v7280 = vmul.f32 %v6825, %v855
        %v7281 = vmul.f32 %v6827, %v855
        %v7282 = vmul.f32 %v6828, %v855
        %v7283 = vmul.f32 %v6829, %v855
        %v7284 = vmul.f32 %v6831, %v855
        %v7285 = vmul.f32 %v6832, %v855
        %v7286 = vmul.f32 %v6833, %v855
        %v7287 = vmul.f32 %v6835, %v855
        %v7288 = vmul.f32 %v6836, %v855
        %v7289 = vmul.f32 %v6837, %v855
        %v7290 = vmul.f32 %v6839, %v855
        %v7291 = vmul.f32 %v6840, %v855
        %v7292 = vmul.f32 %v6841, %v855
        %v7293 = vmul.f32 %v6843, %v855
        %v7294 = vmul.f32 %v6844, %v855
        %v7295 = vmul.f32 %v6845, %v855
        %v7296 = vmul.f32 %v6847, %v855
        %v7297 = vmul.f32 %v6848, %v855
        %v7298 = vmul.f32 %v6849, %v855
        %v7299 = vmul.f32 %v6851, %v855
        %v7300 = vmul.f32 %v6852, %v855
        %v7301 = vmul.f32 %v6853, %v855
        %v7326 = vrot.slane %v7278, 4
        %v7327 = vrot.slane %v7279, 4
        %v7328 = vsel %vm905, %v7326, %v7327
        %v7329 = vrot.slane %v7280, 4
        %v7330 = vsel %vm905, %v7327, %v7329
        %v7331 = vrot.slane %v7281, 4
        %v7332 = vrot.slane %v7282, 4
        %v7333 = vsel %vm905, %v7331, %v7332
        %v7334 = vrot.slane %v7283, 4
        %v7335 = vsel %vm905, %v7332, %v7334
        %v7336 = vrot.slane %v7284, 4
        %v7337 = vrot.slane %v7285, 4
        %v7338 = vsel %vm905, %v7336, %v7337
        %v7339 = vrot.slane %v7286, 4
        %v7340 = vsel %vm905, %v7337, %v7339
        %v7341 = vrot.slane %v7287, 4
        %v7342 = vrot.slane %v7288, 4
        %v7343 = vsel %vm905, %v7341, %v7342
        %v7344 = vrot.slane %v7289, 4
        %v7345 = vsel %vm905, %v7342, %v7344
        %v7346 = vrot.slane %v7290, 4
        %v7347 = vrot.slane %v7291, 4
        %v7348 = vsel %vm905, %v7346, %v7347
        %v7349 = vrot.slane %v7292, 4
        %v7350 = vsel %vm905, %v7347, %v7349
        %v7351 = vrot.slane %v7293, 4
        %v7352 = vrot.slane %v7294, 4
        %v7353 = vsel %vm905, %v7351, %v7352
        %v7354 = vrot.slane %v7295, 4
        %v7355 = vsel %vm905, %v7352, %v7354
        %v7356 = vrot.slane %v7296, 4
        %v7357 = vrot.slane %v7297, 4
        %v7358 = vsel %vm905, %v7356, %v7357
        %v7359 = vrot.slane %v7298, 4
        %v7360 = vsel %vm905, %v7357, %v7359
        %v7361 = vrot.slane %v7299, 4
        %v7362 = vrot.slane %v7300, 4
        %v7363 = vsel %vm905, %v7361, %v7362
        %v7364 = vrot.slane %v7301, 4
        %v7365 = vsel %vm905, %v7362, %v7364
        %v7390 = vadd.f32 %v7254, %v7326
        %v7391 = vadd.f32 %v7255, %v7328
        %v7392 = vadd.f32 %v7256, %v7330
        %v7393 = vadd.f32 %v7257, %v7331
        %v7394 = vadd.f32 %v7258, %v7333
        %v7395 = vadd.f32 %v7259, %v7335
        %v7396 = vadd.f32 %v7260, %v7336
        %v7397 = vadd.f32 %v7261, %v7338
        %v7398 = vadd.f32 %v7262, %v7340
        %v7399 = vadd.f32 %v7263, %v7341
        %v7400 = vadd.f32 %v7264, %v7343
        %v7401 = vadd.f32 %v7265, %v7345
        %v7402 = vadd.f32 %v7266, %v7346
        %v7403 = vadd.f32 %v7267, %v7348
        %v7404 = vadd.f32 %v7268, %v7350
        %v7405 = vadd.f32 %v7269, %v7351
        %v7406 = vadd.f32 %v7270, %v7353
        %v7407 = vadd.f32 %v7271, %v7355
        %v7408 = vadd.f32 %v7272, %v7356
        %v7409 = vadd.f32 %v7273, %v7358
        %v7410 = vadd.f32 %v7274, %v7360
        %v7411 = vadd.f32 %v7275, %v7361
        %v7412 = vadd.f32 %v7276, %v7363
        %v7413 = vadd.f32 %v7277, %v7365
        %v7414 = vmul.f32 %v6823, %v995
        %v7415 = vmul.f32 %v6824, %v995
        %v7416 = vmul.f32 %v6825, %v995
        %v7417 = vmul.f32 %v6827, %v995
        %v7418 = vmul.f32 %v6828, %v995
        %v7419 = vmul.f32 %v6829, %v995
        %v7420 = vmul.f32 %v6831, %v995
        %v7421 = vmul.f32 %v6832, %v995
        %v7422 = vmul.f32 %v6833, %v995
        %v7423 = vmul.f32 %v6835, %v995
        %v7424 = vmul.f32 %v6836, %v995
        %v7425 = vmul.f32 %v6837, %v995
        %v7426 = vmul.f32 %v6839, %v995
        %v7427 = vmul.f32 %v6840, %v995
        %v7428 = vmul.f32 %v6841, %v995
        %v7429 = vmul.f32 %v6843, %v995
        %v7430 = vmul.f32 %v6844, %v995
        %v7431 = vmul.f32 %v6845, %v995
        %v7432 = vmul.f32 %v6847, %v995
        %v7433 = vmul.f32 %v6848, %v995
        %v7434 = vmul.f32 %v6849, %v995
        %v7435 = vmul.f32 %v6851, %v995
        %v7436 = vmul.f32 %v6852, %v995
        %v7437 = vmul.f32 %v6853, %v995
        %v7462 = vrot.slane %v7414, 5
        %v7463 = vrot.slane %v7415, 5
        %v7464 = vsel %vm1045, %v7462, %v7463
        %v7465 = vrot.slane %v7416, 5
        %v7466 = vsel %vm1045, %v7463, %v7465
        %v7467 = vrot.slane %v7417, 5
        %v7468 = vrot.slane %v7418, 5
        %v7469 = vsel %vm1045, %v7467, %v7468
        %v7470 = vrot.slane %v7419, 5
        %v7471 = vsel %vm1045, %v7468, %v7470
        %v7472 = vrot.slane %v7420, 5
        %v7473 = vrot.slane %v7421, 5
        %v7474 = vsel %vm1045, %v7472, %v7473
        %v7475 = vrot.slane %v7422, 5
        %v7476 = vsel %vm1045, %v7473, %v7475
        %v7477 = vrot.slane %v7423, 5
        %v7478 = vrot.slane %v7424, 5
        %v7479 = vsel %vm1045, %v7477, %v7478
        %v7480 = vrot.slane %v7425, 5
        %v7481 = vsel %vm1045, %v7478, %v7480
        %v7482 = vrot.slane %v7426, 5
        %v7483 = vrot.slane %v7427, 5
        %v7484 = vsel %vm1045, %v7482, %v7483
        %v7485 = vrot.slane %v7428, 5
        %v7486 = vsel %vm1045, %v7483, %v7485
        %v7487 = vrot.slane %v7429, 5
        %v7488 = vrot.slane %v7430, 5
        %v7489 = vsel %vm1045, %v7487, %v7488
        %v7490 = vrot.slane %v7431, 5
        %v7491 = vsel %vm1045, %v7488, %v7490
        %v7492 = vrot.slane %v7432, 5
        %v7493 = vrot.slane %v7433, 5
        %v7494 = vsel %vm1045, %v7492, %v7493
        %v7495 = vrot.slane %v7434, 5
        %v7496 = vsel %vm1045, %v7493, %v7495
        %v7497 = vrot.slane %v7435, 5
        %v7498 = vrot.slane %v7436, 5
        %v7499 = vsel %vm1045, %v7497, %v7498
        %v7500 = vrot.slane %v7437, 5
        %v7501 = vsel %vm1045, %v7498, %v7500
        %v7526 = vadd.f32 %v7390, %v7462
        %v7527 = vadd.f32 %v7391, %v7464
        %v7528 = vadd.f32 %v7392, %v7466
        %v7529 = vadd.f32 %v7393, %v7467
        %v7530 = vadd.f32 %v7394, %v7469
        %v7531 = vadd.f32 %v7395, %v7471
        %v7532 = vadd.f32 %v7396, %v7472
        %v7533 = vadd.f32 %v7397, %v7474
        %v7534 = vadd.f32 %v7398, %v7476
        %v7535 = vadd.f32 %v7399, %v7477
        %v7536 = vadd.f32 %v7400, %v7479
        %v7537 = vadd.f32 %v7401, %v7481
        %v7538 = vadd.f32 %v7402, %v7482
        %v7539 = vadd.f32 %v7403, %v7484
        %v7540 = vadd.f32 %v7404, %v7486
        %v7541 = vadd.f32 %v7405, %v7487
        %v7542 = vadd.f32 %v7406, %v7489
        %v7543 = vadd.f32 %v7407, %v7491
        %v7544 = vadd.f32 %v7408, %v7492
        %v7545 = vadd.f32 %v7409, %v7494
        %v7546 = vadd.f32 %v7410, %v7496
        %v7547 = vadd.f32 %v7411, %v7497
        %v7548 = vadd.f32 %v7412, %v7499
        %v7549 = vadd.f32 %v7413, %v7501
        %v7550 = vmul.f32 %v6823, %v1135
        %v7551 = vmul.f32 %v6824, %v1135
        %v7552 = vmul.f32 %v6825, %v1135
        %v7553 = vmul.f32 %v6827, %v1135
        %v7554 = vmul.f32 %v6828, %v1135
        %v7555 = vmul.f32 %v6829, %v1135
        %v7556 = vmul.f32 %v6831, %v1135
        %v7557 = vmul.f32 %v6832, %v1135
        %v7558 = vmul.f32 %v6833, %v1135
        %v7559 = vmul.f32 %v6835, %v1135
        %v7560 = vmul.f32 %v6836, %v1135
        %v7561 = vmul.f32 %v6837, %v1135
        %v7562 = vmul.f32 %v6839, %v1135
        %v7563 = vmul.f32 %v6840, %v1135
        %v7564 = vmul.f32 %v6841, %v1135
        %v7565 = vmul.f32 %v6843, %v1135
        %v7566 = vmul.f32 %v6844, %v1135
        %v7567 = vmul.f32 %v6845, %v1135
        %v7568 = vmul.f32 %v6847, %v1135
        %v7569 = vmul.f32 %v6848, %v1135
        %v7570 = vmul.f32 %v6849, %v1135
        %v7571 = vmul.f32 %v6851, %v1135
        %v7572 = vmul.f32 %v6852, %v1135
        %v7573 = vmul.f32 %v6853, %v1135
        %v7598 = vrot.slane %v7550, 6
        %v7599 = vrot.slane %v7551, 6
        %v7600 = vsel %vm1185, %v7598, %v7599
        %v7601 = vrot.slane %v7552, 6
        %v7602 = vsel %vm1185, %v7599, %v7601
        %v7603 = vrot.slane %v7553, 6
        %v7604 = vrot.slane %v7554, 6
        %v7605 = vsel %vm1185, %v7603, %v7604
        %v7606 = vrot.slane %v7555, 6
        %v7607 = vsel %vm1185, %v7604, %v7606
        %v7608 = vrot.slane %v7556, 6
        %v7609 = vrot.slane %v7557, 6
        %v7610 = vsel %vm1185, %v7608, %v7609
        %v7611 = vrot.slane %v7558, 6
        %v7612 = vsel %vm1185, %v7609, %v7611
        %v7613 = vrot.slane %v7559, 6
        %v7614 = vrot.slane %v7560, 6
        %v7615 = vsel %vm1185, %v7613, %v7614
        %v7616 = vrot.slane %v7561, 6
        %v7617 = vsel %vm1185, %v7614, %v7616
        %v7618 = vrot.slane %v7562, 6
        %v7619 = vrot.slane %v7563, 6
        %v7620 = vsel %vm1185, %v7618, %v7619
        %v7621 = vrot.slane %v7564, 6
        %v7622 = vsel %vm1185, %v7619, %v7621
        %v7623 = vrot.slane %v7565, 6
        %v7624 = vrot.slane %v7566, 6
        %v7625 = vsel %vm1185, %v7623, %v7624
        %v7626 = vrot.slane %v7567, 6
        %v7627 = vsel %vm1185, %v7624, %v7626
        %v7628 = vrot.slane %v7568, 6
        %v7629 = vrot.slane %v7569, 6
        %v7630 = vsel %vm1185, %v7628, %v7629
        %v7631 = vrot.slane %v7570, 6
        %v7632 = vsel %vm1185, %v7629, %v7631
        %v7633 = vrot.slane %v7571, 6
        %v7634 = vrot.slane %v7572, 6
        %v7635 = vsel %vm1185, %v7633, %v7634
        %v7636 = vrot.slane %v7573, 6
        %v7637 = vsel %vm1185, %v7634, %v7636
        %v7662 = vadd.f32 %v7526, %v7598
        %v7663 = vadd.f32 %v7527, %v7600
        %v7664 = vadd.f32 %v7528, %v7602
        %v7665 = vadd.f32 %v7529, %v7603
        %v7666 = vadd.f32 %v7530, %v7605
        %v7667 = vadd.f32 %v7531, %v7607
        %v7668 = vadd.f32 %v7532, %v7608
        %v7669 = vadd.f32 %v7533, %v7610
        %v7670 = vadd.f32 %v7534, %v7612
        %v7671 = vadd.f32 %v7535, %v7613
        %v7672 = vadd.f32 %v7536, %v7615
        %v7673 = vadd.f32 %v7537, %v7617
        %v7674 = vadd.f32 %v7538, %v7618
        %v7675 = vadd.f32 %v7539, %v7620
        %v7676 = vadd.f32 %v7540, %v7622
        %v7677 = vadd.f32 %v7541, %v7623
        %v7678 = vadd.f32 %v7542, %v7625
        %v7679 = vadd.f32 %v7543, %v7627
        %v7680 = vadd.f32 %v7544, %v7628
        %v7681 = vadd.f32 %v7545, %v7630
        %v7682 = vadd.f32 %v7546, %v7632
        %v7683 = vadd.f32 %v7547, %v7633
        %v7684 = vadd.f32 %v7548, %v7635
        %v7685 = vadd.f32 %v7549, %v7637
        %s7686 = scalar_lea.vmem [#allocation2], 288
        %v7687 = vld [vmem:[%s7686] sm:$0xff]
        %v7688 = vld [vmem:[%s7686 + $0x8] sm:$0xff]
        %v7689 = vld [vmem:[%s7686 + $0x10] sm:$0xff]
        %v7690 = vld [vmem:[%s7686 + $0x18] sm:$0x7]
        %v7691 = vld [vmem:[%s7686 + $0x20] sm:$0xff]
        %v7692 = vld [vmem:[%s7686 + $0x28] sm:$0xff]
        %v7693 = vld [vmem:[%s7686 + $0x30] sm:$0xff]
        %v7694 = vld [vmem:[%s7686 + $0x38] sm:$0x7]
        %v7695 = vld [vmem:[%s7686 + $0x40] sm:$0xff]
        %v7696 = vld [vmem:[%s7686 + $0x48] sm:$0xff]
        %v7697 = vld [vmem:[%s7686 + $0x50] sm:$0xff]
        %v7698 = vld [vmem:[%s7686 + $0x58] sm:$0x7]
        %v7699 = vld [vmem:[%s7686 + $0x60] sm:$0xff]
        %v7700 = vld [vmem:[%s7686 + $0x68] sm:$0xff]
        %v7701 = vld [vmem:[%s7686 + $0x70] sm:$0xff]
        %v7702 = vld [vmem:[%s7686 + $0x78] sm:$0x7]
        %v7703 = vld [vmem:[%s7686 + $0x80] sm:$0xff]
        %v7704 = vld [vmem:[%s7686 + $0x88] sm:$0xff]
        %v7705 = vld [vmem:[%s7686 + $0x90] sm:$0xff]
        %v7706 = vld [vmem:[%s7686 + $0x98] sm:$0x7]
        %v7707 = vld [vmem:[%s7686 + $0xa0] sm:$0xff]
        %v7708 = vld [vmem:[%s7686 + $0xa8] sm:$0xff]
        %v7709 = vld [vmem:[%s7686 + $0xb0] sm:$0xff]
        %v7710 = vld [vmem:[%s7686 + $0xb8] sm:$0x7]
        %v7711 = vld [vmem:[%s7686 + $0xc0] sm:$0xff]
        %v7712 = vld [vmem:[%s7686 + $0xc8] sm:$0xff]
        %v7713 = vld [vmem:[%s7686 + $0xd0] sm:$0xff]
        %v7714 = vld [vmem:[%s7686 + $0xd8] sm:$0x7]
        %v7715 = vld [vmem:[%s7686 + $0xe0] sm:$0xff]
        %v7716 = vld [vmem:[%s7686 + $0xe8] sm:$0xff]
        %v7717 = vld [vmem:[%s7686 + $0xf0] sm:$0xff]
        %v7718 = vld [vmem:[%s7686 + $0xf8] sm:$0x7]
        %v7719 = vmul.f32 %v7687, %v1308
        %v7720 = vmul.f32 %v7688, %v1308
        %v7721 = vmul.f32 %v7689, %v1308
        %v7722 = vmul.f32 %v7691, %v1308
        %v7723 = vmul.f32 %v7692, %v1308
        %v7724 = vmul.f32 %v7693, %v1308
        %v7725 = vmul.f32 %v7695, %v1308
        %v7726 = vmul.f32 %v7696, %v1308
        %v7727 = vmul.f32 %v7697, %v1308
        %v7728 = vmul.f32 %v7699, %v1308
        %v7729 = vmul.f32 %v7700, %v1308
        %v7730 = vmul.f32 %v7701, %v1308
        %v7731 = vmul.f32 %v7703, %v1308
        %v7732 = vmul.f32 %v7704, %v1308
        %v7733 = vmul.f32 %v7705, %v1308
        %v7734 = vmul.f32 %v7707, %v1308
        %v7735 = vmul.f32 %v7708, %v1308
        %v7736 = vmul.f32 %v7709, %v1308
        %v7737 = vmul.f32 %v7711, %v1308
        %v7738 = vmul.f32 %v7712, %v1308
        %v7739 = vmul.f32 %v7713, %v1308
        %v7740 = vmul.f32 %v7715, %v1308
        %v7741 = vmul.f32 %v7716, %v1308
        %v7742 = vmul.f32 %v7717, %v1308
        %v7743 = vadd.f32 %v7662, %v7719
        %v7744 = vadd.f32 %v7663, %v7720
        %v7745 = vadd.f32 %v7664, %v7721
        %v7746 = vadd.f32 %v7665, %v7722
        %v7747 = vadd.f32 %v7666, %v7723
        %v7748 = vadd.f32 %v7667, %v7724
        %v7749 = vadd.f32 %v7668, %v7725
        %v7750 = vadd.f32 %v7669, %v7726
        %v7751 = vadd.f32 %v7670, %v7727
        %v7752 = vadd.f32 %v7671, %v7728
        %v7753 = vadd.f32 %v7672, %v7729
        %v7754 = vadd.f32 %v7673, %v7730
        %v7755 = vadd.f32 %v7674, %v7731
        %v7756 = vadd.f32 %v7675, %v7732
        %v7757 = vadd.f32 %v7676, %v7733
        %v7758 = vadd.f32 %v7677, %v7734
        %v7759 = vadd.f32 %v7678, %v7735
        %v7760 = vadd.f32 %v7679, %v7736
        %v7761 = vadd.f32 %v7680, %v7737
        %v7762 = vadd.f32 %v7681, %v7738
        %v7763 = vadd.f32 %v7682, %v7739
        %v7764 = vadd.f32 %v7683, %v7740
        %v7765 = vadd.f32 %v7684, %v7741
        %v7766 = vadd.f32 %v7685, %v7742
        %v7767 = vmul.f32 %v7687, %v1359
        %v7768 = vmul.f32 %v7688, %v1359
        %v7769 = vmul.f32 %v7689, %v1359
        %v7770 = vmul.f32 %v7691, %v1359
        %v7771 = vmul.f32 %v7692, %v1359
        %v7772 = vmul.f32 %v7693, %v1359
        %v7773 = vmul.f32 %v7695, %v1359
        %v7774 = vmul.f32 %v7696, %v1359
        %v7775 = vmul.f32 %v7697, %v1359
        %v7776 = vmul.f32 %v7699, %v1359
        %v7777 = vmul.f32 %v7700, %v1359
        %v7778 = vmul.f32 %v7701, %v1359
        %v7779 = vmul.f32 %v7703, %v1359
        %v7780 = vmul.f32 %v7704, %v1359
        %v7781 = vmul.f32 %v7705, %v1359
        %v7782 = vmul.f32 %v7707, %v1359
        %v7783 = vmul.f32 %v7708, %v1359
        %v7784 = vmul.f32 %v7709, %v1359
        %v7785 = vmul.f32 %v7711, %v1359
        %v7786 = vmul.f32 %v7712, %v1359
        %v7787 = vmul.f32 %v7713, %v1359
        %v7788 = vmul.f32 %v7715, %v1359
        %v7789 = vmul.f32 %v7716, %v1359
        %v7790 = vmul.f32 %v7717, %v1359
        %v7815 = vrot.slane %v7767, 1
        %v7816 = vrot.slane %v7768, 1
        %v7817 = vsel %vm517, %v7815, %v7816
        %v7818 = vrot.slane %v7769, 1
        %v7819 = vsel %vm517, %v7816, %v7818
        %v7820 = vrot.slane %v7770, 1
        %v7821 = vrot.slane %v7771, 1
        %v7822 = vsel %vm517, %v7820, %v7821
        %v7823 = vrot.slane %v7772, 1
        %v7824 = vsel %vm517, %v7821, %v7823
        %v7825 = vrot.slane %v7773, 1
        %v7826 = vrot.slane %v7774, 1
        %v7827 = vsel %vm517, %v7825, %v7826
        %v7828 = vrot.slane %v7775, 1
        %v7829 = vsel %vm517, %v7826, %v7828
        %v7830 = vrot.slane %v7776, 1
        %v7831 = vrot.slane %v7777, 1
        %v7832 = vsel %vm517, %v7830, %v7831
        %v7833 = vrot.slane %v7778, 1
        %v7834 = vsel %vm517, %v7831, %v7833
        %v7835 = vrot.slane %v7779, 1
        %v7836 = vrot.slane %v7780, 1
        %v7837 = vsel %vm517, %v7835, %v7836
        %v7838 = vrot.slane %v7781, 1
        %v7839 = vsel %vm517, %v7836, %v7838
        %v7840 = vrot.slane %v7782, 1
        %v7841 = vrot.slane %v7783, 1
        %v7842 = vsel %vm517, %v7840, %v7841
        %v7843 = vrot.slane %v7784, 1
        %v7844 = vsel %vm517, %v7841, %v7843
        %v7845 = vrot.slane %v7785, 1
        %v7846 = vrot.slane %v7786, 1
        %v7847 = vsel %vm517, %v7845, %v7846
        %v7848 = vrot.slane %v7787, 1
        %v7849 = vsel %vm517, %v7846, %v7848
        %v7850 = vrot.slane %v7788, 1
        %v7851 = vrot.slane %v7789, 1
        %v7852 = vsel %vm517, %v7850, %v7851
        %v7853 = vrot.slane %v7790, 1
        %v7854 = vsel %vm517, %v7851, %v7853
        %v7879 = vadd.f32 %v7743, %v7817
        %v7880 = vadd.f32 %v7744, %v7819
        %v7881 = vadd.f32 %v7745, %v7818
        %v7882 = vadd.f32 %v7746, %v7822
        %v7883 = vadd.f32 %v7747, %v7824
        %v7884 = vadd.f32 %v7748, %v7823
        %v7885 = vadd.f32 %v7749, %v7827
        %v7886 = vadd.f32 %v7750, %v7829
        %v7887 = vadd.f32 %v7751, %v7828
        %v7888 = vadd.f32 %v7752, %v7832
        %v7889 = vadd.f32 %v7753, %v7834
        %v7890 = vadd.f32 %v7754, %v7833
        %v7891 = vadd.f32 %v7755, %v7837
        %v7892 = vadd.f32 %v7756, %v7839
        %v7893 = vadd.f32 %v7757, %v7838
        %v7894 = vadd.f32 %v7758, %v7842
        %v7895 = vadd.f32 %v7759, %v7844
        %v7896 = vadd.f32 %v7760, %v7843
        %v7897 = vadd.f32 %v7761, %v7847
        %v7898 = vadd.f32 %v7762, %v7849
        %v7899 = vadd.f32 %v7763, %v7848
        %v7900 = vadd.f32 %v7764, %v7852
        %v7901 = vadd.f32 %v7765, %v7854
        %v7902 = vadd.f32 %v7766, %v7853
        %v7903 = vmul.f32 %v7687, %v1498
        %v7904 = vmul.f32 %v7688, %v1498
        %v7905 = vmul.f32 %v7689, %v1498
        %v7906 = vmul.f32 %v7691, %v1498
        %v7907 = vmul.f32 %v7692, %v1498
        %v7908 = vmul.f32 %v7693, %v1498
        %v7909 = vmul.f32 %v7695, %v1498
        %v7910 = vmul.f32 %v7696, %v1498
        %v7911 = vmul.f32 %v7697, %v1498
        %v7912 = vmul.f32 %v7699, %v1498
        %v7913 = vmul.f32 %v7700, %v1498
        %v7914 = vmul.f32 %v7701, %v1498
        %v7915 = vmul.f32 %v7703, %v1498
        %v7916 = vmul.f32 %v7704, %v1498
        %v7917 = vmul.f32 %v7705, %v1498
        %v7918 = vmul.f32 %v7707, %v1498
        %v7919 = vmul.f32 %v7708, %v1498
        %v7920 = vmul.f32 %v7709, %v1498
        %v7921 = vmul.f32 %v7711, %v1498
        %v7922 = vmul.f32 %v7712, %v1498
        %v7923 = vmul.f32 %v7713, %v1498
        %v7924 = vmul.f32 %v7715, %v1498
        %v7925 = vmul.f32 %v7716, %v1498
        %v7926 = vmul.f32 %v7717, %v1498
        %v7951 = vrot.slane %v7903, 2
        %v7952 = vrot.slane %v7904, 2
        %v7953 = vsel %vm657, %v7951, %v7952
        %v7954 = vrot.slane %v7905, 2
        %v7955 = vsel %vm657, %v7952, %v7954
        %v7956 = vrot.slane %v7906, 2
        %v7957 = vrot.slane %v7907, 2
        %v7958 = vsel %vm657, %v7956, %v7957
        %v7959 = vrot.slane %v7908, 2
        %v7960 = vsel %vm657, %v7957, %v7959
        %v7961 = vrot.slane %v7909, 2
        %v7962 = vrot.slane %v7910, 2
        %v7963 = vsel %vm657, %v7961, %v7962
        %v7964 = vrot.slane %v7911, 2
        %v7965 = vsel %vm657, %v7962, %v7964
        %v7966 = vrot.slane %v7912, 2
        %v7967 = vrot.slane %v7913, 2
        %v7968 = vsel %vm657, %v7966, %v7967
        %v7969 = vrot.slane %v7914, 2
        %v7970 = vsel %vm657, %v7967, %v7969
        %v7971 = vrot.slane %v7915, 2
        %v7972 = vrot.slane %v7916, 2
        %v7973 = vsel %vm657, %v7971, %v7972
        %v7974 = vrot.slane %v7917, 2
        %v7975 = vsel %vm657, %v7972, %v7974
        %v7976 = vrot.slane %v7918, 2
        %v7977 = vrot.slane %v7919, 2
        %v7978 = vsel %vm657, %v7976, %v7977
        %v7979 = vrot.slane %v7920, 2
        %v7980 = vsel %vm657, %v7977, %v7979
        %v7981 = vrot.slane %v7921, 2
        %v7982 = vrot.slane %v7922, 2
        %v7983 = vsel %vm657, %v7981, %v7982
        %v7984 = vrot.slane %v7923, 2
        %v7985 = vsel %vm657, %v7982, %v7984
        %v7986 = vrot.slane %v7924, 2
        %v7987 = vrot.slane %v7925, 2
        %v7988 = vsel %vm657, %v7986, %v7987
        %v7989 = vrot.slane %v7926, 2
        %v7990 = vsel %vm657, %v7987, %v7989
        %v8015 = vadd.f32 %v7879, %v7953
        %v8016 = vadd.f32 %v7880, %v7955
        %v8017 = vadd.f32 %v7881, %v7954
        %v8018 = vadd.f32 %v7882, %v7958
        %v8019 = vadd.f32 %v7883, %v7960
        %v8020 = vadd.f32 %v7884, %v7959
        %v8021 = vadd.f32 %v7885, %v7963
        %v8022 = vadd.f32 %v7886, %v7965
        %v8023 = vadd.f32 %v7887, %v7964
        %v8024 = vadd.f32 %v7888, %v7968
        %v8025 = vadd.f32 %v7889, %v7970
        %v8026 = vadd.f32 %v7890, %v7969
        %v8027 = vadd.f32 %v7891, %v7973
        %v8028 = vadd.f32 %v7892, %v7975
        %v8029 = vadd.f32 %v7893, %v7974
        %v8030 = vadd.f32 %v7894, %v7978
        %v8031 = vadd.f32 %v7895, %v7980
        %v8032 = vadd.f32 %v7896, %v7979
        %v8033 = vadd.f32 %v7897, %v7983
        %v8034 = vadd.f32 %v7898, %v7985
        %v8035 = vadd.f32 %v7899, %v7984
        %v8036 = vadd.f32 %v7900, %v7988
        %v8037 = vadd.f32 %v7901, %v7990
        %v8038 = vadd.f32 %v7902, %v7989
        %v8039 = vmul.f32 %v7688, %v1637
        %v8040 = vmul.f32 %v7689, %v1637
        %v8041 = vmul.f32 %v7692, %v1637
        %v8042 = vmul.f32 %v7693, %v1637
        %v8043 = vmul.f32 %v7696, %v1637
        %v8044 = vmul.f32 %v7697, %v1637
        %v8045 = vmul.f32 %v7700, %v1637
        %v8046 = vmul.f32 %v7701, %v1637
        %v8047 = vmul.f32 %v7704, %v1637
        %v8048 = vmul.f32 %v7705, %v1637
        %v8049 = vmul.f32 %v7708, %v1637
        %v8050 = vmul.f32 %v7709, %v1637
        %v8051 = vmul.f32 %v7712, %v1637
        %v8052 = vmul.f32 %v7713, %v1637
        %v8053 = vmul.f32 %v7716, %v1637
        %v8054 = vmul.f32 %v7717, %v1637
        %v8071 = vrot.slane %v8039, 3
        %v8072 = vrot.slane %v8040, 3
        %v8073 = vsel %vm781, %v8071, %v8072
        %v8074 = vrot.slane %v8041, 3
        %v8075 = vrot.slane %v8042, 3
        %v8076 = vsel %vm781, %v8074, %v8075
        %v8077 = vrot.slane %v8043, 3
        %v8078 = vrot.slane %v8044, 3
        %v8079 = vsel %vm781, %v8077, %v8078
        %v8080 = vrot.slane %v8045, 3
        %v8081 = vrot.slane %v8046, 3
        %v8082 = vsel %vm781, %v8080, %v8081
        %v8083 = vrot.slane %v8047, 3
        %v8084 = vrot.slane %v8048, 3
        %v8085 = vsel %vm781, %v8083, %v8084
        %v8086 = vrot.slane %v8049, 3
        %v8087 = vrot.slane %v8050, 3
        %v8088 = vsel %vm781, %v8086, %v8087
        %v8089 = vrot.slane %v8051, 3
        %v8090 = vrot.slane %v8052, 3
        %v8091 = vsel %vm781, %v8089, %v8090
        %v8092 = vrot.slane %v8053, 3
        %v8093 = vrot.slane %v8054, 3
        %v8094 = vsel %vm781, %v8092, %v8093
        %v8119 = vadd.f32 %v8015, %v8071
        %v8120 = vadd.f32 %v8016, %v8073
        %v8121 = vadd.f32 %v8017, %v8072
        %v8122 = vadd.f32 %v8018, %v8074
        %v8123 = vadd.f32 %v8019, %v8076
        %v8124 = vadd.f32 %v8020, %v8075
        %v8125 = vadd.f32 %v8021, %v8077
        %v8126 = vadd.f32 %v8022, %v8079
        %v8127 = vadd.f32 %v8023, %v8078
        %v8128 = vadd.f32 %v8024, %v8080
        %v8129 = vadd.f32 %v8025, %v8082
        %v8130 = vadd.f32 %v8026, %v8081
        %v8131 = vadd.f32 %v8027, %v8083
        %v8132 = vadd.f32 %v8028, %v8085
        %v8133 = vadd.f32 %v8029, %v8084
        %v8134 = vadd.f32 %v8030, %v8086
        %v8135 = vadd.f32 %v8031, %v8088
        %v8136 = vadd.f32 %v8032, %v8087
        %v8137 = vadd.f32 %v8033, %v8089
        %v8138 = vadd.f32 %v8034, %v8091
        %v8139 = vadd.f32 %v8035, %v8090
        %v8140 = vadd.f32 %v8036, %v8092
        %v8141 = vadd.f32 %v8037, %v8094
        %v8142 = vadd.f32 %v8038, %v8093
        %v8143 = vmul.f32 %v7688, %v1744
        %v8144 = vmul.f32 %v7689, %v1744
        %v8145 = vmul.f32 %v7690, %v1744
        %v8146 = vmul.f32 %v7692, %v1744
        %v8147 = vmul.f32 %v7693, %v1744
        %v8148 = vmul.f32 %v7694, %v1744
        %v8149 = vmul.f32 %v7696, %v1744
        %v8150 = vmul.f32 %v7697, %v1744
        %v8151 = vmul.f32 %v7698, %v1744
        %v8152 = vmul.f32 %v7700, %v1744
        %v8153 = vmul.f32 %v7701, %v1744
        %v8154 = vmul.f32 %v7702, %v1744
        %v8155 = vmul.f32 %v7704, %v1744
        %v8156 = vmul.f32 %v7705, %v1744
        %v8157 = vmul.f32 %v7706, %v1744
        %v8158 = vmul.f32 %v7708, %v1744
        %v8159 = vmul.f32 %v7709, %v1744
        %v8160 = vmul.f32 %v7710, %v1744
        %v8161 = vmul.f32 %v7712, %v1744
        %v8162 = vmul.f32 %v7713, %v1744
        %v8163 = vmul.f32 %v7714, %v1744
        %v8164 = vmul.f32 %v7716, %v1744
        %v8165 = vmul.f32 %v7717, %v1744
        %v8166 = vmul.f32 %v7718, %v1744
        %v8191 = vrot.slane %v8143, 4
        %v8192 = vrot.slane %v8144, 4
        %v8193 = vsel %vm905, %v8191, %v8192
        %v8194 = vrot.slane %v8145, 4
        %v8195 = vsel %vm905, %v8192, %v8194
        %v8196 = vrot.slane %v8146, 4
        %v8197 = vrot.slane %v8147, 4
        %v8198 = vsel %vm905, %v8196, %v8197
        %v8199 = vrot.slane %v8148, 4
        %v8200 = vsel %vm905, %v8197, %v8199
        %v8201 = vrot.slane %v8149, 4
        %v8202 = vrot.slane %v8150, 4
        %v8203 = vsel %vm905, %v8201, %v8202
        %v8204 = vrot.slane %v8151, 4
        %v8205 = vsel %vm905, %v8202, %v8204
        %v8206 = vrot.slane %v8152, 4
        %v8207 = vrot.slane %v8153, 4
        %v8208 = vsel %vm905, %v8206, %v8207
        %v8209 = vrot.slane %v8154, 4
        %v8210 = vsel %vm905, %v8207, %v8209
        %v8211 = vrot.slane %v8155, 4
        %v8212 = vrot.slane %v8156, 4
        %v8213 = vsel %vm905, %v8211, %v8212
        %v8214 = vrot.slane %v8157, 4
        %v8215 = vsel %vm905, %v8212, %v8214
        %v8216 = vrot.slane %v8158, 4
        %v8217 = vrot.slane %v8159, 4
        %v8218 = vsel %vm905, %v8216, %v8217
        %v8219 = vrot.slane %v8160, 4
        %v8220 = vsel %vm905, %v8217, %v8219
        %v8221 = vrot.slane %v8161, 4
        %v8222 = vrot.slane %v8162, 4
        %v8223 = vsel %vm905, %v8221, %v8222
        %v8224 = vrot.slane %v8163, 4
        %v8225 = vsel %vm905, %v8222, %v8224
        %v8226 = vrot.slane %v8164, 4
        %v8227 = vrot.slane %v8165, 4
        %v8228 = vsel %vm905, %v8226, %v8227
        %v8229 = vrot.slane %v8166, 4
        %v8230 = vsel %vm905, %v8227, %v8229
        %v8255 = vadd.f32 %v8119, %v8191
        %v8256 = vadd.f32 %v8120, %v8193
        %v8257 = vadd.f32 %v8121, %v8195
        %v8258 = vadd.f32 %v8122, %v8196
        %v8259 = vadd.f32 %v8123, %v8198
        %v8260 = vadd.f32 %v8124, %v8200
        %v8261 = vadd.f32 %v8125, %v8201
        %v8262 = vadd.f32 %v8126, %v8203
        %v8263 = vadd.f32 %v8127, %v8205
        %v8264 = vadd.f32 %v8128, %v8206
        %v8265 = vadd.f32 %v8129, %v8208
        %v8266 = vadd.f32 %v8130, %v8210
        %v8267 = vadd.f32 %v8131, %v8211
        %v8268 = vadd.f32 %v8132, %v8213
        %v8269 = vadd.f32 %v8133, %v8215
        %v8270 = vadd.f32 %v8134, %v8216
        %v8271 = vadd.f32 %v8135, %v8218
        %v8272 = vadd.f32 %v8136, %v8220
        %v8273 = vadd.f32 %v8137, %v8221
        %v8274 = vadd.f32 %v8138, %v8223
        %v8275 = vadd.f32 %v8139, %v8225
        %v8276 = vadd.f32 %v8140, %v8226
        %v8277 = vadd.f32 %v8141, %v8228
        %v8278 = vadd.f32 %v8142, %v8230
        %v8279 = vmul.f32 %v7688, %v1883
        %v8280 = vmul.f32 %v7689, %v1883
        %v8281 = vmul.f32 %v7690, %v1883
        %v8282 = vmul.f32 %v7692, %v1883
        %v8283 = vmul.f32 %v7693, %v1883
        %v8284 = vmul.f32 %v7694, %v1883
        %v8285 = vmul.f32 %v7696, %v1883
        %v8286 = vmul.f32 %v7697, %v1883
        %v8287 = vmul.f32 %v7698, %v1883
        %v8288 = vmul.f32 %v7700, %v1883
        %v8289 = vmul.f32 %v7701, %v1883
        %v8290 = vmul.f32 %v7702, %v1883
        %v8291 = vmul.f32 %v7704, %v1883
        %v8292 = vmul.f32 %v7705, %v1883
        %v8293 = vmul.f32 %v7706, %v1883
        %v8294 = vmul.f32 %v7708, %v1883
        %v8295 = vmul.f32 %v7709, %v1883
        %v8296 = vmul.f32 %v7710, %v1883
        %v8297 = vmul.f32 %v7712, %v1883
        %v8298 = vmul.f32 %v7713, %v1883
        %v8299 = vmul.f32 %v7714, %v1883
        %v8300 = vmul.f32 %v7716, %v1883
        %v8301 = vmul.f32 %v7717, %v1883
        %v8302 = vmul.f32 %v7718, %v1883
        %v8327 = vrot.slane %v8279, 5
        %v8328 = vrot.slane %v8280, 5
        %v8329 = vsel %vm1045, %v8327, %v8328
        %v8330 = vrot.slane %v8281, 5
        %v8331 = vsel %vm1045, %v8328, %v8330
        %v8332 = vrot.slane %v8282, 5
        %v8333 = vrot.slane %v8283, 5
        %v8334 = vsel %vm1045, %v8332, %v8333
        %v8335 = vrot.slane %v8284, 5
        %v8336 = vsel %vm1045, %v8333, %v8335
        %v8337 = vrot.slane %v8285, 5
        %v8338 = vrot.slane %v8286, 5
        %v8339 = vsel %vm1045, %v8337, %v8338
        %v8340 = vrot.slane %v8287, 5
        %v8341 = vsel %vm1045, %v8338, %v8340
        %v8342 = vrot.slane %v8288, 5
        %v8343 = vrot.slane %v8289, 5
        %v8344 = vsel %vm1045, %v8342, %v8343
        %v8345 = vrot.slane %v8290, 5
        %v8346 = vsel %vm1045, %v8343, %v8345
        %v8347 = vrot.slane %v8291, 5
        %v8348 = vrot.slane %v8292, 5
        %v8349 = vsel %vm1045, %v8347, %v8348
        %v8350 = vrot.slane %v8293, 5
        %v8351 = vsel %vm1045, %v8348, %v8350
        %v8352 = vrot.slane %v8294, 5
        %v8353 = vrot.slane %v8295, 5
        %v8354 = vsel %vm1045, %v8352, %v8353
        %v8355 = vrot.slane %v8296, 5
        %v8356 = vsel %vm1045, %v8353, %v8355
        %v8357 = vrot.slane %v8297, 5
        %v8358 = vrot.slane %v8298, 5
        %v8359 = vsel %vm1045, %v8357, %v8358
        %v8360 = vrot.slane %v8299, 5
        %v8361 = vsel %vm1045, %v8358, %v8360
        %v8362 = vrot.slane %v8300, 5
        %v8363 = vrot.slane %v8301, 5
        %v8364 = vsel %vm1045, %v8362, %v8363
        %v8365 = vrot.slane %v8302, 5
        %v8366 = vsel %vm1045, %v8363, %v8365
        %v8391 = vadd.f32 %v8255, %v8327
        %v8392 = vadd.f32 %v8256, %v8329
        %v8393 = vadd.f32 %v8257, %v8331
        %v8394 = vadd.f32 %v8258, %v8332
        %v8395 = vadd.f32 %v8259, %v8334
        %v8396 = vadd.f32 %v8260, %v8336
        %v8397 = vadd.f32 %v8261, %v8337
        %v8398 = vadd.f32 %v8262, %v8339
        %v8399 = vadd.f32 %v8263, %v8341
        %v8400 = vadd.f32 %v8264, %v8342
        %v8401 = vadd.f32 %v8265, %v8344
        %v8402 = vadd.f32 %v8266, %v8346
        %v8403 = vadd.f32 %v8267, %v8347
        %v8404 = vadd.f32 %v8268, %v8349
        %v8405 = vadd.f32 %v8269, %v8351
        %v8406 = vadd.f32 %v8270, %v8352
        %v8407 = vadd.f32 %v8271, %v8354
        %v8408 = vadd.f32 %v8272, %v8356
        %v8409 = vadd.f32 %v8273, %v8357
        %v8410 = vadd.f32 %v8274, %v8359
        %v8411 = vadd.f32 %v8275, %v8361
        %v8412 = vadd.f32 %v8276, %v8362
        %v8413 = vadd.f32 %v8277, %v8364
        %v8414 = vadd.f32 %v8278, %v8366
        %v8415 = vmul.f32 %v7688, %v2022
        %v8416 = vmul.f32 %v7689, %v2022
        %v8417 = vmul.f32 %v7690, %v2022
        %v8418 = vmul.f32 %v7692, %v2022
        %v8419 = vmul.f32 %v7693, %v2022
        %v8420 = vmul.f32 %v7694, %v2022
        %v8421 = vmul.f32 %v7696, %v2022
        %v8422 = vmul.f32 %v7697, %v2022
        %v8423 = vmul.f32 %v7698, %v2022
        %v8424 = vmul.f32 %v7700, %v2022
        %v8425 = vmul.f32 %v7701, %v2022
        %v8426 = vmul.f32 %v7702, %v2022
        %v8427 = vmul.f32 %v7704, %v2022
        %v8428 = vmul.f32 %v7705, %v2022
        %v8429 = vmul.f32 %v7706, %v2022
        %v8430 = vmul.f32 %v7708, %v2022
        %v8431 = vmul.f32 %v7709, %v2022
        %v8432 = vmul.f32 %v7710, %v2022
        %v8433 = vmul.f32 %v7712, %v2022
        %v8434 = vmul.f32 %v7713, %v2022
        %v8435 = vmul.f32 %v7714, %v2022
        %v8436 = vmul.f32 %v7716, %v2022
        %v8437 = vmul.f32 %v7717, %v2022
        %v8438 = vmul.f32 %v7718, %v2022
        %v8463 = vrot.slane %v8415, 6
        %v8464 = vrot.slane %v8416, 6
        %v8465 = vsel %vm1185, %v8463, %v8464
        %v8466 = vrot.slane %v8417, 6
        %v8467 = vsel %vm1185, %v8464, %v8466
        %v8468 = vrot.slane %v8418, 6
        %v8469 = vrot.slane %v8419, 6
        %v8470 = vsel %vm1185, %v8468, %v8469
        %v8471 = vrot.slane %v8420, 6
        %v8472 = vsel %vm1185, %v8469, %v8471
        %v8473 = vrot.slane %v8421, 6
        %v8474 = vrot.slane %v8422, 6
        %v8475 = vsel %vm1185, %v8473, %v8474
        %v8476 = vrot.slane %v8423, 6
        %v8477 = vsel %vm1185, %v8474, %v8476
        %v8478 = vrot.slane %v8424, 6
        %v8479 = vrot.slane %v8425, 6
        %v8480 = vsel %vm1185, %v8478, %v8479
        %v8481 = vrot.slane %v8426, 6
        %v8482 = vsel %vm1185, %v8479, %v8481
        %v8483 = vrot.slane %v8427, 6
        %v8484 = vrot.slane %v8428, 6
        %v8485 = vsel %vm1185, %v8483, %v8484
        %v8486 = vrot.slane %v8429, 6
        %v8487 = vsel %vm1185, %v8484, %v8486
        %v8488 = vrot.slane %v8430, 6
        %v8489 = vrot.slane %v8431, 6
        %v8490 = vsel %vm1185, %v8488, %v8489
        %v8491 = vrot.slane %v8432, 6
        %v8492 = vsel %vm1185, %v8489, %v8491
        %v8493 = vrot.slane %v8433, 6
        %v8494 = vrot.slane %v8434, 6
        %v8495 = vsel %vm1185, %v8493, %v8494
        %v8496 = vrot.slane %v8435, 6
        %v8497 = vsel %vm1185, %v8494, %v8496
        %v8498 = vrot.slane %v8436, 6
        %v8499 = vrot.slane %v8437, 6
        %v8500 = vsel %vm1185, %v8498, %v8499
        %v8501 = vrot.slane %v8438, 6
        %v8502 = vsel %vm1185, %v8499, %v8501
        %v8527 = vadd.f32 %v8391, %v8463
        %v8528 = vadd.f32 %v8392, %v8465
        %v8529 = vadd.f32 %v8393, %v8467
        %v8530 = vadd.f32 %v8394, %v8468
        %v8531 = vadd.f32 %v8395, %v8470
        %v8532 = vadd.f32 %v8396, %v8472
        %v8533 = vadd.f32 %v8397, %v8473
        %v8534 = vadd.f32 %v8398, %v8475
        %v8535 = vadd.f32 %v8399, %v8477
        %v8536 = vadd.f32 %v8400, %v8478
        %v8537 = vadd.f32 %v8401, %v8480
        %v8538 = vadd.f32 %v8402, %v8482
        %v8539 = vadd.f32 %v8403, %v8483
        %v8540 = vadd.f32 %v8404, %v8485
        %v8541 = vadd.f32 %v8405, %v8487
        %v8542 = vadd.f32 %v8406, %v8488
        %v8543 = vadd.f32 %v8407, %v8490
        %v8544 = vadd.f32 %v8408, %v8492
        %v8545 = vadd.f32 %v8409, %v8493
        %v8546 = vadd.f32 %v8410, %v8495
        %v8547 = vadd.f32 %v8411, %v8497
        %v8548 = vadd.f32 %v8412, %v8498
        %v8549 = vadd.f32 %v8413, %v8500
        %v8550 = vadd.f32 %v8414, %v8502
        %s8551 = scalar_lea.vmem [#allocation2], 320
        %v8552 = vld [vmem:[%s8551] sm:$0xff]
        %v8553 = vld [vmem:[%s8551 + $0x8] sm:$0xff]
        %v8554 = vld [vmem:[%s8551 + $0x10] sm:$0xff]
        %v8555 = vld [vmem:[%s8551 + $0x18] sm:$0x7]
        %v8556 = vld [vmem:[%s8551 + $0x20] sm:$0xff]
        %v8557 = vld [vmem:[%s8551 + $0x28] sm:$0xff]
        %v8558 = vld [vmem:[%s8551 + $0x30] sm:$0xff]
        %v8559 = vld [vmem:[%s8551 + $0x38] sm:$0x7]
        %v8560 = vld [vmem:[%s8551 + $0x40] sm:$0xff]
        %v8561 = vld [vmem:[%s8551 + $0x48] sm:$0xff]
        %v8562 = vld [vmem:[%s8551 + $0x50] sm:$0xff]
        %v8563 = vld [vmem:[%s8551 + $0x58] sm:$0x7]
        %v8564 = vld [vmem:[%s8551 + $0x60] sm:$0xff]
        %v8565 = vld [vmem:[%s8551 + $0x68] sm:$0xff]
        %v8566 = vld [vmem:[%s8551 + $0x70] sm:$0xff]
        %v8567 = vld [vmem:[%s8551 + $0x78] sm:$0x7]
        %v8568 = vld [vmem:[%s8551 + $0x80] sm:$0xff]
        %v8569 = vld [vmem:[%s8551 + $0x88] sm:$0xff]
        %v8570 = vld [vmem:[%s8551 + $0x90] sm:$0xff]
        %v8571 = vld [vmem:[%s8551 + $0x98] sm:$0x7]
        %v8572 = vld [vmem:[%s8551 + $0xa0] sm:$0xff]
        %v8573 = vld [vmem:[%s8551 + $0xa8] sm:$0xff]
        %v8574 = vld [vmem:[%s8551 + $0xb0] sm:$0xff]
        %v8575 = vld [vmem:[%s8551 + $0xb8] sm:$0x7]
        %v8576 = vld [vmem:[%s8551 + $0xc0] sm:$0xff]
        %v8577 = vld [vmem:[%s8551 + $0xc8] sm:$0xff]
        %v8578 = vld [vmem:[%s8551 + $0xd0] sm:$0xff]
        %v8579 = vld [vmem:[%s8551 + $0xd8] sm:$0x7]
        %v8580 = vld [vmem:[%s8551 + $0xe0] sm:$0xff]
        %v8581 = vld [vmem:[%s8551 + $0xe8] sm:$0xff]
        %v8582 = vld [vmem:[%s8551 + $0xf0] sm:$0xff]
        %v8583 = vld [vmem:[%s8551 + $0xf8] sm:$0x7]
        %v8584 = vmul.f32 %v8552, %v2194
        %v8585 = vmul.f32 %v8553, %v2194
        %v8586 = vmul.f32 %v8554, %v2194
        %v8587 = vmul.f32 %v8556, %v2194
        %v8588 = vmul.f32 %v8557, %v2194
        %v8589 = vmul.f32 %v8558, %v2194
        %v8590 = vmul.f32 %v8560, %v2194
        %v8591 = vmul.f32 %v8561, %v2194
        %v8592 = vmul.f32 %v8562, %v2194
        %v8593 = vmul.f32 %v8564, %v2194
        %v8594 = vmul.f32 %v8565, %v2194
        %v8595 = vmul.f32 %v8566, %v2194
        %v8596 = vmul.f32 %v8568, %v2194
        %v8597 = vmul.f32 %v8569, %v2194
        %v8598 = vmul.f32 %v8570, %v2194
        %v8599 = vmul.f32 %v8572, %v2194
        %v8600 = vmul.f32 %v8573, %v2194
        %v8601 = vmul.f32 %v8574, %v2194
        %v8602 = vmul.f32 %v8576, %v2194
        %v8603 = vmul.f32 %v8577, %v2194
        %v8604 = vmul.f32 %v8578, %v2194
        %v8605 = vmul.f32 %v8580, %v2194
        %v8606 = vmul.f32 %v8581, %v2194
        %v8607 = vmul.f32 %v8582, %v2194
        %v8608 = vadd.f32 %v8527, %v8584
        %v8609 = vadd.f32 %v8528, %v8585
        %v8610 = vadd.f32 %v8529, %v8586
        %v8611 = vadd.f32 %v8530, %v8587
        %v8612 = vadd.f32 %v8531, %v8588
        %v8613 = vadd.f32 %v8532, %v8589
        %v8614 = vadd.f32 %v8533, %v8590
        %v8615 = vadd.f32 %v8534, %v8591
        %v8616 = vadd.f32 %v8535, %v8592
        %v8617 = vadd.f32 %v8536, %v8593
        %v8618 = vadd.f32 %v8537, %v8594
        %v8619 = vadd.f32 %v8538, %v8595
        %v8620 = vadd.f32 %v8539, %v8596
        %v8621 = vadd.f32 %v8540, %v8597
        %v8622 = vadd.f32 %v8541, %v8598
        %v8623 = vadd.f32 %v8542, %v8599
        %v8624 = vadd.f32 %v8543, %v8600
        %v8625 = vadd.f32 %v8544, %v8601
        %v8626 = vadd.f32 %v8545, %v8602
        %v8627 = vadd.f32 %v8546, %v8603
        %v8628 = vadd.f32 %v8547, %v8604
        %v8629 = vadd.f32 %v8548, %v8605
        %v8630 = vadd.f32 %v8549, %v8606
        %v8631 = vadd.f32 %v8550, %v8607
        %v8632 = vmul.f32 %v8552, %v2245
        %v8633 = vmul.f32 %v8553, %v2245
        %v8634 = vmul.f32 %v8554, %v2245
        %v8635 = vmul.f32 %v8556, %v2245
        %v8636 = vmul.f32 %v8557, %v2245
        %v8637 = vmul.f32 %v8558, %v2245
        %v8638 = vmul.f32 %v8560, %v2245
        %v8639 = vmul.f32 %v8561, %v2245
        %v8640 = vmul.f32 %v8562, %v2245
        %v8641 = vmul.f32 %v8564, %v2245
        %v8642 = vmul.f32 %v8565, %v2245
        %v8643 = vmul.f32 %v8566, %v2245
        %v8644 = vmul.f32 %v8568, %v2245
        %v8645 = vmul.f32 %v8569, %v2245
        %v8646 = vmul.f32 %v8570, %v2245
        %v8647 = vmul.f32 %v8572, %v2245
        %v8648 = vmul.f32 %v8573, %v2245
        %v8649 = vmul.f32 %v8574, %v2245
        %v8650 = vmul.f32 %v8576, %v2245
        %v8651 = vmul.f32 %v8577, %v2245
        %v8652 = vmul.f32 %v8578, %v2245
        %v8653 = vmul.f32 %v8580, %v2245
        %v8654 = vmul.f32 %v8581, %v2245
        %v8655 = vmul.f32 %v8582, %v2245
        %v8680 = vrot.slane %v8632, 1
        %v8681 = vrot.slane %v8633, 1
        %v8682 = vsel %vm517, %v8680, %v8681
        %v8683 = vrot.slane %v8634, 1
        %v8684 = vsel %vm517, %v8681, %v8683
        %v8685 = vrot.slane %v8635, 1
        %v8686 = vrot.slane %v8636, 1
        %v8687 = vsel %vm517, %v8685, %v8686
        %v8688 = vrot.slane %v8637, 1
        %v8689 = vsel %vm517, %v8686, %v8688
        %v8690 = vrot.slane %v8638, 1
        %v8691 = vrot.slane %v8639, 1
        %v8692 = vsel %vm517, %v8690, %v8691
        %v8693 = vrot.slane %v8640, 1
        %v8694 = vsel %vm517, %v8691, %v8693
        %v8695 = vrot.slane %v8641, 1
        %v8696 = vrot.slane %v8642, 1
        %v8697 = vsel %vm517, %v8695, %v8696
        %v8698 = vrot.slane %v8643, 1
        %v8699 = vsel %vm517, %v8696, %v8698
        %v8700 = vrot.slane %v8644, 1
        %v8701 = vrot.slane %v8645, 1
        %v8702 = vsel %vm517, %v8700, %v8701
        %v8703 = vrot.slane %v8646, 1
        %v8704 = vsel %vm517, %v8701, %v8703
        %v8705 = vrot.slane %v8647, 1
        %v8706 = vrot.slane %v8648, 1
        %v8707 = vsel %vm517, %v8705, %v8706
        %v8708 = vrot.slane %v8649, 1
        %v8709 = vsel %vm517, %v8706, %v8708
        %v8710 = vrot.slane %v8650, 1
        %v8711 = vrot.slane %v8651, 1
        %v8712 = vsel %vm517, %v8710, %v8711
        %v8713 = vrot.slane %v8652, 1
        %v8714 = vsel %vm517, %v8711, %v8713
        %v8715 = vrot.slane %v8653, 1
        %v8716 = vrot.slane %v8654, 1
        %v8717 = vsel %vm517, %v8715, %v8716
        %v8718 = vrot.slane %v8655, 1
        %v8719 = vsel %vm517, %v8716, %v8718
        %v8744 = vadd.f32 %v8608, %v8682
        %v8745 = vadd.f32 %v8609, %v8684
        %v8746 = vadd.f32 %v8610, %v8683
        %v8747 = vadd.f32 %v8611, %v8687
        %v8748 = vadd.f32 %v8612, %v8689
        %v8749 = vadd.f32 %v8613, %v8688
        %v8750 = vadd.f32 %v8614, %v8692
        %v8751 = vadd.f32 %v8615, %v8694
        %v8752 = vadd.f32 %v8616, %v8693
        %v8753 = vadd.f32 %v8617, %v8697
        %v8754 = vadd.f32 %v8618, %v8699
        %v8755 = vadd.f32 %v8619, %v8698
        %v8756 = vadd.f32 %v8620, %v8702
        %v8757 = vadd.f32 %v8621, %v8704
        %v8758 = vadd.f32 %v8622, %v8703
        %v8759 = vadd.f32 %v8623, %v8707
        %v8760 = vadd.f32 %v8624, %v8709
        %v8761 = vadd.f32 %v8625, %v8708
        %v8762 = vadd.f32 %v8626, %v8712
        %v8763 = vadd.f32 %v8627, %v8714
        %v8764 = vadd.f32 %v8628, %v8713
        %v8765 = vadd.f32 %v8629, %v8717
        %v8766 = vadd.f32 %v8630, %v8719
        %v8767 = vadd.f32 %v8631, %v8718
        %v8768 = vmul.f32 %v8552, %v2384
        %v8769 = vmul.f32 %v8553, %v2384
        %v8770 = vmul.f32 %v8554, %v2384
        %v8771 = vmul.f32 %v8556, %v2384
        %v8772 = vmul.f32 %v8557, %v2384
        %v8773 = vmul.f32 %v8558, %v2384
        %v8774 = vmul.f32 %v8560, %v2384
        %v8775 = vmul.f32 %v8561, %v2384
        %v8776 = vmul.f32 %v8562, %v2384
        %v8777 = vmul.f32 %v8564, %v2384
        %v8778 = vmul.f32 %v8565, %v2384
        %v8779 = vmul.f32 %v8566, %v2384
        %v8780 = vmul.f32 %v8568, %v2384
        %v8781 = vmul.f32 %v8569, %v2384
        %v8782 = vmul.f32 %v8570, %v2384
        %v8783 = vmul.f32 %v8572, %v2384
        %v8784 = vmul.f32 %v8573, %v2384
        %v8785 = vmul.f32 %v8574, %v2384
        %v8786 = vmul.f32 %v8576, %v2384
        %v8787 = vmul.f32 %v8577, %v2384
        %v8788 = vmul.f32 %v8578, %v2384
        %v8789 = vmul.f32 %v8580, %v2384
        %v8790 = vmul.f32 %v8581, %v2384
        %v8791 = vmul.f32 %v8582, %v2384
        %v8816 = vrot.slane %v8768, 2
        %v8817 = vrot.slane %v8769, 2
        %v8818 = vsel %vm657, %v8816, %v8817
        %v8819 = vrot.slane %v8770, 2
        %v8820 = vsel %vm657, %v8817, %v8819
        %v8821 = vrot.slane %v8771, 2
        %v8822 = vrot.slane %v8772, 2
        %v8823 = vsel %vm657, %v8821, %v8822
        %v8824 = vrot.slane %v8773, 2
        %v8825 = vsel %vm657, %v8822, %v8824
        %v8826 = vrot.slane %v8774, 2
        %v8827 = vrot.slane %v8775, 2
        %v8828 = vsel %vm657, %v8826, %v8827
        %v8829 = vrot.slane %v8776, 2
        %v8830 = vsel %vm657, %v8827, %v8829
        %v8831 = vrot.slane %v8777, 2
        %v8832 = vrot.slane %v8778, 2
        %v8833 = vsel %vm657, %v8831, %v8832
        %v8834 = vrot.slane %v8779, 2
        %v8835 = vsel %vm657, %v8832, %v8834
        %v8836 = vrot.slane %v8780, 2
        %v8837 = vrot.slane %v8781, 2
        %v8838 = vsel %vm657, %v8836, %v8837
        %v8839 = vrot.slane %v8782, 2
        %v8840 = vsel %vm657, %v8837, %v8839
        %v8841 = vrot.slane %v8783, 2
        %v8842 = vrot.slane %v8784, 2
        %v8843 = vsel %vm657, %v8841, %v8842
        %v8844 = vrot.slane %v8785, 2
        %v8845 = vsel %vm657, %v8842, %v8844
        %v8846 = vrot.slane %v8786, 2
        %v8847 = vrot.slane %v8787, 2
        %v8848 = vsel %vm657, %v8846, %v8847
        %v8849 = vrot.slane %v8788, 2
        %v8850 = vsel %vm657, %v8847, %v8849
        %v8851 = vrot.slane %v8789, 2
        %v8852 = vrot.slane %v8790, 2
        %v8853 = vsel %vm657, %v8851, %v8852
        %v8854 = vrot.slane %v8791, 2
        %v8855 = vsel %vm657, %v8852, %v8854
        %v8880 = vadd.f32 %v8744, %v8818
        %v8881 = vadd.f32 %v8745, %v8820
        %v8882 = vadd.f32 %v8746, %v8819
        %v8883 = vadd.f32 %v8747, %v8823
        %v8884 = vadd.f32 %v8748, %v8825
        %v8885 = vadd.f32 %v8749, %v8824
        %v8886 = vadd.f32 %v8750, %v8828
        %v8887 = vadd.f32 %v8751, %v8830
        %v8888 = vadd.f32 %v8752, %v8829
        %v8889 = vadd.f32 %v8753, %v8833
        %v8890 = vadd.f32 %v8754, %v8835
        %v8891 = vadd.f32 %v8755, %v8834
        %v8892 = vadd.f32 %v8756, %v8838
        %v8893 = vadd.f32 %v8757, %v8840
        %v8894 = vadd.f32 %v8758, %v8839
        %v8895 = vadd.f32 %v8759, %v8843
        %v8896 = vadd.f32 %v8760, %v8845
        %v8897 = vadd.f32 %v8761, %v8844
        %v8898 = vadd.f32 %v8762, %v8848
        %v8899 = vadd.f32 %v8763, %v8850
        %v8900 = vadd.f32 %v8764, %v8849
        %v8901 = vadd.f32 %v8765, %v8853
        %v8902 = vadd.f32 %v8766, %v8855
        %v8903 = vadd.f32 %v8767, %v8854
        %v8904 = vmul.f32 %v8553, %v2523
        %v8905 = vmul.f32 %v8554, %v2523
        %v8906 = vmul.f32 %v8557, %v2523
        %v8907 = vmul.f32 %v8558, %v2523
        %v8908 = vmul.f32 %v8561, %v2523
        %v8909 = vmul.f32 %v8562, %v2523
        %v8910 = vmul.f32 %v8565, %v2523
        %v8911 = vmul.f32 %v8566, %v2523
        %v8912 = vmul.f32 %v8569, %v2523
        %v8913 = vmul.f32 %v8570, %v2523
        %v8914 = vmul.f32 %v8573, %v2523
        %v8915 = vmul.f32 %v8574, %v2523
        %v8916 = vmul.f32 %v8577, %v2523
        %v8917 = vmul.f32 %v8578, %v2523
        %v8918 = vmul.f32 %v8581, %v2523
        %v8919 = vmul.f32 %v8582, %v2523
        %v8936 = vrot.slane %v8904, 3
        %v8937 = vrot.slane %v8905, 3
        %v8938 = vsel %vm781, %v8936, %v8937
        %v8939 = vrot.slane %v8906, 3
        %v8940 = vrot.slane %v8907, 3
        %v8941 = vsel %vm781, %v8939, %v8940
        %v8942 = vrot.slane %v8908, 3
        %v8943 = vrot.slane %v8909, 3
        %v8944 = vsel %vm781, %v8942, %v8943
        %v8945 = vrot.slane %v8910, 3
        %v8946 = vrot.slane %v8911, 3
        %v8947 = vsel %vm781, %v8945, %v8946
        %v8948 = vrot.slane %v8912, 3
        %v8949 = vrot.slane %v8913, 3
        %v8950 = vsel %vm781, %v8948, %v8949
        %v8951 = vrot.slane %v8914, 3
        %v8952 = vrot.slane %v8915, 3
        %v8953 = vsel %vm781, %v8951, %v8952
        %v8954 = vrot.slane %v8916, 3
        %v8955 = vrot.slane %v8917, 3
        %v8956 = vsel %vm781, %v8954, %v8955
        %v8957 = vrot.slane %v8918, 3
        %v8958 = vrot.slane %v8919, 3
        %v8959 = vsel %vm781, %v8957, %v8958
        %v8984 = vadd.f32 %v8880, %v8936
        %v8985 = vadd.f32 %v8881, %v8938
        %v8986 = vadd.f32 %v8882, %v8937
        %v8987 = vadd.f32 %v8883, %v8939
        %v8988 = vadd.f32 %v8884, %v8941
        %v8989 = vadd.f32 %v8885, %v8940
        %v8990 = vadd.f32 %v8886, %v8942
        %v8991 = vadd.f32 %v8887, %v8944
        %v8992 = vadd.f32 %v8888, %v8943
        %v8993 = vadd.f32 %v8889, %v8945
        %v8994 = vadd.f32 %v8890, %v8947
        %v8995 = vadd.f32 %v8891, %v8946
        %v8996 = vadd.f32 %v8892, %v8948
        %v8997 = vadd.f32 %v8893, %v8950
        %v8998 = vadd.f32 %v8894, %v8949
        %v8999 = vadd.f32 %v8895, %v8951
        %v9000 = vadd.f32 %v8896, %v8953
        %v9001 = vadd.f32 %v8897, %v8952
        %v9002 = vadd.f32 %v8898, %v8954
        %v9003 = vadd.f32 %v8899, %v8956
        %v9004 = vadd.f32 %v8900, %v8955
        %v9005 = vadd.f32 %v8901, %v8957
        %v9006 = vadd.f32 %v8902, %v8959
        %v9007 = vadd.f32 %v8903, %v8958
        %v9008 = vmul.f32 %v8553, %v2630
        %v9009 = vmul.f32 %v8554, %v2630
        %v9010 = vmul.f32 %v8555, %v2630
        %v9011 = vmul.f32 %v8557, %v2630
        %v9012 = vmul.f32 %v8558, %v2630
        %v9013 = vmul.f32 %v8559, %v2630
        %v9014 = vmul.f32 %v8561, %v2630
        %v9015 = vmul.f32 %v8562, %v2630
        %v9016 = vmul.f32 %v8563, %v2630
        %v9017 = vmul.f32 %v8565, %v2630
        %v9018 = vmul.f32 %v8566, %v2630
        %v9019 = vmul.f32 %v8567, %v2630
        %v9020 = vmul.f32 %v8569, %v2630
        %v9021 = vmul.f32 %v8570, %v2630
        %v9022 = vmul.f32 %v8571, %v2630
        %v9023 = vmul.f32 %v8573, %v2630
        %v9024 = vmul.f32 %v8574, %v2630
        %v9025 = vmul.f32 %v8575, %v2630
        %v9026 = vmul.f32 %v8577, %v2630
        %v9027 = vmul.f32 %v8578, %v2630
        %v9028 = vmul.f32 %v8579, %v2630
        %v9029 = vmul.f32 %v8581, %v2630
        %v9030 = vmul.f32 %v8582, %v2630
        %v9031 = vmul.f32 %v8583, %v2630
        %v9056 = vrot.slane %v9008, 4
        %v9057 = vrot.slane %v9009, 4
        %v9058 = vsel %vm905, %v9056, %v9057
        %v9059 = vrot.slane %v9010, 4
        %v9060 = vsel %vm905, %v9057, %v9059
        %v9061 = vrot.slane %v9011, 4
        %v9062 = vrot.slane %v9012, 4
        %v9063 = vsel %vm905, %v9061, %v9062
        %v9064 = vrot.slane %v9013, 4
        %v9065 = vsel %vm905, %v9062, %v9064
        %v9066 = vrot.slane %v9014, 4
        %v9067 = vrot.slane %v9015, 4
        %v9068 = vsel %vm905, %v9066, %v9067
        %v9069 = vrot.slane %v9016, 4
        %v9070 = vsel %vm905, %v9067, %v9069
        %v9071 = vrot.slane %v9017, 4
        %v9072 = vrot.slane %v9018, 4
        %v9073 = vsel %vm905, %v9071, %v9072
        %v9074 = vrot.slane %v9019, 4
        %v9075 = vsel %vm905, %v9072, %v9074
        %v9076 = vrot.slane %v9020, 4
        %v9077 = vrot.slane %v9021, 4
        %v9078 = vsel %vm905, %v9076, %v9077
        %v9079 = vrot.slane %v9022, 4
        %v9080 = vsel %vm905, %v9077, %v9079
        %v9081 = vrot.slane %v9023, 4
        %v9082 = vrot.slane %v9024, 4
        %v9083 = vsel %vm905, %v9081, %v9082
        %v9084 = vrot.slane %v9025, 4
        %v9085 = vsel %vm905, %v9082, %v9084
        %v9086 = vrot.slane %v9026, 4
        %v9087 = vrot.slane %v9027, 4
        %v9088 = vsel %vm905, %v9086, %v9087
        %v9089 = vrot.slane %v9028, 4
        %v9090 = vsel %vm905, %v9087, %v9089
        %v9091 = vrot.slane %v9029, 4
        %v9092 = vrot.slane %v9030, 4
        %v9093 = vsel %vm905, %v9091, %v9092
        %v9094 = vrot.slane %v9031, 4
        %v9095 = vsel %vm905, %v9092, %v9094
        %v9120 = vadd.f32 %v8984, %v9056
        %v9121 = vadd.f32 %v8985, %v9058
        %v9122 = vadd.f32 %v8986, %v9060
        %v9123 = vadd.f32 %v8987, %v9061
        %v9124 = vadd.f32 %v8988, %v9063
        %v9125 = vadd.f32 %v8989, %v9065
        %v9126 = vadd.f32 %v8990, %v9066
        %v9127 = vadd.f32 %v8991, %v9068
        %v9128 = vadd.f32 %v8992, %v9070
        %v9129 = vadd.f32 %v8993, %v9071
        %v9130 = vadd.f32 %v8994, %v9073
        %v9131 = vadd.f32 %v8995, %v9075
        %v9132 = vadd.f32 %v8996, %v9076
        %v9133 = vadd.f32 %v8997, %v9078
        %v9134 = vadd.f32 %v8998, %v9080
        %v9135 = vadd.f32 %v8999, %v9081
        %v9136 = vadd.f32 %v9000, %v9083
        %v9137 = vadd.f32 %v9001, %v9085
        %v9138 = vadd.f32 %v9002, %v9086
        %v9139 = vadd.f32 %v9003, %v9088
        %v9140 = vadd.f32 %v9004, %v9090
        %v9141 = vadd.f32 %v9005, %v9091
        %v9142 = vadd.f32 %v9006, %v9093
        %v9143 = vadd.f32 %v9007, %v9095
        %v9144 = vmul.f32 %v8553, %v2769
        %v9145 = vmul.f32 %v8554, %v2769
        %v9146 = vmul.f32 %v8555, %v2769
        %v9147 = vmul.f32 %v8557, %v2769
        %v9148 = vmul.f32 %v8558, %v2769
        %v9149 = vmul.f32 %v8559, %v2769
        %v9150 = vmul.f32 %v8561, %v2769
        %v9151 = vmul.f32 %v8562, %v2769
        %v9152 = vmul.f32 %v8563, %v2769
        %v9153 = vmul.f32 %v8565, %v2769
        %v9154 = vmul.f32 %v8566, %v2769
        %v9155 = vmul.f32 %v8567, %v2769
        %v9156 = vmul.f32 %v8569, %v2769
        %v9157 = vmul.f32 %v8570, %v2769
        %v9158 = vmul.f32 %v8571, %v2769
        %v9159 = vmul.f32 %v8573, %v2769
        %v9160 = vmul.f32 %v8574, %v2769
        %v9161 = vmul.f32 %v8575, %v2769
        %v9162 = vmul.f32 %v8577, %v2769
        %v9163 = vmul.f32 %v8578, %v2769
        %v9164 = vmul.f32 %v8579, %v2769
        %v9165 = vmul.f32 %v8581, %v2769
        %v9166 = vmul.f32 %v8582, %v2769
        %v9167 = vmul.f32 %v8583, %v2769
        %v9192 = vrot.slane %v9144, 5
        %v9193 = vrot.slane %v9145, 5
        %v9194 = vsel %vm1045, %v9192, %v9193
        %v9195 = vrot.slane %v9146, 5
        %v9196 = vsel %vm1045, %v9193, %v9195
        %v9197 = vrot.slane %v9147, 5
        %v9198 = vrot.slane %v9148, 5
        %v9199 = vsel %vm1045, %v9197, %v9198
        %v9200 = vrot.slane %v9149, 5
        %v9201 = vsel %vm1045, %v9198, %v9200
        %v9202 = vrot.slane %v9150, 5
        %v9203 = vrot.slane %v9151, 5
        %v9204 = vsel %vm1045, %v9202, %v9203
        %v9205 = vrot.slane %v9152, 5
        %v9206 = vsel %vm1045, %v9203, %v9205
        %v9207 = vrot.slane %v9153, 5
        %v9208 = vrot.slane %v9154, 5
        %v9209 = vsel %vm1045, %v9207, %v9208
        %v9210 = vrot.slane %v9155, 5
        %v9211 = vsel %vm1045, %v9208, %v9210
        %v9212 = vrot.slane %v9156, 5
        %v9213 = vrot.slane %v9157, 5
        %v9214 = vsel %vm1045, %v9212, %v9213
        %v9215 = vrot.slane %v9158, 5
        %v9216 = vsel %vm1045, %v9213, %v9215
        %v9217 = vrot.slane %v9159, 5
        %v9218 = vrot.slane %v9160, 5
        %v9219 = vsel %vm1045, %v9217, %v9218
        %v9220 = vrot.slane %v9161, 5
        %v9221 = vsel %vm1045, %v9218, %v9220
        %v9222 = vrot.slane %v9162, 5
        %v9223 = vrot.slane %v9163, 5
        %v9224 = vsel %vm1045, %v9222, %v9223
        %v9225 = vrot.slane %v9164, 5
        %v9226 = vsel %vm1045, %v9223, %v9225
        %v9227 = vrot.slane %v9165, 5
        %v9228 = vrot.slane %v9166, 5
        %v9229 = vsel %vm1045, %v9227, %v9228
        %v9230 = vrot.slane %v9167, 5
        %v9231 = vsel %vm1045, %v9228, %v9230
        %v9256 = vadd.f32 %v9120, %v9192
        %v9257 = vadd.f32 %v9121, %v9194
        %v9258 = vadd.f32 %v9122, %v9196
        %v9259 = vadd.f32 %v9123, %v9197
        %v9260 = vadd.f32 %v9124, %v9199
        %v9261 = vadd.f32 %v9125, %v9201
        %v9262 = vadd.f32 %v9126, %v9202
        %v9263 = vadd.f32 %v9127, %v9204
        %v9264 = vadd.f32 %v9128, %v9206
        %v9265 = vadd.f32 %v9129, %v9207
        %v9266 = vadd.f32 %v9130, %v9209
        %v9267 = vadd.f32 %v9131, %v9211
        %v9268 = vadd.f32 %v9132, %v9212
        %v9269 = vadd.f32 %v9133, %v9214
        %v9270 = vadd.f32 %v9134, %v9216
        %v9271 = vadd.f32 %v9135, %v9217
        %v9272 = vadd.f32 %v9136, %v9219
        %v9273 = vadd.f32 %v9137, %v9221
        %v9274 = vadd.f32 %v9138, %v9222
        %v9275 = vadd.f32 %v9139, %v9224
        %v9276 = vadd.f32 %v9140, %v9226
        %v9277 = vadd.f32 %v9141, %v9227
        %v9278 = vadd.f32 %v9142, %v9229
        %v9279 = vadd.f32 %v9143, %v9231
        %v9280 = vmul.f32 %v8553, %v2908
        %v9281 = vmul.f32 %v8554, %v2908
        %v9282 = vmul.f32 %v8555, %v2908
        %v9283 = vmul.f32 %v8557, %v2908
        %v9284 = vmul.f32 %v8558, %v2908
        %v9285 = vmul.f32 %v8559, %v2908
        %v9286 = vmul.f32 %v8561, %v2908
        %v9287 = vmul.f32 %v8562, %v2908
        %v9288 = vmul.f32 %v8563, %v2908
        %v9289 = vmul.f32 %v8565, %v2908
        %v9290 = vmul.f32 %v8566, %v2908
        %v9291 = vmul.f32 %v8567, %v2908
        %v9292 = vmul.f32 %v8569, %v2908
        %v9293 = vmul.f32 %v8570, %v2908
        %v9294 = vmul.f32 %v8571, %v2908
        %v9295 = vmul.f32 %v8573, %v2908
        %v9296 = vmul.f32 %v8574, %v2908
        %v9297 = vmul.f32 %v8575, %v2908
        %v9298 = vmul.f32 %v8577, %v2908
        %v9299 = vmul.f32 %v8578, %v2908
        %v9300 = vmul.f32 %v8579, %v2908
        %v9301 = vmul.f32 %v8581, %v2908
        %v9302 = vmul.f32 %v8582, %v2908
        %v9303 = vmul.f32 %v8583, %v2908
        %v9328 = vrot.slane %v9280, 6
        %v9329 = vrot.slane %v9281, 6
        %v9330 = vsel %vm1185, %v9328, %v9329
        %v9331 = vrot.slane %v9282, 6
        %v9332 = vsel %vm1185, %v9329, %v9331
        %v9333 = vrot.slane %v9283, 6
        %v9334 = vrot.slane %v9284, 6
        %v9335 = vsel %vm1185, %v9333, %v9334
        %v9336 = vrot.slane %v9285, 6
        %v9337 = vsel %vm1185, %v9334, %v9336
        %v9338 = vrot.slane %v9286, 6
        %v9339 = vrot.slane %v9287, 6
        %v9340 = vsel %vm1185, %v9338, %v9339
        %v9341 = vrot.slane %v9288, 6
        %v9342 = vsel %vm1185, %v9339, %v9341
        %v9343 = vrot.slane %v9289, 6
        %v9344 = vrot.slane %v9290, 6
        %v9345 = vsel %vm1185, %v9343, %v9344
        %v9346 = vrot.slane %v9291, 6
        %v9347 = vsel %vm1185, %v9344, %v9346
        %v9348 = vrot.slane %v9292, 6
        %v9349 = vrot.slane %v9293, 6
        %v9350 = vsel %vm1185, %v9348, %v9349
        %v9351 = vrot.slane %v9294, 6
        %v9352 = vsel %vm1185, %v9349, %v9351
        %v9353 = vrot.slane %v9295, 6
        %v9354 = vrot.slane %v9296, 6
        %v9355 = vsel %vm1185, %v9353, %v9354
        %v9356 = vrot.slane %v9297, 6
        %v9357 = vsel %vm1185, %v9354, %v9356
        %v9358 = vrot.slane %v9298, 6
        %v9359 = vrot.slane %v9299, 6
        %v9360 = vsel %vm1185, %v9358, %v9359
        %v9361 = vrot.slane %v9300, 6
        %v9362 = vsel %vm1185, %v9359, %v9361
        %v9363 = vrot.slane %v9301, 6
        %v9364 = vrot.slane %v9302, 6
        %v9365 = vsel %vm1185, %v9363, %v9364
        %v9366 = vrot.slane %v9303, 6
        %v9367 = vsel %vm1185, %v9364, %v9366
        %v9392 = vadd.f32 %v9256, %v9328
        %v9393 = vadd.f32 %v9257, %v9330
        %v9394 = vadd.f32 %v9258, %v9332
        %v9395 = vadd.f32 %v9259, %v9333
        %v9396 = vadd.f32 %v9260, %v9335
        %v9397 = vadd.f32 %v9261, %v9337
        %v9398 = vadd.f32 %v9262, %v9338
        %v9399 = vadd.f32 %v9263, %v9340
        %v9400 = vadd.f32 %v9264, %v9342
        %v9401 = vadd.f32 %v9265, %v9343
        %v9402 = vadd.f32 %v9266, %v9345
        %v9403 = vadd.f32 %v9267, %v9347
        %v9404 = vadd.f32 %v9268, %v9348
        %v9405 = vadd.f32 %v9269, %v9350
        %v9406 = vadd.f32 %v9270, %v9352
        %v9407 = vadd.f32 %v9271, %v9353
        %v9408 = vadd.f32 %v9272, %v9355
        %v9409 = vadd.f32 %v9273, %v9357
        %v9410 = vadd.f32 %v9274, %v9358
        %v9411 = vadd.f32 %v9275, %v9360
        %v9412 = vadd.f32 %v9276, %v9362
        %v9413 = vadd.f32 %v9277, %v9363
        %v9414 = vadd.f32 %v9278, %v9365
        %v9415 = vadd.f32 %v9279, %v9367
        %s9416 = scalar_lea.vmem [#allocation2], 352
        %v9417 = vld [vmem:[%s9416] sm:$0xff]
        %v9418 = vld [vmem:[%s9416 + $0x8] sm:$0xff]
        %v9419 = vld [vmem:[%s9416 + $0x10] sm:$0xff]
        %v9420 = vld [vmem:[%s9416 + $0x18] sm:$0x7]
        %v9421 = vld [vmem:[%s9416 + $0x20] sm:$0xff]
        %v9422 = vld [vmem:[%s9416 + $0x28] sm:$0xff]
        %v9423 = vld [vmem:[%s9416 + $0x30] sm:$0xff]
        %v9424 = vld [vmem:[%s9416 + $0x38] sm:$0x7]
        %v9425 = vld [vmem:[%s9416 + $0x40] sm:$0xff]
        %v9426 = vld [vmem:[%s9416 + $0x48] sm:$0xff]
        %v9427 = vld [vmem:[%s9416 + $0x50] sm:$0xff]
        %v9428 = vld [vmem:[%s9416 + $0x58] sm:$0x7]
        %v9429 = vld [vmem:[%s9416 + $0x60] sm:$0xff]
        %v9430 = vld [vmem:[%s9416 + $0x68] sm:$0xff]
        %v9431 = vld [vmem:[%s9416 + $0x70] sm:$0xff]
        %v9432 = vld [vmem:[%s9416 + $0x78] sm:$0x7]
        %v9433 = vld [vmem:[%s9416 + $0x80] sm:$0xff]
        %v9434 = vld [vmem:[%s9416 + $0x88] sm:$0xff]
        %v9435 = vld [vmem:[%s9416 + $0x90] sm:$0xff]
        %v9436 = vld [vmem:[%s9416 + $0x98] sm:$0x7]
        %v9437 = vld [vmem:[%s9416 + $0xa0] sm:$0xff]
        %v9438 = vld [vmem:[%s9416 + $0xa8] sm:$0xff]
        %v9439 = vld [vmem:[%s9416 + $0xb0] sm:$0xff]
        %v9440 = vld [vmem:[%s9416 + $0xb8] sm:$0x7]
        %v9441 = vld [vmem:[%s9416 + $0xc0] sm:$0xff]
        %v9442 = vld [vmem:[%s9416 + $0xc8] sm:$0xff]
        %v9443 = vld [vmem:[%s9416 + $0xd0] sm:$0xff]
        %v9444 = vld [vmem:[%s9416 + $0xd8] sm:$0x7]
        %v9445 = vld [vmem:[%s9416 + $0xe0] sm:$0xff]
        %v9446 = vld [vmem:[%s9416 + $0xe8] sm:$0xff]
        %v9447 = vld [vmem:[%s9416 + $0xf0] sm:$0xff]
        %v9448 = vld [vmem:[%s9416 + $0xf8] sm:$0x7]
        %v9449 = vmul.f32 %v9417, %v3079
        %v9450 = vmul.f32 %v9418, %v3079
        %v9451 = vmul.f32 %v9419, %v3079
        %v9452 = vmul.f32 %v9421, %v3079
        %v9453 = vmul.f32 %v9422, %v3079
        %v9454 = vmul.f32 %v9423, %v3079
        %v9455 = vmul.f32 %v9425, %v3079
        %v9456 = vmul.f32 %v9426, %v3079
        %v9457 = vmul.f32 %v9427, %v3079
        %v9458 = vmul.f32 %v9429, %v3079
        %v9459 = vmul.f32 %v9430, %v3079
        %v9460 = vmul.f32 %v9431, %v3079
        %v9461 = vmul.f32 %v9433, %v3079
        %v9462 = vmul.f32 %v9434, %v3079
        %v9463 = vmul.f32 %v9435, %v3079
        %v9464 = vmul.f32 %v9437, %v3079
        %v9465 = vmul.f32 %v9438, %v3079
        %v9466 = vmul.f32 %v9439, %v3079
        %v9467 = vmul.f32 %v9441, %v3079
        %v9468 = vmul.f32 %v9442, %v3079
        %v9469 = vmul.f32 %v9443, %v3079
        %v9470 = vmul.f32 %v9445, %v3079
        %v9471 = vmul.f32 %v9446, %v3079
        %v9472 = vmul.f32 %v9447, %v3079
        %v9473 = vadd.f32 %v9392, %v9449
        %v9474 = vadd.f32 %v9393, %v9450
        %v9475 = vadd.f32 %v9394, %v9451
        %v9476 = vadd.f32 %v9395, %v9452
        %v9477 = vadd.f32 %v9396, %v9453
        %v9478 = vadd.f32 %v9397, %v9454
        %v9479 = vadd.f32 %v9398, %v9455
        %v9480 = vadd.f32 %v9399, %v9456
        %v9481 = vadd.f32 %v9400, %v9457
        %v9482 = vadd.f32 %v9401, %v9458
        %v9483 = vadd.f32 %v9402, %v9459
        %v9484 = vadd.f32 %v9403, %v9460
        %v9485 = vadd.f32 %v9404, %v9461
        %v9486 = vadd.f32 %v9405, %v9462
        %v9487 = vadd.f32 %v9406, %v9463
        %v9488 = vadd.f32 %v9407, %v9464
        %v9489 = vadd.f32 %v9408, %v9465
        %v9490 = vadd.f32 %v9409, %v9466
        %v9491 = vadd.f32 %v9410, %v9467
        %v9492 = vadd.f32 %v9411, %v9468
        %v9493 = vadd.f32 %v9412, %v9469
        %v9494 = vadd.f32 %v9413, %v9470
        %v9495 = vadd.f32 %v9414, %v9471
        %v9496 = vadd.f32 %v9415, %v9472
        %v9497 = vmul.f32 %v9417, %v3130
        %v9498 = vmul.f32 %v9418, %v3130
        %v9499 = vmul.f32 %v9419, %v3130
        %v9500 = vmul.f32 %v9421, %v3130
        %v9501 = vmul.f32 %v9422, %v3130
        %v9502 = vmul.f32 %v9423, %v3130
        %v9503 = vmul.f32 %v9425, %v3130
        %v9504 = vmul.f32 %v9426, %v3130
        %v9505 = vmul.f32 %v9427, %v3130
        %v9506 = vmul.f32 %v9429, %v3130
        %v9507 = vmul.f32 %v9430, %v3130
        %v9508 = vmul.f32 %v9431, %v3130
        %v9509 = vmul.f32 %v9433, %v3130
        %v9510 = vmul.f32 %v9434, %v3130
        %v9511 = vmul.f32 %v9435, %v3130
        %v9512 = vmul.f32 %v9437, %v3130
        %v9513 = vmul.f32 %v9438, %v3130
        %v9514 = vmul.f32 %v9439, %v3130
        %v9515 = vmul.f32 %v9441, %v3130
        %v9516 = vmul.f32 %v9442, %v3130
        %v9517 = vmul.f32 %v9443, %v3130
        %v9518 = vmul.f32 %v9445, %v3130
        %v9519 = vmul.f32 %v9446, %v3130
        %v9520 = vmul.f32 %v9447, %v3130
        %v9545 = vrot.slane %v9497, 1
        %v9546 = vrot.slane %v9498, 1
        %v9547 = vsel %vm517, %v9545, %v9546
        %v9548 = vrot.slane %v9499, 1
        %v9549 = vsel %vm517, %v9546, %v9548
        %v9550 = vrot.slane %v9500, 1
        %v9551 = vrot.slane %v9501, 1
        %v9552 = vsel %vm517, %v9550, %v9551
        %v9553 = vrot.slane %v9502, 1
        %v9554 = vsel %vm517, %v9551, %v9553
        %v9555 = vrot.slane %v9503, 1
        %v9556 = vrot.slane %v9504, 1
        %v9557 = vsel %vm517, %v9555, %v9556
        %v9558 = vrot.slane %v9505, 1
        %v9559 = vsel %vm517, %v9556, %v9558
        %v9560 = vrot.slane %v9506, 1
        %v9561 = vrot.slane %v9507, 1
        %v9562 = vsel %vm517, %v9560, %v9561
        %v9563 = vrot.slane %v9508, 1
        %v9564 = vsel %vm517, %v9561, %v9563
        %v9565 = vrot.slane %v9509, 1
        %v9566 = vrot.slane %v9510, 1
        %v9567 = vsel %vm517, %v9565, %v9566
        %v9568 = vrot.slane %v9511, 1
        %v9569 = vsel %vm517, %v9566, %v9568
        %v9570 = vrot.slane %v9512, 1
        %v9571 = vrot.slane %v9513, 1
        %v9572 = vsel %vm517, %v9570, %v9571
        %v9573 = vrot.slane %v9514, 1
        %v9574 = vsel %vm517, %v9571, %v9573
        %v9575 = vrot.slane %v9515, 1
        %v9576 = vrot.slane %v9516, 1
        %v9577 = vsel %vm517, %v9575, %v9576
        %v9578 = vrot.slane %v9517, 1
        %v9579 = vsel %vm517, %v9576, %v9578
        %v9580 = vrot.slane %v9518, 1
        %v9581 = vrot.slane %v9519, 1
        %v9582 = vsel %vm517, %v9580, %v9581
        %v9583 = vrot.slane %v9520, 1
        %v9584 = vsel %vm517, %v9581, %v9583
        %v9609 = vadd.f32 %v9473, %v9547
        %v9610 = vadd.f32 %v9474, %v9549
        %v9611 = vadd.f32 %v9475, %v9548
        %v9612 = vadd.f32 %v9476, %v9552
        %v9613 = vadd.f32 %v9477, %v9554
        %v9614 = vadd.f32 %v9478, %v9553
        %v9615 = vadd.f32 %v9479, %v9557
        %v9616 = vadd.f32 %v9480, %v9559
        %v9617 = vadd.f32 %v9481, %v9558
        %v9618 = vadd.f32 %v9482, %v9562
        %v9619 = vadd.f32 %v9483, %v9564
        %v9620 = vadd.f32 %v9484, %v9563
        %v9621 = vadd.f32 %v9485, %v9567
        %v9622 = vadd.f32 %v9486, %v9569
        %v9623 = vadd.f32 %v9487, %v9568
        %v9624 = vadd.f32 %v9488, %v9572
        %v9625 = vadd.f32 %v9489, %v9574
        %v9626 = vadd.f32 %v9490, %v9573
        %v9627 = vadd.f32 %v9491, %v9577
        %v9628 = vadd.f32 %v9492, %v9579
        %v9629 = vadd.f32 %v9493, %v9578
        %v9630 = vadd.f32 %v9494, %v9582
        %v9631 = vadd.f32 %v9495, %v9584
        %v9632 = vadd.f32 %v9496, %v9583
        %v9633 = vmul.f32 %v9417, %v3269
        %v9634 = vmul.f32 %v9418, %v3269
        %v9635 = vmul.f32 %v9419, %v3269
        %v9636 = vmul.f32 %v9421, %v3269
        %v9637 = vmul.f32 %v9422, %v3269
        %v9638 = vmul.f32 %v9423, %v3269
        %v9639 = vmul.f32 %v9425, %v3269
        %v9640 = vmul.f32 %v9426, %v3269
        %v9641 = vmul.f32 %v9427, %v3269
        %v9642 = vmul.f32 %v9429, %v3269
        %v9643 = vmul.f32 %v9430, %v3269
        %v9644 = vmul.f32 %v9431, %v3269
        %v9645 = vmul.f32 %v9433, %v3269
        %v9646 = vmul.f32 %v9434, %v3269
        %v9647 = vmul.f32 %v9435, %v3269
        %v9648 = vmul.f32 %v9437, %v3269
        %v9649 = vmul.f32 %v9438, %v3269
        %v9650 = vmul.f32 %v9439, %v3269
        %v9651 = vmul.f32 %v9441, %v3269
        %v9652 = vmul.f32 %v9442, %v3269
        %v9653 = vmul.f32 %v9443, %v3269
        %v9654 = vmul.f32 %v9445, %v3269
        %v9655 = vmul.f32 %v9446, %v3269
        %v9656 = vmul.f32 %v9447, %v3269
        %v9681 = vrot.slane %v9633, 2
        %v9682 = vrot.slane %v9634, 2
        %v9683 = vsel %vm657, %v9681, %v9682
        %v9684 = vrot.slane %v9635, 2
        %v9685 = vsel %vm657, %v9682, %v9684
        %v9686 = vrot.slane %v9636, 2
        %v9687 = vrot.slane %v9637, 2
        %v9688 = vsel %vm657, %v9686, %v9687
        %v9689 = vrot.slane %v9638, 2
        %v9690 = vsel %vm657, %v9687, %v9689
        %v9691 = vrot.slane %v9639, 2
        %v9692 = vrot.slane %v9640, 2
        %v9693 = vsel %vm657, %v9691, %v9692
        %v9694 = vrot.slane %v9641, 2
        %v9695 = vsel %vm657, %v9692, %v9694
        %v9696 = vrot.slane %v9642, 2
        %v9697 = vrot.slane %v9643, 2
        %v9698 = vsel %vm657, %v9696, %v9697
        %v9699 = vrot.slane %v9644, 2
        %v9700 = vsel %vm657, %v9697, %v9699
        %v9701 = vrot.slane %v9645, 2
        %v9702 = vrot.slane %v9646, 2
        %v9703 = vsel %vm657, %v9701, %v9702
        %v9704 = vrot.slane %v9647, 2
        %v9705 = vsel %vm657, %v9702, %v9704
        %v9706 = vrot.slane %v9648, 2
        %v9707 = vrot.slane %v9649, 2
        %v9708 = vsel %vm657, %v9706, %v9707
        %v9709 = vrot.slane %v9650, 2
        %v9710 = vsel %vm657, %v9707, %v9709
        %v9711 = vrot.slane %v9651, 2
        %v9712 = vrot.slane %v9652, 2
        %v9713 = vsel %vm657, %v9711, %v9712
        %v9714 = vrot.slane %v9653, 2
        %v9715 = vsel %vm657, %v9712, %v9714
        %v9716 = vrot.slane %v9654, 2
        %v9717 = vrot.slane %v9655, 2
        %v9718 = vsel %vm657, %v9716, %v9717
        %v9719 = vrot.slane %v9656, 2
        %v9720 = vsel %vm657, %v9717, %v9719
        %v9745 = vadd.f32 %v9609, %v9683
        %v9746 = vadd.f32 %v9610, %v9685
        %v9747 = vadd.f32 %v9611, %v9684
        %v9748 = vadd.f32 %v9612, %v9688
        %v9749 = vadd.f32 %v9613, %v9690
        %v9750 = vadd.f32 %v9614, %v9689
        %v9751 = vadd.f32 %v9615, %v9693
        %v9752 = vadd.f32 %v9616, %v9695
        %v9753 = vadd.f32 %v9617, %v9694
        %v9754 = vadd.f32 %v9618, %v9698
        %v9755 = vadd.f32 %v9619, %v9700
        %v9756 = vadd.f32 %v9620, %v9699
        %v9757 = vadd.f32 %v9621, %v9703
        %v9758 = vadd.f32 %v9622, %v9705
        %v9759 = vadd.f32 %v9623, %v9704
        %v9760 = vadd.f32 %v9624, %v9708
        %v9761 = vadd.f32 %v9625, %v9710
        %v9762 = vadd.f32 %v9626, %v9709
        %v9763 = vadd.f32 %v9627, %v9713
        %v9764 = vadd.f32 %v9628, %v9715
        %v9765 = vadd.f32 %v9629, %v9714
        %v9766 = vadd.f32 %v9630, %v9718
        %v9767 = vadd.f32 %v9631, %v9720
        %v9768 = vadd.f32 %v9632, %v9719
        %v9769 = vmul.f32 %v9418, %v3408
        %v9770 = vmul.f32 %v9419, %v3408
        %v9771 = vmul.f32 %v9422, %v3408
        %v9772 = vmul.f32 %v9423, %v3408
        %v9773 = vmul.f32 %v9426, %v3408
        %v9774 = vmul.f32 %v9427, %v3408
        %v9775 = vmul.f32 %v9430, %v3408
        %v9776 = vmul.f32 %v9431, %v3408
        %v9777 = vmul.f32 %v9434, %v3408
        %v9778 = vmul.f32 %v9435, %v3408
        %v9779 = vmul.f32 %v9438, %v3408
        %v9780 = vmul.f32 %v9439, %v3408
        %v9781 = vmul.f32 %v9442, %v3408
        %v9782 = vmul.f32 %v9443, %v3408
        %v9783 = vmul.f32 %v9446, %v3408
        %v9784 = vmul.f32 %v9447, %v3408
        %v9801 = vrot.slane %v9769, 3
        %v9802 = vrot.slane %v9770, 3
        %v9803 = vsel %vm781, %v9801, %v9802
        %v9804 = vrot.slane %v9771, 3
        %v9805 = vrot.slane %v9772, 3
        %v9806 = vsel %vm781, %v9804, %v9805
        %v9807 = vrot.slane %v9773, 3
        %v9808 = vrot.slane %v9774, 3
        %v9809 = vsel %vm781, %v9807, %v9808
        %v9810 = vrot.slane %v9775, 3
        %v9811 = vrot.slane %v9776, 3
        %v9812 = vsel %vm781, %v9810, %v9811
        %v9813 = vrot.slane %v9777, 3
        %v9814 = vrot.slane %v9778, 3
        %v9815 = vsel %vm781, %v9813, %v9814
        %v9816 = vrot.slane %v9779, 3
        %v9817 = vrot.slane %v9780, 3
        %v9818 = vsel %vm781, %v9816, %v9817
        %v9819 = vrot.slane %v9781, 3
        %v9820 = vrot.slane %v9782, 3
        %v9821 = vsel %vm781, %v9819, %v9820
        %v9822 = vrot.slane %v9783, 3
        %v9823 = vrot.slane %v9784, 3
        %v9824 = vsel %vm781, %v9822, %v9823
        %v9849 = vadd.f32 %v9745, %v9801
        %v9850 = vadd.f32 %v9746, %v9803
        %v9851 = vadd.f32 %v9747, %v9802
        %v9852 = vadd.f32 %v9748, %v9804
        %v9853 = vadd.f32 %v9749, %v9806
        %v9854 = vadd.f32 %v9750, %v9805
        %v9855 = vadd.f32 %v9751, %v9807
        %v9856 = vadd.f32 %v9752, %v9809
        %v9857 = vadd.f32 %v9753, %v9808
        %v9858 = vadd.f32 %v9754, %v9810
        %v9859 = vadd.f32 %v9755, %v9812
        %v9860 = vadd.f32 %v9756, %v9811
        %v9861 = vadd.f32 %v9757, %v9813
        %v9862 = vadd.f32 %v9758, %v9815
        %v9863 = vadd.f32 %v9759, %v9814
        %v9864 = vadd.f32 %v9760, %v9816
        %v9865 = vadd.f32 %v9761, %v9818
        %v9866 = vadd.f32 %v9762, %v9817
        %v9867 = vadd.f32 %v9763, %v9819
        %v9868 = vadd.f32 %v9764, %v9821
        %v9869 = vadd.f32 %v9765, %v9820
        %v9870 = vadd.f32 %v9766, %v9822
        %v9871 = vadd.f32 %v9767, %v9824
        %v9872 = vadd.f32 %v9768, %v9823
        %v9873 = vmul.f32 %v9418, %v3515
        %v9874 = vmul.f32 %v9419, %v3515
        %v9875 = vmul.f32 %v9420, %v3515
        %v9876 = vmul.f32 %v9422, %v3515
        %v9877 = vmul.f32 %v9423, %v3515
        %v9878 = vmul.f32 %v9424, %v3515
        %v9879 = vmul.f32 %v9426, %v3515
        %v9880 = vmul.f32 %v9427, %v3515
        %v9881 = vmul.f32 %v9428, %v3515
        %v9882 = vmul.f32 %v9430, %v3515
        %v9883 = vmul.f32 %v9431, %v3515
        %v9884 = vmul.f32 %v9432, %v3515
        %v9885 = vmul.f32 %v9434, %v3515
        %v9886 = vmul.f32 %v9435, %v3515
        %v9887 = vmul.f32 %v9436, %v3515
        %v9888 = vmul.f32 %v9438, %v3515
        %v9889 = vmul.f32 %v9439, %v3515
        %v9890 = vmul.f32 %v9440, %v3515
        %v9891 = vmul.f32 %v9442, %v3515
        %v9892 = vmul.f32 %v9443, %v3515
        %v9893 = vmul.f32 %v9444, %v3515
        %v9894 = vmul.f32 %v9446, %v3515
        %v9895 = vmul.f32 %v9447, %v3515
        %v9896 = vmul.f32 %v9448, %v3515
        %v9921 = vrot.slane %v9873, 4
        %v9922 = vrot.slane %v9874, 4
        %v9923 = vsel %vm905, %v9921, %v9922
        %v9924 = vrot.slane %v9875, 4
        %v9925 = vsel %vm905, %v9922, %v9924
        %v9926 = vrot.slane %v9876, 4
        %v9927 = vrot.slane %v9877, 4
        %v9928 = vsel %vm905, %v9926, %v9927
        %v9929 = vrot.slane %v9878, 4
        %v9930 = vsel %vm905, %v9927, %v9929
        %v9931 = vrot.slane %v9879, 4
        %v9932 = vrot.slane %v9880, 4
        %v9933 = vsel %vm905, %v9931, %v9932
        %v9934 = vrot.slane %v9881, 4
        %v9935 = vsel %vm905, %v9932, %v9934
        %v9936 = vrot.slane %v9882, 4
        %v9937 = vrot.slane %v9883, 4
        %v9938 = vsel %vm905, %v9936, %v9937
        %v9939 = vrot.slane %v9884, 4
        %v9940 = vsel %vm905, %v9937, %v9939
        %v9941 = vrot.slane %v9885, 4
        %v9942 = vrot.slane %v9886, 4
        %v9943 = vsel %vm905, %v9941, %v9942
        %v9944 = vrot.slane %v9887, 4
        %v9945 = vsel %vm905, %v9942, %v9944
        %v9946 = vrot.slane %v9888, 4
        %v9947 = vrot.slane %v9889, 4
        %v9948 = vsel %vm905, %v9946, %v9947
        %v9949 = vrot.slane %v9890, 4
        %v9950 = vsel %vm905, %v9947, %v9949
        %v9951 = vrot.slane %v9891, 4
        %v9952 = vrot.slane %v9892, 4
        %v9953 = vsel %vm905, %v9951, %v9952
        %v9954 = vrot.slane %v9893, 4
        %v9955 = vsel %vm905, %v9952, %v9954
        %v9956 = vrot.slane %v9894, 4
        %v9957 = vrot.slane %v9895, 4
        %v9958 = vsel %vm905, %v9956, %v9957
        %v9959 = vrot.slane %v9896, 4
        %v9960 = vsel %vm905, %v9957, %v9959
        %v9985 = vadd.f32 %v9849, %v9921
        %v9986 = vadd.f32 %v9850, %v9923
        %v9987 = vadd.f32 %v9851, %v9925
        %v9988 = vadd.f32 %v9852, %v9926
        %v9989 = vadd.f32 %v9853, %v9928
        %v9990 = vadd.f32 %v9854, %v9930
        %v9991 = vadd.f32 %v9855, %v9931
        %v9992 = vadd.f32 %v9856, %v9933
        %v9993 = vadd.f32 %v9857, %v9935
        %v9994 = vadd.f32 %v9858, %v9936
        %v9995 = vadd.f32 %v9859, %v9938
        %v9996 = vadd.f32 %v9860, %v9940
        %v9997 = vadd.f32 %v9861, %v9941
        %v9998 = vadd.f32 %v9862, %v9943
        %v9999 = vadd.f32 %v9863, %v9945
        %v10000 = vadd.f32 %v9864, %v9946
        %v10001 = vadd.f32 %v9865, %v9948
        %v10002 = vadd.f32 %v9866, %v9950
        %v10003 = vadd.f32 %v9867, %v9951
        %v10004 = vadd.f32 %v9868, %v9953
        %v10005 = vadd.f32 %v9869, %v9955
        %v10006 = vadd.f32 %v9870, %v9956
        %v10007 = vadd.f32 %v9871, %v9958
        %v10008 = vadd.f32 %v9872, %v9960
        %v10009 = vmul.f32 %v9418, %v3654
        %v10010 = vmul.f32 %v9419, %v3654
        %v10011 = vmul.f32 %v9420, %v3654
        %v10012 = vmul.f32 %v9422, %v3654
        %v10013 = vmul.f32 %v9423, %v3654
        %v10014 = vmul.f32 %v9424, %v3654
        %v10015 = vmul.f32 %v9426, %v3654
        %v10016 = vmul.f32 %v9427, %v3654
        %v10017 = vmul.f32 %v9428, %v3654
        %v10018 = vmul.f32 %v9430, %v3654
        %v10019 = vmul.f32 %v9431, %v3654
        %v10020 = vmul.f32 %v9432, %v3654
        %v10021 = vmul.f32 %v9434, %v3654
        %v10022 = vmul.f32 %v9435, %v3654
        %v10023 = vmul.f32 %v9436, %v3654
        %v10024 = vmul.f32 %v9438, %v3654
        %v10025 = vmul.f32 %v9439, %v3654
        %v10026 = vmul.f32 %v9440, %v3654
        %v10027 = vmul.f32 %v9442, %v3654
        %v10028 = vmul.f32 %v9443, %v3654
        %v10029 = vmul.f32 %v9444, %v3654
        %v10030 = vmul.f32 %v9446, %v3654
        %v10031 = vmul.f32 %v9447, %v3654
        %v10032 = vmul.f32 %v9448, %v3654
        %v10057 = vrot.slane %v10009, 5
        %v10058 = vrot.slane %v10010, 5
        %v10059 = vsel %vm1045, %v10057, %v10058
        %v10060 = vrot.slane %v10011, 5
        %v10061 = vsel %vm1045, %v10058, %v10060
        %v10062 = vrot.slane %v10012, 5
        %v10063 = vrot.slane %v10013, 5
        %v10064 = vsel %vm1045, %v10062, %v10063
        %v10065 = vrot.slane %v10014, 5
        %v10066 = vsel %vm1045, %v10063, %v10065
        %v10067 = vrot.slane %v10015, 5
        %v10068 = vrot.slane %v10016, 5
        %v10069 = vsel %vm1045, %v10067, %v10068
        %v10070 = vrot.slane %v10017, 5
        %v10071 = vsel %vm1045, %v10068, %v10070
        %v10072 = vrot.slane %v10018, 5
        %v10073 = vrot.slane %v10019, 5
        %v10074 = vsel %vm1045, %v10072, %v10073
        %v10075 = vrot.slane %v10020, 5
        %v10076 = vsel %vm1045, %v10073, %v10075
        %v10077 = vrot.slane %v10021, 5
        %v10078 = vrot.slane %v10022, 5
        %v10079 = vsel %vm1045, %v10077, %v10078
        %v10080 = vrot.slane %v10023, 5
        %v10081 = vsel %vm1045, %v10078, %v10080
        %v10082 = vrot.slane %v10024, 5
        %v10083 = vrot.slane %v10025, 5
        %v10084 = vsel %vm1045, %v10082, %v10083
        %v10085 = vrot.slane %v10026, 5
        %v10086 = vsel %vm1045, %v10083, %v10085
        %v10087 = vrot.slane %v10027, 5
        %v10088 = vrot.slane %v10028, 5
        %v10089 = vsel %vm1045, %v10087, %v10088
        %v10090 = vrot.slane %v10029, 5
        %v10091 = vsel %vm1045, %v10088, %v10090
        %v10092 = vrot.slane %v10030, 5
        %v10093 = vrot.slane %v10031, 5
        %v10094 = vsel %vm1045, %v10092, %v10093
        %v10095 = vrot.slane %v10032, 5
        %v10096 = vsel %vm1045, %v10093, %v10095
        %v10121 = vadd.f32 %v9985, %v10057
        %v10122 = vadd.f32 %v9986, %v10059
        %v10123 = vadd.f32 %v9987, %v10061
        %v10124 = vadd.f32 %v9988, %v10062
        %v10125 = vadd.f32 %v9989, %v10064
        %v10126 = vadd.f32 %v9990, %v10066
        %v10127 = vadd.f32 %v9991, %v10067
        %v10128 = vadd.f32 %v9992, %v10069
        %v10129 = vadd.f32 %v9993, %v10071
        %v10130 = vadd.f32 %v9994, %v10072
        %v10131 = vadd.f32 %v9995, %v10074
        %v10132 = vadd.f32 %v9996, %v10076
        %v10133 = vadd.f32 %v9997, %v10077
        %v10134 = vadd.f32 %v9998, %v10079
        %v10135 = vadd.f32 %v9999, %v10081
        %v10136 = vadd.f32 %v10000, %v10082
        %v10137 = vadd.f32 %v10001, %v10084
        %v10138 = vadd.f32 %v10002, %v10086
        %v10139 = vadd.f32 %v10003, %v10087
        %v10140 = vadd.f32 %v10004, %v10089
        %v10141 = vadd.f32 %v10005, %v10091
        %v10142 = vadd.f32 %v10006, %v10092
        %v10143 = vadd.f32 %v10007, %v10094
        %v10144 = vadd.f32 %v10008, %v10096
        %v10145 = vmul.f32 %v9418, %v3793
        %v10146 = vmul.f32 %v9419, %v3793
        %v10147 = vmul.f32 %v9420, %v3793
        %v10148 = vmul.f32 %v9422, %v3793
        %v10149 = vmul.f32 %v9423, %v3793
        %v10150 = vmul.f32 %v9424, %v3793
        %v10151 = vmul.f32 %v9426, %v3793
        %v10152 = vmul.f32 %v9427, %v3793
        %v10153 = vmul.f32 %v9428, %v3793
        %v10154 = vmul.f32 %v9430, %v3793
        %v10155 = vmul.f32 %v9431, %v3793
        %v10156 = vmul.f32 %v9432, %v3793
        %v10157 = vmul.f32 %v9434, %v3793
        %v10158 = vmul.f32 %v9435, %v3793
        %v10159 = vmul.f32 %v9436, %v3793
        %v10160 = vmul.f32 %v9438, %v3793
        %v10161 = vmul.f32 %v9439, %v3793
        %v10162 = vmul.f32 %v9440, %v3793
        %v10163 = vmul.f32 %v9442, %v3793
        %v10164 = vmul.f32 %v9443, %v3793
        %v10165 = vmul.f32 %v9444, %v3793
        %v10166 = vmul.f32 %v9446, %v3793
        %v10167 = vmul.f32 %v9447, %v3793
        %v10168 = vmul.f32 %v9448, %v3793
        %v10193 = vrot.slane %v10145, 6
        %v10194 = vrot.slane %v10146, 6
        %v10195 = vsel %vm1185, %v10193, %v10194
        %v10196 = vrot.slane %v10147, 6
        %v10197 = vsel %vm1185, %v10194, %v10196
        %v10198 = vrot.slane %v10148, 6
        %v10199 = vrot.slane %v10149, 6
        %v10200 = vsel %vm1185, %v10198, %v10199
        %v10201 = vrot.slane %v10150, 6
        %v10202 = vsel %vm1185, %v10199, %v10201
        %v10203 = vrot.slane %v10151, 6
        %v10204 = vrot.slane %v10152, 6
        %v10205 = vsel %vm1185, %v10203, %v10204
        %v10206 = vrot.slane %v10153, 6
        %v10207 = vsel %vm1185, %v10204, %v10206
        %v10208 = vrot.slane %v10154, 6
        %v10209 = vrot.slane %v10155, 6
        %v10210 = vsel %vm1185, %v10208, %v10209
        %v10211 = vrot.slane %v10156, 6
        %v10212 = vsel %vm1185, %v10209, %v10211
        %v10213 = vrot.slane %v10157, 6
        %v10214 = vrot.slane %v10158, 6
        %v10215 = vsel %vm1185, %v10213, %v10214
        %v10216 = vrot.slane %v10159, 6
        %v10217 = vsel %vm1185, %v10214, %v10216
        %v10218 = vrot.slane %v10160, 6
        %v10219 = vrot.slane %v10161, 6
        %v10220 = vsel %vm1185, %v10218, %v10219
        %v10221 = vrot.slane %v10162, 6
        %v10222 = vsel %vm1185, %v10219, %v10221
        %v10223 = vrot.slane %v10163, 6
        %v10224 = vrot.slane %v10164, 6
        %v10225 = vsel %vm1185, %v10223, %v10224
        %v10226 = vrot.slane %v10165, 6
        %v10227 = vsel %vm1185, %v10224, %v10226
        %v10228 = vrot.slane %v10166, 6
        %v10229 = vrot.slane %v10167, 6
        %v10230 = vsel %vm1185, %v10228, %v10229
        %v10231 = vrot.slane %v10168, 6
        %v10232 = vsel %vm1185, %v10229, %v10231
        %v10257 = vadd.f32 %v10121, %v10193
        %v10258 = vadd.f32 %v10122, %v10195
        %v10259 = vadd.f32 %v10123, %v10197
        %v10260 = vadd.f32 %v10124, %v10198
        %v10261 = vadd.f32 %v10125, %v10200
        %v10262 = vadd.f32 %v10126, %v10202
        %v10263 = vadd.f32 %v10127, %v10203
        %v10264 = vadd.f32 %v10128, %v10205
        %v10265 = vadd.f32 %v10129, %v10207
        %v10266 = vadd.f32 %v10130, %v10208
        %v10267 = vadd.f32 %v10131, %v10210
        %v10268 = vadd.f32 %v10132, %v10212
        %v10269 = vadd.f32 %v10133, %v10213
        %v10270 = vadd.f32 %v10134, %v10215
        %v10271 = vadd.f32 %v10135, %v10217
        %v10272 = vadd.f32 %v10136, %v10218
        %v10273 = vadd.f32 %v10137, %v10220
        %v10274 = vadd.f32 %v10138, %v10222
        %v10275 = vadd.f32 %v10139, %v10223
        %v10276 = vadd.f32 %v10140, %v10225
        %v10277 = vadd.f32 %v10141, %v10227
        %v10278 = vadd.f32 %v10142, %v10228
        %v10279 = vadd.f32 %v10143, %v10230
        %v10280 = vadd.f32 %v10144, %v10232
        %s10281 = scalar_lea.vmem [#allocation2], 384
        %v10282 = vld [vmem:[%s10281] sm:$0xff]
        %v10283 = vld [vmem:[%s10281 + $0x8] sm:$0xff]
        %v10284 = vld [vmem:[%s10281 + $0x10] sm:$0xff]
        %v10285 = vld [vmem:[%s10281 + $0x18] sm:$0x7]
        %v10286 = vld [vmem:[%s10281 + $0x20] sm:$0xff]
        %v10287 = vld [vmem:[%s10281 + $0x28] sm:$0xff]
        %v10288 = vld [vmem:[%s10281 + $0x30] sm:$0xff]
        %v10289 = vld [vmem:[%s10281 + $0x38] sm:$0x7]
        %v10290 = vld [vmem:[%s10281 + $0x40] sm:$0xff]
        %v10291 = vld [vmem:[%s10281 + $0x48] sm:$0xff]
        %v10292 = vld [vmem:[%s10281 + $0x50] sm:$0xff]
        %v10293 = vld [vmem:[%s10281 + $0x58] sm:$0x7]
        %v10294 = vld [vmem:[%s10281 + $0x60] sm:$0xff]
        %v10295 = vld [vmem:[%s10281 + $0x68] sm:$0xff]
        %v10296 = vld [vmem:[%s10281 + $0x70] sm:$0xff]
        %v10297 = vld [vmem:[%s10281 + $0x78] sm:$0x7]
        %v10298 = vld [vmem:[%s10281 + $0x80] sm:$0xff]
        %v10299 = vld [vmem:[%s10281 + $0x88] sm:$0xff]
        %v10300 = vld [vmem:[%s10281 + $0x90] sm:$0xff]
        %v10301 = vld [vmem:[%s10281 + $0x98] sm:$0x7]
        %v10302 = vld [vmem:[%s10281 + $0xa0] sm:$0xff]
        %v10303 = vld [vmem:[%s10281 + $0xa8] sm:$0xff]
        %v10304 = vld [vmem:[%s10281 + $0xb0] sm:$0xff]
        %v10305 = vld [vmem:[%s10281 + $0xb8] sm:$0x7]
        %v10306 = vld [vmem:[%s10281 + $0xc0] sm:$0xff]
        %v10307 = vld [vmem:[%s10281 + $0xc8] sm:$0xff]
        %v10308 = vld [vmem:[%s10281 + $0xd0] sm:$0xff]
        %v10309 = vld [vmem:[%s10281 + $0xd8] sm:$0x7]
        %v10310 = vld [vmem:[%s10281 + $0xe0] sm:$0xff]
        %v10311 = vld [vmem:[%s10281 + $0xe8] sm:$0xff]
        %v10312 = vld [vmem:[%s10281 + $0xf0] sm:$0xff]
        %v10313 = vld [vmem:[%s10281 + $0xf8] sm:$0x7]
        %v10314 = vmul.f32 %v10282, %v3965
        %v10315 = vmul.f32 %v10283, %v3965
        %v10316 = vmul.f32 %v10284, %v3965
        %v10317 = vmul.f32 %v10286, %v3965
        %v10318 = vmul.f32 %v10287, %v3965
        %v10319 = vmul.f32 %v10288, %v3965
        %v10320 = vmul.f32 %v10290, %v3965
        %v10321 = vmul.f32 %v10291, %v3965
        %v10322 = vmul.f32 %v10292, %v3965
        %v10323 = vmul.f32 %v10294, %v3965
        %v10324 = vmul.f32 %v10295, %v3965
        %v10325 = vmul.f32 %v10296, %v3965
        %v10326 = vmul.f32 %v10298, %v3965
        %v10327 = vmul.f32 %v10299, %v3965
        %v10328 = vmul.f32 %v10300, %v3965
        %v10329 = vmul.f32 %v10302, %v3965
        %v10330 = vmul.f32 %v10303, %v3965
        %v10331 = vmul.f32 %v10304, %v3965
        %v10332 = vmul.f32 %v10306, %v3965
        %v10333 = vmul.f32 %v10307, %v3965
        %v10334 = vmul.f32 %v10308, %v3965
        %v10335 = vmul.f32 %v10310, %v3965
        %v10336 = vmul.f32 %v10311, %v3965
        %v10337 = vmul.f32 %v10312, %v3965
        %v10338 = vadd.f32 %v10257, %v10314
        %v10339 = vadd.f32 %v10258, %v10315
        %v10340 = vadd.f32 %v10259, %v10316
        %v10341 = vadd.f32 %v10260, %v10317
        %v10342 = vadd.f32 %v10261, %v10318
        %v10343 = vadd.f32 %v10262, %v10319
        %v10344 = vadd.f32 %v10263, %v10320
        %v10345 = vadd.f32 %v10264, %v10321
        %v10346 = vadd.f32 %v10265, %v10322
        %v10347 = vadd.f32 %v10266, %v10323
        %v10348 = vadd.f32 %v10267, %v10324
        %v10349 = vadd.f32 %v10268, %v10325
        %v10350 = vadd.f32 %v10269, %v10326
        %v10351 = vadd.f32 %v10270, %v10327
        %v10352 = vadd.f32 %v10271, %v10328
        %v10353 = vadd.f32 %v10272, %v10329
        %v10354 = vadd.f32 %v10273, %v10330
        %v10355 = vadd.f32 %v10274, %v10331
        %v10356 = vadd.f32 %v10275, %v10332
        %v10357 = vadd.f32 %v10276, %v10333
        %v10358 = vadd.f32 %v10277, %v10334
        %v10359 = vadd.f32 %v10278, %v10335
        %v10360 = vadd.f32 %v10279, %v10336
        %v10361 = vadd.f32 %v10280, %v10337
        %v10362 = vmul.f32 %v10282, %v4016
        %v10363 = vmul.f32 %v10283, %v4016
        %v10364 = vmul.f32 %v10284, %v4016
        %v10365 = vmul.f32 %v10286, %v4016
        %v10366 = vmul.f32 %v10287, %v4016
        %v10367 = vmul.f32 %v10288, %v4016
        %v10368 = vmul.f32 %v10290, %v4016
        %v10369 = vmul.f32 %v10291, %v4016
        %v10370 = vmul.f32 %v10292, %v4016
        %v10371 = vmul.f32 %v10294, %v4016
        %v10372 = vmul.f32 %v10295, %v4016
        %v10373 = vmul.f32 %v10296, %v4016
        %v10374 = vmul.f32 %v10298, %v4016
        %v10375 = vmul.f32 %v10299, %v4016
        %v10376 = vmul.f32 %v10300, %v4016
        %v10377 = vmul.f32 %v10302, %v4016
        %v10378 = vmul.f32 %v10303, %v4016
        %v10379 = vmul.f32 %v10304, %v4016
        %v10380 = vmul.f32 %v10306, %v4016
        %v10381 = vmul.f32 %v10307, %v4016
        %v10382 = vmul.f32 %v10308, %v4016
        %v10383 = vmul.f32 %v10310, %v4016
        %v10384 = vmul.f32 %v10311, %v4016
        %v10385 = vmul.f32 %v10312, %v4016
        %v10410 = vrot.slane %v10362, 1
        %v10411 = vrot.slane %v10363, 1
        %v10412 = vsel %vm517, %v10410, %v10411
        %v10413 = vrot.slane %v10364, 1
        %v10414 = vsel %vm517, %v10411, %v10413
        %v10415 = vrot.slane %v10365, 1
        %v10416 = vrot.slane %v10366, 1
        %v10417 = vsel %vm517, %v10415, %v10416
        %v10418 = vrot.slane %v10367, 1
        %v10419 = vsel %vm517, %v10416, %v10418
        %v10420 = vrot.slane %v10368, 1
        %v10421 = vrot.slane %v10369, 1
        %v10422 = vsel %vm517, %v10420, %v10421
        %v10423 = vrot.slane %v10370, 1
        %v10424 = vsel %vm517, %v10421, %v10423
        %v10425 = vrot.slane %v10371, 1
        %v10426 = vrot.slane %v10372, 1
        %v10427 = vsel %vm517, %v10425, %v10426
        %v10428 = vrot.slane %v10373, 1
        %v10429 = vsel %vm517, %v10426, %v10428
        %v10430 = vrot.slane %v10374, 1
        %v10431 = vrot.slane %v10375, 1
        %v10432 = vsel %vm517, %v10430, %v10431
        %v10433 = vrot.slane %v10376, 1
        %v10434 = vsel %vm517, %v10431, %v10433
        %v10435 = vrot.slane %v10377, 1
        %v10436 = vrot.slane %v10378, 1
        %v10437 = vsel %vm517, %v10435, %v10436
        %v10438 = vrot.slane %v10379, 1
        %v10439 = vsel %vm517, %v10436, %v10438
        %v10440 = vrot.slane %v10380, 1
        %v10441 = vrot.slane %v10381, 1
        %v10442 = vsel %vm517, %v10440, %v10441
        %v10443 = vrot.slane %v10382, 1
        %v10444 = vsel %vm517, %v10441, %v10443
        %v10445 = vrot.slane %v10383, 1
        %v10446 = vrot.slane %v10384, 1
        %v10447 = vsel %vm517, %v10445, %v10446
        %v10448 = vrot.slane %v10385, 1
        %v10449 = vsel %vm517, %v10446, %v10448
        %v10474 = vadd.f32 %v10338, %v10412
        %v10475 = vadd.f32 %v10339, %v10414
        %v10476 = vadd.f32 %v10340, %v10413
        %v10477 = vadd.f32 %v10341, %v10417
        %v10478 = vadd.f32 %v10342, %v10419
        %v10479 = vadd.f32 %v10343, %v10418
        %v10480 = vadd.f32 %v10344, %v10422
        %v10481 = vadd.f32 %v10345, %v10424
        %v10482 = vadd.f32 %v10346, %v10423
        %v10483 = vadd.f32 %v10347, %v10427
        %v10484 = vadd.f32 %v10348, %v10429
        %v10485 = vadd.f32 %v10349, %v10428
        %v10486 = vadd.f32 %v10350, %v10432
        %v10487 = vadd.f32 %v10351, %v10434
        %v10488 = vadd.f32 %v10352, %v10433
        %v10489 = vadd.f32 %v10353, %v10437
        %v10490 = vadd.f32 %v10354, %v10439
        %v10491 = vadd.f32 %v10355, %v10438
        %v10492 = vadd.f32 %v10356, %v10442
        %v10493 = vadd.f32 %v10357, %v10444
        %v10494 = vadd.f32 %v10358, %v10443
        %v10495 = vadd.f32 %v10359, %v10447
        %v10496 = vadd.f32 %v10360, %v10449
        %v10497 = vadd.f32 %v10361, %v10448
        %v10498 = vmul.f32 %v10282, %v4155
        %v10499 = vmul.f32 %v10283, %v4155
        %v10500 = vmul.f32 %v10284, %v4155
        %v10501 = vmul.f32 %v10286, %v4155
        %v10502 = vmul.f32 %v10287, %v4155
        %v10503 = vmul.f32 %v10288, %v4155
        %v10504 = vmul.f32 %v10290, %v4155
        %v10505 = vmul.f32 %v10291, %v4155
        %v10506 = vmul.f32 %v10292, %v4155
        %v10507 = vmul.f32 %v10294, %v4155
        %v10508 = vmul.f32 %v10295, %v4155
        %v10509 = vmul.f32 %v10296, %v4155
        %v10510 = vmul.f32 %v10298, %v4155
        %v10511 = vmul.f32 %v10299, %v4155
        %v10512 = vmul.f32 %v10300, %v4155
        %v10513 = vmul.f32 %v10302, %v4155
        %v10514 = vmul.f32 %v10303, %v4155
        %v10515 = vmul.f32 %v10304, %v4155
        %v10516 = vmul.f32 %v10306, %v4155
        %v10517 = vmul.f32 %v10307, %v4155
        %v10518 = vmul.f32 %v10308, %v4155
        %v10519 = vmul.f32 %v10310, %v4155
        %v10520 = vmul.f32 %v10311, %v4155
        %v10521 = vmul.f32 %v10312, %v4155
        %v10546 = vrot.slane %v10498, 2
        %v10547 = vrot.slane %v10499, 2
        %v10548 = vsel %vm657, %v10546, %v10547
        %v10549 = vrot.slane %v10500, 2
        %v10550 = vsel %vm657, %v10547, %v10549
        %v10551 = vrot.slane %v10501, 2
        %v10552 = vrot.slane %v10502, 2
        %v10553 = vsel %vm657, %v10551, %v10552
        %v10554 = vrot.slane %v10503, 2
        %v10555 = vsel %vm657, %v10552, %v10554
        %v10556 = vrot.slane %v10504, 2
        %v10557 = vrot.slane %v10505, 2
        %v10558 = vsel %vm657, %v10556, %v10557
        %v10559 = vrot.slane %v10506, 2
        %v10560 = vsel %vm657, %v10557, %v10559
        %v10561 = vrot.slane %v10507, 2
        %v10562 = vrot.slane %v10508, 2
        %v10563 = vsel %vm657, %v10561, %v10562
        %v10564 = vrot.slane %v10509, 2
        %v10565 = vsel %vm657, %v10562, %v10564
        %v10566 = vrot.slane %v10510, 2
        %v10567 = vrot.slane %v10511, 2
        %v10568 = vsel %vm657, %v10566, %v10567
        %v10569 = vrot.slane %v10512, 2
        %v10570 = vsel %vm657, %v10567, %v10569
        %v10571 = vrot.slane %v10513, 2
        %v10572 = vrot.slane %v10514, 2
        %v10573 = vsel %vm657, %v10571, %v10572
        %v10574 = vrot.slane %v10515, 2
        %v10575 = vsel %vm657, %v10572, %v10574
        %v10576 = vrot.slane %v10516, 2
        %v10577 = vrot.slane %v10517, 2
        %v10578 = vsel %vm657, %v10576, %v10577
        %v10579 = vrot.slane %v10518, 2
        %v10580 = vsel %vm657, %v10577, %v10579
        %v10581 = vrot.slane %v10519, 2
        %v10582 = vrot.slane %v10520, 2
        %v10583 = vsel %vm657, %v10581, %v10582
        %v10584 = vrot.slane %v10521, 2
        %v10585 = vsel %vm657, %v10582, %v10584
        %v10610 = vadd.f32 %v10474, %v10548
        %v10611 = vadd.f32 %v10475, %v10550
        %v10612 = vadd.f32 %v10476, %v10549
        %v10613 = vadd.f32 %v10477, %v10553
        %v10614 = vadd.f32 %v10478, %v10555
        %v10615 = vadd.f32 %v10479, %v10554
        %v10616 = vadd.f32 %v10480, %v10558
        %v10617 = vadd.f32 %v10481, %v10560
        %v10618 = vadd.f32 %v10482, %v10559
        %v10619 = vadd.f32 %v10483, %v10563
        %v10620 = vadd.f32 %v10484, %v10565
        %v10621 = vadd.f32 %v10485, %v10564
        %v10622 = vadd.f32 %v10486, %v10568
        %v10623 = vadd.f32 %v10487, %v10570
        %v10624 = vadd.f32 %v10488, %v10569
        %v10625 = vadd.f32 %v10489, %v10573
        %v10626 = vadd.f32 %v10490, %v10575
        %v10627 = vadd.f32 %v10491, %v10574
        %v10628 = vadd.f32 %v10492, %v10578
        %v10629 = vadd.f32 %v10493, %v10580
        %v10630 = vadd.f32 %v10494, %v10579
        %v10631 = vadd.f32 %v10495, %v10583
        %v10632 = vadd.f32 %v10496, %v10585
        %v10633 = vadd.f32 %v10497, %v10584
        %v10634 = vmul.f32 %v10283, %v4294
        %v10635 = vmul.f32 %v10284, %v4294
        %v10636 = vmul.f32 %v10287, %v4294
        %v10637 = vmul.f32 %v10288, %v4294
        %v10638 = vmul.f32 %v10291, %v4294
        %v10639 = vmul.f32 %v10292, %v4294
        %v10640 = vmul.f32 %v10295, %v4294
        %v10641 = vmul.f32 %v10296, %v4294
        %v10642 = vmul.f32 %v10299, %v4294
        %v10643 = vmul.f32 %v10300, %v4294
        %v10644 = vmul.f32 %v10303, %v4294
        %v10645 = vmul.f32 %v10304, %v4294
        %v10646 = vmul.f32 %v10307, %v4294
        %v10647 = vmul.f32 %v10308, %v4294
        %v10648 = vmul.f32 %v10311, %v4294
        %v10649 = vmul.f32 %v10312, %v4294
        %v10666 = vrot.slane %v10634, 3
        %v10667 = vrot.slane %v10635, 3
        %v10668 = vsel %vm781, %v10666, %v10667
        %v10669 = vrot.slane %v10636, 3
        %v10670 = vrot.slane %v10637, 3
        %v10671 = vsel %vm781, %v10669, %v10670
        %v10672 = vrot.slane %v10638, 3
        %v10673 = vrot.slane %v10639, 3
        %v10674 = vsel %vm781, %v10672, %v10673
        %v10675 = vrot.slane %v10640, 3
        %v10676 = vrot.slane %v10641, 3
        %v10677 = vsel %vm781, %v10675, %v10676
        %v10678 = vrot.slane %v10642, 3
        %v10679 = vrot.slane %v10643, 3
        %v10680 = vsel %vm781, %v10678, %v10679
        %v10681 = vrot.slane %v10644, 3
        %v10682 = vrot.slane %v10645, 3
        %v10683 = vsel %vm781, %v10681, %v10682
        %v10684 = vrot.slane %v10646, 3
        %v10685 = vrot.slane %v10647, 3
        %v10686 = vsel %vm781, %v10684, %v10685
        %v10687 = vrot.slane %v10648, 3
        %v10688 = vrot.slane %v10649, 3
        %v10689 = vsel %vm781, %v10687, %v10688
        %v10714 = vadd.f32 %v10610, %v10666
        %v10715 = vadd.f32 %v10611, %v10668
        %v10716 = vadd.f32 %v10612, %v10667
        %v10717 = vadd.f32 %v10613, %v10669
        %v10718 = vadd.f32 %v10614, %v10671
        %v10719 = vadd.f32 %v10615, %v10670
        %v10720 = vadd.f32 %v10616, %v10672
        %v10721 = vadd.f32 %v10617, %v10674
        %v10722 = vadd.f32 %v10618, %v10673
        %v10723 = vadd.f32 %v10619, %v10675
        %v10724 = vadd.f32 %v10620, %v10677
        %v10725 = vadd.f32 %v10621, %v10676
        %v10726 = vadd.f32 %v10622, %v10678
        %v10727 = vadd.f32 %v10623, %v10680
        %v10728 = vadd.f32 %v10624, %v10679
        %v10729 = vadd.f32 %v10625, %v10681
        %v10730 = vadd.f32 %v10626, %v10683
        %v10731 = vadd.f32 %v10627, %v10682
        %v10732 = vadd.f32 %v10628, %v10684
        %v10733 = vadd.f32 %v10629, %v10686
        %v10734 = vadd.f32 %v10630, %v10685
        %v10735 = vadd.f32 %v10631, %v10687
        %v10736 = vadd.f32 %v10632, %v10689
        %v10737 = vadd.f32 %v10633, %v10688
        %v10738 = vmul.f32 %v10283, %v4401
        %v10739 = vmul.f32 %v10284, %v4401
        %v10740 = vmul.f32 %v10285, %v4401
        %v10741 = vmul.f32 %v10287, %v4401
        %v10742 = vmul.f32 %v10288, %v4401
        %v10743 = vmul.f32 %v10289, %v4401
        %v10744 = vmul.f32 %v10291, %v4401
        %v10745 = vmul.f32 %v10292, %v4401
        %v10746 = vmul.f32 %v10293, %v4401
        %v10747 = vmul.f32 %v10295, %v4401
        %v10748 = vmul.f32 %v10296, %v4401
        %v10749 = vmul.f32 %v10297, %v4401
        %v10750 = vmul.f32 %v10299, %v4401
        %v10751 = vmul.f32 %v10300, %v4401
        %v10752 = vmul.f32 %v10301, %v4401
        %v10753 = vmul.f32 %v10303, %v4401
        %v10754 = vmul.f32 %v10304, %v4401
        %v10755 = vmul.f32 %v10305, %v4401
        %v10756 = vmul.f32 %v10307, %v4401
        %v10757 = vmul.f32 %v10308, %v4401
        %v10758 = vmul.f32 %v10309, %v4401
        %v10759 = vmul.f32 %v10311, %v4401
        %v10760 = vmul.f32 %v10312, %v4401
        %v10761 = vmul.f32 %v10313, %v4401
        %v10786 = vrot.slane %v10738, 4
        %v10787 = vrot.slane %v10739, 4
        %v10788 = vsel %vm905, %v10786, %v10787
        %v10789 = vrot.slane %v10740, 4
        %v10790 = vsel %vm905, %v10787, %v10789
        %v10791 = vrot.slane %v10741, 4
        %v10792 = vrot.slane %v10742, 4
        %v10793 = vsel %vm905, %v10791, %v10792
        %v10794 = vrot.slane %v10743, 4
        %v10795 = vsel %vm905, %v10792, %v10794
        %v10796 = vrot.slane %v10744, 4
        %v10797 = vrot.slane %v10745, 4
        %v10798 = vsel %vm905, %v10796, %v10797
        %v10799 = vrot.slane %v10746, 4
        %v10800 = vsel %vm905, %v10797, %v10799
        %v10801 = vrot.slane %v10747, 4
        %v10802 = vrot.slane %v10748, 4
        %v10803 = vsel %vm905, %v10801, %v10802
        %v10804 = vrot.slane %v10749, 4
        %v10805 = vsel %vm905, %v10802, %v10804
        %v10806 = vrot.slane %v10750, 4
        %v10807 = vrot.slane %v10751, 4
        %v10808 = vsel %vm905, %v10806, %v10807
        %v10809 = vrot.slane %v10752, 4
        %v10810 = vsel %vm905, %v10807, %v10809
        %v10811 = vrot.slane %v10753, 4
        %v10812 = vrot.slane %v10754, 4
        %v10813 = vsel %vm905, %v10811, %v10812
        %v10814 = vrot.slane %v10755, 4
        %v10815 = vsel %vm905, %v10812, %v10814
        %v10816 = vrot.slane %v10756, 4
        %v10817 = vrot.slane %v10757, 4
        %v10818 = vsel %vm905, %v10816, %v10817
        %v10819 = vrot.slane %v10758, 4
        %v10820 = vsel %vm905, %v10817, %v10819
        %v10821 = vrot.slane %v10759, 4
        %v10822 = vrot.slane %v10760, 4
        %v10823 = vsel %vm905, %v10821, %v10822
        %v10824 = vrot.slane %v10761, 4
        %v10825 = vsel %vm905, %v10822, %v10824
        %v10850 = vadd.f32 %v10714, %v10786
        %v10851 = vadd.f32 %v10715, %v10788
        %v10852 = vadd.f32 %v10716, %v10790
        %v10853 = vadd.f32 %v10717, %v10791
        %v10854 = vadd.f32 %v10718, %v10793
        %v10855 = vadd.f32 %v10719, %v10795
        %v10856 = vadd.f32 %v10720, %v10796
        %v10857 = vadd.f32 %v10721, %v10798
        %v10858 = vadd.f32 %v10722, %v10800
        %v10859 = vadd.f32 %v10723, %v10801
        %v10860 = vadd.f32 %v10724, %v10803
        %v10861 = vadd.f32 %v10725, %v10805
        %v10862 = vadd.f32 %v10726, %v10806
        %v10863 = vadd.f32 %v10727, %v10808
        %v10864 = vadd.f32 %v10728, %v10810
        %v10865 = vadd.f32 %v10729, %v10811
        %v10866 = vadd.f32 %v10730, %v10813
        %v10867 = vadd.f32 %v10731, %v10815
        %v10868 = vadd.f32 %v10732, %v10816
        %v10869 = vadd.f32 %v10733, %v10818
        %v10870 = vadd.f32 %v10734, %v10820
        %v10871 = vadd.f32 %v10735, %v10821
        %v10872 = vadd.f32 %v10736, %v10823
        %v10873 = vadd.f32 %v10737, %v10825
        %v10874 = vmul.f32 %v10283, %v4540
        %v10875 = vmul.f32 %v10284, %v4540
        %v10876 = vmul.f32 %v10285, %v4540
        %v10877 = vmul.f32 %v10287, %v4540
        %v10878 = vmul.f32 %v10288, %v4540
        %v10879 = vmul.f32 %v10289, %v4540
        %v10880 = vmul.f32 %v10291, %v4540
        %v10881 = vmul.f32 %v10292, %v4540
        %v10882 = vmul.f32 %v10293, %v4540
        %v10883 = vmul.f32 %v10295, %v4540
        %v10884 = vmul.f32 %v10296, %v4540
        %v10885 = vmul.f32 %v10297, %v4540
        %v10886 = vmul.f32 %v10299, %v4540
        %v10887 = vmul.f32 %v10300, %v4540
        %v10888 = vmul.f32 %v10301, %v4540
        %v10889 = vmul.f32 %v10303, %v4540
        %v10890 = vmul.f32 %v10304, %v4540
        %v10891 = vmul.f32 %v10305, %v4540
        %v10892 = vmul.f32 %v10307, %v4540
        %v10893 = vmul.f32 %v10308, %v4540
        %v10894 = vmul.f32 %v10309, %v4540
        %v10895 = vmul.f32 %v10311, %v4540
        %v10896 = vmul.f32 %v10312, %v4540
        %v10897 = vmul.f32 %v10313, %v4540
        %v10922 = vrot.slane %v10874, 5
        %v10923 = vrot.slane %v10875, 5
        %v10924 = vsel %vm1045, %v10922, %v10923
        %v10925 = vrot.slane %v10876, 5
        %v10926 = vsel %vm1045, %v10923, %v10925
        %v10927 = vrot.slane %v10877, 5
        %v10928 = vrot.slane %v10878, 5
        %v10929 = vsel %vm1045, %v10927, %v10928
        %v10930 = vrot.slane %v10879, 5
        %v10931 = vsel %vm1045, %v10928, %v10930
        %v10932 = vrot.slane %v10880, 5
        %v10933 = vrot.slane %v10881, 5
        %v10934 = vsel %vm1045, %v10932, %v10933
        %v10935 = vrot.slane %v10882, 5
        %v10936 = vsel %vm1045, %v10933, %v10935
        %v10937 = vrot.slane %v10883, 5
        %v10938 = vrot.slane %v10884, 5
        %v10939 = vsel %vm1045, %v10937, %v10938
        %v10940 = vrot.slane %v10885, 5
        %v10941 = vsel %vm1045, %v10938, %v10940
        %v10942 = vrot.slane %v10886, 5
        %v10943 = vrot.slane %v10887, 5
        %v10944 = vsel %vm1045, %v10942, %v10943
        %v10945 = vrot.slane %v10888, 5
        %v10946 = vsel %vm1045, %v10943, %v10945
        %v10947 = vrot.slane %v10889, 5
        %v10948 = vrot.slane %v10890, 5
        %v10949 = vsel %vm1045, %v10947, %v10948
        %v10950 = vrot.slane %v10891, 5
        %v10951 = vsel %vm1045, %v10948, %v10950
        %v10952 = vrot.slane %v10892, 5
        %v10953 = vrot.slane %v10893, 5
        %v10954 = vsel %vm1045, %v10952, %v10953
        %v10955 = vrot.slane %v10894, 5
        %v10956 = vsel %vm1045, %v10953, %v10955
        %v10957 = vrot.slane %v10895, 5
        %v10958 = vrot.slane %v10896, 5
        %v10959 = vsel %vm1045, %v10957, %v10958
        %v10960 = vrot.slane %v10897, 5
        %v10961 = vsel %vm1045, %v10958, %v10960
        %v10986 = vadd.f32 %v10850, %v10922
        %v10987 = vadd.f32 %v10851, %v10924
        %v10988 = vadd.f32 %v10852, %v10926
        %v10989 = vadd.f32 %v10853, %v10927
        %v10990 = vadd.f32 %v10854, %v10929
        %v10991 = vadd.f32 %v10855, %v10931
        %v10992 = vadd.f32 %v10856, %v10932
        %v10993 = vadd.f32 %v10857, %v10934
        %v10994 = vadd.f32 %v10858, %v10936
        %v10995 = vadd.f32 %v10859, %v10937
        %v10996 = vadd.f32 %v10860, %v10939
        %v10997 = vadd.f32 %v10861, %v10941
        %v10998 = vadd.f32 %v10862, %v10942
        %v10999 = vadd.f32 %v10863, %v10944
        %v11000 = vadd.f32 %v10864, %v10946
        %v11001 = vadd.f32 %v10865, %v10947
        %v11002 = vadd.f32 %v10866, %v10949
        %v11003 = vadd.f32 %v10867, %v10951
        %v11004 = vadd.f32 %v10868, %v10952
        %v11005 = vadd.f32 %v10869, %v10954
        %v11006 = vadd.f32 %v10870, %v10956
        %v11007 = vadd.f32 %v10871, %v10957
        %v11008 = vadd.f32 %v10872, %v10959
        %v11009 = vadd.f32 %v10873, %v10961
        %v11010 = vmul.f32 %v10283, %v4679
        %v11011 = vmul.f32 %v10284, %v4679
        %v11012 = vmul.f32 %v10285, %v4679
        %v11013 = vmul.f32 %v10287, %v4679
        %v11014 = vmul.f32 %v10288, %v4679
        %v11015 = vmul.f32 %v10289, %v4679
        %v11016 = vmul.f32 %v10291, %v4679
        %v11017 = vmul.f32 %v10292, %v4679
        %v11018 = vmul.f32 %v10293, %v4679
        %v11019 = vmul.f32 %v10295, %v4679
        %v11020 = vmul.f32 %v10296, %v4679
        %v11021 = vmul.f32 %v10297, %v4679
        %v11022 = vmul.f32 %v10299, %v4679
        %v11023 = vmul.f32 %v10300, %v4679
        %v11024 = vmul.f32 %v10301, %v4679
        %v11025 = vmul.f32 %v10303, %v4679
        %v11026 = vmul.f32 %v10304, %v4679
        %v11027 = vmul.f32 %v10305, %v4679
        %v11028 = vmul.f32 %v10307, %v4679
        %v11029 = vmul.f32 %v10308, %v4679
        %v11030 = vmul.f32 %v10309, %v4679
        %v11031 = vmul.f32 %v10311, %v4679
        %v11032 = vmul.f32 %v10312, %v4679
        %v11033 = vmul.f32 %v10313, %v4679
        %v11058 = vrot.slane %v11010, 6
        %v11059 = vrot.slane %v11011, 6
        %v11060 = vsel %vm1185, %v11058, %v11059
        %v11061 = vrot.slane %v11012, 6
        %v11062 = vsel %vm1185, %v11059, %v11061
        %v11063 = vrot.slane %v11013, 6
        %v11064 = vrot.slane %v11014, 6
        %v11065 = vsel %vm1185, %v11063, %v11064
        %v11066 = vrot.slane %v11015, 6
        %v11067 = vsel %vm1185, %v11064, %v11066
        %v11068 = vrot.slane %v11016, 6
        %v11069 = vrot.slane %v11017, 6
        %v11070 = vsel %vm1185, %v11068, %v11069
        %v11071 = vrot.slane %v11018, 6
        %v11072 = vsel %vm1185, %v11069, %v11071
        %v11073 = vrot.slane %v11019, 6
        %v11074 = vrot.slane %v11020, 6
        %v11075 = vsel %vm1185, %v11073, %v11074
        %v11076 = vrot.slane %v11021, 6
        %v11077 = vsel %vm1185, %v11074, %v11076
        %v11078 = vrot.slane %v11022, 6
        %v11079 = vrot.slane %v11023, 6
        %v11080 = vsel %vm1185, %v11078, %v11079
        %v11081 = vrot.slane %v11024, 6
        %v11082 = vsel %vm1185, %v11079, %v11081
        %v11083 = vrot.slane %v11025, 6
        %v11084 = vrot.slane %v11026, 6
        %v11085 = vsel %vm1185, %v11083, %v11084
        %v11086 = vrot.slane %v11027, 6
        %v11087 = vsel %vm1185, %v11084, %v11086
        %v11088 = vrot.slane %v11028, 6
        %v11089 = vrot.slane %v11029, 6
        %v11090 = vsel %vm1185, %v11088, %v11089
        %v11091 = vrot.slane %v11030, 6
        %v11092 = vsel %vm1185, %v11089, %v11091
        %v11093 = vrot.slane %v11031, 6
        %v11094 = vrot.slane %v11032, 6
        %v11095 = vsel %vm1185, %v11093, %v11094
        %v11096 = vrot.slane %v11033, 6
        %v11097 = vsel %vm1185, %v11094, %v11096
        %v11122 = vadd.f32 %v10986, %v11058
        %v11123 = vadd.f32 %v10987, %v11060
        %v11124 = vadd.f32 %v10988, %v11062
        %v11125 = vadd.f32 %v10989, %v11063
        %v11126 = vadd.f32 %v10990, %v11065
        %v11127 = vadd.f32 %v10991, %v11067
        %v11128 = vadd.f32 %v10992, %v11068
        %v11129 = vadd.f32 %v10993, %v11070
        %v11130 = vadd.f32 %v10994, %v11072
        %v11131 = vadd.f32 %v10995, %v11073
        %v11132 = vadd.f32 %v10996, %v11075
        %v11133 = vadd.f32 %v10997, %v11077
        %v11134 = vadd.f32 %v10998, %v11078
        %v11135 = vadd.f32 %v10999, %v11080
        %v11136 = vadd.f32 %v11000, %v11082
        %v11137 = vadd.f32 %v11001, %v11083
        %v11138 = vadd.f32 %v11002, %v11085
        %v11139 = vadd.f32 %v11003, %v11087
        %v11140 = vadd.f32 %v11004, %v11088
        %v11141 = vadd.f32 %v11005, %v11090
        %v11142 = vadd.f32 %v11006, %v11092
        %v11143 = vadd.f32 %v11007, %v11093
        %v11144 = vadd.f32 %v11008, %v11095
        %v11145 = vadd.f32 %v11009, %v11097
        %s11146 = scalar_lea.vmem [#allocation2], 416
        %v11147 = vld [vmem:[%s11146] sm:$0xff]
        %v11148 = vld [vmem:[%s11146 + $0x8] sm:$0xff]
        %v11149 = vld [vmem:[%s11146 + $0x10] sm:$0xff]
        %v11150 = vld [vmem:[%s11146 + $0x18] sm:$0x7]
        %v11151 = vld [vmem:[%s11146 + $0x20] sm:$0xff]
        %v11152 = vld [vmem:[%s11146 + $0x28] sm:$0xff]
        %v11153 = vld [vmem:[%s11146 + $0x30] sm:$0xff]
        %v11154 = vld [vmem:[%s11146 + $0x38] sm:$0x7]
        %v11155 = vld [vmem:[%s11146 + $0x40] sm:$0xff]
        %v11156 = vld [vmem:[%s11146 + $0x48] sm:$0xff]
        %v11157 = vld [vmem:[%s11146 + $0x50] sm:$0xff]
        %v11158 = vld [vmem:[%s11146 + $0x58] sm:$0x7]
        %v11159 = vld [vmem:[%s11146 + $0x60] sm:$0xff]
        %v11160 = vld [vmem:[%s11146 + $0x68] sm:$0xff]
        %v11161 = vld [vmem:[%s11146 + $0x70] sm:$0xff]
        %v11162 = vld [vmem:[%s11146 + $0x78] sm:$0x7]
        %v11163 = vld [vmem:[%s11146 + $0x80] sm:$0xff]
        %v11164 = vld [vmem:[%s11146 + $0x88] sm:$0xff]
        %v11165 = vld [vmem:[%s11146 + $0x90] sm:$0xff]
        %v11166 = vld [vmem:[%s11146 + $0x98] sm:$0x7]
        %v11167 = vld [vmem:[%s11146 + $0xa0] sm:$0xff]
        %v11168 = vld [vmem:[%s11146 + $0xa8] sm:$0xff]
        %v11169 = vld [vmem:[%s11146 + $0xb0] sm:$0xff]
        %v11170 = vld [vmem:[%s11146 + $0xb8] sm:$0x7]
        %v11171 = vld [vmem:[%s11146 + $0xc0] sm:$0xff]
        %v11172 = vld [vmem:[%s11146 + $0xc8] sm:$0xff]
        %v11173 = vld [vmem:[%s11146 + $0xd0] sm:$0xff]
        %v11174 = vld [vmem:[%s11146 + $0xd8] sm:$0x7]
        %v11175 = vld [vmem:[%s11146 + $0xe0] sm:$0xff]
        %v11176 = vld [vmem:[%s11146 + $0xe8] sm:$0xff]
        %v11177 = vld [vmem:[%s11146 + $0xf0] sm:$0xff]
        %v11178 = vld [vmem:[%s11146 + $0xf8] sm:$0x7]
        %v11179 = vmul.f32 %v11147, %v4851
        %v11180 = vmul.f32 %v11148, %v4851
        %v11181 = vmul.f32 %v11149, %v4851
        %v11182 = vmul.f32 %v11151, %v4851
        %v11183 = vmul.f32 %v11152, %v4851
        %v11184 = vmul.f32 %v11153, %v4851
        %v11185 = vmul.f32 %v11155, %v4851
        %v11186 = vmul.f32 %v11156, %v4851
        %v11187 = vmul.f32 %v11157, %v4851
        %v11188 = vmul.f32 %v11159, %v4851
        %v11189 = vmul.f32 %v11160, %v4851
        %v11190 = vmul.f32 %v11161, %v4851
        %v11191 = vmul.f32 %v11163, %v4851
        %v11192 = vmul.f32 %v11164, %v4851
        %v11193 = vmul.f32 %v11165, %v4851
        %v11194 = vmul.f32 %v11167, %v4851
        %v11195 = vmul.f32 %v11168, %v4851
        %v11196 = vmul.f32 %v11169, %v4851
        %v11197 = vmul.f32 %v11171, %v4851
        %v11198 = vmul.f32 %v11172, %v4851
        %v11199 = vmul.f32 %v11173, %v4851
        %v11200 = vmul.f32 %v11175, %v4851
        %v11201 = vmul.f32 %v11176, %v4851
        %v11202 = vmul.f32 %v11177, %v4851
        %v11203 = vadd.f32 %v11122, %v11179
        %v11204 = vadd.f32 %v11123, %v11180
        %v11205 = vadd.f32 %v11124, %v11181
        %v11206 = vadd.f32 %v11125, %v11182
        %v11207 = vadd.f32 %v11126, %v11183
        %v11208 = vadd.f32 %v11127, %v11184
        %v11209 = vadd.f32 %v11128, %v11185
        %v11210 = vadd.f32 %v11129, %v11186
        %v11211 = vadd.f32 %v11130, %v11187
        %v11212 = vadd.f32 %v11131, %v11188
        %v11213 = vadd.f32 %v11132, %v11189
        %v11214 = vadd.f32 %v11133, %v11190
        %v11215 = vadd.f32 %v11134, %v11191
        %v11216 = vadd.f32 %v11135, %v11192
        %v11217 = vadd.f32 %v11136, %v11193
        %v11218 = vadd.f32 %v11137, %v11194
        %v11219 = vadd.f32 %v11138, %v11195
        %v11220 = vadd.f32 %v11139, %v11196
        %v11221 = vadd.f32 %v11140, %v11197
        %v11222 = vadd.f32 %v11141, %v11198
        %v11223 = vadd.f32 %v11142, %v11199
        %v11224 = vadd.f32 %v11143, %v11200
        %v11225 = vadd.f32 %v11144, %v11201
        %v11226 = vadd.f32 %v11145, %v11202
        %v11227 = vmul.f32 %v11147, %v4902
        %v11228 = vmul.f32 %v11148, %v4902
        %v11229 = vmul.f32 %v11149, %v4902
        %v11230 = vmul.f32 %v11151, %v4902
        %v11231 = vmul.f32 %v11152, %v4902
        %v11232 = vmul.f32 %v11153, %v4902
        %v11233 = vmul.f32 %v11155, %v4902
        %v11234 = vmul.f32 %v11156, %v4902
        %v11235 = vmul.f32 %v11157, %v4902
        %v11236 = vmul.f32 %v11159, %v4902
        %v11237 = vmul.f32 %v11160, %v4902
        %v11238 = vmul.f32 %v11161, %v4902
        %v11239 = vmul.f32 %v11163, %v4902
        %v11240 = vmul.f32 %v11164, %v4902
        %v11241 = vmul.f32 %v11165, %v4902
        %v11242 = vmul.f32 %v11167, %v4902
        %v11243 = vmul.f32 %v11168, %v4902
        %v11244 = vmul.f32 %v11169, %v4902
        %v11245 = vmul.f32 %v11171, %v4902
        %v11246 = vmul.f32 %v11172, %v4902
        %v11247 = vmul.f32 %v11173, %v4902
        %v11248 = vmul.f32 %v11175, %v4902
        %v11249 = vmul.f32 %v11176, %v4902
        %v11250 = vmul.f32 %v11177, %v4902
        %v11275 = vrot.slane %v11227, 1
        %v11276 = vrot.slane %v11228, 1
        %v11277 = vsel %vm517, %v11275, %v11276
        %v11278 = vrot.slane %v11229, 1
        %v11279 = vsel %vm517, %v11276, %v11278
        %v11280 = vrot.slane %v11230, 1
        %v11281 = vrot.slane %v11231, 1
        %v11282 = vsel %vm517, %v11280, %v11281
        %v11283 = vrot.slane %v11232, 1
        %v11284 = vsel %vm517, %v11281, %v11283
        %v11285 = vrot.slane %v11233, 1
        %v11286 = vrot.slane %v11234, 1
        %v11287 = vsel %vm517, %v11285, %v11286
        %v11288 = vrot.slane %v11235, 1
        %v11289 = vsel %vm517, %v11286, %v11288
        %v11290 = vrot.slane %v11236, 1
        %v11291 = vrot.slane %v11237, 1
        %v11292 = vsel %vm517, %v11290, %v11291
        %v11293 = vrot.slane %v11238, 1
        %v11294 = vsel %vm517, %v11291, %v11293
        %v11295 = vrot.slane %v11239, 1
        %v11296 = vrot.slane %v11240, 1
        %v11297 = vsel %vm517, %v11295, %v11296
        %v11298 = vrot.slane %v11241, 1
        %v11299 = vsel %vm517, %v11296, %v11298
        %v11300 = vrot.slane %v11242, 1
        %v11301 = vrot.slane %v11243, 1
        %v11302 = vsel %vm517, %v11300, %v11301
        %v11303 = vrot.slane %v11244, 1
        %v11304 = vsel %vm517, %v11301, %v11303
        %v11305 = vrot.slane %v11245, 1
        %v11306 = vrot.slane %v11246, 1
        %v11307 = vsel %vm517, %v11305, %v11306
        %v11308 = vrot.slane %v11247, 1
        %v11309 = vsel %vm517, %v11306, %v11308
        %v11310 = vrot.slane %v11248, 1
        %v11311 = vrot.slane %v11249, 1
        %v11312 = vsel %vm517, %v11310, %v11311
        %v11313 = vrot.slane %v11250, 1
        %v11314 = vsel %vm517, %v11311, %v11313
        %v11339 = vadd.f32 %v11203, %v11277
        %v11340 = vadd.f32 %v11204, %v11279
        %v11341 = vadd.f32 %v11205, %v11278
        %v11342 = vadd.f32 %v11206, %v11282
        %v11343 = vadd.f32 %v11207, %v11284
        %v11344 = vadd.f32 %v11208, %v11283
        %v11345 = vadd.f32 %v11209, %v11287
        %v11346 = vadd.f32 %v11210, %v11289
        %v11347 = vadd.f32 %v11211, %v11288
        %v11348 = vadd.f32 %v11212, %v11292
        %v11349 = vadd.f32 %v11213, %v11294
        %v11350 = vadd.f32 %v11214, %v11293
        %v11351 = vadd.f32 %v11215, %v11297
        %v11352 = vadd.f32 %v11216, %v11299
        %v11353 = vadd.f32 %v11217, %v11298
        %v11354 = vadd.f32 %v11218, %v11302
        %v11355 = vadd.f32 %v11219, %v11304
        %v11356 = vadd.f32 %v11220, %v11303
        %v11357 = vadd.f32 %v11221, %v11307
        %v11358 = vadd.f32 %v11222, %v11309
        %v11359 = vadd.f32 %v11223, %v11308
        %v11360 = vadd.f32 %v11224, %v11312
        %v11361 = vadd.f32 %v11225, %v11314
        %v11362 = vadd.f32 %v11226, %v11313
        %v11363 = vmul.f32 %v11147, %v5041
        %v11364 = vmul.f32 %v11148, %v5041
        %v11365 = vmul.f32 %v11149, %v5041
        %v11366 = vmul.f32 %v11151, %v5041
        %v11367 = vmul.f32 %v11152, %v5041
        %v11368 = vmul.f32 %v11153, %v5041
        %v11369 = vmul.f32 %v11155, %v5041
        %v11370 = vmul.f32 %v11156, %v5041
        %v11371 = vmul.f32 %v11157, %v5041
        %v11372 = vmul.f32 %v11159, %v5041
        %v11373 = vmul.f32 %v11160, %v5041
        %v11374 = vmul.f32 %v11161, %v5041
        %v11375 = vmul.f32 %v11163, %v5041
        %v11376 = vmul.f32 %v11164, %v5041
        %v11377 = vmul.f32 %v11165, %v5041
        %v11378 = vmul.f32 %v11167, %v5041
        %v11379 = vmul.f32 %v11168, %v5041
        %v11380 = vmul.f32 %v11169, %v5041
        %v11381 = vmul.f32 %v11171, %v5041
        %v11382 = vmul.f32 %v11172, %v5041
        %v11383 = vmul.f32 %v11173, %v5041
        %v11384 = vmul.f32 %v11175, %v5041
        %v11385 = vmul.f32 %v11176, %v5041
        %v11386 = vmul.f32 %v11177, %v5041
        %v11411 = vrot.slane %v11363, 2
        %v11412 = vrot.slane %v11364, 2
        %v11413 = vsel %vm657, %v11411, %v11412
        %v11414 = vrot.slane %v11365, 2
        %v11415 = vsel %vm657, %v11412, %v11414
        %v11416 = vrot.slane %v11366, 2
        %v11417 = vrot.slane %v11367, 2
        %v11418 = vsel %vm657, %v11416, %v11417
        %v11419 = vrot.slane %v11368, 2
        %v11420 = vsel %vm657, %v11417, %v11419
        %v11421 = vrot.slane %v11369, 2
        %v11422 = vrot.slane %v11370, 2
        %v11423 = vsel %vm657, %v11421, %v11422
        %v11424 = vrot.slane %v11371, 2
        %v11425 = vsel %vm657, %v11422, %v11424
        %v11426 = vrot.slane %v11372, 2
        %v11427 = vrot.slane %v11373, 2
        %v11428 = vsel %vm657, %v11426, %v11427
        %v11429 = vrot.slane %v11374, 2
        %v11430 = vsel %vm657, %v11427, %v11429
        %v11431 = vrot.slane %v11375, 2
        %v11432 = vrot.slane %v11376, 2
        %v11433 = vsel %vm657, %v11431, %v11432
        %v11434 = vrot.slane %v11377, 2
        %v11435 = vsel %vm657, %v11432, %v11434
        %v11436 = vrot.slane %v11378, 2
        %v11437 = vrot.slane %v11379, 2
        %v11438 = vsel %vm657, %v11436, %v11437
        %v11439 = vrot.slane %v11380, 2
        %v11440 = vsel %vm657, %v11437, %v11439
        %v11441 = vrot.slane %v11381, 2
        %v11442 = vrot.slane %v11382, 2
        %v11443 = vsel %vm657, %v11441, %v11442
        %v11444 = vrot.slane %v11383, 2
        %v11445 = vsel %vm657, %v11442, %v11444
        %v11446 = vrot.slane %v11384, 2
        %v11447 = vrot.slane %v11385, 2
        %v11448 = vsel %vm657, %v11446, %v11447
        %v11449 = vrot.slane %v11386, 2
        %v11450 = vsel %vm657, %v11447, %v11449
        %v11475 = vadd.f32 %v11339, %v11413
        %v11476 = vadd.f32 %v11340, %v11415
        %v11477 = vadd.f32 %v11341, %v11414
        %v11478 = vadd.f32 %v11342, %v11418
        %v11479 = vadd.f32 %v11343, %v11420
        %v11480 = vadd.f32 %v11344, %v11419
        %v11481 = vadd.f32 %v11345, %v11423
        %v11482 = vadd.f32 %v11346, %v11425
        %v11483 = vadd.f32 %v11347, %v11424
        %v11484 = vadd.f32 %v11348, %v11428
        %v11485 = vadd.f32 %v11349, %v11430
        %v11486 = vadd.f32 %v11350, %v11429
        %v11487 = vadd.f32 %v11351, %v11433
        %v11488 = vadd.f32 %v11352, %v11435
        %v11489 = vadd.f32 %v11353, %v11434
        %v11490 = vadd.f32 %v11354, %v11438
        %v11491 = vadd.f32 %v11355, %v11440
        %v11492 = vadd.f32 %v11356, %v11439
        %v11493 = vadd.f32 %v11357, %v11443
        %v11494 = vadd.f32 %v11358, %v11445
        %v11495 = vadd.f32 %v11359, %v11444
        %v11496 = vadd.f32 %v11360, %v11448
        %v11497 = vadd.f32 %v11361, %v11450
        %v11498 = vadd.f32 %v11362, %v11449
        %v11499 = vmul.f32 %v11148, %v5180
        %v11500 = vmul.f32 %v11149, %v5180
        %v11501 = vmul.f32 %v11152, %v5180
        %v11502 = vmul.f32 %v11153, %v5180
        %v11503 = vmul.f32 %v11156, %v5180
        %v11504 = vmul.f32 %v11157, %v5180
        %v11505 = vmul.f32 %v11160, %v5180
        %v11506 = vmul.f32 %v11161, %v5180
        %v11507 = vmul.f32 %v11164, %v5180
        %v11508 = vmul.f32 %v11165, %v5180
        %v11509 = vmul.f32 %v11168, %v5180
        %v11510 = vmul.f32 %v11169, %v5180
        %v11511 = vmul.f32 %v11172, %v5180
        %v11512 = vmul.f32 %v11173, %v5180
        %v11513 = vmul.f32 %v11176, %v5180
        %v11514 = vmul.f32 %v11177, %v5180
        %v11531 = vrot.slane %v11499, 3
        %v11532 = vrot.slane %v11500, 3
        %v11533 = vsel %vm781, %v11531, %v11532
        %v11534 = vrot.slane %v11501, 3
        %v11535 = vrot.slane %v11502, 3
        %v11536 = vsel %vm781, %v11534, %v11535
        %v11537 = vrot.slane %v11503, 3
        %v11538 = vrot.slane %v11504, 3
        %v11539 = vsel %vm781, %v11537, %v11538
        %v11540 = vrot.slane %v11505, 3
        %v11541 = vrot.slane %v11506, 3
        %v11542 = vsel %vm781, %v11540, %v11541
        %v11543 = vrot.slane %v11507, 3
        %v11544 = vrot.slane %v11508, 3
        %v11545 = vsel %vm781, %v11543, %v11544
        %v11546 = vrot.slane %v11509, 3
        %v11547 = vrot.slane %v11510, 3
        %v11548 = vsel %vm781, %v11546, %v11547
        %v11549 = vrot.slane %v11511, 3
        %v11550 = vrot.slane %v11512, 3
        %v11551 = vsel %vm781, %v11549, %v11550
        %v11552 = vrot.slane %v11513, 3
        %v11553 = vrot.slane %v11514, 3
        %v11554 = vsel %vm781, %v11552, %v11553
        %v11579 = vadd.f32 %v11475, %v11531
        %v11580 = vadd.f32 %v11476, %v11533
        %v11581 = vadd.f32 %v11477, %v11532
        %v11582 = vadd.f32 %v11478, %v11534
        %v11583 = vadd.f32 %v11479, %v11536
        %v11584 = vadd.f32 %v11480, %v11535
        %v11585 = vadd.f32 %v11481, %v11537
        %v11586 = vadd.f32 %v11482, %v11539
        %v11587 = vadd.f32 %v11483, %v11538
        %v11588 = vadd.f32 %v11484, %v11540
        %v11589 = vadd.f32 %v11485, %v11542
        %v11590 = vadd.f32 %v11486, %v11541
        %v11591 = vadd.f32 %v11487, %v11543
        %v11592 = vadd.f32 %v11488, %v11545
        %v11593 = vadd.f32 %v11489, %v11544
        %v11594 = vadd.f32 %v11490, %v11546
        %v11595 = vadd.f32 %v11491, %v11548
        %v11596 = vadd.f32 %v11492, %v11547
        %v11597 = vadd.f32 %v11493, %v11549
        %v11598 = vadd.f32 %v11494, %v11551
        %v11599 = vadd.f32 %v11495, %v11550
        %v11600 = vadd.f32 %v11496, %v11552
        %v11601 = vadd.f32 %v11497, %v11554
        %v11602 = vadd.f32 %v11498, %v11553
        %v11603 = vmul.f32 %v11148, %v5287
        %v11604 = vmul.f32 %v11149, %v5287
        %v11605 = vmul.f32 %v11150, %v5287
        %v11606 = vmul.f32 %v11152, %v5287
        %v11607 = vmul.f32 %v11153, %v5287
        %v11608 = vmul.f32 %v11154, %v5287
        %v11609 = vmul.f32 %v11156, %v5287
        %v11610 = vmul.f32 %v11157, %v5287
        %v11611 = vmul.f32 %v11158, %v5287
        %v11612 = vmul.f32 %v11160, %v5287
        %v11613 = vmul.f32 %v11161, %v5287
        %v11614 = vmul.f32 %v11162, %v5287
        %v11615 = vmul.f32 %v11164, %v5287
        %v11616 = vmul.f32 %v11165, %v5287
        %v11617 = vmul.f32 %v11166, %v5287
        %v11618 = vmul.f32 %v11168, %v5287
        %v11619 = vmul.f32 %v11169, %v5287
        %v11620 = vmul.f32 %v11170, %v5287
        %v11621 = vmul.f32 %v11172, %v5287
        %v11622 = vmul.f32 %v11173, %v5287
        %v11623 = vmul.f32 %v11174, %v5287
        %v11624 = vmul.f32 %v11176, %v5287
        %v11625 = vmul.f32 %v11177, %v5287
        %v11626 = vmul.f32 %v11178, %v5287
        %v11651 = vrot.slane %v11603, 4
        %v11652 = vrot.slane %v11604, 4
        %v11653 = vsel %vm905, %v11651, %v11652
        %v11654 = vrot.slane %v11605, 4
        %v11655 = vsel %vm905, %v11652, %v11654
        %v11656 = vrot.slane %v11606, 4
        %v11657 = vrot.slane %v11607, 4
        %v11658 = vsel %vm905, %v11656, %v11657
        %v11659 = vrot.slane %v11608, 4
        %v11660 = vsel %vm905, %v11657, %v11659
        %v11661 = vrot.slane %v11609, 4
        %v11662 = vrot.slane %v11610, 4
        %v11663 = vsel %vm905, %v11661, %v11662
        %v11664 = vrot.slane %v11611, 4
        %v11665 = vsel %vm905, %v11662, %v11664
        %v11666 = vrot.slane %v11612, 4
        %v11667 = vrot.slane %v11613, 4
        %v11668 = vsel %vm905, %v11666, %v11667
        %v11669 = vrot.slane %v11614, 4
        %v11670 = vsel %vm905, %v11667, %v11669
        %v11671 = vrot.slane %v11615, 4
        %v11672 = vrot.slane %v11616, 4
        %v11673 = vsel %vm905, %v11671, %v11672
        %v11674 = vrot.slane %v11617, 4
        %v11675 = vsel %vm905, %v11672, %v11674
        %v11676 = vrot.slane %v11618, 4
        %v11677 = vrot.slane %v11619, 4
        %v11678 = vsel %vm905, %v11676, %v11677
        %v11679 = vrot.slane %v11620, 4
        %v11680 = vsel %vm905, %v11677, %v11679
        %v11681 = vrot.slane %v11621, 4
        %v11682 = vrot.slane %v11622, 4
        %v11683 = vsel %vm905, %v11681, %v11682
        %v11684 = vrot.slane %v11623, 4
        %v11685 = vsel %vm905, %v11682, %v11684
        %v11686 = vrot.slane %v11624, 4
        %v11687 = vrot.slane %v11625, 4
        %v11688 = vsel %vm905, %v11686, %v11687
        %v11689 = vrot.slane %v11626, 4
        %v11690 = vsel %vm905, %v11687, %v11689
        %v11715 = vadd.f32 %v11579, %v11651
        %v11716 = vadd.f32 %v11580, %v11653
        %v11717 = vadd.f32 %v11581, %v11655
        %v11718 = vadd.f32 %v11582, %v11656
        %v11719 = vadd.f32 %v11583, %v11658
        %v11720 = vadd.f32 %v11584, %v11660
        %v11721 = vadd.f32 %v11585, %v11661
        %v11722 = vadd.f32 %v11586, %v11663
        %v11723 = vadd.f32 %v11587, %v11665
        %v11724 = vadd.f32 %v11588, %v11666
        %v11725 = vadd.f32 %v11589, %v11668
        %v11726 = vadd.f32 %v11590, %v11670
        %v11727 = vadd.f32 %v11591, %v11671
        %v11728 = vadd.f32 %v11592, %v11673
        %v11729 = vadd.f32 %v11593, %v11675
        %v11730 = vadd.f32 %v11594, %v11676
        %v11731 = vadd.f32 %v11595, %v11678
        %v11732 = vadd.f32 %v11596, %v11680
        %v11733 = vadd.f32 %v11597, %v11681
        %v11734 = vadd.f32 %v11598, %v11683
        %v11735 = vadd.f32 %v11599, %v11685
        %v11736 = vadd.f32 %v11600, %v11686
        %v11737 = vadd.f32 %v11601, %v11688
        %v11738 = vadd.f32 %v11602, %v11690
        %v11739 = vmul.f32 %v11148, %v5426
        %v11740 = vmul.f32 %v11149, %v5426
        %v11741 = vmul.f32 %v11150, %v5426
        %v11742 = vmul.f32 %v11152, %v5426
        %v11743 = vmul.f32 %v11153, %v5426
        %v11744 = vmul.f32 %v11154, %v5426
        %v11745 = vmul.f32 %v11156, %v5426
        %v11746 = vmul.f32 %v11157, %v5426
        %v11747 = vmul.f32 %v11158, %v5426
        %v11748 = vmul.f32 %v11160, %v5426
        %v11749 = vmul.f32 %v11161, %v5426
        %v11750 = vmul.f32 %v11162, %v5426
        %v11751 = vmul.f32 %v11164, %v5426
        %v11752 = vmul.f32 %v11165, %v5426
        %v11753 = vmul.f32 %v11166, %v5426
        %v11754 = vmul.f32 %v11168, %v5426
        %v11755 = vmul.f32 %v11169, %v5426
        %v11756 = vmul.f32 %v11170, %v5426
        %v11757 = vmul.f32 %v11172, %v5426
        %v11758 = vmul.f32 %v11173, %v5426
        %v11759 = vmul.f32 %v11174, %v5426
        %v11760 = vmul.f32 %v11176, %v5426
        %v11761 = vmul.f32 %v11177, %v5426
        %v11762 = vmul.f32 %v11178, %v5426
        %v11787 = vrot.slane %v11739, 5
        %v11788 = vrot.slane %v11740, 5
        %v11789 = vsel %vm1045, %v11787, %v11788
        %v11790 = vrot.slane %v11741, 5
        %v11791 = vsel %vm1045, %v11788, %v11790
        %v11792 = vrot.slane %v11742, 5
        %v11793 = vrot.slane %v11743, 5
        %v11794 = vsel %vm1045, %v11792, %v11793
        %v11795 = vrot.slane %v11744, 5
        %v11796 = vsel %vm1045, %v11793, %v11795
        %v11797 = vrot.slane %v11745, 5
        %v11798 = vrot.slane %v11746, 5
        %v11799 = vsel %vm1045, %v11797, %v11798
        %v11800 = vrot.slane %v11747, 5
        %v11801 = vsel %vm1045, %v11798, %v11800
        %v11802 = vrot.slane %v11748, 5
        %v11803 = vrot.slane %v11749, 5
        %v11804 = vsel %vm1045, %v11802, %v11803
        %v11805 = vrot.slane %v11750, 5
        %v11806 = vsel %vm1045, %v11803, %v11805
        %v11807 = vrot.slane %v11751, 5
        %v11808 = vrot.slane %v11752, 5
        %v11809 = vsel %vm1045, %v11807, %v11808
        %v11810 = vrot.slane %v11753, 5
        %v11811 = vsel %vm1045, %v11808, %v11810
        %v11812 = vrot.slane %v11754, 5
        %v11813 = vrot.slane %v11755, 5
        %v11814 = vsel %vm1045, %v11812, %v11813
        %v11815 = vrot.slane %v11756, 5
        %v11816 = vsel %vm1045, %v11813, %v11815
        %v11817 = vrot.slane %v11757, 5
        %v11818 = vrot.slane %v11758, 5
        %v11819 = vsel %vm1045, %v11817, %v11818
        %v11820 = vrot.slane %v11759, 5
        %v11821 = vsel %vm1045, %v11818, %v11820
        %v11822 = vrot.slane %v11760, 5
        %v11823 = vrot.slane %v11761, 5
        %v11824 = vsel %vm1045, %v11822, %v11823
        %v11825 = vrot.slane %v11762, 5
        %v11826 = vsel %vm1045, %v11823, %v11825
        %v11851 = vadd.f32 %v11715, %v11787
        %v11852 = vadd.f32 %v11716, %v11789
        %v11853 = vadd.f32 %v11717, %v11791
        %v11854 = vadd.f32 %v11718, %v11792
        %v11855 = vadd.f32 %v11719, %v11794
        %v11856 = vadd.f32 %v11720, %v11796
        %v11857 = vadd.f32 %v11721, %v11797
        %v11858 = vadd.f32 %v11722, %v11799
        %v11859 = vadd.f32 %v11723, %v11801
        %v11860 = vadd.f32 %v11724, %v11802
        %v11861 = vadd.f32 %v11725, %v11804
        %v11862 = vadd.f32 %v11726, %v11806
        %v11863 = vadd.f32 %v11727, %v11807
        %v11864 = vadd.f32 %v11728, %v11809
        %v11865 = vadd.f32 %v11729, %v11811
        %v11866 = vadd.f32 %v11730, %v11812
        %v11867 = vadd.f32 %v11731, %v11814
        %v11868 = vadd.f32 %v11732, %v11816
        %v11869 = vadd.f32 %v11733, %v11817
        %v11870 = vadd.f32 %v11734, %v11819
        %v11871 = vadd.f32 %v11735, %v11821
        %v11872 = vadd.f32 %v11736, %v11822
        %v11873 = vadd.f32 %v11737, %v11824
        %v11874 = vadd.f32 %v11738, %v11826
        %v11875 = vmul.f32 %v11148, %v5565
        %v11876 = vmul.f32 %v11149, %v5565
        %v11877 = vmul.f32 %v11150, %v5565
        %v11878 = vmul.f32 %v11152, %v5565
        %v11879 = vmul.f32 %v11153, %v5565
        %v11880 = vmul.f32 %v11154, %v5565
        %v11881 = vmul.f32 %v11156, %v5565
        %v11882 = vmul.f32 %v11157, %v5565
        %v11883 = vmul.f32 %v11158, %v5565
        %v11884 = vmul.f32 %v11160, %v5565
        %v11885 = vmul.f32 %v11161, %v5565
        %v11886 = vmul.f32 %v11162, %v5565
        %v11887 = vmul.f32 %v11164, %v5565
        %v11888 = vmul.f32 %v11165, %v5565
        %v11889 = vmul.f32 %v11166, %v5565
        %v11890 = vmul.f32 %v11168, %v5565
        %v11891 = vmul.f32 %v11169, %v5565
        %v11892 = vmul.f32 %v11170, %v5565
        %v11893 = vmul.f32 %v11172, %v5565
        %v11894 = vmul.f32 %v11173, %v5565
        %v11895 = vmul.f32 %v11174, %v5565
        %v11896 = vmul.f32 %v11176, %v5565
        %v11897 = vmul.f32 %v11177, %v5565
        %v11898 = vmul.f32 %v11178, %v5565
        %v11923 = vrot.slane %v11875, 6
        %v11924 = vrot.slane %v11876, 6
        %v11925 = vsel %vm1185, %v11923, %v11924
        %v11926 = vrot.slane %v11877, 6
        %v11927 = vsel %vm1185, %v11924, %v11926
        %v11928 = vrot.slane %v11878, 6
        %v11929 = vrot.slane %v11879, 6
        %v11930 = vsel %vm1185, %v11928, %v11929
        %v11931 = vrot.slane %v11880, 6
        %v11932 = vsel %vm1185, %v11929, %v11931
        %v11933 = vrot.slane %v11881, 6
        %v11934 = vrot.slane %v11882, 6
        %v11935 = vsel %vm1185, %v11933, %v11934
        %v11936 = vrot.slane %v11883, 6
        %v11937 = vsel %vm1185, %v11934, %v11936
        %v11938 = vrot.slane %v11884, 6
        %v11939 = vrot.slane %v11885, 6
        %v11940 = vsel %vm1185, %v11938, %v11939
        %v11941 = vrot.slane %v11886, 6
        %v11942 = vsel %vm1185, %v11939, %v11941
        %v11943 = vrot.slane %v11887, 6
        %v11944 = vrot.slane %v11888, 6
        %v11945 = vsel %vm1185, %v11943, %v11944
        %v11946 = vrot.slane %v11889, 6
        %v11947 = vsel %vm1185, %v11944, %v11946
        %v11948 = vrot.slane %v11890, 6
        %v11949 = vrot.slane %v11891, 6
        %v11950 = vsel %vm1185, %v11948, %v11949
        %v11951 = vrot.slane %v11892, 6
        %v11952 = vsel %vm1185, %v11949, %v11951
        %v11953 = vrot.slane %v11893, 6
        %v11954 = vrot.slane %v11894, 6
        %v11955 = vsel %vm1185, %v11953, %v11954
        %v11956 = vrot.slane %v11895, 6
        %v11957 = vsel %vm1185, %v11954, %v11956
        %v11958 = vrot.slane %v11896, 6
        %v11959 = vrot.slane %v11897, 6
        %v11960 = vsel %vm1185, %v11958, %v11959
        %v11961 = vrot.slane %v11898, 6
        %v11962 = vsel %vm1185, %v11959, %v11961
        %v11987 = vadd.f32 %v11851, %v11923
        %v11988 = vadd.f32 %v11852, %v11925
        %v11989 = vadd.f32 %v11853, %v11927
        %v11990 = vadd.f32 %v11854, %v11928
        %v11991 = vadd.f32 %v11855, %v11930
        %v11992 = vadd.f32 %v11856, %v11932
        %v11993 = vadd.f32 %v11857, %v11933
        %v11994 = vadd.f32 %v11858, %v11935
        %v11995 = vadd.f32 %v11859, %v11937
        %v11996 = vadd.f32 %v11860, %v11938
        %v11997 = vadd.f32 %v11861, %v11940
        %v11998 = vadd.f32 %v11862, %v11942
        %v11999 = vadd.f32 %v11863, %v11943
        %v12000 = vadd.f32 %v11864, %v11945
        %v12001 = vadd.f32 %v11865, %v11947
        %v12002 = vadd.f32 %v11866, %v11948
        %v12003 = vadd.f32 %v11867, %v11950
        %v12004 = vadd.f32 %v11868, %v11952
        %v12005 = vadd.f32 %v11869, %v11953
        %v12006 = vadd.f32 %v11870, %v11955
        %v12007 = vadd.f32 %v11871, %v11957
        %v12008 = vadd.f32 %v11872, %v11958
        %v12009 = vadd.f32 %v11873, %v11960
        %v12010 = vadd.f32 %v11874, %v11962
        %s12011 = scalar_lea.vmem [#allocation2], 448
        %v12012 = vld [vmem:[%s12011] sm:$0xff]
        %v12013 = vld [vmem:[%s12011 + $0x8] sm:$0xff]
        %v12014 = vld [vmem:[%s12011 + $0x10] sm:$0xff]
        %v12015 = vld [vmem:[%s12011 + $0x18] sm:$0x7]
        %v12016 = vld [vmem:[%s12011 + $0x20] sm:$0xff]
        %v12017 = vld [vmem:[%s12011 + $0x28] sm:$0xff]
        %v12018 = vld [vmem:[%s12011 + $0x30] sm:$0xff]
        %v12019 = vld [vmem:[%s12011 + $0x38] sm:$0x7]
        %v12020 = vld [vmem:[%s12011 + $0x40] sm:$0xff]
        %v12021 = vld [vmem:[%s12011 + $0x48] sm:$0xff]
        %v12022 = vld [vmem:[%s12011 + $0x50] sm:$0xff]
        %v12023 = vld [vmem:[%s12011 + $0x58] sm:$0x7]
        %v12024 = vld [vmem:[%s12011 + $0x60] sm:$0xff]
        %v12025 = vld [vmem:[%s12011 + $0x68] sm:$0xff]
        %v12026 = vld [vmem:[%s12011 + $0x70] sm:$0xff]
        %v12027 = vld [vmem:[%s12011 + $0x78] sm:$0x7]
        %v12028 = vld [vmem:[%s12011 + $0x80] sm:$0xff]
        %v12029 = vld [vmem:[%s12011 + $0x88] sm:$0xff]
        %v12030 = vld [vmem:[%s12011 + $0x90] sm:$0xff]
        %v12031 = vld [vmem:[%s12011 + $0x98] sm:$0x7]
        %v12032 = vld [vmem:[%s12011 + $0xa0] sm:$0xff]
        %v12033 = vld [vmem:[%s12011 + $0xa8] sm:$0xff]
        %v12034 = vld [vmem:[%s12011 + $0xb0] sm:$0xff]
        %v12035 = vld [vmem:[%s12011 + $0xb8] sm:$0x7]
        %v12036 = vld [vmem:[%s12011 + $0xc0] sm:$0xff]
        %v12037 = vld [vmem:[%s12011 + $0xc8] sm:$0xff]
        %v12038 = vld [vmem:[%s12011 + $0xd0] sm:$0xff]
        %v12039 = vld [vmem:[%s12011 + $0xd8] sm:$0x7]
        %v12040 = vld [vmem:[%s12011 + $0xe0] sm:$0xff]
        %v12041 = vld [vmem:[%s12011 + $0xe8] sm:$0xff]
        %v12042 = vld [vmem:[%s12011 + $0xf0] sm:$0xff]
        %v12043 = vld [vmem:[%s12011 + $0xf8] sm:$0x7]
        %v12044 = vmul.f32 %v12012, %v5737
        %v12045 = vmul.f32 %v12013, %v5737
        %v12046 = vmul.f32 %v12014, %v5737
        %v12047 = vmul.f32 %v12016, %v5737
        %v12048 = vmul.f32 %v12017, %v5737
        %v12049 = vmul.f32 %v12018, %v5737
        %v12050 = vmul.f32 %v12020, %v5737
        %v12051 = vmul.f32 %v12021, %v5737
        %v12052 = vmul.f32 %v12022, %v5737
        %v12053 = vmul.f32 %v12024, %v5737
        %v12054 = vmul.f32 %v12025, %v5737
        %v12055 = vmul.f32 %v12026, %v5737
        %v12056 = vmul.f32 %v12028, %v5737
        %v12057 = vmul.f32 %v12029, %v5737
        %v12058 = vmul.f32 %v12030, %v5737
        %v12059 = vmul.f32 %v12032, %v5737
        %v12060 = vmul.f32 %v12033, %v5737
        %v12061 = vmul.f32 %v12034, %v5737
        %v12062 = vmul.f32 %v12036, %v5737
        %v12063 = vmul.f32 %v12037, %v5737
        %v12064 = vmul.f32 %v12038, %v5737
        %v12065 = vmul.f32 %v12040, %v5737
        %v12066 = vmul.f32 %v12041, %v5737
        %v12067 = vmul.f32 %v12042, %v5737
        %v12068 = vadd.f32 %v11987, %v12044
        %v12069 = vadd.f32 %v11988, %v12045
        %v12070 = vadd.f32 %v11989, %v12046
        %v12071 = vadd.f32 %v11990, %v12047
        %v12072 = vadd.f32 %v11991, %v12048
        %v12073 = vadd.f32 %v11992, %v12049
        %v12074 = vadd.f32 %v11993, %v12050
        %v12075 = vadd.f32 %v11994, %v12051
        %v12076 = vadd.f32 %v11995, %v12052
        %v12077 = vadd.f32 %v11996, %v12053
        %v12078 = vadd.f32 %v11997, %v12054
        %v12079 = vadd.f32 %v11998, %v12055
        %v12080 = vadd.f32 %v11999, %v12056
        %v12081 = vadd.f32 %v12000, %v12057
        %v12082 = vadd.f32 %v12001, %v12058
        %v12083 = vadd.f32 %v12002, %v12059
        %v12084 = vadd.f32 %v12003, %v12060
        %v12085 = vadd.f32 %v12004, %v12061
        %v12086 = vadd.f32 %v12005, %v12062
        %v12087 = vadd.f32 %v12006, %v12063
        %v12088 = vadd.f32 %v12007, %v12064
        %v12089 = vadd.f32 %v12008, %v12065
        %v12090 = vadd.f32 %v12009, %v12066
        %v12091 = vadd.f32 %v12010, %v12067
        %v12092 = vmul.f32 %v12012, %v5788
        %v12093 = vmul.f32 %v12013, %v5788
        %v12094 = vmul.f32 %v12014, %v5788
        %v12095 = vmul.f32 %v12016, %v5788
        %v12096 = vmul.f32 %v12017, %v5788
        %v12097 = vmul.f32 %v12018, %v5788
        %v12098 = vmul.f32 %v12020, %v5788
        %v12099 = vmul.f32 %v12021, %v5788
        %v12100 = vmul.f32 %v12022, %v5788
        %v12101 = vmul.f32 %v12024, %v5788
        %v12102 = vmul.f32 %v12025, %v5788
        %v12103 = vmul.f32 %v12026, %v5788
        %v12104 = vmul.f32 %v12028, %v5788
        %v12105 = vmul.f32 %v12029, %v5788
        %v12106 = vmul.f32 %v12030, %v5788
        %v12107 = vmul.f32 %v12032, %v5788
        %v12108 = vmul.f32 %v12033, %v5788
        %v12109 = vmul.f32 %v12034, %v5788
        %v12110 = vmul.f32 %v12036, %v5788
        %v12111 = vmul.f32 %v12037, %v5788
        %v12112 = vmul.f32 %v12038, %v5788
        %v12113 = vmul.f32 %v12040, %v5788
        %v12114 = vmul.f32 %v12041, %v5788
        %v12115 = vmul.f32 %v12042, %v5788
        %v12140 = vrot.slane %v12092, 1
        %v12141 = vrot.slane %v12093, 1
        %v12142 = vsel %vm517, %v12140, %v12141
        %v12143 = vrot.slane %v12094, 1
        %v12144 = vsel %vm517, %v12141, %v12143
        %v12145 = vrot.slane %v12095, 1
        %v12146 = vrot.slane %v12096, 1
        %v12147 = vsel %vm517, %v12145, %v12146
        %v12148 = vrot.slane %v12097, 1
        %v12149 = vsel %vm517, %v12146, %v12148
        %v12150 = vrot.slane %v12098, 1
        %v12151 = vrot.slane %v12099, 1
        %v12152 = vsel %vm517, %v12150, %v12151
        %v12153 = vrot.slane %v12100, 1
        %v12154 = vsel %vm517, %v12151, %v12153
        %v12155 = vrot.slane %v12101, 1
        %v12156 = vrot.slane %v12102, 1
        %v12157 = vsel %vm517, %v12155, %v12156
        %v12158 = vrot.slane %v12103, 1
        %v12159 = vsel %vm517, %v12156, %v12158
        %v12160 = vrot.slane %v12104, 1
        %v12161 = vrot.slane %v12105, 1
        %v12162 = vsel %vm517, %v12160, %v12161
        %v12163 = vrot.slane %v12106, 1
        %v12164 = vsel %vm517, %v12161, %v12163
        %v12165 = vrot.slane %v12107, 1
        %v12166 = vrot.slane %v12108, 1
        %v12167 = vsel %vm517, %v12165, %v12166
        %v12168 = vrot.slane %v12109, 1
        %v12169 = vsel %vm517, %v12166, %v12168
        %v12170 = vrot.slane %v12110, 1
        %v12171 = vrot.slane %v12111, 1
        %v12172 = vsel %vm517, %v12170, %v12171
        %v12173 = vrot.slane %v12112, 1
        %v12174 = vsel %vm517, %v12171, %v12173
        %v12175 = vrot.slane %v12113, 1
        %v12176 = vrot.slane %v12114, 1
        %v12177 = vsel %vm517, %v12175, %v12176
        %v12178 = vrot.slane %v12115, 1
        %v12179 = vsel %vm517, %v12176, %v12178
        %v12204 = vadd.f32 %v12068, %v12142
        %v12205 = vadd.f32 %v12069, %v12144
        %v12206 = vadd.f32 %v12070, %v12143
        %v12207 = vadd.f32 %v12071, %v12147
        %v12208 = vadd.f32 %v12072, %v12149
        %v12209 = vadd.f32 %v12073, %v12148
        %v12210 = vadd.f32 %v12074, %v12152
        %v12211 = vadd.f32 %v12075, %v12154
        %v12212 = vadd.f32 %v12076, %v12153
        %v12213 = vadd.f32 %v12077, %v12157
        %v12214 = vadd.f32 %v12078, %v12159
        %v12215 = vadd.f32 %v12079, %v12158
        %v12216 = vadd.f32 %v12080, %v12162
        %v12217 = vadd.f32 %v12081, %v12164
        %v12218 = vadd.f32 %v12082, %v12163
        %v12219 = vadd.f32 %v12083, %v12167
        %v12220 = vadd.f32 %v12084, %v12169
        %v12221 = vadd.f32 %v12085, %v12168
        %v12222 = vadd.f32 %v12086, %v12172
        %v12223 = vadd.f32 %v12087, %v12174
        %v12224 = vadd.f32 %v12088, %v12173
        %v12225 = vadd.f32 %v12089, %v12177
        %v12226 = vadd.f32 %v12090, %v12179
        %v12227 = vadd.f32 %v12091, %v12178
        %v12228 = vmul.f32 %v12012, %v5927
        %v12229 = vmul.f32 %v12013, %v5927
        %v12230 = vmul.f32 %v12014, %v5927
        %v12231 = vmul.f32 %v12016, %v5927
        %v12232 = vmul.f32 %v12017, %v5927
        %v12233 = vmul.f32 %v12018, %v5927
        %v12234 = vmul.f32 %v12020, %v5927
        %v12235 = vmul.f32 %v12021, %v5927
        %v12236 = vmul.f32 %v12022, %v5927
        %v12237 = vmul.f32 %v12024, %v5927
        %v12238 = vmul.f32 %v12025, %v5927
        %v12239 = vmul.f32 %v12026, %v5927
        %v12240 = vmul.f32 %v12028, %v5927
        %v12241 = vmul.f32 %v12029, %v5927
        %v12242 = vmul.f32 %v12030, %v5927
        %v12243 = vmul.f32 %v12032, %v5927
        %v12244 = vmul.f32 %v12033, %v5927
        %v12245 = vmul.f32 %v12034, %v5927
        %v12246 = vmul.f32 %v12036, %v5927
        %v12247 = vmul.f32 %v12037, %v5927
        %v12248 = vmul.f32 %v12038, %v5927
        %v12249 = vmul.f32 %v12040, %v5927
        %v12250 = vmul.f32 %v12041, %v5927
        %v12251 = vmul.f32 %v12042, %v5927
        %v12276 = vrot.slane %v12228, 2
        %v12277 = vrot.slane %v12229, 2
        %v12278 = vsel %vm657, %v12276, %v12277
        %v12279 = vrot.slane %v12230, 2
        %v12280 = vsel %vm657, %v12277, %v12279
        %v12281 = vrot.slane %v12231, 2
        %v12282 = vrot.slane %v12232, 2
        %v12283 = vsel %vm657, %v12281, %v12282
        %v12284 = vrot.slane %v12233, 2
        %v12285 = vsel %vm657, %v12282, %v12284
        %v12286 = vrot.slane %v12234, 2
        %v12287 = vrot.slane %v12235, 2
        %v12288 = vsel %vm657, %v12286, %v12287
        %v12289 = vrot.slane %v12236, 2
        %v12290 = vsel %vm657, %v12287, %v12289
        %v12291 = vrot.slane %v12237, 2
        %v12292 = vrot.slane %v12238, 2
        %v12293 = vsel %vm657, %v12291, %v12292
        %v12294 = vrot.slane %v12239, 2
        %v12295 = vsel %vm657, %v12292, %v12294
        %v12296 = vrot.slane %v12240, 2
        %v12297 = vrot.slane %v12241, 2
        %v12298 = vsel %vm657, %v12296, %v12297
        %v12299 = vrot.slane %v12242, 2
        %v12300 = vsel %vm657, %v12297, %v12299
        %v12301 = vrot.slane %v12243, 2
        %v12302 = vrot.slane %v12244, 2
        %v12303 = vsel %vm657, %v12301, %v12302
        %v12304 = vrot.slane %v12245, 2
        %v12305 = vsel %vm657, %v12302, %v12304
        %v12306 = vrot.slane %v12246, 2
        %v12307 = vrot.slane %v12247, 2
        %v12308 = vsel %vm657, %v12306, %v12307
        %v12309 = vrot.slane %v12248, 2
        %v12310 = vsel %vm657, %v12307, %v12309
        %v12311 = vrot.slane %v12249, 2
        %v12312 = vrot.slane %v12250, 2
        %v12313 = vsel %vm657, %v12311, %v12312
        %v12314 = vrot.slane %v12251, 2
        %v12315 = vsel %vm657, %v12312, %v12314
        %v12340 = vadd.f32 %v12204, %v12278
        %v12341 = vadd.f32 %v12205, %v12280
        %v12342 = vadd.f32 %v12206, %v12279
        %v12343 = vadd.f32 %v12207, %v12283
        %v12344 = vadd.f32 %v12208, %v12285
        %v12345 = vadd.f32 %v12209, %v12284
        %v12346 = vadd.f32 %v12210, %v12288
        %v12347 = vadd.f32 %v12211, %v12290
        %v12348 = vadd.f32 %v12212, %v12289
        %v12349 = vadd.f32 %v12213, %v12293
        %v12350 = vadd.f32 %v12214, %v12295
        %v12351 = vadd.f32 %v12215, %v12294
        %v12352 = vadd.f32 %v12216, %v12298
        %v12353 = vadd.f32 %v12217, %v12300
        %v12354 = vadd.f32 %v12218, %v12299
        %v12355 = vadd.f32 %v12219, %v12303
        %v12356 = vadd.f32 %v12220, %v12305
        %v12357 = vadd.f32 %v12221, %v12304
        %v12358 = vadd.f32 %v12222, %v12308
        %v12359 = vadd.f32 %v12223, %v12310
        %v12360 = vadd.f32 %v12224, %v12309
        %v12361 = vadd.f32 %v12225, %v12313
        %v12362 = vadd.f32 %v12226, %v12315
        %v12363 = vadd.f32 %v12227, %v12314
        %v12364 = vmul.f32 %v12013, %v6066
        %v12365 = vmul.f32 %v12014, %v6066
        %v12366 = vmul.f32 %v12017, %v6066
        %v12367 = vmul.f32 %v12018, %v6066
        %v12368 = vmul.f32 %v12021, %v6066
        %v12369 = vmul.f32 %v12022, %v6066
        %v12370 = vmul.f32 %v12025, %v6066
        %v12371 = vmul.f32 %v12026, %v6066
        %v12372 = vmul.f32 %v12029, %v6066
        %v12373 = vmul.f32 %v12030, %v6066
        %v12374 = vmul.f32 %v12033, %v6066
        %v12375 = vmul.f32 %v12034, %v6066
        %v12376 = vmul.f32 %v12037, %v6066
        %v12377 = vmul.f32 %v12038, %v6066
        %v12378 = vmul.f32 %v12041, %v6066
        %v12379 = vmul.f32 %v12042, %v6066
        %v12396 = vrot.slane %v12364, 3
        %v12397 = vrot.slane %v12365, 3
        %v12398 = vsel %vm781, %v12396, %v12397
        %v12399 = vrot.slane %v12366, 3
        %v12400 = vrot.slane %v12367, 3
        %v12401 = vsel %vm781, %v12399, %v12400
        %v12402 = vrot.slane %v12368, 3
        %v12403 = vrot.slane %v12369, 3
        %v12404 = vsel %vm781, %v12402, %v12403
        %v12405 = vrot.slane %v12370, 3
        %v12406 = vrot.slane %v12371, 3
        %v12407 = vsel %vm781, %v12405, %v12406
        %v12408 = vrot.slane %v12372, 3
        %v12409 = vrot.slane %v12373, 3
        %v12410 = vsel %vm781, %v12408, %v12409
        %v12411 = vrot.slane %v12374, 3
        %v12412 = vrot.slane %v12375, 3
        %v12413 = vsel %vm781, %v12411, %v12412
        %v12414 = vrot.slane %v12376, 3
        %v12415 = vrot.slane %v12377, 3
        %v12416 = vsel %vm781, %v12414, %v12415
        %v12417 = vrot.slane %v12378, 3
        %v12418 = vrot.slane %v12379, 3
        %v12419 = vsel %vm781, %v12417, %v12418
        %v12444 = vadd.f32 %v12340, %v12396
        %v12445 = vadd.f32 %v12341, %v12398
        %v12446 = vadd.f32 %v12342, %v12397
        %v12447 = vadd.f32 %v12343, %v12399
        %v12448 = vadd.f32 %v12344, %v12401
        %v12449 = vadd.f32 %v12345, %v12400
        %v12450 = vadd.f32 %v12346, %v12402
        %v12451 = vadd.f32 %v12347, %v12404
        %v12452 = vadd.f32 %v12348, %v12403
        %v12453 = vadd.f32 %v12349, %v12405
        %v12454 = vadd.f32 %v12350, %v12407
        %v12455 = vadd.f32 %v12351, %v12406
        %v12456 = vadd.f32 %v12352, %v12408
        %v12457 = vadd.f32 %v12353, %v12410
        %v12458 = vadd.f32 %v12354, %v12409
        %v12459 = vadd.f32 %v12355, %v12411
        %v12460 = vadd.f32 %v12356, %v12413
        %v12461 = vadd.f32 %v12357, %v12412
        %v12462 = vadd.f32 %v12358, %v12414
        %v12463 = vadd.f32 %v12359, %v12416
        %v12464 = vadd.f32 %v12360, %v12415
        %v12465 = vadd.f32 %v12361, %v12417
        %v12466 = vadd.f32 %v12362, %v12419
        %v12467 = vadd.f32 %v12363, %v12418
        %v12468 = vmul.f32 %v12013, %v6173
        %v12469 = vmul.f32 %v12014, %v6173
        %v12470 = vmul.f32 %v12015, %v6173
        %v12471 = vmul.f32 %v12017, %v6173
        %v12472 = vmul.f32 %v12018, %v6173
        %v12473 = vmul.f32 %v12019, %v6173
        %v12474 = vmul.f32 %v12021, %v6173
        %v12475 = vmul.f32 %v12022, %v6173
        %v12476 = vmul.f32 %v12023, %v6173
        %v12477 = vmul.f32 %v12025, %v6173
        %v12478 = vmul.f32 %v12026, %v6173
        %v12479 = vmul.f32 %v12027, %v6173
        %v12480 = vmul.f32 %v12029, %v6173
        %v12481 = vmul.f32 %v12030, %v6173
        %v12482 = vmul.f32 %v12031, %v6173
        %v12483 = vmul.f32 %v12033, %v6173
        %v12484 = vmul.f32 %v12034, %v6173
        %v12485 = vmul.f32 %v12035, %v6173
        %v12486 = vmul.f32 %v12037, %v6173
        %v12487 = vmul.f32 %v12038, %v6173
        %v12488 = vmul.f32 %v12039, %v6173
        %v12489 = vmul.f32 %v12041, %v6173
        %v12490 = vmul.f32 %v12042, %v6173
        %v12491 = vmul.f32 %v12043, %v6173
        %v12516 = vrot.slane %v12468, 4
        %v12517 = vrot.slane %v12469, 4
        %v12518 = vsel %vm905, %v12516, %v12517
        %v12519 = vrot.slane %v12470, 4
        %v12520 = vsel %vm905, %v12517, %v12519
        %v12521 = vrot.slane %v12471, 4
        %v12522 = vrot.slane %v12472, 4
        %v12523 = vsel %vm905, %v12521, %v12522
        %v12524 = vrot.slane %v12473, 4
        %v12525 = vsel %vm905, %v12522, %v12524
        %v12526 = vrot.slane %v12474, 4
        %v12527 = vrot.slane %v12475, 4
        %v12528 = vsel %vm905, %v12526, %v12527
        %v12529 = vrot.slane %v12476, 4
        %v12530 = vsel %vm905, %v12527, %v12529
        %v12531 = vrot.slane %v12477, 4
        %v12532 = vrot.slane %v12478, 4
        %v12533 = vsel %vm905, %v12531, %v12532
        %v12534 = vrot.slane %v12479, 4
        %v12535 = vsel %vm905, %v12532, %v12534
        %v12536 = vrot.slane %v12480, 4
        %v12537 = vrot.slane %v12481, 4
        %v12538 = vsel %vm905, %v12536, %v12537
        %v12539 = vrot.slane %v12482, 4
        %v12540 = vsel %vm905, %v12537, %v12539
        %v12541 = vrot.slane %v12483, 4
        %v12542 = vrot.slane %v12484, 4
        %v12543 = vsel %vm905, %v12541, %v12542
        %v12544 = vrot.slane %v12485, 4
        %v12545 = vsel %vm905, %v12542, %v12544
        %v12546 = vrot.slane %v12486, 4
        %v12547 = vrot.slane %v12487, 4
        %v12548 = vsel %vm905, %v12546, %v12547
        %v12549 = vrot.slane %v12488, 4
        %v12550 = vsel %vm905, %v12547, %v12549
        %v12551 = vrot.slane %v12489, 4
        %v12552 = vrot.slane %v12490, 4
        %v12553 = vsel %vm905, %v12551, %v12552
        %v12554 = vrot.slane %v12491, 4
        %v12555 = vsel %vm905, %v12552, %v12554
        %v12580 = vadd.f32 %v12444, %v12516
        %v12581 = vadd.f32 %v12445, %v12518
        %v12582 = vadd.f32 %v12446, %v12520
        %v12583 = vadd.f32 %v12447, %v12521
        %v12584 = vadd.f32 %v12448, %v12523
        %v12585 = vadd.f32 %v12449, %v12525
        %v12586 = vadd.f32 %v12450, %v12526
        %v12587 = vadd.f32 %v12451, %v12528
        %v12588 = vadd.f32 %v12452, %v12530
        %v12589 = vadd.f32 %v12453, %v12531
        %v12590 = vadd.f32 %v12454, %v12533
        %v12591 = vadd.f32 %v12455, %v12535
        %v12592 = vadd.f32 %v12456, %v12536
        %v12593 = vadd.f32 %v12457, %v12538
        %v12594 = vadd.f32 %v12458, %v12540
        %v12595 = vadd.f32 %v12459, %v12541
        %v12596 = vadd.f32 %v12460, %v12543
        %v12597 = vadd.f32 %v12461, %v12545
        %v12598 = vadd.f32 %v12462, %v12546
        %v12599 = vadd.f32 %v12463, %v12548
        %v12600 = vadd.f32 %v12464, %v12550
        %v12601 = vadd.f32 %v12465, %v12551
        %v12602 = vadd.f32 %v12466, %v12553
        %v12603 = vadd.f32 %v12467, %v12555
        %v12604 = vmul.f32 %v12013, %v6312
        %v12605 = vmul.f32 %v12014, %v6312
        %v12606 = vmul.f32 %v12015, %v6312
        %v12607 = vmul.f32 %v12017, %v6312
        %v12608 = vmul.f32 %v12018, %v6312
        %v12609 = vmul.f32 %v12019, %v6312
        %v12610 = vmul.f32 %v12021, %v6312
        %v12611 = vmul.f32 %v12022, %v6312
        %v12612 = vmul.f32 %v12023, %v6312
        %v12613 = vmul.f32 %v12025, %v6312
        %v12614 = vmul.f32 %v12026, %v6312
        %v12615 = vmul.f32 %v12027, %v6312
        %v12616 = vmul.f32 %v12029, %v6312
        %v12617 = vmul.f32 %v12030, %v6312
        %v12618 = vmul.f32 %v12031, %v6312
        %v12619 = vmul.f32 %v12033, %v6312
        %v12620 = vmul.f32 %v12034, %v6312
        %v12621 = vmul.f32 %v12035, %v6312
        %v12622 = vmul.f32 %v12037, %v6312
        %v12623 = vmul.f32 %v12038, %v6312
        %v12624 = vmul.f32 %v12039, %v6312
        %v12625 = vmul.f32 %v12041, %v6312
        %v12626 = vmul.f32 %v12042, %v6312
        %v12627 = vmul.f32 %v12043, %v6312
        %v12652 = vrot.slane %v12604, 5
        %v12653 = vrot.slane %v12605, 5
        %v12654 = vsel %vm1045, %v12652, %v12653
        %v12655 = vrot.slane %v12606, 5
        %v12656 = vsel %vm1045, %v12653, %v12655
        %v12657 = vrot.slane %v12607, 5
        %v12658 = vrot.slane %v12608, 5
        %v12659 = vsel %vm1045, %v12657, %v12658
        %v12660 = vrot.slane %v12609, 5
        %v12661 = vsel %vm1045, %v12658, %v12660
        %v12662 = vrot.slane %v12610, 5
        %v12663 = vrot.slane %v12611, 5
        %v12664 = vsel %vm1045, %v12662, %v12663
        %v12665 = vrot.slane %v12612, 5
        %v12666 = vsel %vm1045, %v12663, %v12665
        %v12667 = vrot.slane %v12613, 5
        %v12668 = vrot.slane %v12614, 5
        %v12669 = vsel %vm1045, %v12667, %v12668
        %v12670 = vrot.slane %v12615, 5
        %v12671 = vsel %vm1045, %v12668, %v12670
        %v12672 = vrot.slane %v12616, 5
        %v12673 = vrot.slane %v12617, 5
        %v12674 = vsel %vm1045, %v12672, %v12673
        %v12675 = vrot.slane %v12618, 5
        %v12676 = vsel %vm1045, %v12673, %v12675
        %v12677 = vrot.slane %v12619, 5
        %v12678 = vrot.slane %v12620, 5
        %v12679 = vsel %vm1045, %v12677, %v12678
        %v12680 = vrot.slane %v12621, 5
        %v12681 = vsel %vm1045, %v12678, %v12680
        %v12682 = vrot.slane %v12622, 5
        %v12683 = vrot.slane %v12623, 5
        %v12684 = vsel %vm1045, %v12682, %v12683
        %v12685 = vrot.slane %v12624, 5
        %v12686 = vsel %vm1045, %v12683, %v12685
        %v12687 = vrot.slane %v12625, 5
        %v12688 = vrot.slane %v12626, 5
        %v12689 = vsel %vm1045, %v12687, %v12688
        %v12690 = vrot.slane %v12627, 5
        %v12691 = vsel %vm1045, %v12688, %v12690
        %v12716 = vadd.f32 %v12580, %v12652
        %v12717 = vadd.f32 %v12581, %v12654
        %v12718 = vadd.f32 %v12582, %v12656
        %v12719 = vadd.f32 %v12583, %v12657
        %v12720 = vadd.f32 %v12584, %v12659
        %v12721 = vadd.f32 %v12585, %v12661
        %v12722 = vadd.f32 %v12586, %v12662
        %v12723 = vadd.f32 %v12587, %v12664
        %v12724 = vadd.f32 %v12588, %v12666
        %v12725 = vadd.f32 %v12589, %v12667
        %v12726 = vadd.f32 %v12590, %v12669
        %v12727 = vadd.f32 %v12591, %v12671
        %v12728 = vadd.f32 %v12592, %v12672
        %v12729 = vadd.f32 %v12593, %v12674
        %v12730 = vadd.f32 %v12594, %v12676
        %v12731 = vadd.f32 %v12595, %v12677
        %v12732 = vadd.f32 %v12596, %v12679
        %v12733 = vadd.f32 %v12597, %v12681
        %v12734 = vadd.f32 %v12598, %v12682
        %v12735 = vadd.f32 %v12599, %v12684
        %v12736 = vadd.f32 %v12600, %v12686
        %v12737 = vadd.f32 %v12601, %v12687
        %v12738 = vadd.f32 %v12602, %v12689
        %v12739 = vadd.f32 %v12603, %v12691
        %v12740 = vmul.f32 %v12013, %v6451
        %v12741 = vmul.f32 %v12014, %v6451
        %v12742 = vmul.f32 %v12015, %v6451
        %v12743 = vmul.f32 %v12017, %v6451
        %v12744 = vmul.f32 %v12018, %v6451
        %v12745 = vmul.f32 %v12019, %v6451
        %v12746 = vmul.f32 %v12021, %v6451
        %v12747 = vmul.f32 %v12022, %v6451
        %v12748 = vmul.f32 %v12023, %v6451
        %v12749 = vmul.f32 %v12025, %v6451
        %v12750 = vmul.f32 %v12026, %v6451
        %v12751 = vmul.f32 %v12027, %v6451
        %v12752 = vmul.f32 %v12029, %v6451
        %v12753 = vmul.f32 %v12030, %v6451
        %v12754 = vmul.f32 %v12031, %v6451
        %v12755 = vmul.f32 %v12033, %v6451
        %v12756 = vmul.f32 %v12034, %v6451
        %v12757 = vmul.f32 %v12035, %v6451
        %v12758 = vmul.f32 %v12037, %v6451
        %v12759 = vmul.f32 %v12038, %v6451
        %v12760 = vmul.f32 %v12039, %v6451
        %v12761 = vmul.f32 %v12041, %v6451
        %v12762 = vmul.f32 %v12042, %v6451
        %v12763 = vmul.f32 %v12043, %v6451
        %v12788 = vrot.slane %v12740, 6
        %v12789 = vrot.slane %v12741, 6
        %v12790 = vsel %vm1185, %v12788, %v12789
        %v12791 = vrot.slane %v12742, 6
        %v12792 = vsel %vm1185, %v12789, %v12791
        %v12793 = vrot.slane %v12743, 6
        %v12794 = vrot.slane %v12744, 6
        %v12795 = vsel %vm1185, %v12793, %v12794
        %v12796 = vrot.slane %v12745, 6
        %v12797 = vsel %vm1185, %v12794, %v12796
        %v12798 = vrot.slane %v12746, 6
        %v12799 = vrot.slane %v12747, 6
        %v12800 = vsel %vm1185, %v12798, %v12799
        %v12801 = vrot.slane %v12748, 6
        %v12802 = vsel %vm1185, %v12799, %v12801
        %v12803 = vrot.slane %v12749, 6
        %v12804 = vrot.slane %v12750, 6
        %v12805 = vsel %vm1185, %v12803, %v12804
        %v12806 = vrot.slane %v12751, 6
        %v12807 = vsel %vm1185, %v12804, %v12806
        %v12808 = vrot.slane %v12752, 6
        %v12809 = vrot.slane %v12753, 6
        %v12810 = vsel %vm1185, %v12808, %v12809
        %v12811 = vrot.slane %v12754, 6
        %v12812 = vsel %vm1185, %v12809, %v12811
        %v12813 = vrot.slane %v12755, 6
        %v12814 = vrot.slane %v12756, 6
        %v12815 = vsel %vm1185, %v12813, %v12814
        %v12816 = vrot.slane %v12757, 6
        %v12817 = vsel %vm1185, %v12814, %v12816
        %v12818 = vrot.slane %v12758, 6
        %v12819 = vrot.slane %v12759, 6
        %v12820 = vsel %vm1185, %v12818, %v12819
        %v12821 = vrot.slane %v12760, 6
        %v12822 = vsel %vm1185, %v12819, %v12821
        %v12823 = vrot.slane %v12761, 6
        %v12824 = vrot.slane %v12762, 6
        %v12825 = vsel %vm1185, %v12823, %v12824
        %v12826 = vrot.slane %v12763, 6
        %v12827 = vsel %vm1185, %v12824, %v12826
        %v12852 = vadd.f32 %v12716, %v12788
        %v12853 = vadd.f32 %v12717, %v12790
        %v12854 = vadd.f32 %v12718, %v12792
        %v12855 = vadd.f32 %v12719, %v12793
        %v12856 = vadd.f32 %v12720, %v12795
        %v12857 = vadd.f32 %v12721, %v12797
        %v12858 = vadd.f32 %v12722, %v12798
        %v12859 = vadd.f32 %v12723, %v12800
        %v12860 = vadd.f32 %v12724, %v12802
        %v12861 = vadd.f32 %v12725, %v12803
        %v12862 = vadd.f32 %v12726, %v12805
        %v12863 = vadd.f32 %v12727, %v12807
        %v12864 = vadd.f32 %v12728, %v12808
        %v12865 = vadd.f32 %v12729, %v12810
        %v12866 = vadd.f32 %v12730, %v12812
        %v12867 = vadd.f32 %v12731, %v12813
        %v12868 = vadd.f32 %v12732, %v12815
        %v12869 = vadd.f32 %v12733, %v12817
        %v12870 = vadd.f32 %v12734, %v12818
        %v12871 = vadd.f32 %v12735, %v12820
        %v12872 = vadd.f32 %v12736, %v12822
        %v12873 = vadd.f32 %v12737, %v12823
        %v12874 = vadd.f32 %v12738, %v12825
        %v12875 = vadd.f32 %v12739, %v12827
        %v12876 = vsub.f32 0.0, %v12852
        %v12877 = vsub.f32 0.0, %v12853
        %v12878 = vsub.f32 0.0, %v12854
        %v12879 = vsub.f32 0.0, %v12855
        %v12880 = vsub.f32 0.0, %v12856
        %v12881 = vsub.f32 0.0, %v12857
        %v12882 = vsub.f32 0.0, %v12858
        %v12883 = vsub.f32 0.0, %v12859
        %v12884 = vsub.f32 0.0, %v12860
        %v12885 = vsub.f32 0.0, %v12861
        %v12886 = vsub.f32 0.0, %v12862
        %v12887 = vsub.f32 0.0, %v12863
        %v12888 = vsub.f32 0.0, %v12864
        %v12889 = vsub.f32 0.0, %v12865
        %v12890 = vsub.f32 0.0, %v12866
        %v12891 = vsub.f32 0.0, %v12867
        %v12892 = vsub.f32 0.0, %v12868
        %v12893 = vsub.f32 0.0, %v12869
        %v12894 = vsub.f32 0.0, %v12870
        %v12895 = vsub.f32 0.0, %v12871
        %v12896 = vsub.f32 0.0, %v12872
        %v12897 = vsub.f32 0.0, %v12873
        %v12898 = vsub.f32 0.0, %v12874
        %v12899 = vsub.f32 0.0, %v12875
        %v12900 = vmul.f32 %v12876, 1.442695
        %v12901 = vpow.pop %v12900
        %v12902 = vmul.f32 %v12877, 1.442695
        %v12903 = vpow.pop %v12902
        %v12904 = vmul.f32 %v12878, 1.442695
        %v12905 = vpow.pop %v12904
        %v12906 = vmul.f32 %v12879, 1.442695
        %v12907 = vpow.pop %v12906
        %v12908 = vmul.f32 %v12880, 1.442695
        %v12909 = vpow.pop %v12908
        %v12910 = vmul.f32 %v12881, 1.442695
        %v12911 = vpow.pop %v12910
        %v12912 = vmul.f32 %v12882, 1.442695
        %v12913 = vpow.pop %v12912
        %v12914 = vmul.f32 %v12883, 1.442695
        %v12915 = vpow.pop %v12914
        %v12916 = vmul.f32 %v12884, 1.442695
        %v12917 = vpow.pop %v12916
        %v12918 = vmul.f32 %v12885, 1.442695
        %v12919 = vpow.pop %v12918
        %v12920 = vmul.f32 %v12886, 1.442695
        %v12921 = vpow.pop %v12920
        %v12922 = vmul.f32 %v12887, 1.442695
        %v12923 = vpow.pop %v12922
        %v12924 = vmul.f32 %v12888, 1.442695
        %v12925 = vpow.pop %v12924
        %v12926 = vmul.f32 %v12889, 1.442695
        %v12927 = vpow.pop %v12926
        %v12928 = vmul.f32 %v12890, 1.442695
        %v12929 = vpow.pop %v12928
        %v12930 = vmul.f32 %v12891, 1.442695
        %v12931 = vpow.pop %v12930
        %v12932 = vmul.f32 %v12892, 1.442695
        %v12933 = vpow.pop %v12932
        %v12934 = vmul.f32 %v12893, 1.442695
        %v12935 = vpow.pop %v12934
        %v12936 = vmul.f32 %v12894, 1.442695
        %v12937 = vpow.pop %v12936
        %v12938 = vmul.f32 %v12895, 1.442695
        %v12939 = vpow.pop %v12938
        %v12940 = vmul.f32 %v12896, 1.442695
        %v12941 = vpow.pop %v12940
        %v12942 = vmul.f32 %v12897, 1.442695
        %v12943 = vpow.pop %v12942
        %v12944 = vmul.f32 %v12898, 1.442695
        %v12945 = vpow.pop %v12944
        %v12946 = vmul.f32 %v12899, 1.442695
        %v12947 = vpow.pop %v12946
        %v12948 = vadd.f32 %v12901, 1.0
        %v12949 = vadd.f32 %v12903, 1.0
        %v12950 = vadd.f32 %v12905, 1.0
        %v12951 = vadd.f32 %v12907, 1.0
        %v12952 = vadd.f32 %v12909, 1.0
        %v12953 = vadd.f32 %v12911, 1.0
        %v12954 = vadd.f32 %v12913, 1.0
        %v12955 = vadd.f32 %v12915, 1.0
        %v12956 = vadd.f32 %v12917, 1.0
        %v12957 = vadd.f32 %v12919, 1.0
        %v12958 = vadd.f32 %v12921, 1.0
        %v12959 = vadd.f32 %v12923, 1.0
        %v12960 = vadd.f32 %v12925, 1.0
        %v12961 = vadd.f32 %v12927, 1.0
        %v12962 = vadd.f32 %v12929, 1.0
        %v12963 = vadd.f32 %v12931, 1.0
        %v12964 = vadd.f32 %v12933, 1.0
        %v12965 = vadd.f32 %v12935, 1.0
        %v12966 = vadd.f32 %v12937, 1.0
        %v12967 = vadd.f32 %v12939, 1.0
        %v12968 = vadd.f32 %v12941, 1.0
        %v12969 = vadd.f32 %v12943, 1.0
        %v12970 = vadd.f32 %v12945, 1.0
        %v12971 = vadd.f32 %v12947, 1.0
        %v12972 = vrcp.pop %v12948
        %v12973 = vrcp.pop %v12949
        %v12974 = vrcp.pop %v12950
        %v12975 = vrcp.pop %v12951
        %v12976 = vrcp.pop %v12952
        %v12977 = vrcp.pop %v12953
        %v12978 = vrcp.pop %v12954
        %v12979 = vrcp.pop %v12955
        %v12980 = vrcp.pop %v12956
        %v12981 = vrcp.pop %v12957
        %v12982 = vrcp.pop %v12958
        %v12983 = vrcp.pop %v12959
        %v12984 = vrcp.pop %v12960
        %v12985 = vrcp.pop %v12961
        %v12986 = vrcp.pop %v12962
        %v12987 = vrcp.pop %v12963
        %v12988 = vrcp.pop %v12964
        %v12989 = vrcp.pop %v12965
        %v12990 = vrcp.pop %v12966
        %v12991 = vrcp.pop %v12967
        %v12992 = vrcp.pop %v12968
        %v12993 = vrcp.pop %v12969
        %v12994 = vrcp.pop %v12970
        %v12995 = vrcp.pop %v12971
        %v13020 = vrot.slane %v12972, 5
        %v13021 = vrot.slane %v12973, 5
        %v13022 = vsel %vm1045, %v13020, %v13021
        %v13023 = vrot.slane %v12974, 5
        %v13024 = vsel %vm1045, %v13021, %v13023
        %v13025 = vrot.slane %v12975, 5
        %v13026 = vrot.slane %v12976, 5
        %v13027 = vsel %vm1045, %v13025, %v13026
        %v13028 = vrot.slane %v12977, 5
        %v13029 = vsel %vm1045, %v13026, %v13028
        %v13030 = vrot.slane %v12978, 5
        %v13031 = vrot.slane %v12979, 5
        %v13032 = vsel %vm1045, %v13030, %v13031
        %v13033 = vrot.slane %v12980, 5
        %v13034 = vsel %vm1045, %v13031, %v13033
        %v13035 = vrot.slane %v12981, 5
        %v13036 = vrot.slane %v12982, 5
        %v13037 = vsel %vm1045, %v13035, %v13036
        %v13038 = vrot.slane %v12983, 5
        %v13039 = vsel %vm1045, %v13036, %v13038
        %v13040 = vrot.slane %v12984, 5
        %v13041 = vrot.slane %v12985, 5
        %v13042 = vsel %vm1045, %v13040, %v13041
        %v13043 = vrot.slane %v12986, 5
        %v13044 = vsel %vm1045, %v13041, %v13043
        %v13045 = vrot.slane %v12987, 5
        %v13046 = vrot.slane %v12988, 5
        %v13047 = vsel %vm1045, %v13045, %v13046
        %v13048 = vrot.slane %v12989, 5
        %v13049 = vsel %vm1045, %v13046, %v13048
        %v13050 = vrot.slane %v12990, 5
        %v13051 = vrot.slane %v12991, 5
        %v13052 = vsel %vm1045, %v13050, %v13051
        %v13053 = vrot.slane %v12992, 5
        %v13054 = vsel %vm1045, %v13051, %v13053
        %v13055 = vrot.slane %v12993, 5
        %v13056 = vrot.slane %v12994, 5
        %v13057 = vsel %vm1045, %v13055, %v13056
        %v13058 = vrot.slane %v12995, 5
        %v13059 = vsel %vm1045, %v13056, %v13058
        %v13076 = vmul.f32 %v9418, %v13022
        %v13077 = vmul.f32 %v9419, %v13024
        %v13078 = vmul.f32 %v9422, %v13027
        %v13079 = vmul.f32 %v9423, %v13029
        %v13080 = vmul.f32 %v9426, %v13032
        %v13081 = vmul.f32 %v9427, %v13034
        %v13082 = vmul.f32 %v9430, %v13037
        %v13083 = vmul.f32 %v9431, %v13039
        %v13084 = vmul.f32 %v9434, %v13042
        %v13085 = vmul.f32 %v9435, %v13044
        %v13086 = vmul.f32 %v9438, %v13047
        %v13087 = vmul.f32 %v9439, %v13049
        %v13088 = vmul.f32 %v9442, %v13052
        %v13089 = vmul.f32 %v9443, %v13054
        %v13090 = vmul.f32 %v9446, %v13057
        %v13091 = vmul.f32 %v9447, %v13059
        %s13092 = scalar_lea.vmem %s207, 128 [#allocation8]
        %13093 = vst [vmem:[%s13092] sm:$0xff] %v13076
        %13094 = vst [vmem:[%s13092 + $0x8] sm:$0xff] %v13077
        %13095 = vst [vmem:[%s13092 + $0x10] sm:$0xff] %v13078
        %13096 = vst [vmem:[%s13092 + $0x18] sm:$0xff] %v13079
        %13097 = vst [vmem:[%s13092 + $0x20] sm:$0xff] %v13080
        %13098 = vst [vmem:[%s13092 + $0x28] sm:$0xff] %v13081
        %13099 = vst [vmem:[%s13092 + $0x30] sm:$0xff] %v13082
        %13100 = vst [vmem:[%s13092 + $0x38] sm:$0xff] %v13083
        %13101 = vst [vmem:[%s13092 + $0x40] sm:$0xff] %v13084
        %13102 = vst [vmem:[%s13092 + $0x48] sm:$0xff] %v13085
        %13103 = vst [vmem:[%s13092 + $0x50] sm:$0xff] %v13086
        %13104 = vst [vmem:[%s13092 + $0x58] sm:$0xff] %v13087
        %13105 = vst [vmem:[%s13092 + $0x60] sm:$0xff] %v13088
        %13106 = vst [vmem:[%s13092 + $0x68] sm:$0xff] %v13089
        %13107 = vst [vmem:[%s13092 + $0x70] sm:$0xff] %v13090
        %13108 = vst [vmem:[%s13092 + $0x78] sm:$0xff] %v13091
        %s13109 = sand.u32 %s97, 1
        %s13110 = scalar_lea.sflag [#allocation5], %s13109
        %s13111 = sand.u32 %s97, 1
        %s13112 = smul.addr %s13111, 256
        %s13113 = scalar_lea.vmem [#allocation8], %s13112
        // Predicated region
        $region41: #{tpu_custom_call.1} parent=31 // pred_check
          %p13114 = pneg %p107
        $region42: #{tpu_custom_call.1} parent=31 // pred_check_branch
          %13116 = sbr.rel (%p13114) target = $region44
        $region43: #{tpu_custom_call.1} parent=31 // pred_region
          %13118 = vsyncadd %s13110, 0
          %s13119 = smul.addr %s21, 32
          %s13120 = smul.addr %s13119, 8
          %s13121 = scalar_lea.hbm %s3, %s13120
          %s13122 = sshll.u32 %s13113, 4
          %s13123 = int_to_ptr.vmem [resolvable:$true] %s13122
          %s13124 = sshll.u32 %s13121, 4
          %s13125 = int_to_ptr.hbm [resolvable:$true] %s13124
          %13130 = dma.vmem_to_hbm [thread:$0]  %s13123, 4096, %s13125, %s13110, 128, 128, 8
        $region44: #{tpu_custom_call.1} parent=31 // pred_fallthru
          _
      $region32: #{tpu_custom_call.1} parent=5 // pred_fallthru
        _
      %p13131 = scmp.le.s32.totalorder 2, %s16
      // Predicated region
      $region45: #{tpu_custom_call.1} parent=5 // pred_check
        %p13132 = pneg %p13131
      $region46: #{tpu_custom_call.1} parent=5 // pred_check_branch
        %13134 = sbr.rel (%p13132) target = $region48
      $region47: #{tpu_custom_call.1} parent=5 // pred_region
        %s13135 = ssub.s32 %s16, 2
        // Predicated region
        $region49: #{tpu_custom_call.1} parent=47 // pred_check
          %p13136 = pneg %p113
        $region50: #{tpu_custom_call.1} parent=47 // pred_check_branch
          %13138 = sbr.rel (%p13136) target = $region52
        $region51: #{tpu_custom_call.1} parent=47 // pred_region
          %s13139 = sand.u32 %s98, 1
          %s13140 = scalar_lea.sflag [#allocation5], %s13139
          %s13141 = sand.u32 %s98, 1
          %s13142 = smul.addr %s13141, 256
          %s13143 = scalar_lea.vmem [#allocation8], %s13142
          %13145 = dma.done %s13140, 4096
        $region52: #{tpu_custom_call.1} parent=47 // pred_fallthru
          _
      $region48: #{tpu_custom_call.1} parent=5 // pred_fallthru
        _
    $region6: #{tpu_custom_call.1} parent=1 // loop_footer
      %s20 = sadd.s32 1, %s16
    $region7: #{tpu_custom_call.1} parent=1 // loop_footer_branch
      %15 = sbr.rel target = $region3
    $region8: #{tpu_custom_call.1} parent=1 // loop_exit
      _
    %13146 = vsyncpa [#allocation4], 1
    %s13147 = scalar_lea.sflag [#allocation4], 1
    %13148 = vsyncpa %s13147, 1
    %13149 = vsyncpa [#allocation7], 1
    %13150 = vsyncpa [#allocation5], 1
    %s13151 = scalar_lea.sflag [#allocation5], 1
    %13152 = vsyncpa %s13151, 1

</llo_original>
